<compile_context>
chip_gen: v7x
topology: tpu7x:2x2x1
jax: 0.10.0
libtpu: 0.0.40
codegen_flags: <defaults>
</compile_context>

<pallas_src>
import math
import functools

import jax
import jax.numpy as jnp
from jax import lax
from jax.experimental import pallas as pl
from jax.experimental.pallas import tpu as pltpu

VMEM = pltpu.MemorySpace.VMEM
EPS = 1e-5
NEG_INF = -1e9
MXU_DTYPE = jnp.bfloat16


# --------------------------- in-kernel helpers ------------------------------

def _mm(a, w):
    """a @ w with bf16 MXU inputs and f32 accumulation.  w is (in, out)."""
    return jnp.dot(a.astype(MXU_DTYPE), w.astype(MXU_DTYPE),
                   preferred_element_type=jnp.float32)


def _ln(z, g, b):
    """LayerNorm over the last dim (f32 math).  g/b: (1, D)."""
    mean = jnp.mean(z, axis=-1, keepdims=True)
    var = jnp.mean(jnp.square(z - mean), axis=-1, keepdims=True)
    return (z - mean) * lax.rsqrt(var + EPS) * g + b


def _mha(xq, xkv, mask, wqkv_ref, wo_ref, b_ref, num_heads, scale):
    """Multi-head attention over batch-flattened rows.

    xq: (Nq, E), xkv: (Nk, E), mask: (Nq, Nk) additive (block-diag over batch).
    wqkv_ref: (1, 3, E, E)  q/k/v weights, pre-transposed to (in, out).
    wo_ref:   (1, H, dh, E) out-projection weight, pre-packed per head.
    b_ref:    (1, 4, 1, E)  biases (bq, bk, bv, bo).
    """
    Nq, E = xq.shape
    dh = E // num_heads
    q = (_mm(xq, wqkv_ref[0, 0]) + b_ref[0, 0]) * scale       # (Nq, E)
    k = _mm(xkv, wqkv_ref[0, 1]) + b_ref[0, 1]                # (Nk, E)
    v = _mm(xkv, wqkv_ref[0, 2]) + b_ref[0, 2]                # (Nk, E)
    out = jnp.zeros((Nq, E), jnp.float32)
    for h in range(num_heads):                                # static unroll (H small)
        sl = slice(h * dh, (h + 1) * dh)
        s = lax.dot_general(q[:, sl].astype(MXU_DTYPE),
                            k[:, sl].astype(MXU_DTYPE),
                            (((1,), (1,)), ((), ())),
                            preferred_element_type=jnp.float32) + mask
        s = s - jnp.max(s, axis=-1, keepdims=True)
        p = jnp.exp(s)
        p = p * pl.reciprocal(jnp.sum(p, axis=-1, keepdims=True), approx=True)
        ctx = jnp.dot(p.astype(MXU_DTYPE), v[:, sl].astype(MXU_DTYPE),
                      preferred_element_type=jnp.float32)     # (Nq, dh)
        out = out + _mm(ctx, wo_ref[0, h])                    # accumulate out-proj
    return out + b_ref[0, 3]


# ------------------------------ fused kernels -------------------------------

def _embed_pos_kernel(x_ref, pe_ref, w_ref, b_ref, o_ref):
    # x: (N, Din) f32, pe: (N, E) f32, w: (Din, E) bf16, b: (1, E) f32
    y = _mm(x_ref[...], w_ref[...]) + b_ref[...] + pe_ref[...]
    o_ref[...] = y.astype(o_ref.dtype)                        # one full-block store


def _encoder_stack_kernel(x0_ref, mask_ref, wqkv_ref, wo_ref, attn_b_ref,
                          ffn_w_ref, ffn_b_ref, ln_g_ref, ln_b_ref,
                          fin_g_ref, fin_b_ref, o_ref, x_scr,
                          *, num_heads, scale):
    layer = pl.program_id(0)

    @pl.when(layer == 0)
    def _():                                   # load embedded input once
        x_scr[...] = x0_ref[...]

    x = x_scr[...]                                            # (B*L, E) f32
    mask = mask_ref[...]

    sa = _mha(x, x, mask, wqkv_ref, wo_ref, attn_b_ref, num_heads, scale)
    x1 = _ln(x + sa, ln_g_ref[0, 0], ln_b_ref[0, 0])
    h = jnp.maximum(_mm(x1, ffn_w_ref[0, 0]) + ffn_b_ref[0, 0], 0.0)
    ff = _mm(h, ffn_w_ref[0, 1]) + ffn_b_ref[0, 1]
    x2 = _ln(x1 + ff, ln_g_ref[0, 1], ln_b_ref[0, 1])
    x_scr[...] = x2                            # activation stays resident in VMEM

    @pl.when(layer == pl.num_programs(0) - 1)
    def _():                                   # fused final encoder LayerNorm
        o_ref[...] = _ln(x2, fin_g_ref[...], fin_b_ref[...]).astype(o_ref.dtype)


def _decoder_stack_kernel(t0_ref, enc_ref, tmask_ref, smask_ref,
                          sa_wqkv_ref, sa_wo_ref, sa_b_ref,
                          ca_wqkv_ref, ca_wo_ref, ca_b_ref,
                          ffn_w_ref, ffn_b_ref, ln_g_ref, ln_b_ref,
                          fin_g_ref, fin_b_ref, out_w_ref, out_b_ref,
                          o_ref, t_scr, *, num_heads, scale):
    layer = pl.program_id(0)

    @pl.when(layer == 0)
    def _():
        t_scr[...] = t0_ref[...]

    t = t_scr[...]                                            # (B*Lt, E) f32
    enc = enc_ref[...]                                        # (B*Ls, E) f32

    sa = _mha(t, t, tmask_ref[...], sa_wqkv_ref, sa_wo_ref, sa_b_ref,
              num_heads, scale)
    t1 = _ln(t + sa, ln_g_ref[0, 0], ln_b_ref[0, 0])
    # TODO(synk): like the reference module, cross-attention reuses src_mask,
    # which assumes L_tgt == L_src.
    ca = _mha(t1, enc, smask_ref[...], ca_wqkv_ref, ca_wo_ref, ca_b_ref,
              num_heads, scale)
    t2 = _ln(t1 + ca, ln_g_ref[0, 1], ln_b_ref[0, 1])
    h = jnp.maximum(_mm(t2, ffn_w_ref[0, 0]) + ffn_b_ref[0, 0], 0.0)
    ff = _mm(h, ffn_w_ref[0, 1]) + ffn_b_ref[0, 1]
    t3 = _ln(t2 + ff, ln_g_ref[0, 2], ln_b_ref[0, 2])
    t_scr[...] = t3

    @pl.when(layer == pl.num_programs(0) - 1)
    def _():                     # fused final decoder LayerNorm + output Linear
        y = _ln(t3, fin_g_ref[...], fin_b_ref[...])
        o_ref[...] = (_mm(y, out_w_ref[...]) + out_b_ref[...]).astype(o_ref.dtype)


# ----------------------------- pallas_call wrappers -------------------------

def _const_spec(shape):
    return pl.BlockSpec(shape, lambda l: (0,) * len(shape))


def _layer_spec(shape):
    return pl.BlockSpec(shape, lambda l: (l,) + (0,) * (len(shape) - 1))


def embed_pos(x, pe, w, b):
    N = x.shape[0]
    E = w.shape[1]
    return pl.pallas_call(
        _embed_pos_kernel,
        out_shape=jax.ShapeDtypeStruct((N, E), jnp.float32),
        in_specs=[pl.BlockSpec(memory_space=VMEM)] * 4,
        out_specs=pl.BlockSpec(memory_space=VMEM),
    )(x, pe, w, b)


def encoder_stack(ep, x0, mask_big, num_heads):
    BL, E = x0.shape
    NL, H, dh, _ = ep["attn_wo"].shape
    scale = 1.0 / math.sqrt(E // num_heads)
    kern = functools.partial(_encoder_stack_kernel,
                             num_heads=num_heads, scale=scale)
    grid_spec = pltpu.PrefetchScalarGridSpec(
        num_scalar_prefetch=0,
        grid=(NL,),
        in_specs=[
            _const_spec((BL, E)),               # embedded src (used at layer 0)
            _const_spec((BL, BL)),              # block-diag src mask
            _layer_spec((1, 3, E, E)),          # q/k/v weights
            _layer_spec((1, H, dh, E)),         # out-proj weights (per head)
            _layer_spec((1, 4, 1, E)),          # attention biases
            _layer_spec((1, 2, E, E)),          # FFN weights
            _layer_spec((1, 2, 1, E)),          # FFN biases
            _layer_spec((1, 2, 1, E)),          # LN gains
            _layer_spec((1, 2, 1, E)),          # LN biases
            _const_spec((1, E)),                # final encoder norm gain
            _const_spec((1, E)),                # final encoder norm bias
        ],
        out_specs=_const_spec((BL, E)),
        scratch_shapes=[pltpu.VMEM((BL, E), jnp.float32)],
    )
    return pl.pallas_call(
        kern,
        out_shape=jax.ShapeDtypeStruct((BL, E), jnp.float32),
        grid_spec=grid_spec,
        compiler_params=pltpu.CompilerParams(dimension_semantics=("arbitrary",)),
    )(x0, mask_big, ep["attn_wqkv"], ep["attn_wo"], ep["attn_b"],
      ep["ffn_w"], ep["ffn_b"], ep["ln_g"], ep["ln_b"],
      ep["norm_g"], ep["norm_b"])


def decoder_stack(dp, tgt0, enc_out, tgt_mask_big, cross_mask_big,
                  out_w, out_b, num_heads):
    BLt, E = tgt0.shape
    BLs = enc_out.shape[0]
    Dout = out_w.shape[1]
    NL, H, dh, _ = dp["sa_wo"].shape
    scale = 1.0 / math.sqrt(E // num_heads)
    kern = functools.partial(_decoder_stack_kernel,
                             num_heads=num_heads, scale=scale)
    grid_spec = pltpu.PrefetchScalarGridSpec(
        num_scalar_prefetch=0,
        grid=(NL,),
        in_specs=[
            _const_spec((BLt, E)),              # embedded tgt (used at layer 0)
            _const_spec((BLs, E)),              # encoder output (resident)
            _const_spec((BLt, BLt)),            # block-diag tgt mask
            _const_spec((BLt, BLs)),            # block-diag cross mask
            _layer_spec((1, 3, E, E)),          # self-attn q/k/v
            _layer_spec((1, H, dh, E)),         # self-attn out-proj
            _layer_spec((1, 4, 1, E)),          # self-attn biases
            _layer_spec((1, 3, E, E)),          # cross-attn q/k/v
            _layer_spec((1, H, dh, E)),         # cross-attn out-proj
            _layer_spec((1, 4, 1, E)),          # cross-attn biases
            _layer_spec((1, 2, E, E)),          # FFN weights
            _layer_spec((1, 2, 1, E)),          # FFN biases
            _layer_spec((1, 3, 1, E)),          # LN gains
            _layer_spec((1, 3, 1, E)),          # LN biases
            _const_spec((1, E)),                # final decoder norm gain
            _const_spec((1, E)),                # final decoder norm bias
            _const_spec((E, Dout)),             # output linear weight
            _const_spec((1, Dout)),             # output linear bias
        ],
        out_specs=_const_spec((BLt, Dout)),
        scratch_shapes=[pltpu.VMEM((BLt, E), jnp.float32)],
    )
    return pl.pallas_call(
        kern,
        out_shape=jax.ShapeDtypeStruct((BLt, Dout), jnp.float32),
        grid_spec=grid_spec,
        compiler_params=pltpu.CompilerParams(dimension_semantics=("arbitrary",)),
    )(tgt0, enc_out, tgt_mask_big, cross_mask_big,
      dp["sa_wqkv"], dp["sa_wo"], dp["sa_b"],
      dp["ca_wqkv"], dp["ca_wo"], dp["ca_b"],
      dp["ffn_w"], dp["ffn_b"], dp["ln_g"], dp["ln_b"],
      dp["norm_g"], dp["norm_b"], out_w, out_b)


# --------------------------------- model ------------------------------------

def positional_encoding(seq_len, emb_size):
    den = jnp.exp(-jnp.arange(0, emb_size, 2, dtype=jnp.float32)
                  * (math.log(10000.0) / emb_size))
    pos = jnp.arange(seq_len, dtype=jnp.float32).reshape(seq_len, 1)
    pe = jnp.zeros((seq_len, emb_size), jnp.float32)
    pe = pe.at[:, 0::2].set(jnp.sin(pos * den))
    pe = pe.at[:, 1::2].set(jnp.cos(pos * den))
    return pe                                   # (seq, emb)


def _block_diag_mask(mask, batch):
    """(Lq, Lk) additive mask -> (B*Lq, B*Lk), -1e9 across different batches."""
    lq, lk = mask.shape
    on_diag = jnp.kron(jnp.eye(batch, dtype=jnp.float32),
                       jnp.ones((lq, lk), jnp.float32))
    tiled = jnp.tile(mask.astype(jnp.float32), (batch, batch))
    return jnp.where(on_diag > 0, tiled, jnp.float32(NEG_INF))


def transformer_forward(params, src, tgt, src_mask, tgt_mask, num_heads):
    # PyTorch layout is (L, B, *); internally rows are batch-major flattened.
    Ls, B, Din = src.shape
    Lt = tgt.shape[0]
    E = params["emb_b"].shape[-1]
    Dout = params["out_b"].shape[-1]

    src_rows = jnp.transpose(src, (1, 0, 2)).reshape(B * Ls, Din)
    tgt_rows = jnp.transpose(tgt, (1, 0, 2)).reshape(B * Lt, Din)

    pe_src = jnp.tile(positional_encoding(Ls, E), (B, 1))
    pe_tgt = jnp.tile(positional_encoding(Lt, E), (B, 1))

    # one embedding + positional-encoding kernel for src AND tgt (dropout == id)
    x_all = jnp.concatenate([src_rows, tgt_rows], axis=0)
    pe_all = jnp.concatenate([pe_src, pe_tgt], axis=0)
    emb = embed_pos(x_all, pe_all, params["emb_w"], params["emb_b"])
    src_emb, tgt_emb = emb[:B * Ls], emb[B * Ls:]

    src_mask_big = _block_diag_mask(src_mask, B)
    tgt_mask_big = _block_diag_mask(tgt_mask, B)

    enc_out = encoder_stack(params["enc"], src_emb, src_mask_big, num_heads)
    dec_out = decoder_stack(params["dec"], tgt_emb, enc_out,
                            tgt_mask_big, src_mask_big,
                            params["out_w"], params["out_b"], num_heads)
    return jnp.transpose(dec_out.reshape(B, Lt, Dout), (1, 0, 2))  # (L, B, Dout)


# ------------------------------ parameter init ------------------------------

def _uniform(key, shape, bound):
    return jax.random.uniform(key, shape, jnp.float32, -bound, bound)


def _init_linear_t(key, in_dim, out_dim):
    """nn.Linear with the weight pre-transposed to (in, out)."""
    k1, k2 = jax.random.split(key)
    bound = 1.0 / math.sqrt(in_dim)
    return _uniform(k1, (in_dim, out_dim), bound), _uniform(k2, (1, out_dim), bound)


def _init_mha(key, e, num_heads):
    """nn.MultiheadAttention: q/k/v weights (3, E, E) pre-transposed to (in, out),
    out-proj weight pre-packed per head (H, dh, E), biases (4, 1, E)."""
    k1, k2 = jax.random.split(key)
    bound = 1.0 / math.sqrt(e)
    dh = e // num_heads
    w_in = _uniform(k1, (3, e, e), bound)             # (3, out, in) torch layout
    w_out = _uniform(k2, (e, e), bound)               # (out, in)
    wqkv = jnp.transpose(w_in, (0, 2, 1))             # (3, in, out)
    # ctx @ w_out.T == sum_h ctx_h @ wo[h],  wo[h][d, o] = w_out[o, h*dh + d]
    wo = jnp.transpose(w_out.reshape(e, num_heads, dh), (1, 2, 0))   # (H, dh, E)
    b = jnp.zeros((4, 1, e), jnp.float32)             # torch inits attn biases to 0
    return wqkv, wo, b


def init_params(key, input_dim, output_dim, hidden_dim, num_layers, num_heads):
    # The reference DecoderLayer residual `tgt + linear2(...)` requires
    # output_dim == hidden_dim (also lets us stack the FFN weights).
    assert output_dim == hidden_dim
    E = hidden_dim
    k_emb, k_out, k_enc, k_dec = jax.random.split(key, 4)

    emb_w, emb_b = _init_linear_t(k_emb, input_dim, E)
    out_w, out_b = _init_linear_t(k_out, E, output_dim)

    enc_keys = jax.random.split(k_enc, num_layers)
    e_wqkv, e_wo, e_b, e_ffw, e_ffb = [], [], [], [], []
    for kk in enc_keys:
        ka, k1, k2 = jax.random.split(kk, 3)
        wqkv, wo, b = _init_mha(ka, E, num_heads)
        w1, b1 = _init_linear_t(k1, E, E)
        w2, b2 = _init_linear_t(k2, E, E)
        e_wqkv.append(wqkv); e_wo.append(wo); e_b.append(b)
        e_ffw.append(jnp.stack([w1, w2])); e_ffb.append(jnp.stack([b1, b2]))
    enc = {
        "attn_wqkv": jnp.stack(e_wqkv).astype(MXU_DTYPE),   # (NL, 3, E, E)
        "attn_wo": jnp.stack(e_wo).astype(MXU_DTYPE),       # (NL, H, dh, E)
        "attn_b": jnp.stack(e_b),                           # (NL, 4, 1, E)
        "ffn_w": jnp.stack(e_ffw).astype(MXU_DTYPE),        # (NL, 2, E, E)
        "ffn_b": jnp.stack(e_ffb),                          # (NL, 2, 1, E)
        "ln_g": jnp.ones((num_layers, 2, 1, E), jnp.float32),
        "ln_b": jnp.zeros((num_layers, 2, 1, E), jnp.float32),
        "norm_g": jnp.ones((1, E), jnp.float32),
        "norm_b": jnp.zeros((1, E), jnp.float32),
    }

    dec_keys = jax.random.split(k_dec, num_layers)
    d_swqkv, d_swo, d_sb = [], [], []
    d_cwqkv, d_cwo, d_cb = [], [], []
    d_ffw, d_ffb = [], []
    for kk in dec_keys:
        ka, kc, k1, k2 = jax.random.split(kk, 4)
        swqkv, swo, sb = _init_mha(ka, E, num_heads)
        cwqkv, cwo, cb = _init_mha(kc, E, num_heads)
        w1, b1 = _init_linear_t(k1, E, E)
        w2, b2 = _init_linear_t(k2, E, output_dim)
        d_swqkv.append(swqkv); d_swo.append(swo); d_sb.append(sb)
        d_cwqkv.append(cwqkv); d_cwo.append(cwo); d_cb.append(cb)
        d_ffw.append(jnp.stack([w1, w2])); d_ffb.append(jnp.stack([b1, b2]))
    dec = {
        "sa_wqkv": jnp.stack(d_swqkv).astype(MXU_DTYPE),
        "sa_wo": jnp.stack(d_swo).astype(MXU_DTYPE),
        "sa_b": jnp.stack(d_sb),
        "ca_wqkv": jnp.stack(d_cwqkv).astype(MXU_DTYPE),
        "ca_wo": jnp.stack(d_cwo).astype(MXU_DTYPE),
        "ca_b": jnp.stack(d_cb),
        "ffn_w": jnp.stack(d_ffw).astype(MXU_DTYPE),
        "ffn_b": jnp.stack(d_ffb),
        "ln_g": jnp.ones((num_layers, 3, 1, E), jnp.float32),
        "ln_b": jnp.zeros((num_layers, 3, 1, E), jnp.float32),
        "norm_g": jnp.ones((1, E), jnp.float32),
        "norm_b": jnp.zeros((1, E), jnp.float32),
    }

    return {
        "emb_w": emb_w.astype(MXU_DTYPE), "emb_b": emb_b,
        "out_w": out_w.astype(MXU_DTYPE), "out_b": out_b,
        "enc": enc, "dec": dec,
    }


# ----------------------------------- main -----------------------------------

if __name__ == "__main__":
    input_dim = 16
    hidden_dim = 32
    output_dim = 32   # must equal hidden_dim for the reference DecoderLayer residual
    num_layers = 2
    num_heads = 4
    seq_len = 8
    batch = 2

    key = jax.random.PRNGKey(0)
    k_param, k_src, k_tgt = jax.random.split(key, 3)

    params = init_params(k_param, input_dim, output_dim, hidden_dim,
                         num_layers, num_heads)

    src = jax.random.normal(k_src, (seq_len, batch, input_dim), jnp.float32)
    tgt = jax.random.normal(k_tgt, (seq_len, batch, input_dim), jnp.float32)

    # additive float attention masks (PyTorch attn_mask semantics)
    src_mask = jnp.zeros((seq_len, seq_len), jnp.float32)
    tgt_mask = jnp.triu(jnp.ones((seq_len, seq_len), jnp.float32), k=1) * NEG_INF

    fwd = jax.jit(functools.partial(transformer_forward, num_heads=num_heads))
    out = fwd(params, src, tgt, src_mask, tgt_mask)
    jax.block_until_ready(out)

    assert out.shape == (seq_len, batch, output_dim)
    assert bool(jnp.all(jnp.isfinite(out)))
    print("KERNEL_OK")
</pallas_src>

<mosaic_0001>
module attributes {stable_mosaic.version = 11 : i64} {
  func.func @_embed_pos_kernel(%arg0: memref<32x16xf32, #tpu.memory_space<vmem>>, %arg1: memref<32x32xf32, #tpu.memory_space<vmem>>, %arg2: memref<16x32xbf16, #tpu.memory_space<vmem>>, %arg3: memref<1x32xf32, #tpu.memory_space<vmem>>, %arg4: memref<32x32xf32, #tpu.memory_space<vmem>>) attributes {dimension_semantics = [], scalar_prefetch = 0 : i64, scratch_operands = 0 : i64, tpu.core_type = #tpu.core_type<tc>} {
    %c0 = arith.constant 0 : index
    %c0_0 = arith.constant 0 : index
    %0 = vector.load %arg0[%c0, %c0_0] : memref<32x16xf32, #tpu.memory_space<vmem>>, vector<32x16xf32>
    %c0_1 = arith.constant 0 : index
    %c0_2 = arith.constant 0 : index
    %1 = vector.load %arg2[%c0_1, %c0_2] : memref<16x32xbf16, #tpu.memory_space<vmem>>, vector<16x32xbf16>
    %2 = arith.truncf %0 : vector<32x16xf32> to vector<32x16xbf16>
    %cst = arith.constant dense<0.000000e+00> : vector<32x32xf32>
    %3 = tpu.matmul %2, %1, %cst {dimension_numbers = #tpu.dot_dimension_numbers<[1], [0], [0], [1], [0, 0, 1, 1], [], []>} : vector<32x16xbf16>, vector<16x32xbf16>, vector<32x32xf32> -> vector<32x32xf32>
    %c0_3 = arith.constant 0 : index
    %c0_4 = arith.constant 0 : index
    %4 = vector.load %arg3[%c0_3, %c0_4] : memref<1x32xf32, #tpu.memory_space<vmem>>, vector<1x32xf32>
    %5 = vector.broadcast %4 : vector<1x32xf32> to vector<32x32xf32>
    %6 = arith.addf %3, %5 : vector<32x32xf32>
    %c0_5 = arith.constant 0 : index
    %c0_6 = arith.constant 0 : index
    %7 = vector.load %arg1[%c0_5, %c0_6] : memref<32x32xf32, #tpu.memory_space<vmem>>, vector<32x32xf32>
    %8 = arith.addf %6, %7 : vector<32x32xf32>
    %c0_7 = arith.constant 0 : index
    %c0_8 = arith.constant 0 : index
    %9 = vector.load %arg4[%c0_7, %c0_8] : memref<32x32xf32, #tpu.memory_space<vmem>>, vector<32x32xf32>
    tpu.vector_store %arg4[%c0_7, %c0_8], %8 {strides = array<i32>} : memref<32x32xf32, #tpu.memory_space<vmem>>, vector<32x32xf32>,
    return
  }
}

module attributes {stable_mosaic.version = 11 : i64} {
  func.func @_encoder_stack_kernel(%arg0: i32, %arg1: memref<16x32xf32, #tpu.memory_space<vmem>>, %arg2: memref<16x16xf32, #tpu.memory_space<vmem>>, %arg3: memref<1x3x32x32xbf16, #tpu.memory_space<vmem>>, %arg4: memref<1x4x8x32xbf16, #tpu.memory_space<vmem>>, %arg5: memref<1x4x1x32xf32, #tpu.memory_space<vmem>>, %arg6: memref<1x2x32x32xbf16, #tpu.memory_space<vmem>>, %arg7: memref<1x2x1x32xf32, #tpu.memory_space<vmem>>, %arg8: memref<1x2x1x32xf32, #tpu.memory_space<vmem>>, %arg9: memref<1x2x1x32xf32, #tpu.memory_space<vmem>>, %arg10: memref<1x32xf32, #tpu.memory_space<vmem>>, %arg11: memref<1x32xf32, #tpu.memory_space<vmem>>, %arg12: memref<16x32xf32, #tpu.memory_space<vmem>>, %arg13: memref<16x32xf32, #tpu.memory_space<vmem>>) attributes {dimension_semantics = [#tpu.dimension_semantics<arbitrary>], iteration_bounds = array<i64: 2>, scalar_prefetch = 0 : i64, scratch_operands = 1 : i64, tpu.core_type = #tpu.core_type<tc>, window_params = [{pipeline_mode = #tpu.pipeline_mode<synchronous>, transform_indices = @transform_0, window_bounds = array<i64: 16, 32>}, {pipeline_mode = #tpu.pipeline_mode<synchronous>, transform_indices = @transform_1, window_bounds = array<i64: 16, 16>}, {transform_indices = @transform_2, window_bounds = array<i64: 1, 3, 32, 32>}, {transform_indices = @transform_3, window_bounds = array<i64: 1, 4, 8, 32>}, {transform_indices = @transform_4, window_bounds = array<i64: 1, 4, 1, 32>}, {transform_indices = @transform_5, window_bounds = array<i64: 1, 2, 32, 32>}, {transform_indices = @transform_6, window_bounds = array<i64: 1, 2, 1, 32>}, {transform_indices = @transform_7, window_bounds = array<i64: 1, 2, 1, 32>}, {transform_indices = @transform_8, window_bounds = array<i64: 1, 2, 1, 32>}, {pipeline_mode = #tpu.pipeline_mode<synchronous>, transform_indices = @transform_9, window_bounds = array<i64: 1, 32>}, {pipeline_mode = #tpu.pipeline_mode<synchronous>, transform_indices = @transform_10, window_bounds = array<i64: 1, 32>}, {pipeline_mode = #tpu.pipeline_mode<synchronous>, transform_indices = @transform_11, window_bounds = array<i64: 16, 32>}]} {
    %c0_i32 = arith.constant 0 : i32
    %0 = arith.cmpi eq, %arg0, %c0_i32 : i32
    %1 = arith.extui %0 : i1 to i32
    %c0_i32_0 = arith.constant 0 : i32
    %2 = arith.cmpi ne, %1, %c0_i32_0 : i32
    scf.if %2 {
      %c0_117 = arith.constant 0 : index
      %c0_118 = arith.constant 0 : index
      %212 = vector.load %arg1[%c0_117, %c0_118] : memref<16x32xf32, #tpu.memory_space<vmem>>, vector<16x32xf32>
      %c0_119 = arith.constant 0 : index
      %c0_120 = arith.constant 0 : index
      %213 = vector.load %arg13[%c0_119, %c0_120] : memref<16x32xf32, #tpu.memory_space<vmem>>, vector<16x32xf32>
      tpu.vector_store %arg13[%c0_119, %c0_120], %212 {strides = array<i32>} : memref<16x32xf32, #tpu.memory_space<vmem>>, vector<16x32xf32>,
    } else {
    }
    %c0 = arith.constant 0 : index
    %c0_1 = arith.constant 0 : index
    %3 = vector.load %arg13[%c0, %c0_1] : memref<16x32xf32, #tpu.memory_space<vmem>>, vector<16x32xf32>
    %c0_2 = arith.constant 0 : index
    %c0_3 = arith.constant 0 : index
    %4 = vector.load %arg2[%c0_2, %c0_3] : memref<16x16xf32, #tpu.memory_space<vmem>>, vector<16x16xf32>
    %c0_4 = arith.constant 0 : index
    %c0_5 = arith.constant 0 : index
    %c0_6 = arith.constant 0 : index
    %c0_7 = arith.constant 0 : index
    %5 = vector.load %arg3[%c0_4, %c0_5, %c0_6, %c0_7] : memref<1x3x32x32xbf16, #tpu.memory_space<vmem>>, vector<1x1x32x32xbf16>
    %6 = vector.shape_cast %5 : vector<1x1x32x32xbf16> to vector<32x32xbf16>
    %7 = arith.truncf %3 : vector<16x32xf32> to vector<16x32xbf16>
    %cst = arith.constant dense<0.000000e+00> : vector<16x32xf32>
    %8 = tpu.matmul %7, %6, %cst {dimension_numbers = #tpu.dot_dimension_numbers<[1], [0], [0], [1], [0, 0, 1, 1], [], []>} : vector<16x32xbf16>, vector<32x32xbf16>, vector<16x32xf32> -> vector<16x32xf32>
    %c0_8 = arith.constant 0 : index
    %c0_9 = arith.constant 0 : index
    %c0_10 = arith.constant 0 : index
    %c0_11 = arith.constant 0 : index
    %9 = vector.load %arg5[%c0_8, %c0_9, %c0_10, %c0_11] : memref<1x4x1x32xf32, #tpu.memory_space<vmem>>, vector<1x1x1x32xf32>
    %10 = vector.shape_cast %9 : vector<1x1x1x32xf32> to vector<1x32xf32>
    %11 = vector.broadcast %10 : vector<1x32xf32> to vector<16x32xf32>
    %12 = arith.addf %8, %11 : vector<16x32xf32>
    %cst_12 = arith.constant 0.353553385 : f32
    %13 = vector.broadcast %cst_12 : f32 to vector<16x32xf32>
    %14 = arith.mulf %12, %13 : vector<16x32xf32>
    %c0_13 = arith.constant 0 : index
    %c1 = arith.constant 1 : index
    %c0_14 = arith.constant 0 : index
    %c0_15 = arith.constant 0 : index
    %15 = vector.load %arg3[%c0_13, %c1, %c0_14, %c0_15] : memref<1x3x32x32xbf16, #tpu.memory_space<vmem>>, vector<1x1x32x32xbf16>
    %16 = vector.shape_cast %15 : vector<1x1x32x32xbf16> to vector<32x32xbf16>
    %17 = arith.truncf %3 : vector<16x32xf32> to vector<16x32xbf16>
    %cst_16 = arith.constant dense<0.000000e+00> : vector<16x32xf32>
    %18 = tpu.matmul %17, %16, %cst_16 {dimension_numbers = #tpu.dot_dimension_numbers<[1], [0], [0], [1], [0, 0, 1, 1], [], []>} : vector<16x32xbf16>, vector<32x32xbf16>, vector<16x32xf32> -> vector<16x32xf32>
    %c0_17 = arith.constant 0 : index
    %c1_18 = arith.constant 1 : index
    %c0_19 = arith.constant 0 : index
    %c0_20 = arith.constant 0 : index
    %19 = vector.load %arg5[%c0_17, %c1_18, %c0_19, %c0_20] : memref<1x4x1x32xf32, #tpu.memory_space<vmem>>, vector<1x1x1x32xf32>
    %20 = vector.shape_cast %19 : vector<1x1x1x32xf32> to vector<1x32xf32>
    %21 = vector.broadcast %20 : vector<1x32xf32> to vector<16x32xf32>
    %22 = arith.addf %18, %21 : vector<16x32xf32>
    %c0_21 = arith.constant 0 : index
    %c2 = arith.constant 2 : index
    %c0_22 = arith.constant 0 : index
    %c0_23 = arith.constant 0 : index
    %23 = vector.load %arg3[%c0_21, %c2, %c0_22, %c0_23] : memref<1x3x32x32xbf16, #tpu.memory_space<vmem>>, vector<1x1x32x32xbf16>
    %24 = vector.shape_cast %23 : vector<1x1x32x32xbf16> to vector<32x32xbf16>
    %25 = arith.truncf %3 : vector<16x32xf32> to vector<16x32xbf16>
    %cst_24 = arith.constant dense<0.000000e+00> : vector<16x32xf32>
    %26 = tpu.matmul %25, %24, %cst_24 {dimension_numbers = #tpu.dot_dimension_numbers<[1], [0], [0], [1], [0, 0, 1, 1], [], []>} : vector<16x32xbf16>, vector<32x32xbf16>, vector<16x32xf32> -> vector<16x32xf32>
    %c0_25 = arith.constant 0 : index
    %c2_26 = arith.constant 2 : index
    %c0_27 = arith.constant 0 : index
    %c0_28 = arith.constant 0 : index
    %27 = vector.load %arg5[%c0_25, %c2_26, %c0_27, %c0_28] : memref<1x4x1x32xf32, #tpu.memory_space<vmem>>, vector<1x1x1x32xf32>
    %28 = vector.shape_cast %27 : vector<1x1x1x32xf32> to vector<1x32xf32>
    %29 = vector.broadcast %28 : vector<1x32xf32> to vector<16x32xf32>
    %30 = arith.addf %26, %29 : vector<16x32xf32>
    %cst_29 = arith.constant 0.000000e+00 : f32
    %31 = vector.broadcast %cst_29 : f32 to vector<16x32xf32>
    %32 = vector.extract_strided_slice %14 {offsets = [0, 0], sizes = [16, 8], strides = [1, 1]} : vector<16x32xf32> to vector<16x8xf32>
    %33 = arith.truncf %32 : vector<16x8xf32> to vector<16x8xbf16>
    %34 = vector.extract_strided_slice %22 {offsets = [0, 0], sizes = [16, 8], strides = [1, 1]} : vector<16x32xf32> to vector<16x8xf32>
    %35 = arith.truncf %34 : vector<16x8xf32> to vector<16x8xbf16>
    %cst_30 = arith.constant dense<0.000000e+00> : vector<16x16xf32>
    %36 = tpu.matmul %33, %35, %cst_30 {dimension_numbers = #tpu.dot_dimension_numbers<[1], [1], [0], [0], [0, 0, 1, 0], [], []>} : vector<16x8xbf16>, vector<16x8xbf16>, vector<16x16xf32> -> vector<16x16xf32>
    %37 = arith.addf %36, %4 : vector<16x16xf32>
    %cst_31 = arith.constant dense<0xFF800000> : vector<16xf32>
    %38 = vector.multi_reduction <maximumf>, %37, %cst_31 [1] : vector<16x16xf32> to vector<16xf32>
    %39 = vector.shape_cast %38 : vector<16xf32> to vector<16x1xf32>
    %40 = vector.broadcast %39 : vector<16x1xf32> to vector<16x16xf32>
    %41 = arith.subf %37, %40 : vector<16x16xf32>
    %42 = math.exp %41 : vector<16x16xf32>
    %cst_32 = arith.constant dense<0.000000e+00> : vector<16xf32>
    %43 = vector.multi_reduction <add>, %42, %cst_32 [1] : vector<16x16xf32> to vector<16xf32>
    %44 = vector.shape_cast %43 : vector<16xf32> to vector<16x1xf32>
    %45 = tpu.reciprocal %44 {approx = true} : vector<16x1xf32> -> vector<16x1xf32>
    %46 = vector.broadcast %45 : vector<16x1xf32> to vector<16x16xf32>
    %47 = arith.mulf %42, %46 : vector<16x16xf32>
    %48 = arith.truncf %47 : vector<16x16xf32> to vector<16x16xbf16>
    %49 = vector.extract_strided_slice %30 {offsets = [0, 0], sizes = [16, 8], strides = [1, 1]} : vector<16x32xf32> to vector<16x8xf32>
    %50 = arith.truncf %49 : vector<16x8xf32> to vector<16x8xbf16>
    %cst_33 = arith.constant dense<0.000000e+00> : vector<16x8xf32>
    %51 = tpu.matmul %48, %50, %cst_33 {dimension_numbers = #tpu.dot_dimension_numbers<[1], [0], [0], [1], [0, 0, 1, 1], [], []>} : vector<16x16xbf16>, vector<16x8xbf16>, vector<16x8xf32> -> vector<16x8xf32>
    %c0_34 = arith.constant 0 : index
    %c0_35 = arith.constant 0 : index
    %c0_36 = arith.constant 0 : index
    %c0_37 = arith.constant 0 : index
    %52 = vector.load %arg4[%c0_34, %c0_35, %c0_36, %c0_37] : memref<1x4x8x32xbf16, #tpu.memory_space<vmem>>, vector<1x1x8x32xbf16>
    %53 = vector.shape_cast %52 : vector<1x1x8x32xbf16> to vector<8x32xbf16>
    %54 = arith.truncf %51 : vector<16x8xf32> to vector<16x8xbf16>
    %cst_38 = arith.constant dense<0.000000e+00> : vector<16x32xf32>
    %55 = tpu.matmul %54, %53, %cst_38 {dimension_numbers = #tpu.dot_dimension_numbers<[1], [0], [0], [1], [0, 0, 1, 1], [], []>} : vector<16x8xbf16>, vector<8x32xbf16>, vector<16x32xf32> -> vector<16x32xf32>
    %56 = arith.addf %31, %55 : vector<16x32xf32>
    %57 = vector.extract_strided_slice %14 {offsets = [0, 8], sizes = [16, 8], strides = [1, 1]} : vector<16x32xf32> to vector<16x8xf32>
    %58 = arith.truncf %57 : vector<16x8xf32> to vector<16x8xbf16>
    %59 = vector.extract_strided_slice %22 {offsets = [0, 8], sizes = [16, 8], strides = [1, 1]} : vector<16x32xf32> to vector<16x8xf32>
    %60 = arith.truncf %59 : vector<16x8xf32> to vector<16x8xbf16>
    %cst_39 = arith.constant dense<0.000000e+00> : vector<16x16xf32>
    %61 = tpu.matmul %58, %60, %cst_39 {dimension_numbers = #tpu.dot_dimension_numbers<[1], [1], [0], [0], [0, 0, 1, 0], [], []>} : vector<16x8xbf16>, vector<16x8xbf16>, vector<16x16xf32> -> vector<16x16xf32>
    %62 = arith.addf %61, %4 : vector<16x16xf32>
    %cst_40 = arith.constant dense<0xFF800000> : vector<16xf32>
    %63 = vector.multi_reduction <maximumf>, %62, %cst_40 [1] : vector<16x16xf32> to vector<16xf32>
    %64 = vector.shape_cast %63 : vector<16xf32> to vector<16x1xf32>
    %65 = vector.broadcast %64 : vector<16x1xf32> to vector<16x16xf32>
    %66 = arith.subf %62, %65 : vector<16x16xf32>
    %67 = math.exp %66 : vector<16x16xf32>
    %cst_41 = arith.constant dense<0.000000e+00> : vector<16xf32>
    %68 = vector.multi_reduction <add>, %67, %cst_41 [1] : vector<16x16xf32> to vector<16xf32>
    %69 = vector.shape_cast %68 : vector<16xf32> to vector<16x1xf32>
    %70 = tpu.reciprocal %69 {approx = true} : vector<16x1xf32> -> vector<16x1xf32>
    %71 = vector.broadcast %70 : vector<16x1xf32> to vector<16x16xf32>
    %72 = arith.mulf %67, %71 : vector<16x16xf32>
    %73 = arith.truncf %72 : vector<16x16xf32> to vector<16x16xbf16>
    %74 = vector.extract_strided_slice %30 {offsets = [0, 8], sizes = [16, 8], strides = [1, 1]} : vector<16x32xf32> to vector<16x8xf32>
    %75 = arith.truncf %74 : vector<16x8xf32> to vector<16x8xbf16>
    %cst_42 = arith.constant dense<0.000000e+00> : vector<16x8xf32>
    %76 = tpu.matmul %73, %75, %cst_42 {dimension_numbers = #tpu.dot_dimension_numbers<[1], [0], [0], [1], [0, 0, 1, 1], [], []>} : vector<16x16xbf16>, vector<16x8xbf16>, vector<16x8xf32> -> vector<16x8xf32>
    %c0_43 = arith.constant 0 : index
    %c1_44 = arith.constant 1 : index
    %c0_45 = arith.constant 0 : index
    %c0_46 = arith.constant 0 : index
    %77 = vector.load %arg4[%c0_43, %c1_44, %c0_45, %c0_46] : memref<1x4x8x32xbf16, #tpu.memory_space<vmem>>, vector<1x1x8x32xbf16>
    %78 = vector.shape_cast %77 : vector<1x1x8x32xbf16> to vector<8x32xbf16>
    %79 = arith.truncf %76 : vector<16x8xf32> to vector<16x8xbf16>
    %cst_47 = arith.constant dense<0.000000e+00> : vector<16x32xf32>
    %80 = tpu.matmul %79, %78, %cst_47 {dimension_numbers = #tpu.dot_dimension_numbers<[1], [0], [0], [1], [0, 0, 1, 1], [], []>} : vector<16x8xbf16>, vector<8x32xbf16>, vector<16x32xf32> -> vector<16x32xf32>
    %81 = arith.addf %56, %80 : vector<16x32xf32>
    %82 = vector.extract_strided_slice %14 {offsets = [0, 16], sizes = [16, 8], strides = [1, 1]} : vector<16x32xf32> to vector<16x8xf32>
    %83 = arith.truncf %82 : vector<16x8xf32> to vector<16x8xbf16>
    %84 = vector.extract_strided_slice %22 {offsets = [0, 16], sizes = [16, 8], strides = [1, 1]} : vector<16x32xf32> to vector<16x8xf32>
    %85 = arith.truncf %84 : vector<16x8xf32> to vector<16x8xbf16>
    %cst_48 = arith.constant dense<0.000000e+00> : vector<16x16xf32>
    %86 = tpu.matmul %83, %85, %cst_48 {dimension_numbers = #tpu.dot_dimension_numbers<[1], [1], [0], [0], [0, 0, 1, 0], [], []>} : vector<16x8xbf16>, vector<16x8xbf16>, vector<16x16xf32> -> vector<16x16xf32>
    %87 = arith.addf %86, %4 : vector<16x16xf32>
    %cst_49 = arith.constant dense<0xFF800000> : vector<16xf32>
    %88 = vector.multi_reduction <maximumf>, %87, %cst_49 [1] : vector<16x16xf32> to vector<16xf32>
    %89 = vector.shape_cast %88 : vector<16xf32> to vector<16x1xf32>
    %90 = vector.broadcast %89 : vector<16x1xf32> to vector<16x16xf32>
    %91 = arith.subf %87, %90 : vector<16x16xf32>
    %92 = math.exp %91 : vector<16x16xf32>
    %cst_50 = arith.constant dense<0.000000e+00> : vector<16xf32>
    %93 = vector.multi_reduction <add>, %92, %cst_50 [1] : vector<16x16xf32> to vector<16xf32>
    %94 = vector.shape_cast %93 : vector<16xf32> to vector<16x1xf32>
    %95 = tpu.reciprocal %94 {approx = true} : vector<16x1xf32> -> vector<16x1xf32>
    %96 = vector.broadcast %95 : vector<16x1xf32> to vector<16x16xf32>
    %97 = arith.mulf %92, %96 : vector<16x16xf32>
    %98 = arith.truncf %97 : vector<16x16xf32> to vector<16x16xbf16>
    %99 = vector.extract_strided_slice %30 {offsets = [0, 16], sizes = [16, 8], strides = [1, 1]} : vector<16x32xf32> to vector<16x8xf32>
    %100 = arith.truncf %99 : vector<16x8xf32> to vector<16x8xbf16>
    %cst_51 = arith.constant dense<0.000000e+00> : vector<16x8xf32>
    %101 = tpu.matmul %98, %100, %cst_51 {dimension_numbers = #tpu.dot_dimension_numbers<[1], [0], [0], [1], [0, 0, 1, 1], [], []>} : vector<16x16xbf16>, vector<16x8xbf16>, vector<16x8xf32> -> vector<16x8xf32>
    %c0_52 = arith.constant 0 : index
    %c2_53 = arith.constant 2 : index
    %c0_54 = arith.constant 0 : index
    %c0_55 = arith.constant 0 : index
    %102 = vector.load %arg4[%c0_52, %c2_53, %c0_54, %c0_55] : memref<1x4x8x32xbf16, #tpu.memory_space<vmem>>, vector<1x1x8x32xbf16>
    %103 = vector.shape_cast %102 : vector<1x1x8x32xbf16> to vector<8x32xbf16>
    %104 = arith.truncf %101 : vector<16x8xf32> to vector<16x8xbf16>
    %cst_56 = arith.constant dense<0.000000e+00> : vector<16x32xf32>
    %105 = tpu.matmul %104, %103, %cst_56 {dimension_numbers = #tpu.dot_dimension_numbers<[1], [0], [0], [1], [0, 0, 1, 1], [], []>} : vector<16x8xbf16>, vector<8x32xbf16>, vector<16x32xf32> -> vector<16x32xf32>
    %106 = arith.addf %81, %105 : vector<16x32xf32>
    %107 = vector.extract_strided_slice %14 {offsets = [0, 24], sizes = [16, 8], strides = [1, 1]} : vector<16x32xf32> to vector<16x8xf32>
    %108 = arith.truncf %107 : vector<16x8xf32> to vector<16x8xbf16>
    %109 = vector.extract_strided_slice %22 {offsets = [0, 24], sizes = [16, 8], strides = [1, 1]} : vector<16x32xf32> to vector<16x8xf32>
    %110 = arith.truncf %109 : vector<16x8xf32> to vector<16x8xbf16>
    %cst_57 = arith.constant dense<0.000000e+00> : vector<16x16xf32>
    %111 = tpu.matmul %108, %110, %cst_57 {dimension_numbers = #tpu.dot_dimension_numbers<[1], [1], [0], [0], [0, 0, 1, 0], [], []>} : vector<16x8xbf16>, vector<16x8xbf16>, vector<16x16xf32> -> vector<16x16xf32>
    %112 = arith.addf %111, %4 : vector<16x16xf32>
    %cst_58 = arith.constant dense<0xFF800000> : vector<16xf32>
    %113 = vector.multi_reduction <maximumf>, %112, %cst_58 [1] : vector<16x16xf32> to vector<16xf32>
    %114 = vector.shape_cast %113 : vector<16xf32> to vector<16x1xf32>
    %115 = vector.broadcast %114 : vector<16x1xf32> to vector<16x16xf32>
    %116 = arith.subf %112, %115 : vector<16x16xf32>
    %117 = math.exp %116 : vector<16x16xf32>
    %cst_59 = arith.constant dense<0.000000e+00> : vector<16xf32>
    %118 = vector.multi_reduction <add>, %117, %cst_59 [1] : vector<16x16xf32> to vector<16xf32>
    %119 = vector.shape_cast %118 : vector<16xf32> to vector<16x1xf32>
    %120 = tpu.reciprocal %119 {approx = true} : vector<16x1xf32> -> vector<16x1xf32>
    %121 = vector.broadcast %120 : vector<16x1xf32> to vector<16x16xf32>
    %122 = arith.mulf %117, %121 : vector<16x16xf32>
    %123 = arith.truncf %122 : vector<16x16xf32> to vector<16x16xbf16>
    %124 = vector.extract_strided_slice %30 {offsets = [0, 24], sizes = [16, 8], strides = [1, 1]} : vector<16x32xf32> to vector<16x8xf32>
    %125 = arith.truncf %124 : vector<16x8xf32> to vector<16x8xbf16>
    %cst_60 = arith.constant dense<0.000000e+00> : vector<16x8xf32>
    %126 = tpu.matmul %123, %125, %cst_60 {dimension_numbers = #tpu.dot_dimension_numbers<[1], [0], [0], [1], [0, 0, 1, 1], [], []>} : vector<16x16xbf16>, vector<16x8xbf16>, vector<16x8xf32> -> vector<16x8xf32>
    %c0_61 = arith.constant 0 : index
    %c3 = arith.constant 3 : index
    %c0_62 = arith.constant 0 : index
    %c0_63 = arith.constant 0 : index
    %127 = vector.load %arg4[%c0_61, %c3, %c0_62, %c0_63] : memref<1x4x8x32xbf16, #tpu.memory_space<vmem>>, vector<1x1x8x32xbf16>
    %128 = vector.shape_cast %127 : vector<1x1x8x32xbf16> to vector<8x32xbf16>
    %129 = arith.truncf %126 : vector<16x8xf32> to vector<16x8xbf16>
    %cst_64 = arith.constant dense<0.000000e+00> : vector<16x32xf32>
    %130 = tpu.matmul %129, %128, %cst_64 {dimension_numbers = #tpu.dot_dimension_numbers<[1], [0], [0], [1], [0, 0, 1, 1], [], []>} : vector<16x8xbf16>, vector<8x32xbf16>, vector<16x32xf32> -> vector<16x32xf32>
    %131 = arith.addf %106, %130 : vector<16x32xf32>
    %c0_65 = arith.constant 0 : index
    %c3_66 = arith.constant 3 : index
    %c0_67 = arith.constant 0 : index
    %c0_68 = arith.constant 0 : index
    %132 = vector.load %arg5[%c0_65, %c3_66, %c0_67, %c0_68] : memref<1x4x1x32xf32, #tpu.memory_space<vmem>>, vector<1x1x1x32xf32>
    %133 = vector.shape_cast %132 : vector<1x1x1x32xf32> to vector<1x32xf32>
    %134 = vector.broadcast %133 : vector<1x32xf32> to vector<16x32xf32>
    %135 = arith.addf %131, %134 : vector<16x32xf32>
    %136 = arith.addf %3, %135 : vector<16x32xf32>
    %c0_69 = arith.constant 0 : index
    %c0_70 = arith.constant 0 : index
    %c0_71 = arith.constant 0 : index
    %c0_72 = arith.constant 0 : index
    %137 = vector.load %arg8[%c0_69, %c0_70, %c0_71, %c0_72] : memref<1x2x1x32xf32, #tpu.memory_space<vmem>>, vector<1x1x1x32xf32>
    %138 = vector.shape_cast %137 : vector<1x1x1x32xf32> to vector<1x32xf32>
    %c0_73 = arith.constant 0 : index
    %c0_74 = arith.constant 0 : index
    %c0_75 = arith.constant 0 : index
    %c0_76 = arith.constant 0 : index
    %139 = vector.load %arg9[%c0_73, %c0_74, %c0_75, %c0_76] : memref<1x2x1x32xf32, #tpu.memory_space<vmem>>, vector<1x1x1x32xf32>
    %140 = vector.shape_cast %139 : vector<1x1x1x32xf32> to vector<1x32xf32>
    %cst_77 = arith.constant dense<0.000000e+00> : vector<16xf32>
    %141 = vector.multi_reduction <add>, %136, %cst_77 [1] : vector<16x32xf32> to vector<16xf32>
    %142 = vector.shape_cast %141 : vector<16xf32> to vector<16x1xf32>
    %cst_78 = arith.constant 3.200000e+01 : f32
    %143 = vector.broadcast %cst_78 : f32 to vector<16x1xf32>
    %144 = arith.divf %142, %143 : vector<16x1xf32>
    %145 = vector.broadcast %144 : vector<16x1xf32> to vector<16x32xf32>
    %146 = arith.subf %136, %145 : vector<16x32xf32>
    %147 = arith.mulf %146, %146 : vector<16x32xf32>
    %cst_79 = arith.constant dense<0.000000e+00> : vector<16xf32>
    %148 = vector.multi_reduction <add>, %147, %cst_79 [1] : vector<16x32xf32> to vector<16xf32>
    %149 = vector.shape_cast %148 : vector<16xf32> to vector<16x1xf32>
    %cst_80 = arith.constant 3.200000e+01 : f32
    %150 = vector.broadcast %cst_80 : f32 to vector<16x1xf32>
    %151 = arith.divf %149, %150 : vector<16x1xf32>
    %152 = vector.broadcast %144 : vector<16x1xf32> to vector<16x32xf32>
    %153 = arith.subf %136, %152 : vector<16x32xf32>
    %cst_81 = arith.constant 9.99999974E-6 : f32
    %154 = vector.broadcast %cst_81 : f32 to vector<16x1xf32>
    %155 = arith.addf %151, %154 : vector<16x1xf32>
    %156 = math.rsqrt %155 : vector<16x1xf32>
    %157 = vector.broadcast %156 : vector<16x1xf32> to vector<16x32xf32>
    %158 = arith.mulf %153, %157 : vector<16x32xf32>
    %159 = vector.broadcast %138 : vector<1x32xf32> to vector<16x32xf32>
    %160 = arith.mulf %158, %159 : vector<16x32xf32>
    %161 = vector.broadcast %140 : vector<1x32xf32> to vector<16x32xf32>
    %162 = arith.addf %160, %161 : vector<16x32xf32>
    %c0_82 = arith.constant 0 : index
    %c0_83 = arith.constant 0 : index
    %c0_84 = arith.constant 0 : index
    %c0_85 = arith.constant 0 : index
    %163 = vector.load %arg6[%c0_82, %c0_83, %c0_84, %c0_85] : memref<1x2x32x32xbf16, #tpu.memory_space<vmem>>, vector<1x1x32x32xbf16>
    %164 = vector.shape_cast %163 : vector<1x1x32x32xbf16> to vector<32x32xbf16>
    %165 = arith.truncf %162 : vector<16x32xf32> to vector<16x32xbf16>
    %cst_86 = arith.constant dense<0.000000e+00> : vector<16x32xf32>
    %166 = tpu.matmul %165, %164, %cst_86 {dimension_numbers = #tpu.dot_dimension_numbers<[1], [0], [0], [1], [0, 0, 1, 1], [], []>} : vector<16x32xbf16>, vector<32x32xbf16>, vector<16x32xf32> -> vector<16x32xf32>
    %c0_87 = arith.constant 0 : index
    %c0_88 = arith.constant 0 : index
    %c0_89 = arith.constant 0 : index
    %c0_90 = arith.constant 0 : index
    %167 = vector.load %arg7[%c0_87, %c0_88, %c0_89, %c0_90] : memref<1x2x1x32xf32, #tpu.memory_space<vmem>>, vector<1x1x1x32xf32>
    %168 = vector.shape_cast %167 : vector<1x1x1x32xf32> to vector<1x32xf32>
    %169 = vector.broadcast %168 : vector<1x32xf32> to vector<16x32xf32>
    %170 = arith.addf %166, %169 : vector<16x32xf32>
    %cst_91 = arith.constant 0.000000e+00 : f32
    %171 = vector.broadcast %cst_91 : f32 to vector<16x32xf32>
    %172 = arith.maximumf %170, %171 : vector<16x32xf32>
    %c0_92 = arith.constant 0 : index
    %c1_93 = arith.constant 1 : index
    %c0_94 = arith.constant 0 : index
    %c0_95 = arith.constant 0 : index
    %173 = vector.load %arg6[%c0_92, %c1_93, %c0_94, %c0_95] : memref<1x2x32x32xbf16, #tpu.memory_space<vmem>>, vector<1x1x32x32xbf16>
    %174 = vector.shape_cast %173 : vector<1x1x32x32xbf16> to vector<32x32xbf16>
    %175 = arith.truncf %172 : vector<16x32xf32> to vector<16x32xbf16>
    %cst_96 = arith.constant dense<0.000000e+00> : vector<16x32xf32>
    %176 = tpu.matmul %175, %174, %cst_96 {dimension_numbers = #tpu.dot_dimension_numbers<[1], [0], [0], [1], [0, 0, 1, 1], [], []>} : vector<16x32xbf16>, vector<32x32xbf16>, vector<16x32xf32> -> vector<16x32xf32>
    %c0_97 = arith.constant 0 : index
    %c1_98 = arith.constant 1 : index
    %c0_99 = arith.constant 0 : index
    %c0_100 = arith.constant 0 : index
    %177 = vector.load %arg7[%c0_97, %c1_98, %c0_99, %c0_100] : memref<1x2x1x32xf32, #tpu.memory_space<vmem>>, vector<1x1x1x32xf32>
    %178 = vector.shape_cast %177 : vector<1x1x1x32xf32> to vector<1x32xf32>
    %179 = vector.broadcast %178 : vector<1x32xf32> to vector<16x32xf32>
    %180 = arith.addf %176, %179 : vector<16x32xf32>
    %181 = arith.addf %162, %180 : vector<16x32xf32>
    %c0_101 = arith.constant 0 : index
    %c1_102 = arith.constant 1 : index
    %c0_103 = arith.constant 0 : index
    %c0_104 = arith.constant 0 : index
    %182 = vector.load %arg8[%c0_101, %c1_102, %c0_103, %c0_104] : memref<1x2x1x32xf32, #tpu.memory_space<vmem>>, vector<1x1x1x32xf32>
    %183 = vector.shape_cast %182 : vector<1x1x1x32xf32> to vector<1x32xf32>
    %c0_105 = arith.constant 0 : index
    %c1_106 = arith.constant 1 : index
    %c0_107 = arith.constant 0 : index
    %c0_108 = arith.constant 0 : index
    %184 = vector.load %arg9[%c0_105, %c1_106, %c0_107, %c0_108] : memref<1x2x1x32xf32, #tpu.memory_space<vmem>>, vector<1x1x1x32xf32>
    %185 = vector.shape_cast %184 : vector<1x1x1x32xf32> to vector<1x32xf32>
    %cst_109 = arith.constant dense<0.000000e+00> : vector<16xf32>
    %186 = vector.multi_reduction <add>, %181, %cst_109 [1] : vector<16x32xf32> to vector<16xf32>
    %187 = vector.shape_cast %186 : vector<16xf32> to vector<16x1xf32>
    %cst_110 = arith.constant 3.200000e+01 : f32
    %188 = vector.broadcast %cst_110 : f32 to vector<16x1xf32>
    %189 = arith.divf %187, %188 : vector<16x1xf32>
    %190 = vector.broadcast %189 : vector<16x1xf32> to vector<16x32xf32>
    %191 = arith.subf %181, %190 : vector<16x32xf32>
    %192 = arith.mulf %191, %191 : vector<16x32xf32>
    %cst_111 = arith.constant dense<0.000000e+00> : vector<16xf32>
    %193 = vector.multi_reduction <add>, %192, %cst_111 [1] : vector<16x32xf32> to vector<16xf32>
    %194 = vector.shape_cast %193 : vector<16xf32> to vector<16x1xf32>
    %cst_112 = arith.constant 3.200000e+01 : f32
    %195 = vector.broadcast %cst_112 : f32 to vector<16x1xf32>
    %196 = arith.divf %194, %195 : vector<16x1xf32>
    %197 = vector.broadcast %189 : vector<16x1xf32> to vector<16x32xf32>
    %198 = arith.subf %181, %197 : vector<16x32xf32>
    %cst_113 = arith.constant 9.99999974E-6 : f32
    %199 = vector.broadcast %cst_113 : f32 to vector<16x1xf32>
    %200 = arith.addf %196, %199 : vector<16x1xf32>
    %201 = math.rsqrt %200 : vector<16x1xf32>
    %202 = vector.broadcast %201 : vector<16x1xf32> to vector<16x32xf32>
    %203 = arith.mulf %198, %202 : vector<16x32xf32>
    %204 = vector.broadcast %183 : vector<1x32xf32> to vector<16x32xf32>
    %205 = arith.mulf %203, %204 : vector<16x32xf32>
    %206 = vector.broadcast %185 : vector<1x32xf32> to vector<16x32xf32>
    %207 = arith.addf %205, %206 : vector<16x32xf32>
    %c0_114 = arith.constant 0 : index
    %c0_115 = arith.constant 0 : index
    %208 = vector.load %arg13[%c0_114, %c0_115] : memref<16x32xf32, #tpu.memory_space<vmem>>, vector<16x32xf32>
    tpu.vector_store %arg13[%c0_114, %c0_115], %207 {strides = array<i32>} : memref<16x32xf32, #tpu.memory_space<vmem>>, vector<16x32xf32>,
    %c1_i32 = arith.constant 1 : i32
    %209 = arith.cmpi eq, %arg0, %c1_i32 : i32
    %210 = arith.extui %209 : i1 to i32
    %c0_i32_116 = arith.constant 0 : i32
    %211 = arith.cmpi ne, %210, %c0_i32_116 : i32
    scf.if %211 {
      %c0_117 = arith.constant 0 : index
      %c0_118 = arith.constant 0 : index
      %212 = vector.load %arg10[%c0_117, %c0_118] : memref<1x32xf32, #tpu.memory_space<vmem>>, vector<1x32xf32>
      %c0_119 = arith.constant 0 : index
      %c0_120 = arith.constant 0 : index
      %213 = vector.load %arg11[%c0_119, %c0_120] : memref<1x32xf32, #tpu.memory_space<vmem>>, vector<1x32xf32>
      %cst_121 = arith.constant dense<0.000000e+00> : vector<16xf32>
      %214 = vector.multi_reduction <add>, %207, %cst_121 [1] : vector<16x32xf32> to vector<16xf32>
      %215 = vector.shape_cast %214 : vector<16xf32> to vector<16x1xf32>
      %cst_122 = arith.constant 3.200000e+01 : f32
      %216 = vector.broadcast %cst_122 : f32 to vector<16x1xf32>
      %217 = arith.divf %215, %216 : vector<16x1xf32>
      %218 = vector.broadcast %217 : vector<16x1xf32> to vector<16x32xf32>
      %219 = arith.subf %207, %218 : vector<16x32xf32>
      %220 = arith.mulf %219, %219 : vector<16x32xf32>
      %cst_123 = arith.constant dense<0.000000e+00> : vector<16xf32>
      %221 = vector.multi_reduction <add>, %220, %cst_123 [1] : vector<16x32xf32> to vector<16xf32>
      %222 = vector.shape_cast %221 : vector<16xf32> to vector<16x1xf32>
      %cst_124 = arith.constant 3.200000e+01 : f32
      %223 = vector.broadcast %cst_124 : f32 to vector<16x1xf32>
      %224 = arith.divf %222, %223 : vector<16x1xf32>
      %225 = vector.broadcast %217 : vector<16x1xf32> to vector<16x32xf32>
      %226 = arith.subf %207, %225 : vector<16x32xf32>
      %cst_125 = arith.constant 9.99999974E-6 : f32
      %227 = vector.broadcast %cst_125 : f32 to vector<16x1xf32>
      %228 = arith.addf %224, %227 : vector<16x1xf32>
      %229 = math.rsqrt %228 : vector<16x1xf32>
      %230 = vector.broadcast %229 : vector<16x1xf32> to vector<16x32xf32>
      %231 = arith.mulf %226, %230 : vector<16x32xf32>
      %232 = vector.broadcast %212 : vector<1x32xf32> to vector<16x32xf32>
      %233 = arith.mulf %231, %232 : vector<16x32xf32>
      %234 = vector.broadcast %213 : vector<1x32xf32> to vector<16x32xf32>
      %235 = arith.addf %233, %234 : vector<16x32xf32>
      %c0_126 = arith.constant 0 : index
      %c0_127 = arith.constant 0 : index
      %236 = vector.load %arg12[%c0_126, %c0_127] : memref<16x32xf32, #tpu.memory_space<vmem>>, vector<16x32xf32>
      tpu.vector_store %arg12[%c0_126, %c0_127], %235 {strides = array<i32>} : memref<16x32xf32, #tpu.memory_space<vmem>>, vector<16x32xf32>,
    } else {
    }
    return
  }
  func.func @transform_0(%arg0: i32) -> (i32, i32) {
    %c0_i32 = arith.constant 0 : i32
    %c0_i32_0 = arith.constant 0 : i32
    %c0_i32_1 = arith.constant 0 : i32
    return %c0_i32, %c0_i32_0 : i32, i32
  }
  func.func @transform_1(%arg0: i32) -> (i32, i32) {
    %c0_i32 = arith.constant 0 : i32
    %c0_i32_0 = arith.constant 0 : i32
    %c0_i32_1 = arith.constant 0 : i32
    return %c0_i32, %c0_i32_0 : i32, i32
  }
  func.func @transform_2(%arg0: i32) -> (i32, i32, i32, i32) {
    %c0_i32 = arith.constant 0 : i32
    %c0_i32_0 = arith.constant 0 : i32
    %c0_i32_1 = arith.constant 0 : i32
    %c0_i32_2 = arith.constant 0 : i32
    return %arg0, %c0_i32, %c0_i32_0, %c0_i32_1 : i32, i32, i32, i32
  }
  func.func @transform_3(%arg0: i32) -> (i32, i32, i32, i32) {
    %c0_i32 = arith.constant 0 : i32
    %c0_i32_0 = arith.constant 0 : i32
    %c0_i32_1 = arith.constant 0 : i32
    %c0_i32_2 = arith.constant 0 : i32
    return %arg0, %c0_i32, %c0_i32_0, %c0_i32_1 : i32, i32, i32, i32
  }
  func.func @transform_4(%arg0: i32) -> (i32, i32, i32, i32) {
    %c0_i32 = arith.constant 0 : i32
    %c0_i32_0 = arith.constant 0 : i32
    %c0_i32_1 = arith.constant 0 : i32
    %c0_i32_2 = arith.constant 0 : i32
    return %arg0, %c0_i32, %c0_i32_0, %c0_i32_1 : i32, i32, i32, i32
  }
  func.func @transform_5(%arg0: i32) -> (i32, i32, i32, i32) {
    %c0_i32 = arith.constant 0 : i32
    %c0_i32_0 = arith.constant 0 : i32
    %c0_i32_1 = arith.constant 0 : i32
    %c0_i32_2 = arith.constant 0 : i32
    return %arg0, %c0_i32, %c0_i32_0, %c0_i32_1 : i32, i32, i32, i32
  }
  func.func @transform_6(%arg0: i32) -> (i32, i32, i32, i32) {
    %c0_i32 = arith.constant 0 : i32
    %c0_i32_0 = arith.constant 0 : i32
    %c0_i32_1 = arith.constant 0 : i32
    %c0_i32_2 = arith.constant 0 : i32
    return %arg0, %c0_i32, %c0_i32_0, %c0_i32_1 : i32, i32, i32, i32
  }
  func.func @transform_7(%arg0: i32) -> (i32, i32, i32, i32) {
    %c0_i32 = arith.constant 0 : i32
    %c0_i32_0 = arith.constant 0 : i32
    %c0_i32_1 = arith.constant 0 : i32
    %c0_i32_2 = arith.constant 0 : i32
    return %arg0, %c0_i32, %c0_i32_0, %c0_i32_1 : i32, i32, i32, i32
  }
  func.func @transform_8(%arg0: i32) -> (i32, i32, i32, i32) {
    %c0_i32 = arith.constant 0 : i32
    %c0_i32_0 = arith.constant 0 : i32
    %c0_i32_1 = arith.constant 0 : i32
    %c0_i32_2 = arith.constant 0 : i32
    return %arg0, %c0_i32, %c0_i32_0, %c0_i32_1 : i32, i32, i32, i32
  }
  func.func @transform_9(%arg0: i32) -> (i32, i32) {
    %c0_i32 = arith.constant 0 : i32
    %c0_i32_0 = arith.constant 0 : i32
    %c0_i32_1 = arith.constant 0 : i32
    return %c0_i32, %c0_i32_0 : i32, i32
  }
  func.func @transform_10(%arg0: i32) -> (i32, i32) {
    %c0_i32 = arith.constant 0 : i32
    %c0_i32_0 = arith.constant 0 : i32
    %c0_i32_1 = arith.constant 0 : i32
    return %c0_i32, %c0_i32_0 : i32, i32
  }
  func.func @transform_11(%arg0: i32) -> (i32, i32) {
    %c0_i32 = arith.constant 0 : i32
    %c0_i32_0 = arith.constant 0 : i32
    %c0_i32_1 = arith.constant 0 : i32
    return %c0_i32, %c0_i32_0 : i32, i32
  }
}

module attributes {stable_mosaic.version = 11 : i64} {
  func.func @_decoder_stack_kernel(%arg0: i32, %arg1: memref<16x32xf32, #tpu.memory_space<vmem>>, %arg2: memref<16x32xf32, #tpu.memory_space<vmem>>, %arg3: memref<16x16xf32, #tpu.memory_space<vmem>>, %arg4: memref<16x16xf32, #tpu.memory_space<vmem>>, %arg5: memref<1x3x32x32xbf16, #tpu.memory_space<vmem>>, %arg6: memref<1x4x8x32xbf16, #tpu.memory_space<vmem>>, %arg7: memref<1x4x1x32xf32, #tpu.memory_space<vmem>>, %arg8: memref<1x3x32x32xbf16, #tpu.memory_space<vmem>>, %arg9: memref<1x4x8x32xbf16, #tpu.memory_space<vmem>>, %arg10: memref<1x4x1x32xf32, #tpu.memory_space<vmem>>, %arg11: memref<1x2x32x32xbf16, #tpu.memory_space<vmem>>, %arg12: memref<1x2x1x32xf32, #tpu.memory_space<vmem>>, %arg13: memref<1x3x1x32xf32, #tpu.memory_space<vmem>>, %arg14: memref<1x3x1x32xf32, #tpu.memory_space<vmem>>, %arg15: memref<1x32xf32, #tpu.memory_space<vmem>>, %arg16: memref<1x32xf32, #tpu.memory_space<vmem>>, %arg17: memref<32x32xbf16, #tpu.memory_space<vmem>>, %arg18: memref<1x32xf32, #tpu.memory_space<vmem>>, %arg19: memref<16x32xf32, #tpu.memory_space<vmem>>, %arg20: memref<16x32xf32, #tpu.memory_space<vmem>>) attributes {dimension_semantics = [#tpu.dimension_semantics<arbitrary>], iteration_bounds = array<i64: 2>, scalar_prefetch = 0 : i64, scratch_operands = 1 : i64, tpu.core_type = #tpu.core_type<tc>, window_params = [{pipeline_mode = #tpu.pipeline_mode<synchronous>, transform_indices = @transform_0, window_bounds = array<i64: 16, 32>}, {pipeline_mode = #tpu.pipeline_mode<synchronous>, transform_indices = @transform_1, window_bounds = array<i64: 16, 32>}, {pipeline_mode = #tpu.pipeline_mode<synchronous>, transform_indices = @transform_2, window_bounds = array<i64: 16, 16>}, {pipeline_mode = #tpu.pipeline_mode<synchronous>, transform_indices = @transform_3, window_bounds = array<i64: 16, 16>}, {transform_indices = @transform_4, window_bounds = array<i64: 1, 3, 32, 32>}, {transform_indices = @transform_5, window_bounds = array<i64: 1, 4, 8, 32>}, {transform_indices = @transform_6, window_bounds = array<i64: 1, 4, 1, 32>}, {transform_indices = @transform_7, window_bounds = array<i64: 1, 3, 32, 32>}, {transform_indices = @transform_8, window_bounds = array<i64: 1, 4, 8, 32>}, {transform_indices = @transform_9, window_bounds = array<i64: 1, 4, 1, 32>}, {transform_indices = @transform_10, window_bounds = array<i64: 1, 2, 32, 32>}, {transform_indices = @transform_11, window_bounds = array<i64: 1, 2, 1, 32>}, {transform_indices = @transform_12, window_bounds = array<i64: 1, 3, 1, 32>}, {transform_indices = @transform_13, window_bounds = array<i64: 1, 3, 1, 32>}, {pipeline_mode = #tpu.pipeline_mode<synchronous>, transform_indices = @transform_14, window_bounds = array<i64: 1, 32>}, {pipeline_mode = #tpu.pipeline_mode<synchronous>, transform_indices = @transform_15, window_bounds = array<i64: 1, 32>}, {pipeline_mode = #tpu.pipeline_mode<synchronous>, transform_indices = @transform_16, window_bounds = array<i64: 32, 32>}, {pipeline_mode = #tpu.pipeline_mode<synchronous>, transform_indices = @transform_17, window_bounds = array<i64: 1, 32>}, {pipeline_mode = #tpu.pipeline_mode<synchronous>, transform_indices = @transform_18, window_bounds = array<i64: 16, 32>}]} {
    %c0_i32 = arith.constant 0 : i32
    %0 = arith.cmpi eq, %arg0, %c0_i32 : i32
    %1 = arith.extui %0 : i1 to i32
    %c0_i32_0 = arith.constant 0 : i32
    %2 = arith.cmpi ne, %1, %c0_i32_0 : i32
    scf.if %2 {
      %c0_203 = arith.constant 0 : index
      %c0_204 = arith.constant 0 : index
      %372 = vector.load %arg1[%c0_203, %c0_204] : memref<16x32xf32, #tpu.memory_space<vmem>>, vector<16x32xf32>
      %c0_205 = arith.constant 0 : index
      %c0_206 = arith.constant 0 : index
      %373 = vector.load %arg20[%c0_205, %c0_206] : memref<16x32xf32, #tpu.memory_space<vmem>>, vector<16x32xf32>
      tpu.vector_store %arg20[%c0_205, %c0_206], %372 {strides = array<i32>} : memref<16x32xf32, #tpu.memory_space<vmem>>, vector<16x32xf32>,
    } else {
    }
    %c0 = arith.constant 0 : index
    %c0_1 = arith.constant 0 : index
    %3 = vector.load %arg20[%c0, %c0_1] : memref<16x32xf32, #tpu.memory_space<vmem>>, vector<16x32xf32>
    %c0_2 = arith.constant 0 : index
    %c0_3 = arith.constant 0 : index
    %4 = vector.load %arg2[%c0_2, %c0_3] : memref<16x32xf32, #tpu.memory_space<vmem>>, vector<16x32xf32>
    %c0_4 = arith.constant 0 : index
    %c0_5 = arith.constant 0 : index
    %5 = vector.load %arg3[%c0_4, %c0_5] : memref<16x16xf32, #tpu.memory_space<vmem>>, vector<16x16xf32>
    %c0_6 = arith.constant 0 : index
    %c0_7 = arith.constant 0 : index
    %c0_8 = arith.constant 0 : index
    %c0_9 = arith.constant 0 : index
    %6 = vector.load %arg5[%c0_6, %c0_7, %c0_8, %c0_9] : memref<1x3x32x32xbf16, #tpu.memory_space<vmem>>, vector<1x1x32x32xbf16>
    %7 = vector.shape_cast %6 : vector<1x1x32x32xbf16> to vector<32x32xbf16>
    %8 = arith.truncf %3 : vector<16x32xf32> to vector<16x32xbf16>
    %cst = arith.constant dense<0.000000e+00> : vector<16x32xf32>
    %9 = tpu.matmul %8, %7, %cst {dimension_numbers = #tpu.dot_dimension_numbers<[1], [0], [0], [1], [0, 0, 1, 1], [], []>} : vector<16x32xbf16>, vector<32x32xbf16>, vector<16x32xf32> -> vector<16x32xf32>
    %c0_10 = arith.constant 0 : index
    %c0_11 = arith.constant 0 : index
    %c0_12 = arith.constant 0 : index
    %c0_13 = arith.constant 0 : index
    %10 = vector.load %arg7[%c0_10, %c0_11, %c0_12, %c0_13] : memref<1x4x1x32xf32, #tpu.memory_space<vmem>>, vector<1x1x1x32xf32>
    %11 = vector.shape_cast %10 : vector<1x1x1x32xf32> to vector<1x32xf32>
    %12 = vector.broadcast %11 : vector<1x32xf32> to vector<16x32xf32>
    %13 = arith.addf %9, %12 : vector<16x32xf32>
    %cst_14 = arith.constant 0.353553385 : f32
    %14 = vector.broadcast %cst_14 : f32 to vector<16x32xf32>
    %15 = arith.mulf %13, %14 : vector<16x32xf32>
    %c0_15 = arith.constant 0 : index
    %c1 = arith.constant 1 : index
    %c0_16 = arith.constant 0 : index
    %c0_17 = arith.constant 0 : index
    %16 = vector.load %arg5[%c0_15, %c1, %c0_16, %c0_17] : memref<1x3x32x32xbf16, #tpu.memory_space<vmem>>, vector<1x1x32x32xbf16>
    %17 = vector.shape_cast %16 : vector<1x1x32x32xbf16> to vector<32x32xbf16>
    %18 = arith.truncf %3 : vector<16x32xf32> to vector<16x32xbf16>
    %cst_18 = arith.constant dense<0.000000e+00> : vector<16x32xf32>
    %19 = tpu.matmul %18, %17, %cst_18 {dimension_numbers = #tpu.dot_dimension_numbers<[1], [0], [0], [1], [0, 0, 1, 1], [], []>} : vector<16x32xbf16>, vector<32x32xbf16>, vector<16x32xf32> -> vector<16x32xf32>
    %c0_19 = arith.constant 0 : index
    %c1_20 = arith.constant 1 : index
    %c0_21 = arith.constant 0 : index
    %c0_22 = arith.constant 0 : index
    %20 = vector.load %arg7[%c0_19, %c1_20, %c0_21, %c0_22] : memref<1x4x1x32xf32, #tpu.memory_space<vmem>>, vector<1x1x1x32xf32>
    %21 = vector.shape_cast %20 : vector<1x1x1x32xf32> to vector<1x32xf32>
    %22 = vector.broadcast %21 : vector<1x32xf32> to vector<16x32xf32>
    %23 = arith.addf %19, %22 : vector<16x32xf32>
    %c0_23 = arith.constant 0 : index
    %c2 = arith.constant 2 : index
    %c0_24 = arith.constant 0 : index
    %c0_25 = arith.constant 0 : index
    %24 = vector.load %arg5[%c0_23, %c2, %c0_24, %c0_25] : memref<1x3x32x32xbf16, #tpu.memory_space<vmem>>, vector<1x1x32x32xbf16>
    %25 = vector.shape_cast %24 : vector<1x1x32x32xbf16> to vector<32x32xbf16>
    %26 = arith.truncf %3 : vector<16x32xf32> to vector<16x32xbf16>
    %cst_26 = arith.constant dense<0.000000e+00> : vector<16x32xf32>
    %27 = tpu.matmul %26, %25, %cst_26 {dimension_numbers = #tpu.dot_dimension_numbers<[1], [0], [0], [1], [0, 0, 1, 1], [], []>} : vector<16x32xbf16>, vector<32x32xbf16>, vector<16x32xf32> -> vector<16x32xf32>
    %c0_27 = arith.constant 0 : index
    %c2_28 = arith.constant 2 : index
    %c0_29 = arith.constant 0 : index
    %c0_30 = arith.constant 0 : index
    %28 = vector.load %arg7[%c0_27, %c2_28, %c0_29, %c0_30] : memref<1x4x1x32xf32, #tpu.memory_space<vmem>>, vector<1x1x1x32xf32>
    %29 = vector.shape_cast %28 : vector<1x1x1x32xf32> to vector<1x32xf32>
    %30 = vector.broadcast %29 : vector<1x32xf32> to vector<16x32xf32>
    %31 = arith.addf %27, %30 : vector<16x32xf32>
    %cst_31 = arith.constant 0.000000e+00 : f32
    %32 = vector.broadcast %cst_31 : f32 to vector<16x32xf32>
    %33 = vector.extract_strided_slice %15 {offsets = [0, 0], sizes = [16, 8], strides = [1, 1]} : vector<16x32xf32> to vector<16x8xf32>
    %34 = arith.truncf %33 : vector<16x8xf32> to vector<16x8xbf16>
    %35 = vector.extract_strided_slice %23 {offsets = [0, 0], sizes = [16, 8], strides = [1, 1]} : vector<16x32xf32> to vector<16x8xf32>
    %36 = arith.truncf %35 : vector<16x8xf32> to vector<16x8xbf16>
    %cst_32 = arith.constant dense<0.000000e+00> : vector<16x16xf32>
    %37 = tpu.matmul %34, %36, %cst_32 {dimension_numbers = #tpu.dot_dimension_numbers<[1], [1], [0], [0], [0, 0, 1, 0], [], []>} : vector<16x8xbf16>, vector<16x8xbf16>, vector<16x16xf32> -> vector<16x16xf32>
    %38 = arith.addf %37, %5 : vector<16x16xf32>
    %cst_33 = arith.constant dense<0xFF800000> : vector<16xf32>
    %39 = vector.multi_reduction <maximumf>, %38, %cst_33 [1] : vector<16x16xf32> to vector<16xf32>
    %40 = vector.shape_cast %39 : vector<16xf32> to vector<16x1xf32>
    %41 = vector.broadcast %40 : vector<16x1xf32> to vector<16x16xf32>
    %42 = arith.subf %38, %41 : vector<16x16xf32>
    %43 = math.exp %42 : vector<16x16xf32>
    %cst_34 = arith.constant dense<0.000000e+00> : vector<16xf32>
    %44 = vector.multi_reduction <add>, %43, %cst_34 [1] : vector<16x16xf32> to vector<16xf32>
    %45 = vector.shape_cast %44 : vector<16xf32> to vector<16x1xf32>
    %46 = tpu.reciprocal %45 {approx = true} : vector<16x1xf32> -> vector<16x1xf32>
    %47 = vector.broadcast %46 : vector<16x1xf32> to vector<16x16xf32>
    %48 = arith.mulf %43, %47 : vector<16x16xf32>
    %49 = arith.truncf %48 : vector<16x16xf32> to vector<16x16xbf16>
    %50 = vector.extract_strided_slice %31 {offsets = [0, 0], sizes = [16, 8], strides = [1, 1]} : vector<16x32xf32> to vector<16x8xf32>
    %51 = arith.truncf %50 : vector<16x8xf32> to vector<16x8xbf16>
    %cst_35 = arith.constant dense<0.000000e+00> : vector<16x8xf32>
    %52 = tpu.matmul %49, %51, %cst_35 {dimension_numbers = #tpu.dot_dimension_numbers<[1], [0], [0], [1], [0, 0, 1, 1], [], []>} : vector<16x16xbf16>, vector<16x8xbf16>, vector<16x8xf32> -> vector<16x8xf32>
    %c0_36 = arith.constant 0 : index
    %c0_37 = arith.constant 0 : index
    %c0_38 = arith.constant 0 : index
    %c0_39 = arith.constant 0 : index
    %53 = vector.load %arg6[%c0_36, %c0_37, %c0_38, %c0_39] : memref<1x4x8x32xbf16, #tpu.memory_space<vmem>>, vector<1x1x8x32xbf16>
    %54 = vector.shape_cast %53 : vector<1x1x8x32xbf16> to vector<8x32xbf16>
    %55 = arith.truncf %52 : vector<16x8xf32> to vector<16x8xbf16>
    %cst_40 = arith.constant dense<0.000000e+00> : vector<16x32xf32>
    %56 = tpu.matmul %55, %54, %cst_40 {dimension_numbers = #tpu.dot_dimension_numbers<[1], [0], [0], [1], [0, 0, 1, 1], [], []>} : vector<16x8xbf16>, vector<8x32xbf16>, vector<16x32xf32> -> vector<16x32xf32>
    %57 = arith.addf %32, %56 : vector<16x32xf32>
    %58 = vector.extract_strided_slice %15 {offsets = [0, 8], sizes = [16, 8], strides = [1, 1]} : vector<16x32xf32> to vector<16x8xf32>
    %59 = arith.truncf %58 : vector<16x8xf32> to vector<16x8xbf16>
    %60 = vector.extract_strided_slice %23 {offsets = [0, 8], sizes = [16, 8], strides = [1, 1]} : vector<16x32xf32> to vector<16x8xf32>
    %61 = arith.truncf %60 : vector<16x8xf32> to vector<16x8xbf16>
    %cst_41 = arith.constant dense<0.000000e+00> : vector<16x16xf32>
    %62 = tpu.matmul %59, %61, %cst_41 {dimension_numbers = #tpu.dot_dimension_numbers<[1], [1], [0], [0], [0, 0, 1, 0], [], []>} : vector<16x8xbf16>, vector<16x8xbf16>, vector<16x16xf32> -> vector<16x16xf32>
    %63 = arith.addf %62, %5 : vector<16x16xf32>
    %cst_42 = arith.constant dense<0xFF800000> : vector<16xf32>
    %64 = vector.multi_reduction <maximumf>, %63, %cst_42 [1] : vector<16x16xf32> to vector<16xf32>
    %65 = vector.shape_cast %64 : vector<16xf32> to vector<16x1xf32>
    %66 = vector.broadcast %65 : vector<16x1xf32> to vector<16x16xf32>
    %67 = arith.subf %63, %66 : vector<16x16xf32>
    %68 = math.exp %67 : vector<16x16xf32>
    %cst_43 = arith.constant dense<0.000000e+00> : vector<16xf32>
    %69 = vector.multi_reduction <add>, %68, %cst_43 [1] : vector<16x16xf32> to vector<16xf32>
    %70 = vector.shape_cast %69 : vector<16xf32> to vector<16x1xf32>
    %71 = tpu.reciprocal %70 {approx = true} : vector<16x1xf32> -> vector<16x1xf32>
    %72 = vector.broadcast %71 : vector<16x1xf32> to vector<16x16xf32>
    %73 = arith.mulf %68, %72 : vector<16x16xf32>
    %74 = arith.truncf %73 : vector<16x16xf32> to vector<16x16xbf16>
    %75 = vector.extract_strided_slice %31 {offsets = [0, 8], sizes = [16, 8], strides = [1, 1]} : vector<16x32xf32> to vector<16x8xf32>
    %76 = arith.truncf %75 : vector<16x8xf32> to vector<16x8xbf16>
    %cst_44 = arith.constant dense<0.000000e+00> : vector<16x8xf32>
    %77 = tpu.matmul %74, %76, %cst_44 {dimension_numbers = #tpu.dot_dimension_numbers<[1], [0], [0], [1], [0, 0, 1, 1], [], []>} : vector<16x16xbf16>, vector<16x8xbf16>, vector<16x8xf32> -> vector<16x8xf32>
    %c0_45 = arith.constant 0 : index
    %c1_46 = arith.constant 1 : index
    %c0_47 = arith.constant 0 : index
    %c0_48 = arith.constant 0 : index
    %78 = vector.load %arg6[%c0_45, %c1_46, %c0_47, %c0_48] : memref<1x4x8x32xbf16, #tpu.memory_space<vmem>>, vector<1x1x8x32xbf16>
    %79 = vector.shape_cast %78 : vector<1x1x8x32xbf16> to vector<8x32xbf16>
    %80 = arith.truncf %77 : vector<16x8xf32> to vector<16x8xbf16>
    %cst_49 = arith.constant dense<0.000000e+00> : vector<16x32xf32>
    %81 = tpu.matmul %80, %79, %cst_49 {dimension_numbers = #tpu.dot_dimension_numbers<[1], [0], [0], [1], [0, 0, 1, 1], [], []>} : vector<16x8xbf16>, vector<8x32xbf16>, vector<16x32xf32> -> vector<16x32xf32>
    %82 = arith.addf %57, %81 : vector<16x32xf32>
    %83 = vector.extract_strided_slice %15 {offsets = [0, 16], sizes = [16, 8], strides = [1, 1]} : vector<16x32xf32> to vector<16x8xf32>
    %84 = arith.truncf %83 : vector<16x8xf32> to vector<16x8xbf16>
    %85 = vector.extract_strided_slice %23 {offsets = [0, 16], sizes = [16, 8], strides = [1, 1]} : vector<16x32xf32> to vector<16x8xf32>
    %86 = arith.truncf %85 : vector<16x8xf32> to vector<16x8xbf16>
    %cst_50 = arith.constant dense<0.000000e+00> : vector<16x16xf32>
    %87 = tpu.matmul %84, %86, %cst_50 {dimension_numbers = #tpu.dot_dimension_numbers<[1], [1], [0], [0], [0, 0, 1, 0], [], []>} : vector<16x8xbf16>, vector<16x8xbf16>, vector<16x16xf32> -> vector<16x16xf32>
    %88 = arith.addf %87, %5 : vector<16x16xf32>
    %cst_51 = arith.constant dense<0xFF800000> : vector<16xf32>
    %89 = vector.multi_reduction <maximumf>, %88, %cst_51 [1] : vector<16x16xf32> to vector<16xf32>
    %90 = vector.shape_cast %89 : vector<16xf32> to vector<16x1xf32>
    %91 = vector.broadcast %90 : vector<16x1xf32> to vector<16x16xf32>
    %92 = arith.subf %88, %91 : vector<16x16xf32>
    %93 = math.exp %92 : vector<16x16xf32>
    %cst_52 = arith.constant dense<0.000000e+00> : vector<16xf32>
    %94 = vector.multi_reduction <add>, %93, %cst_52 [1] : vector<16x16xf32> to vector<16xf32>
    %95 = vector.shape_cast %94 : vector<16xf32> to vector<16x1xf32>
    %96 = tpu.reciprocal %95 {approx = true} : vector<16x1xf32> -> vector<16x1xf32>
    %97 = vector.broadcast %96 : vector<16x1xf32> to vector<16x16xf32>
    %98 = arith.mulf %93, %97 : vector<16x16xf32>
    %99 = arith.truncf %98 : vector<16x16xf32> to vector<16x16xbf16>
    %100 = vector.extract_strided_slice %31 {offsets = [0, 16], sizes = [16, 8], strides = [1, 1]} : vector<16x32xf32> to vector<16x8xf32>
    %101 = arith.truncf %100 : vector<16x8xf32> to vector<16x8xbf16>
    %cst_53 = arith.constant dense<0.000000e+00> : vector<16x8xf32>
    %102 = tpu.matmul %99, %101, %cst_53 {dimension_numbers = #tpu.dot_dimension_numbers<[1], [0], [0], [1], [0, 0, 1, 1], [], []>} : vector<16x16xbf16>, vector<16x8xbf16>, vector<16x8xf32> -> vector<16x8xf32>
    %c0_54 = arith.constant 0 : index
    %c2_55 = arith.constant 2 : index
    %c0_56 = arith.constant 0 : index
    %c0_57 = arith.constant 0 : index
    %103 = vector.load %arg6[%c0_54, %c2_55, %c0_56, %c0_57] : memref<1x4x8x32xbf16, #tpu.memory_space<vmem>>, vector<1x1x8x32xbf16>
    %104 = vector.shape_cast %103 : vector<1x1x8x32xbf16> to vector<8x32xbf16>
    %105 = arith.truncf %102 : vector<16x8xf32> to vector<16x8xbf16>
    %cst_58 = arith.constant dense<0.000000e+00> : vector<16x32xf32>
    %106 = tpu.matmul %105, %104, %cst_58 {dimension_numbers = #tpu.dot_dimension_numbers<[1], [0], [0], [1], [0, 0, 1, 1], [], []>} : vector<16x8xbf16>, vector<8x32xbf16>, vector<16x32xf32> -> vector<16x32xf32>
    %107 = arith.addf %82, %106 : vector<16x32xf32>
    %108 = vector.extract_strided_slice %15 {offsets = [0, 24], sizes = [16, 8], strides = [1, 1]} : vector<16x32xf32> to vector<16x8xf32>
    %109 = arith.truncf %108 : vector<16x8xf32> to vector<16x8xbf16>
    %110 = vector.extract_strided_slice %23 {offsets = [0, 24], sizes = [16, 8], strides = [1, 1]} : vector<16x32xf32> to vector<16x8xf32>
    %111 = arith.truncf %110 : vector<16x8xf32> to vector<16x8xbf16>
    %cst_59 = arith.constant dense<0.000000e+00> : vector<16x16xf32>
    %112 = tpu.matmul %109, %111, %cst_59 {dimension_numbers = #tpu.dot_dimension_numbers<[1], [1], [0], [0], [0, 0, 1, 0], [], []>} : vector<16x8xbf16>, vector<16x8xbf16>, vector<16x16xf32> -> vector<16x16xf32>
    %113 = arith.addf %112, %5 : vector<16x16xf32>
    %cst_60 = arith.constant dense<0xFF800000> : vector<16xf32>
    %114 = vector.multi_reduction <maximumf>, %113, %cst_60 [1] : vector<16x16xf32> to vector<16xf32>
    %115 = vector.shape_cast %114 : vector<16xf32> to vector<16x1xf32>
    %116 = vector.broadcast %115 : vector<16x1xf32> to vector<16x16xf32>
    %117 = arith.subf %113, %116 : vector<16x16xf32>
    %118 = math.exp %117 : vector<16x16xf32>
    %cst_61 = arith.constant dense<0.000000e+00> : vector<16xf32>
    %119 = vector.multi_reduction <add>, %118, %cst_61 [1] : vector<16x16xf32> to vector<16xf32>
    %120 = vector.shape_cast %119 : vector<16xf32> to vector<16x1xf32>
    %121 = tpu.reciprocal %120 {approx = true} : vector<16x1xf32> -> vector<16x1xf32>
    %122 = vector.broadcast %121 : vector<16x1xf32> to vector<16x16xf32>
    %123 = arith.mulf %118, %122 : vector<16x16xf32>
    %124 = arith.truncf %123 : vector<16x16xf32> to vector<16x16xbf16>
    %125 = vector.extract_strided_slice %31 {offsets = [0, 24], sizes = [16, 8], strides = [1, 1]} : vector<16x32xf32> to vector<16x8xf32>
    %126 = arith.truncf %125 : vector<16x8xf32> to vector<16x8xbf16>
    %cst_62 = arith.constant dense<0.000000e+00> : vector<16x8xf32>
    %127 = tpu.matmul %124, %126, %cst_62 {dimension_numbers = #tpu.dot_dimension_numbers<[1], [0], [0], [1], [0, 0, 1, 1], [], []>} : vector<16x16xbf16>, vector<16x8xbf16>, vector<16x8xf32> -> vector<16x8xf32>
    %c0_63 = arith.constant 0 : index
    %c3 = arith.constant 3 : index
    %c0_64 = arith.constant 0 : index
    %c0_65 = arith.constant 0 : index
    %128 = vector.load %arg6[%c0_63, %c3, %c0_64, %c0_65] : memref<1x4x8x32xbf16, #tpu.memory_space<vmem>>, vector<1x1x8x32xbf16>
    %129 = vector.shape_cast %128 : vector<1x1x8x32xbf16> to vector<8x32xbf16>
    %130 = arith.truncf %127 : vector<16x8xf32> to vector<16x8xbf16>
    %cst_66 = arith.constant dense<0.000000e+00> : vector<16x32xf32>
    %131 = tpu.matmul %130, %129, %cst_66 {dimension_numbers = #tpu.dot_dimension_numbers<[1], [0], [0], [1], [0, 0, 1, 1], [], []>} : vector<16x8xbf16>, vector<8x32xbf16>, vector<16x32xf32> -> vector<16x32xf32>
    %132 = arith.addf %107, %131 : vector<16x32xf32>
    %c0_67 = arith.constant 0 : index
    %c3_68 = arith.constant 3 : index
    %c0_69 = arith.constant 0 : index
    %c0_70 = arith.constant 0 : index
    %133 = vector.load %arg7[%c0_67, %c3_68, %c0_69, %c0_70] : memref<1x4x1x32xf32, #tpu.memory_space<vmem>>, vector<1x1x1x32xf32>
    %134 = vector.shape_cast %133 : vector<1x1x1x32xf32> to vector<1x32xf32>
    %135 = vector.broadcast %134 : vector<1x32xf32> to vector<16x32xf32>
    %136 = arith.addf %132, %135 : vector<16x32xf32>
    %137 = arith.addf %3, %136 : vector<16x32xf32>
    %c0_71 = arith.constant 0 : index
    %c0_72 = arith.constant 0 : index
    %c0_73 = arith.constant 0 : index
    %c0_74 = arith.constant 0 : index
    %138 = vector.load %arg13[%c0_71, %c0_72, %c0_73, %c0_74] : memref<1x3x1x32xf32, #tpu.memory_space<vmem>>, vector<1x1x1x32xf32>
    %139 = vector.shape_cast %138 : vector<1x1x1x32xf32> to vector<1x32xf32>
    %c0_75 = arith.constant 0 : index
    %c0_76 = arith.constant 0 : index
    %c0_77 = arith.constant 0 : index
    %c0_78 = arith.constant 0 : index
    %140 = vector.load %arg14[%c0_75, %c0_76, %c0_77, %c0_78] : memref<1x3x1x32xf32, #tpu.memory_space<vmem>>, vector<1x1x1x32xf32>
    %141 = vector.shape_cast %140 : vector<1x1x1x32xf32> to vector<1x32xf32>
    %cst_79 = arith.constant dense<0.000000e+00> : vector<16xf32>
    %142 = vector.multi_reduction <add>, %137, %cst_79 [1] : vector<16x32xf32> to vector<16xf32>
    %143 = vector.shape_cast %142 : vector<16xf32> to vector<16x1xf32>
    %cst_80 = arith.constant 3.200000e+01 : f32
    %144 = vector.broadcast %cst_80 : f32 to vector<16x1xf32>
    %145 = arith.divf %143, %144 : vector<16x1xf32>
    %146 = vector.broadcast %145 : vector<16x1xf32> to vector<16x32xf32>
    %147 = arith.subf %137, %146 : vector<16x32xf32>
    %148 = arith.mulf %147, %147 : vector<16x32xf32>
    %cst_81 = arith.constant dense<0.000000e+00> : vector<16xf32>
    %149 = vector.multi_reduction <add>, %148, %cst_81 [1] : vector<16x32xf32> to vector<16xf32>
    %150 = vector.shape_cast %149 : vector<16xf32> to vector<16x1xf32>
    %cst_82 = arith.constant 3.200000e+01 : f32
    %151 = vector.broadcast %cst_82 : f32 to vector<16x1xf32>
    %152 = arith.divf %150, %151 : vector<16x1xf32>
    %153 = vector.broadcast %145 : vector<16x1xf32> to vector<16x32xf32>
    %154 = arith.subf %137, %153 : vector<16x32xf32>
    %cst_83 = arith.constant 9.99999974E-6 : f32
    %155 = vector.broadcast %cst_83 : f32 to vector<16x1xf32>
    %156 = arith.addf %152, %155 : vector<16x1xf32>
    %157 = math.rsqrt %156 : vector<16x1xf32>
    %158 = vector.broadcast %157 : vector<16x1xf32> to vector<16x32xf32>
    %159 = arith.mulf %154, %158 : vector<16x32xf32>
    %160 = vector.broadcast %139 : vector<1x32xf32> to vector<16x32xf32>
    %161 = arith.mulf %159, %160 : vector<16x32xf32>
    %162 = vector.broadcast %141 : vector<1x32xf32> to vector<16x32xf32>
    %163 = arith.addf %161, %162 : vector<16x32xf32>
    %c0_84 = arith.constant 0 : index
    %c0_85 = arith.constant 0 : index
    %164 = vector.load %arg4[%c0_84, %c0_85] : memref<16x16xf32, #tpu.memory_space<vmem>>, vector<16x16xf32>
    %c0_86 = arith.constant 0 : index
    %c0_87 = arith.constant 0 : index
    %c0_88 = arith.constant 0 : index
    %c0_89 = arith.constant 0 : index
    %165 = vector.load %arg8[%c0_86, %c0_87, %c0_88, %c0_89] : memref<1x3x32x32xbf16, #tpu.memory_space<vmem>>, vector<1x1x32x32xbf16>
    %166 = vector.shape_cast %165 : vector<1x1x32x32xbf16> to vector<32x32xbf16>
    %167 = arith.truncf %163 : vector<16x32xf32> to vector<16x32xbf16>
    %cst_90 = arith.constant dense<0.000000e+00> : vector<16x32xf32>
    %168 = tpu.matmul %167, %166, %cst_90 {dimension_numbers = #tpu.dot_dimension_numbers<[1], [0], [0], [1], [0, 0, 1, 1], [], []>} : vector<16x32xbf16>, vector<32x32xbf16>, vector<16x32xf32> -> vector<16x32xf32>
    %c0_91 = arith.constant 0 : index
    %c0_92 = arith.constant 0 : index
    %c0_93 = arith.constant 0 : index
    %c0_94 = arith.constant 0 : index
    %169 = vector.load %arg10[%c0_91, %c0_92, %c0_93, %c0_94] : memref<1x4x1x32xf32, #tpu.memory_space<vmem>>, vector<1x1x1x32xf32>
    %170 = vector.shape_cast %169 : vector<1x1x1x32xf32> to vector<1x32xf32>
    %171 = vector.broadcast %170 : vector<1x32xf32> to vector<16x32xf32>
    %172 = arith.addf %168, %171 : vector<16x32xf32>
    %cst_95 = arith.constant 0.353553385 : f32
    %173 = vector.broadcast %cst_95 : f32 to vector<16x32xf32>
    %174 = arith.mulf %172, %173 : vector<16x32xf32>
    %c0_96 = arith.constant 0 : index
    %c1_97 = arith.constant 1 : index
    %c0_98 = arith.constant 0 : index
    %c0_99 = arith.constant 0 : index
    %175 = vector.load %arg8[%c0_96, %c1_97, %c0_98, %c0_99] : memref<1x3x32x32xbf16, #tpu.memory_space<vmem>>, vector<1x1x32x32xbf16>
    %176 = vector.shape_cast %175 : vector<1x1x32x32xbf16> to vector<32x32xbf16>
    %177 = arith.truncf %4 : vector<16x32xf32> to vector<16x32xbf16>
    %cst_100 = arith.constant dense<0.000000e+00> : vector<16x32xf32>
    %178 = tpu.matmul %177, %176, %cst_100 {dimension_numbers = #tpu.dot_dimension_numbers<[1], [0], [0], [1], [0, 0, 1, 1], [], []>} : vector<16x32xbf16>, vector<32x32xbf16>, vector<16x32xf32> -> vector<16x32xf32>
    %c0_101 = arith.constant 0 : index
    %c1_102 = arith.constant 1 : index
    %c0_103 = arith.constant 0 : index
    %c0_104 = arith.constant 0 : index
    %179 = vector.load %arg10[%c0_101, %c1_102, %c0_103, %c0_104] : memref<1x4x1x32xf32, #tpu.memory_space<vmem>>, vector<1x1x1x32xf32>
    %180 = vector.shape_cast %179 : vector<1x1x1x32xf32> to vector<1x32xf32>
    %181 = vector.broadcast %180 : vector<1x32xf32> to vector<16x32xf32>
    %182 = arith.addf %178, %181 : vector<16x32xf32>
    %c0_105 = arith.constant 0 : index
    %c2_106 = arith.constant 2 : index
    %c0_107 = arith.constant 0 : index
    %c0_108 = arith.constant 0 : index
    %183 = vector.load %arg8[%c0_105, %c2_106, %c0_107, %c0_108] : memref<1x3x32x32xbf16, #tpu.memory_space<vmem>>, vector<1x1x32x32xbf16>
    %184 = vector.shape_cast %183 : vector<1x1x32x32xbf16> to vector<32x32xbf16>
    %185 = arith.truncf %4 : vector<16x32xf32> to vector<16x32xbf16>
    %cst_109 = arith.constant dense<0.000000e+00> : vector<16x32xf32>
    %186 = tpu.matmul %185, %184, %cst_109 {dimension_numbers = #tpu.dot_dimension_numbers<[1], [0], [0], [1], [0, 0, 1, 1], [], []>} : vector<16x32xbf16>, vector<32x32xbf16>, vector<16x32xf32> -> vector<16x32xf32>
    %c0_110 = arith.constant 0 : index
    %c2_111 = arith.constant 2 : index
    %c0_112 = arith.constant 0 : index
    %c0_113 = arith.constant 0 : index
    %187 = vector.load %arg10[%c0_110, %c2_111, %c0_112, %c0_113] : memref<1x4x1x32xf32, #tpu.memory_space<vmem>>, vector<1x1x1x32xf32>
    %188 = vector.shape_cast %187 : vector<1x1x1x32xf32> to vector<1x32xf32>
    %189 = vector.broadcast %188 : vector<1x32xf32> to vector<16x32xf32>
    %190 = arith.addf %186, %189 : vector<16x32xf32>
    %cst_114 = arith.constant 0.000000e+00 : f32
    %191 = vector.broadcast %cst_114 : f32 to vector<16x32xf32>
    %192 = vector.extract_strided_slice %174 {offsets = [0, 0], sizes = [16, 8], strides = [1, 1]} : vector<16x32xf32> to vector<16x8xf32>
    %193 = arith.truncf %192 : vector<16x8xf32> to vector<16x8xbf16>
    %194 = vector.extract_strided_slice %182 {offsets = [0, 0], sizes = [16, 8], strides = [1, 1]} : vector<16x32xf32> to vector<16x8xf32>
    %195 = arith.truncf %194 : vector<16x8xf32> to vector<16x8xbf16>
    %cst_115 = arith.constant dense<0.000000e+00> : vector<16x16xf32>
    %196 = tpu.matmul %193, %195, %cst_115 {dimension_numbers = #tpu.dot_dimension_numbers<[1], [1], [0], [0], [0, 0, 1, 0], [], []>} : vector<16x8xbf16>, vector<16x8xbf16>, vector<16x16xf32> -> vector<16x16xf32>
    %197 = arith.addf %196, %164 : vector<16x16xf32>
    %cst_116 = arith.constant dense<0xFF800000> : vector<16xf32>
    %198 = vector.multi_reduction <maximumf>, %197, %cst_116 [1] : vector<16x16xf32> to vector<16xf32>
    %199 = vector.shape_cast %198 : vector<16xf32> to vector<16x1xf32>
    %200 = vector.broadcast %199 : vector<16x1xf32> to vector<16x16xf32>
    %201 = arith.subf %197, %200 : vector<16x16xf32>
    %202 = math.exp %201 : vector<16x16xf32>
    %cst_117 = arith.constant dense<0.000000e+00> : vector<16xf32>
    %203 = vector.multi_reduction <add>, %202, %cst_117 [1] : vector<16x16xf32> to vector<16xf32>
    %204 = vector.shape_cast %203 : vector<16xf32> to vector<16x1xf32>
    %205 = tpu.reciprocal %204 {approx = true} : vector<16x1xf32> -> vector<16x1xf32>
    %206 = vector.broadcast %205 : vector<16x1xf32> to vector<16x16xf32>
    %207 = arith.mulf %202, %206 : vector<16x16xf32>
    %208 = arith.truncf %207 : vector<16x16xf32> to vector<16x16xbf16>
    %209 = vector.extract_strided_slice %190 {offsets = [0, 0], sizes = [16, 8], strides = [1, 1]} : vector<16x32xf32> to vector<16x8xf32>
    %210 = arith.truncf %209 : vector<16x8xf32> to vector<16x8xbf16>
    %cst_118 = arith.constant dense<0.000000e+00> : vector<16x8xf32>
    %211 = tpu.matmul %208, %210, %cst_118 {dimension_numbers = #tpu.dot_dimension_numbers<[1], [0], [0], [1], [0, 0, 1, 1], [], []>} : vector<16x16xbf16>, vector<16x8xbf16>, vector<16x8xf32> -> vector<16x8xf32>
    %c0_119 = arith.constant 0 : index
    %c0_120 = arith.constant 0 : index
    %c0_121 = arith.constant 0 : index
    %c0_122 = arith.constant 0 : index
    %212 = vector.load %arg9[%c0_119, %c0_120, %c0_121, %c0_122] : memref<1x4x8x32xbf16, #tpu.memory_space<vmem>>, vector<1x1x8x32xbf16>
    %213 = vector.shape_cast %212 : vector<1x1x8x32xbf16> to vector<8x32xbf16>
    %214 = arith.truncf %211 : vector<16x8xf32> to vector<16x8xbf16>
    %cst_123 = arith.constant dense<0.000000e+00> : vector<16x32xf32>
    %215 = tpu.matmul %214, %213, %cst_123 {dimension_numbers = #tpu.dot_dimension_numbers<[1], [0], [0], [1], [0, 0, 1, 1], [], []>} : vector<16x8xbf16>, vector<8x32xbf16>, vector<16x32xf32> -> vector<16x32xf32>
    %216 = arith.addf %191, %215 : vector<16x32xf32>
    %217 = vector.extract_strided_slice %174 {offsets = [0, 8], sizes = [16, 8], strides = [1, 1]} : vector<16x32xf32> to vector<16x8xf32>
    %218 = arith.truncf %217 : vector<16x8xf32> to vector<16x8xbf16>
    %219 = vector.extract_strided_slice %182 {offsets = [0, 8], sizes = [16, 8], strides = [1, 1]} : vector<16x32xf32> to vector<16x8xf32>
    %220 = arith.truncf %219 : vector<16x8xf32> to vector<16x8xbf16>
    %cst_124 = arith.constant dense<0.000000e+00> : vector<16x16xf32>
    %221 = tpu.matmul %218, %220, %cst_124 {dimension_numbers = #tpu.dot_dimension_numbers<[1], [1], [0], [0], [0, 0, 1, 0], [], []>} : vector<16x8xbf16>, vector<16x8xbf16>, vector<16x16xf32> -> vector<16x16xf32>
    %222 = arith.addf %221, %164 : vector<16x16xf32>
    %cst_125 = arith.constant dense<0xFF800000> : vector<16xf32>
    %223 = vector.multi_reduction <maximumf>, %222, %cst_125 [1] : vector<16x16xf32> to vector<16xf32>
    %224 = vector.shape_cast %223 : vector<16xf32> to vector<16x1xf32>
    %225 = vector.broadcast %224 : vector<16x1xf32> to vector<16x16xf32>
    %226 = arith.subf %222, %225 : vector<16x16xf32>
    %227 = math.exp %226 : vector<16x16xf32>
    %cst_126 = arith.constant dense<0.000000e+00> : vector<16xf32>
    %228 = vector.multi_reduction <add>, %227, %cst_126 [1] : vector<16x16xf32> to vector<16xf32>
    %229 = vector.shape_cast %228 : vector<16xf32> to vector<16x1xf32>
    %230 = tpu.reciprocal %229 {approx = true} : vector<16x1xf32> -> vector<16x1xf32>
    %231 = vector.broadcast %230 : vector<16x1xf32> to vector<16x16xf32>
    %232 = arith.mulf %227, %231 : vector<16x16xf32>
    %233 = arith.truncf %232 : vector<16x16xf32> to vector<16x16xbf16>
    %234 = vector.extract_strided_slice %190 {offsets = [0, 8], sizes = [16, 8], strides = [1, 1]} : vector<16x32xf32> to vector<16x8xf32>
    %235 = arith.truncf %234 : vector<16x8xf32> to vector<16x8xbf16>
    %cst_127 = arith.constant dense<0.000000e+00> : vector<16x8xf32>
    %236 = tpu.matmul %233, %235, %cst_127 {dimension_numbers = #tpu.dot_dimension_numbers<[1], [0], [0], [1], [0, 0, 1, 1], [], []>} : vector<16x16xbf16>, vector<16x8xbf16>, vector<16x8xf32> -> vector<16x8xf32>
    %c0_128 = arith.constant 0 : index
    %c1_129 = arith.constant 1 : index
    %c0_130 = arith.constant 0 : index
    %c0_131 = arith.constant 0 : index
    %237 = vector.load %arg9[%c0_128, %c1_129, %c0_130, %c0_131] : memref<1x4x8x32xbf16, #tpu.memory_space<vmem>>, vector<1x1x8x32xbf16>
    %238 = vector.shape_cast %237 : vector<1x1x8x32xbf16> to vector<8x32xbf16>
    %239 = arith.truncf %236 : vector<16x8xf32> to vector<16x8xbf16>
    %cst_132 = arith.constant dense<0.000000e+00> : vector<16x32xf32>
    %240 = tpu.matmul %239, %238, %cst_132 {dimension_numbers = #tpu.dot_dimension_numbers<[1], [0], [0], [1], [0, 0, 1, 1], [], []>} : vector<16x8xbf16>, vector<8x32xbf16>, vector<16x32xf32> -> vector<16x32xf32>
    %241 = arith.addf %216, %240 : vector<16x32xf32>
    %242 = vector.extract_strided_slice %174 {offsets = [0, 16], sizes = [16, 8], strides = [1, 1]} : vector<16x32xf32> to vector<16x8xf32>
    %243 = arith.truncf %242 : vector<16x8xf32> to vector<16x8xbf16>
    %244 = vector.extract_strided_slice %182 {offsets = [0, 16], sizes = [16, 8], strides = [1, 1]} : vector<16x32xf32> to vector<16x8xf32>
    %245 = arith.truncf %244 : vector<16x8xf32> to vector<16x8xbf16>
    %cst_133 = arith.constant dense<0.000000e+00> : vector<16x16xf32>
    %246 = tpu.matmul %243, %245, %cst_133 {dimension_numbers = #tpu.dot_dimension_numbers<[1], [1], [0], [0], [0, 0, 1, 0], [], []>} : vector<16x8xbf16>, vector<16x8xbf16>, vector<16x16xf32> -> vector<16x16xf32>
    %247 = arith.addf %246, %164 : vector<16x16xf32>
    %cst_134 = arith.constant dense<0xFF800000> : vector<16xf32>
    %248 = vector.multi_reduction <maximumf>, %247, %cst_134 [1] : vector<16x16xf32> to vector<16xf32>
    %249 = vector.shape_cast %248 : vector<16xf32> to vector<16x1xf32>
    %250 = vector.broadcast %249 : vector<16x1xf32> to vector<16x16xf32>
    %251 = arith.subf %247, %250 : vector<16x16xf32>
    %252 = math.exp %251 : vector<16x16xf32>
    %cst_135 = arith.constant dense<0.000000e+00> : vector<16xf32>
    %253 = vector.multi_reduction <add>, %252, %cst_135 [1] : vector<16x16xf32> to vector<16xf32>
    %254 = vector.shape_cast %253 : vector<16xf32> to vector<16x1xf32>
    %255 = tpu.reciprocal %254 {approx = true} : vector<16x1xf32> -> vector<16x1xf32>
    %256 = vector.broadcast %255 : vector<16x1xf32> to vector<16x16xf32>
    %257 = arith.mulf %252, %256 : vector<16x16xf32>
    %258 = arith.truncf %257 : vector<16x16xf32> to vector<16x16xbf16>
    %259 = vector.extract_strided_slice %190 {offsets = [0, 16], sizes = [16, 8], strides = [1, 1]} : vector<16x32xf32> to vector<16x8xf32>
    %260 = arith.truncf %259 : vector<16x8xf32> to vector<16x8xbf16>
    %cst_136 = arith.constant dense<0.000000e+00> : vector<16x8xf32>
    %261 = tpu.matmul %258, %260, %cst_136 {dimension_numbers = #tpu.dot_dimension_numbers<[1], [0], [0], [1], [0, 0, 1, 1], [], []>} : vector<16x16xbf16>, vector<16x8xbf16>, vector<16x8xf32> -> vector<16x8xf32>
    %c0_137 = arith.constant 0 : index
    %c2_138 = arith.constant 2 : index
    %c0_139 = arith.constant 0 : index
    %c0_140 = arith.constant 0 : index
    %262 = vector.load %arg9[%c0_137, %c2_138, %c0_139, %c0_140] : memref<1x4x8x32xbf16, #tpu.memory_space<vmem>>, vector<1x1x8x32xbf16>
    %263 = vector.shape_cast %262 : vector<1x1x8x32xbf16> to vector<8x32xbf16>
    %264 = arith.truncf %261 : vector<16x8xf32> to vector<16x8xbf16>
    %cst_141 = arith.constant dense<0.000000e+00> : vector<16x32xf32>
    %265 = tpu.matmul %264, %263, %cst_141 {dimension_numbers = #tpu.dot_dimension_numbers<[1], [0], [0], [1], [0, 0, 1, 1], [], []>} : vector<16x8xbf16>, vector<8x32xbf16>, vector<16x32xf32> -> vector<16x32xf32>
    %266 = arith.addf %241, %265 : vector<16x32xf32>
    %267 = vector.extract_strided_slice %174 {offsets = [0, 24], sizes = [16, 8], strides = [1, 1]} : vector<16x32xf32> to vector<16x8xf32>
    %268 = arith.truncf %267 : vector<16x8xf32> to vector<16x8xbf16>
    %269 = vector.extract_strided_slice %182 {offsets = [0, 24], sizes = [16, 8], strides = [1, 1]} : vector<16x32xf32> to vector<16x8xf32>
    %270 = arith.truncf %269 : vector<16x8xf32> to vector<16x8xbf16>
    %cst_142 = arith.constant dense<0.000000e+00> : vector<16x16xf32>
    %271 = tpu.matmul %268, %270, %cst_142 {dimension_numbers = #tpu.dot_dimension_numbers<[1], [1], [0], [0], [0, 0, 1, 0], [], []>} : vector<16x8xbf16>, vector<16x8xbf16>, vector<16x16xf32> -> vector<16x16xf32>
    %272 = arith.addf %271, %164 : vector<16x16xf32>
    %cst_143 = arith.constant dense<0xFF800000> : vector<16xf32>
    %273 = vector.multi_reduction <maximumf>, %272, %cst_143 [1] : vector<16x16xf32> to vector<16xf32>
    %274 = vector.shape_cast %273 : vector<16xf32> to vector<16x1xf32>
    %275 = vector.broadcast %274 : vector<16x1xf32> to vector<16x16xf32>
    %276 = arith.subf %272, %275 : vector<16x16xf32>
    %277 = math.exp %276 : vector<16x16xf32>
    %cst_144 = arith.constant dense<0.000000e+00> : vector<16xf32>
    %278 = vector.multi_reduction <add>, %277, %cst_144 [1] : vector<16x16xf32> to vector<16xf32>
    %279 = vector.shape_cast %278 : vector<16xf32> to vector<16x1xf32>
    %280 = tpu.reciprocal %279 {approx = true} : vector<16x1xf32> -> vector<16x1xf32>
    %281 = vector.broadcast %280 : vector<16x1xf32> to vector<16x16xf32>
    %282 = arith.mulf %277, %281 : vector<16x16xf32>
    %283 = arith.truncf %282 : vector<16x16xf32> to vector<16x16xbf16>
    %284 = vector.extract_strided_slice %190 {offsets = [0, 24], sizes = [16, 8], strides = [1, 1]} : vector<16x32xf32> to vector<16x8xf32>
    %285 = arith.truncf %284 : vector<16x8xf32> to vector<16x8xbf16>
    %cst_145 = arith.constant dense<0.000000e+00> : vector<16x8xf32>
    %286 = tpu.matmul %283, %285, %cst_145 {dimension_numbers = #tpu.dot_dimension_numbers<[1], [0], [0], [1], [0, 0, 1, 1], [], []>} : vector<16x16xbf16>, vector<16x8xbf16>, vector<16x8xf32> -> vector<16x8xf32>
    %c0_146 = arith.constant 0 : index
    %c3_147 = arith.constant 3 : index
    %c0_148 = arith.constant 0 : index
    %c0_149 = arith.constant 0 : index
    %287 = vector.load %arg9[%c0_146, %c3_147, %c0_148, %c0_149] : memref<1x4x8x32xbf16, #tpu.memory_space<vmem>>, vector<1x1x8x32xbf16>
    %288 = vector.shape_cast %287 : vector<1x1x8x32xbf16> to vector<8x32xbf16>
    %289 = arith.truncf %286 : vector<16x8xf32> to vector<16x8xbf16>
    %cst_150 = arith.constant dense<0.000000e+00> : vector<16x32xf32>
    %290 = tpu.matmul %289, %288, %cst_150 {dimension_numbers = #tpu.dot_dimension_numbers<[1], [0], [0], [1], [0, 0, 1, 1], [], []>} : vector<16x8xbf16>, vector<8x32xbf16>, vector<16x32xf32> -> vector<16x32xf32>
    %291 = arith.addf %266, %290 : vector<16x32xf32>
    %c0_151 = arith.constant 0 : index
    %c3_152 = arith.constant 3 : index
    %c0_153 = arith.constant 0 : index
    %c0_154 = arith.constant 0 : index
    %292 = vector.load %arg10[%c0_151, %c3_152, %c0_153, %c0_154] : memref<1x4x1x32xf32, #tpu.memory_space<vmem>>, vector<1x1x1x32xf32>
    %293 = vector.shape_cast %292 : vector<1x1x1x32xf32> to vector<1x32xf32>
    %294 = vector.broadcast %293 : vector<1x32xf32> to vector<16x32xf32>
    %295 = arith.addf %291, %294 : vector<16x32xf32>
    %296 = arith.addf %163, %295 : vector<16x32xf32>
    %c0_155 = arith.constant 0 : index
    %c1_156 = arith.constant 1 : index
    %c0_157 = arith.constant 0 : index
    %c0_158 = arith.constant 0 : index
    %297 = vector.load %arg13[%c0_155, %c1_156, %c0_157, %c0_158] : memref<1x3x1x32xf32, #tpu.memory_space<vmem>>, vector<1x1x1x32xf32>
    %298 = vector.shape_cast %297 : vector<1x1x1x32xf32> to vector<1x32xf32>
    %c0_159 = arith.constant 0 : index
    %c1_160 = arith.constant 1 : index
    %c0_161 = arith.constant 0 : index
    %c0_162 = arith.constant 0 : index
    %299 = vector.load %arg14[%c0_159, %c1_160, %c0_161, %c0_162] : memref<1x3x1x32xf32, #tpu.memory_space<vmem>>, vector<1x1x1x32xf32>
    %300 = vector.shape_cast %299 : vector<1x1x1x32xf32> to vector<1x32xf32>
    %cst_163 = arith.constant dense<0.000000e+00> : vector<16xf32>
    %301 = vector.multi_reduction <add>, %296, %cst_163 [1] : vector<16x32xf32> to vector<16xf32>
    %302 = vector.shape_cast %301 : vector<16xf32> to vector<16x1xf32>
    %cst_164 = arith.constant 3.200000e+01 : f32
    %303 = vector.broadcast %cst_164 : f32 to vector<16x1xf32>
    %304 = arith.divf %302, %303 : vector<16x1xf32>
    %305 = vector.broadcast %304 : vector<16x1xf32> to vector<16x32xf32>
    %306 = arith.subf %296, %305 : vector<16x32xf32>
    %307 = arith.mulf %306, %306 : vector<16x32xf32>
    %cst_165 = arith.constant dense<0.000000e+00> : vector<16xf32>
    %308 = vector.multi_reduction <add>, %307, %cst_165 [1] : vector<16x32xf32> to vector<16xf32>
    %309 = vector.shape_cast %308 : vector<16xf32> to vector<16x1xf32>
    %cst_166 = arith.constant 3.200000e+01 : f32
    %310 = vector.broadcast %cst_166 : f32 to vector<16x1xf32>
    %311 = arith.divf %309, %310 : vector<16x1xf32>
    %312 = vector.broadcast %304 : vector<16x1xf32> to vector<16x32xf32>
    %313 = arith.subf %296, %312 : vector<16x32xf32>
    %cst_167 = arith.constant 9.99999974E-6 : f32
    %314 = vector.broadcast %cst_167 : f32 to vector<16x1xf32>
    %315 = arith.addf %311, %314 : vector<16x1xf32>
    %316 = math.rsqrt %315 : vector<16x1xf32>
    %317 = vector.broadcast %316 : vector<16x1xf32> to vector<16x32xf32>
    %318 = arith.mulf %313, %317 : vector<16x32xf32>
    %319 = vector.broadcast %298 : vector<1x32xf32> to vector<16x32xf32>
    %320 = arith.mulf %318, %319 : vector<16x32xf32>
    %321 = vector.broadcast %300 : vector<1x32xf32> to vector<16x32xf32>
    %322 = arith.addf %320, %321 : vector<16x32xf32>
    %c0_168 = arith.constant 0 : index
    %c0_169 = arith.constant 0 : index
    %c0_170 = arith.constant 0 : index
    %c0_171 = arith.constant 0 : index
    %323 = vector.load %arg11[%c0_168, %c0_169, %c0_170, %c0_171] : memref<1x2x32x32xbf16, #tpu.memory_space<vmem>>, vector<1x1x32x32xbf16>
    %324 = vector.shape_cast %323 : vector<1x1x32x32xbf16> to vector<32x32xbf16>
    %325 = arith.truncf %322 : vector<16x32xf32> to vector<16x32xbf16>
    %cst_172 = arith.constant dense<0.000000e+00> : vector<16x32xf32>
    %326 = tpu.matmul %325, %324, %cst_172 {dimension_numbers = #tpu.dot_dimension_numbers<[1], [0], [0], [1], [0, 0, 1, 1], [], []>} : vector<16x32xbf16>, vector<32x32xbf16>, vector<16x32xf32> -> vector<16x32xf32>
    %c0_173 = arith.constant 0 : index
    %c0_174 = arith.constant 0 : index
    %c0_175 = arith.constant 0 : index
    %c0_176 = arith.constant 0 : index
    %327 = vector.load %arg12[%c0_173, %c0_174, %c0_175, %c0_176] : memref<1x2x1x32xf32, #tpu.memory_space<vmem>>, vector<1x1x1x32xf32>
    %328 = vector.shape_cast %327 : vector<1x1x1x32xf32> to vector<1x32xf32>
    %329 = vector.broadcast %328 : vector<1x32xf32> to vector<16x32xf32>
    %330 = arith.addf %326, %329 : vector<16x32xf32>
    %cst_177 = arith.constant 0.000000e+00 : f32
    %331 = vector.broadcast %cst_177 : f32 to vector<16x32xf32>
    %332 = arith.maximumf %330, %331 : vector<16x32xf32>
    %c0_178 = arith.constant 0 : index
    %c1_179 = arith.constant 1 : index
    %c0_180 = arith.constant 0 : index
    %c0_181 = arith.constant 0 : index
    %333 = vector.load %arg11[%c0_178, %c1_179, %c0_180, %c0_181] : memref<1x2x32x32xbf16, #tpu.memory_space<vmem>>, vector<1x1x32x32xbf16>
    %334 = vector.shape_cast %333 : vector<1x1x32x32xbf16> to vector<32x32xbf16>
    %335 = arith.truncf %332 : vector<16x32xf32> to vector<16x32xbf16>
    %cst_182 = arith.constant dense<0.000000e+00> : vector<16x32xf32>
    %336 = tpu.matmul %335, %334, %cst_182 {dimension_numbers = #tpu.dot_dimension_numbers<[1], [0], [0], [1], [0, 0, 1, 1], [], []>} : vector<16x32xbf16>, vector<32x32xbf16>, vector<16x32xf32> -> vector<16x32xf32>
    %c0_183 = arith.constant 0 : index
    %c1_184 = arith.constant 1 : index
    %c0_185 = arith.constant 0 : index
    %c0_186 = arith.constant 0 : index
    %337 = vector.load %arg12[%c0_183, %c1_184, %c0_185, %c0_186] : memref<1x2x1x32xf32, #tpu.memory_space<vmem>>, vector<1x1x1x32xf32>
    %338 = vector.shape_cast %337 : vector<1x1x1x32xf32> to vector<1x32xf32>
    %339 = vector.broadcast %338 : vector<1x32xf32> to vector<16x32xf32>
    %340 = arith.addf %336, %339 : vector<16x32xf32>
    %341 = arith.addf %322, %340 : vector<16x32xf32>
    %c0_187 = arith.constant 0 : index
    %c2_188 = arith.constant 2 : index
    %c0_189 = arith.constant 0 : index
    %c0_190 = arith.constant 0 : index
    %342 = vector.load %arg13[%c0_187, %c2_188, %c0_189, %c0_190] : memref<1x3x1x32xf32, #tpu.memory_space<vmem>>, vector<1x1x1x32xf32>
    %343 = vector.shape_cast %342 : vector<1x1x1x32xf32> to vector<1x32xf32>
    %c0_191 = arith.constant 0 : index
    %c2_192 = arith.constant 2 : index
    %c0_193 = arith.constant 0 : index
    %c0_194 = arith.constant 0 : index
    %344 = vector.load %arg14[%c0_191, %c2_192, %c0_193, %c0_194] : memref<1x3x1x32xf32, #tpu.memory_space<vmem>>, vector<1x1x1x32xf32>
    %345 = vector.shape_cast %344 : vector<1x1x1x32xf32> to vector<1x32xf32>
    %cst_195 = arith.constant dense<0.000000e+00> : vector<16xf32>
    %346 = vector.multi_reduction <add>, %341, %cst_195 [1] : vector<16x32xf32> to vector<16xf32>
    %347 = vector.shape_cast %346 : vector<16xf32> to vector<16x1xf32>
    %cst_196 = arith.constant 3.200000e+01 : f32
    %348 = vector.broadcast %cst_196 : f32 to vector<16x1xf32>
    %349 = arith.divf %347, %348 : vector<16x1xf32>
    %350 = vector.broadcast %349 : vector<16x1xf32> to vector<16x32xf32>
    %351 = arith.subf %341, %350 : vector<16x32xf32>
    %352 = arith.mulf %351, %351 : vector<16x32xf32>
    %cst_197 = arith.constant dense<0.000000e+00> : vector<16xf32>
    %353 = vector.multi_reduction <add>, %352, %cst_197 [1] : vector<16x32xf32> to vector<16xf32>
    %354 = vector.shape_cast %353 : vector<16xf32> to vector<16x1xf32>
    %cst_198 = arith.constant 3.200000e+01 : f32
    %355 = vector.broadcast %cst_198 : f32 to vector<16x1xf32>
    %356 = arith.divf %354, %355 : vector<16x1xf32>
    %357 = vector.broadcast %349 : vector<16x1xf32> to vector<16x32xf32>
    %358 = arith.subf %341, %357 : vector<16x32xf32>
    %cst_199 = arith.constant 9.99999974E-6 : f32
    %359 = vector.broadcast %cst_199 : f32 to vector<16x1xf32>
    %360 = arith.addf %356, %359 : vector<16x1xf32>
    %361 = math.rsqrt %360 : vector<16x1xf32>
    %362 = vector.broadcast %361 : vector<16x1xf32> to vector<16x32xf32>
    %363 = arith.mulf %358, %362 : vector<16x32xf32>
    %364 = vector.broadcast %343 : vector<1x32xf32> to vector<16x32xf32>
    %365 = arith.mulf %363, %364 : vector<16x32xf32>
    %366 = vector.broadcast %345 : vector<1x32xf32> to vector<16x32xf32>
    %367 = arith.addf %365, %366 : vector<16x32xf32>
    %c0_200 = arith.constant 0 : index
    %c0_201 = arith.constant 0 : index
    %368 = vector.load %arg20[%c0_200, %c0_201] : memref<16x32xf32, #tpu.memory_space<vmem>>, vector<16x32xf32>
    tpu.vector_store %arg20[%c0_200, %c0_201], %367 {strides = array<i32>} : memref<16x32xf32, #tpu.memory_space<vmem>>, vector<16x32xf32>,
    %c1_i32 = arith.constant 1 : i32
    %369 = arith.cmpi eq, %arg0, %c1_i32 : i32
    %370 = arith.extui %369 : i1 to i32
    %c0_i32_202 = arith.constant 0 : i32
    %371 = arith.cmpi ne, %370, %c0_i32_202 : i32
    scf.if %371 {
      %c0_203 = arith.constant 0 : index
      %c0_204 = arith.constant 0 : index
      %372 = vector.load %arg15[%c0_203, %c0_204] : memref<1x32xf32, #tpu.memory_space<vmem>>, vector<1x32xf32>
      %c0_205 = arith.constant 0 : index
      %c0_206 = arith.constant 0 : index
      %373 = vector.load %arg16[%c0_205, %c0_206] : memref<1x32xf32, #tpu.memory_space<vmem>>, vector<1x32xf32>
      %cst_207 = arith.constant dense<0.000000e+00> : vector<16xf32>
      %374 = vector.multi_reduction <add>, %367, %cst_207 [1] : vector<16x32xf32> to vector<16xf32>
      %375 = vector.shape_cast %374 : vector<16xf32> to vector<16x1xf32>
      %cst_208 = arith.constant 3.200000e+01 : f32
      %376 = vector.broadcast %cst_208 : f32 to vector<16x1xf32>
      %377 = arith.divf %375, %376 : vector<16x1xf32>
      %378 = vector.broadcast %377 : vector<16x1xf32> to vector<16x32xf32>
      %379 = arith.subf %367, %378 : vector<16x32xf32>
      %380 = arith.mulf %379, %379 : vector<16x32xf32>
      %cst_209 = arith.constant dense<0.000000e+00> : vector<16xf32>
      %381 = vector.multi_reduction <add>, %380, %cst_209 [1] : vector<16x32xf32> to vector<16xf32>
      %382 = vector.shape_cast %381 : vector<16xf32> to vector<16x1xf32>
      %cst_210 = arith.constant 3.200000e+01 : f32
      %383 = vector.broadcast %cst_210 : f32 to vector<16x1xf32>
      %384 = arith.divf %382, %383 : vector<16x1xf32>
      %385 = vector.broadcast %377 : vector<16x1xf32> to vector<16x32xf32>
      %386 = arith.subf %367, %385 : vector<16x32xf32>
      %cst_211 = arith.constant 9.99999974E-6 : f32
      %387 = vector.broadcast %cst_211 : f32 to vector<16x1xf32>
      %388 = arith.addf %384, %387 : vector<16x1xf32>
      %389 = math.rsqrt %388 : vector<16x1xf32>
      %390 = vector.broadcast %389 : vector<16x1xf32> to vector<16x32xf32>
      %391 = arith.mulf %386, %390 : vector<16x32xf32>
      %392 = vector.broadcast %372 : vector<1x32xf32> to vector<16x32xf32>
      %393 = arith.mulf %391, %392 : vector<16x32xf32>
      %394 = vector.broadcast %373 : vector<1x32xf32> to vector<16x32xf32>
      %395 = arith.addf %393, %394 : vector<16x32xf32>
      %c0_212 = arith.constant 0 : index
      %c0_213 = arith.constant 0 : index
      %396 = vector.load %arg17[%c0_212, %c0_213] : memref<32x32xbf16, #tpu.memory_space<vmem>>, vector<32x32xbf16>
      %397 = arith.truncf %395 : vector<16x32xf32> to vector<16x32xbf16>
      %cst_214 = arith.constant dense<0.000000e+00> : vector<16x32xf32>
      %398 = tpu.matmul %397, %396, %cst_214 {dimension_numbers = #tpu.dot_dimension_numbers<[1], [0], [0], [1], [0, 0, 1, 1], [], []>} : vector<16x32xbf16>, vector<32x32xbf16>, vector<16x32xf32> -> vector<16x32xf32>
      %c0_215 = arith.constant 0 : index
      %c0_216 = arith.constant 0 : index
      %399 = vector.load %arg18[%c0_215, %c0_216] : memref<1x32xf32, #tpu.memory_space<vmem>>, vector<1x32xf32>
      %400 = vector.broadcast %399 : vector<1x32xf32> to vector<16x32xf32>
      %401 = arith.addf %398, %400 : vector<16x32xf32>
      %c0_217 = arith.constant 0 : index
      %c0_218 = arith.constant 0 : index
      %402 = vector.load %arg19[%c0_217, %c0_218] : memref<16x32xf32, #tpu.memory_space<vmem>>, vector<16x32xf32>
      tpu.vector_store %arg19[%c0_217, %c0_218], %401 {strides = array<i32>} : memref<16x32xf32, #tpu.memory_space<vmem>>, vector<16x32xf32>,
    } else {
    }
    return
  }
  func.func @transform_0(%arg0: i32) -> (i32, i32) {
    %c0_i32 = arith.constant 0 : i32
    %c0_i32_0 = arith.constant 0 : i32
    %c0_i32_1 = arith.constant 0 : i32
    return %c0_i32, %c0_i32_0 : i32, i32
  }
  func.func @transform_1(%arg0: i32) -> (i32, i32) {
    %c0_i32 = arith.constant 0 : i32
    %c0_i32_0 = arith.constant 0 : i32
    %c0_i32_1 = arith.constant 0 : i32
    return %c0_i32, %c0_i32_0 : i32, i32
  }
  func.func @transform_2(%arg0: i32) -> (i32, i32) {
    %c0_i32 = arith.constant 0 : i32
    %c0_i32_0 = arith.constant 0 : i32
    %c0_i32_1 = arith.constant 0 : i32
    return %c0_i32, %c0_i32_0 : i32, i32
  }
  func.func @transform_3(%arg0: i32) -> (i32, i32) {
    %c0_i32 = arith.constant 0 : i32
    %c0_i32_0 = arith.constant 0 : i32
    %c0_i32_1 = arith.constant 0 : i32
    return %c0_i32, %c0_i32_0 : i32, i32
  }
  func.func @transform_4(%arg0: i32) -> (i32, i32, i32, i32) {
    %c0_i32 = arith.constant 0 : i32
    %c0_i32_0 = arith.constant 0 : i32
    %c0_i32_1 = arith.constant 0 : i32
    %c0_i32_2 = arith.constant 0 : i32
    return %arg0, %c0_i32, %c0_i32_0, %c0_i32_1 : i32, i32, i32, i32
  }
  func.func @transform_5(%arg0: i32) -> (i32, i32, i32, i32) {
    %c0_i32 = arith.constant 0 : i32
    %c0_i32_0 = arith.constant 0 : i32
    %c0_i32_1 = arith.constant 0 : i32
    %c0_i32_2 = arith.constant 0 : i32
    return %arg0, %c0_i32, %c0_i32_0, %c0_i32_1 : i32, i32, i32, i32
  }
  func.func @transform_6(%arg0: i32) -> (i32, i32, i32, i32) {
    %c0_i32 = arith.constant 0 : i32
    %c0_i32_0 = arith.constant 0 : i32
    %c0_i32_1 = arith.constant 0 : i32
    %c0_i32_2 = arith.constant 0 : i32
    return %arg0, %c0_i32, %c0_i32_0, %c0_i32_1 : i32, i32, i32, i32
  }
  func.func @transform_7(%arg0: i32) -> (i32, i32, i32, i32) {
    %c0_i32 = arith.constant 0 : i32
    %c0_i32_0 = arith.constant 0 : i32
    %c0_i32_1 = arith.constant 0 : i32
    %c0_i32_2 = arith.constant 0 : i32
    return %arg0, %c0_i32, %c0_i32_0, %c0_i32_1 : i32, i32, i32, i32
  }
  func.func @transform_8(%arg0: i32) -> (i32, i32, i32, i32) {
    %c0_i32 = arith.constant 0 : i32
    %c0_i32_0 = arith.constant 0 : i32
    %c0_i32_1 = arith.constant 0 : i32
    %c0_i32_2 = arith.constant 0 : i32
    return %arg0, %c0_i32, %c0_i32_0, %c0_i32_1 : i32, i32, i32, i32
  }
  func.func @transform_9(%arg0: i32) -> (i32, i32, i32, i32) {
    %c0_i32 = arith.constant 0 : i32
    %c0_i32_0 = arith.constant 0 : i32
    %c0_i32_1 = arith.constant 0 : i32
    %c0_i32_2 = arith.constant 0 : i32
    return %arg0, %c0_i32, %c0_i32_0, %c0_i32_1 : i32, i32, i32, i32
  }
  func.func @transform_10(%arg0: i32) -> (i32, i32, i32, i32) {
    %c0_i32 = arith.constant 0 : i32
    %c0_i32_0 = arith.constant 0 : i32
    %c0_i32_1 = arith.constant 0 : i32
    %c0_i32_2 = arith.constant 0 : i32
    return %arg0, %c0_i32, %c0_i32_0, %c0_i32_1 : i32, i32, i32, i32
  }
  func.func @transform_11(%arg0: i32) -> (i32, i32, i32, i32) {
    %c0_i32 = arith.constant 0 : i32
    %c0_i32_0 = arith.constant 0 : i32
    %c0_i32_1 = arith.constant 0 : i32
    %c0_i32_2 = arith.constant 0 : i32
    return %arg0, %c0_i32, %c0_i32_0, %c0_i32_1 : i32, i32, i32, i32
  }
  func.func @transform_12(%arg0: i32) -> (i32, i32, i32, i32) {
    %c0_i32 = arith.constant 0 : i32
    %c0_i32_0 = arith.constant 0 : i32
    %c0_i32_1 = arith.constant 0 : i32
    %c0_i32_2 = arith.constant 0 : i32
    return %arg0, %c0_i32, %c0_i32_0, %c0_i32_1 : i32, i32, i32, i32
  }
  func.func @transform_13(%arg0: i32) -> (i32, i32, i32, i32) {
    %c0_i32 = arith.constant 0 : i32
    %c0_i32_0 = arith.constant 0 : i32
    %c0_i32_1 = arith.constant 0 : i32
    %c0_i32_2 = arith.constant 0 : i32
    return %arg0, %c0_i32, %c0_i32_0, %c0_i32_1 : i32, i32, i32, i32
  }
  func.func @transform_14(%arg0: i32) -> (i32, i32) {
    %c0_i32 = arith.constant 0 : i32
    %c0_i32_0 = arith.constant 0 : i32
    %c0_i32_1 = arith.constant 0 : i32
    return %c0_i32, %c0_i32_0 : i32, i32
  }
  func.func @transform_15(%arg0: i32) -> (i32, i32) {
    %c0_i32 = arith.constant 0 : i32
    %c0_i32_0 = arith.constant 0 : i32
    %c0_i32_1 = arith.constant 0 : i32
    return %c0_i32, %c0_i32_0 : i32, i32
  }
  func.func @transform_16(%arg0: i32) -> (i32, i32) {
    %c0_i32 = arith.constant 0 : i32
    %c0_i32_0 = arith.constant 0 : i32
    %c0_i32_1 = arith.constant 0 : i32
    return %c0_i32, %c0_i32_0 : i32, i32
  }
  func.func @transform_17(%arg0: i32) -> (i32, i32) {
    %c0_i32 = arith.constant 0 : i32
    %c0_i32_0 = arith.constant 0 : i32
    %c0_i32_1 = arith.constant 0 : i32
    return %c0_i32, %c0_i32_0 : i32, i32
  }
  func.func @transform_18(%arg0: i32) -> (i32, i32) {
    %c0_i32 = arith.constant 0 : i32
    %c0_i32_0 = arith.constant 0 : i32
    %c0_i32_1 = arith.constant 0 : i32
    return %c0_i32, %c0_i32_0 : i32, i32
  }
}

</mosaic_0001>

<llo_original>
// kernel: transformer_forward.3
$region0: #{transformer_forward.3}
  #allocation0 [shape = 'u32[]', space=smem, size = 0x4, offset = 0x4, fixed_abs, tag = 'smem constant byte address 0x4 - core index']
  #allocation1 [shape = 'u32[144,128]{1,0:T(1,128)}', space=vmem, size = 0x12000, scoped, tag = 'internal scratch']
  %s0 = inlined_call_operand.vmem [shape: f32[32,16], index: 0, kind: input, shape index: {}]
  %s1 = inlined_call_operand.vmem [shape: f32[32,32], index: 1, kind: input, shape index: {}]
  %s2 = inlined_call_operand.vmem [shape: bf16[16,32], index: 2, kind: input, shape index: {}]
  %s3 = inlined_call_operand.vmem [shape: f32[1,32], index: 3, kind: input, shape index: {}]
  %s4 = inlined_call_operand.vmem [shape: f32[32,32], index: 4, kind: output, shape index: {}]
  %s5 = sld [smem:[#allocation0]]
  $region26: #{transformer_forward.3} parent=0
    _
  %s7 = ssub.s32 1, %s5
  %s8 = scalar_select 0, %s7, %s5
  // Predicated region
  $region2: #{transformer_forward.3} parent=0 // pred_check
    _
  $region3: #{transformer_forward.3} parent=0 // pred_check_branch
    %10 = sbr.rel (0) target = $region5
  $region4: #{transformer_forward.3} parent=0 // pred_region
    _
  $region5: #{transformer_forward.3} parent=0 // pred_fallthru
    _
  // Predicated region
  $region6: #{transformer_forward.3} parent=0 // pred_check
    _
  $region7: #{transformer_forward.3} parent=0 // pred_check_branch
    %12 = sbr.rel (0) target = $region9
  $region8: #{transformer_forward.3} parent=0 // pred_region
    _
  $region9: #{transformer_forward.3} parent=0 // pred_fallthru
    _
  // Predicated region
  $region10: #{transformer_forward.3} parent=0 // pred_check
    _
  $region11: #{transformer_forward.3} parent=0 // pred_check_branch
    %14 = sbr.rel (0) target = $region13
  $region12: #{transformer_forward.3} parent=0 // pred_region
    _
  $region13: #{transformer_forward.3} parent=0 // pred_fallthru
    _
  // Predicated region
  $region14: #{transformer_forward.3} parent=0 // pred_check
    _
  $region15: #{transformer_forward.3} parent=0 // pred_check_branch
    %16 = sbr.rel (0) target = $region17
  $region16: #{transformer_forward.3} parent=0 // pred_region
    _
  $region17: #{transformer_forward.3} parent=0 // pred_fallthru
    _
  %v18 = vld [vmem:[%s0] sm:$0xff]
  %v19 = vld [vmem:[%s0 + $0x8] sm:$0xff]
  %v20 = vld [vmem:[%s0 + $0x10] sm:$0xff]
  %v21 = vld [vmem:[%s0 + $0x18] sm:$0xff]
  %v22 = vld [vmem:[%s2] sm:$0xf]
  %v23 = vld [vmem:[%s2 + $0x4] sm:$0xf]
  %v24 = vpack.c.bf16 %v19, %v18
  %v25 = vpack.c.bf16 %v21, %v20
  %v26 = vld [vmem:[%s3] sm:$0x1]
  %v28 = vlaneseq
  %v29 = vshrl.u32 %v28, 7
  %v30 = vsub.s32 0, %v29
  %v31 = vrot.slane %v26, %v30
  %v35 = vunpack.c.l.b16 %v22
  %v36 = vunpack.c.l.b16 %v23
  %v37 = vpack.c.b16 %v36, %v35
  %vm39 = vcmask 130048
  %v41 = vsel %vm39, %v24, 0
  %v44 = vsel %vm39, %v25, 0
  %46 = vmatprep.subr.bf16.mxu0 0
  %47 = vmatpush1.bf16.msra.mxu0 %v37
  %48 = vmatprep.subr.bf16.mxu0 0
  %49 = vmatpush1.bf16.msra.mxu0 0
  %50 = vmatprep.subr.bf16.mxu0 0
  %51 = vmatpush1.bf16.msra.mxu0 0
  %52 = vmatprep.subr.bf16.mxu0 0
  %53 = vmatpush1.bf16.msra.mxu0 0
  %54 = vmatprep.subr.bf16.mxu0 0
  %55 = vmatpush1.bf16.msra.mxu0 0
  %56 = vmatprep.subr.bf16.mxu0 0
  %57 = vmatpush1.bf16.msra.mxu0 0
  %58 = vmatprep.subr.bf16.mxu0 0
  %59 = vmatpush1.bf16.msra.mxu0 0
  %60 = vmatprep.subr.bf16.mxu0 0
  %61 = vmatpush1.bf16.msra.mxu0 0
  %62 = vmatprep.subr.bf16.mxu0 0
  %63 = vmatpush1.bf16.msra.mxu0 0
  %64 = vmatprep.subr.bf16.mxu0 0
  %65 = vmatpush1.bf16.msra.mxu0 0
  %66 = vmatprep.subr.bf16.mxu0 0
  %67 = vmatpush1.bf16.msra.mxu0 0
  %68 = vmatprep.subr.bf16.mxu0 0
  %69 = vmatpush1.bf16.msra.mxu0 0
  %70 = vmatprep.subr.bf16.mxu0 0
  %71 = vmatpush1.bf16.msra.mxu0 0
  %72 = vmatprep.subr.bf16.mxu0 0
  %73 = vmatpush1.bf16.msra.mxu0 0
  %74 = vmatprep.subr.bf16.mxu0 0
  %75 = vmatpush1.bf16.msra.mxu0 0
  %76 = vmatprep.subr.bf16.mxu0 0
  %77 = vmatpush1.bf16.msra.mxu0 0
  %78 = vmatprep.mubr.bf16.mxu0 0
  %79 = vmatmul.mubr.bf16.gmra.mrb[0].mxu0 %v41
  %v80 = vpop.f32.mrb[0].mxu0
  %v81 = vadd.f32 %v31, %v80
  %v82 = vpop.f32.mrb[0].mxu0
  %v83 = vpop.f32.mrb[0].mxu0
  %v84 = vadd.f32 %v31, %v83
  %v85 = vpop.f32.mrb[0].mxu0
  %86 = vmatprep.mubr.bf16.mxu0 0
  %87 = vmatmul.mubr.bf16.gmra.mrb[0].mxu0 %v44
  %v88 = vpop.f32.mrb[0].mxu0
  %v89 = vadd.f32 %v31, %v88
  %v90 = vpop.f32.mrb[0].mxu0
  %v91 = vpop.f32.mrb[0].mxu0
  %v92 = vadd.f32 %v31, %v91
  %v93 = vpop.f32.mrb[0].mxu0
  %94 = vdwg.mxu0
  %v95 = vld [vmem:[%s1] sm:$0xff]
  %v96 = vld [vmem:[%s1 + $0x8] sm:$0xff]
  %v97 = vld [vmem:[%s1 + $0x10] sm:$0xff]
  %v98 = vld [vmem:[%s1 + $0x18] sm:$0xff]
  %v99 = vadd.f32 %v81, %v95
  %v100 = vadd.f32 %v84, %v96
  %v101 = vadd.f32 %v89, %v97
  %v102 = vadd.f32 %v92, %v98
  %vm103 = vcmask 261120
  %104 = vst.msk [vmem:[%s4] sm:$0xff] %vm103, %v99
  %105 = vst.msk [vmem:[%s4 + $0x8] sm:$0xff] %vm103, %v100
  %106 = vst.msk [vmem:[%s4 + $0x10] sm:$0xff] %vm103, %v101
  %107 = vst.msk [vmem:[%s4 + $0x18] sm:$0xff] %vm103, %v102
  // Predicated region
  $region18: #{transformer_forward.3} parent=0 // pred_check
    _
  $region19: #{transformer_forward.3} parent=0 // pred_check_branch
    %109 = sbr.rel (0) target = $region21
  $region20: #{transformer_forward.3} parent=0 // pred_region
    _
  $region21: #{transformer_forward.3} parent=0 // pred_fallthru
    _
  // Predicated region
  $region22: #{transformer_forward.3} parent=0 // pred_check
    _
  $region23: #{transformer_forward.3} parent=0 // pred_check_branch
    %111 = sbr.rel (0) target = $region25
  $region24: #{transformer_forward.3} parent=0 // pred_region
    _
  $region25: #{transformer_forward.3} parent=0 // pred_fallthru
    _

// kernel: transformer_forward.4
$region0: #{transformer_forward.4}
  #allocation0 [shape = 'u32[]', space=smem, size = 0x4, offset = 0x4, fixed_abs, tag = 'smem constant byte address 0x4 - core index']
  #allocation1 [shape = 'u32[144,128]{1,0:T(1,128)}', space=vmem, size = 0x12000, scoped, tag = 'internal scratch']
  #allocation2 [shape = 'f32[16,32]{1,0:T(8,128)}', space=vmem, size = 0x2000, scoped, tag = 'scratch operand']
  %s0 = inlined_call_operand.vmem [shape: f32[16,32], index: 0, kind: input, shape index: {}]
  %s1 = inlined_call_operand.vmem [shape: f32[16,16], index: 1, kind: input, shape index: {}]
  %s2 = inlined_call_operand.vmem [shape: bf16[2,3,32,32], index: 2, kind: input, shape index: {}]
  %s3 = inlined_call_operand.vmem [shape: bf16[2,4,8,32], index: 3, kind: input, shape index: {}]
  %s4 = inlined_call_operand.vmem [shape: f32[2,4,1,32], index: 4, kind: input, shape index: {}]
  %s5 = inlined_call_operand.vmem [shape: bf16[2,2,32,32], index: 5, kind: input, shape index: {}]
  %s6 = inlined_call_operand.vmem [shape: f32[2,2,1,32], index: 6, kind: input, shape index: {}]
  %s7 = inlined_call_operand.vmem [shape: f32[2,2,1,32], index: 7, kind: input, shape index: {}]
  %s8 = inlined_call_operand.vmem [shape: f32[2,2,1,32], index: 8, kind: input, shape index: {}]
  %s9 = inlined_call_operand.vmem [shape: f32[1,32], index: 9, kind: input, shape index: {}]
  %s10 = inlined_call_operand.vmem [shape: f32[1,32], index: 10, kind: input, shape index: {}]
  %s11 = inlined_call_operand.vmem [shape: f32[16,32], index: 11, kind: output, shape index: {}]
  %s12 = sld [smem:[#allocation0]]
  $region85: #{transformer_forward.4} parent=0
    _
  %s14 = ssub.s32 1, %s12
  %s15 = scalar_select 0, %s14, %s12
  loop: start=0, step=1, limit=4
  $region2: #{transformer_forward.4} parent=0 // loop_pre_header
    _
  $region3: #{transformer_forward.4} parent=0 // loop_header
    %s17 = sphi 0, %s21
    %p18 = scmp.ge.s32.totalorder %s17, 4
    %s25 = sphi 0, %s25
    %s27 = sphi 0, %s25
    %s28 = sphi 0, %s27
    %s42 = sphi 0, %s28
    %s46 = sphi 0, %s46
    %s48 = sphi 0, %s46
    %s49 = sphi 0, %s48
    %s63 = sphi 0, %s49
    %s69 = sphi 0, %s71
    %s72 = sphi 0, %s69
    %s73 = sphi 0, %s72
    %s89 = sphi 0, %s73
    %s95 = sphi 0, %s97
    %s98 = sphi 0, %s95
    %s99 = sphi 0, %s98
    %s115 = sphi 0, %s99
    %s121 = sphi 0, %s123
    %s124 = sphi 0, %s121
    %s125 = sphi 0, %s124
    %s141 = sphi 0, %s125
    %s147 = sphi 0, %s149
    %s150 = sphi 0, %s147
    %s151 = sphi 0, %s150
    %s167 = sphi 0, %s151
    %s173 = sphi 0, %s175
    %s176 = sphi 0, %s173
    %s177 = sphi 0, %s176
    %s193 = sphi 0, %s177
    %s199 = sphi 0, %s201
    %s202 = sphi 0, %s199
    %s203 = sphi 0, %s202
    %s219 = sphi 0, %s203
    %s225 = sphi 0, %s227
    %s228 = sphi 0, %s225
    %s229 = sphi 0, %s228
    %s245 = sphi 0, %s229
    %s249 = sphi 0, %s249
    %s251 = sphi 0, %s249
    %s252 = sphi 0, %s251
    %s266 = sphi 0, %s252
    %s270 = sphi 0, %s270
    %s272 = sphi 0, %s270
    %s273 = sphi 0, %s272
    %s287 = sphi 0, %s273
    %s291 = sphi 0, %s291
    %s293 = sphi 0, %s291
    %s294 = sphi 0, %s293
    %s308 = sphi 0, %s294
  $region4: #{transformer_forward.4} parent=0 // loop_header_branch
    %20 = sbr.rel (%p18) target = $region8
  $region5: #{transformer_forward.4} parent=0 // loop_body
    %s22 = ssub.s32 %s17, 1
    %s23 = ssub.s32 %s17, 2
    %s24 = sadd.s32 %s17, 1
    %s26 = sadd.s32 %s25, 1
    %p29 = scmp.eq.s32.totalorder %s17, 1
    %p30 = scmp.ne.s32.totalorder %s25, %s27
    %p31 = scmp.eq.s32.totalorder %s17, 0
    %p32 = por %p30, %p31
    %p33 = scmp.ne.s32.totalorder %s25, %s27
    %p34 = scmp.eq.s32.totalorder %s22, 1
    %p35 = por %p33, %p34
    %p36 = scmp.ne.s32.totalorder %s27, %s28
    %p37 = scmp.eq.s32.totalorder %s22, 0
    %p38 = por %p36, %p37
    %p39 = scmp.ne.s32.totalorder %s27, %s28
    %p40 = scmp.eq.s32.totalorder %s23, 1
    %p41 = por %p39, %p40
    %p43 = scmp.ne.s32.totalorder %s28, %s42
    %p44 = scmp.eq.s32.totalorder %s23, 0
    %p45 = por %p43, %p44
    %s47 = sadd.s32 %s46, 1
    %p50 = scmp.eq.s32.totalorder %s17, 1
    %p51 = scmp.ne.s32.totalorder %s46, %s48
    %p52 = scmp.eq.s32.totalorder %s17, 0
    %p53 = por %p51, %p52
    %p54 = scmp.ne.s32.totalorder %s46, %s48
    %p55 = scmp.eq.s32.totalorder %s22, 1
    %p56 = por %p54, %p55
    %p57 = scmp.ne.s32.totalorder %s48, %s49
    %p58 = scmp.eq.s32.totalorder %s22, 0
    %p59 = por %p57, %p58
    %p60 = scmp.ne.s32.totalorder %s48, %s49
    %p61 = scmp.eq.s32.totalorder %s23, 1
    %p62 = por %p60, %p61
    %p64 = scmp.ne.s32.totalorder %s49, %s63
    %p65 = scmp.eq.s32.totalorder %s23, 0
    %p66 = por %p64, %p65
    %s67 = ssub.s32 %s17, %s24
    %p68 = scmp.eq.s32.totalorder %s67, 0
    %s70 = sadd.s32 %s69, 1
    %s71 = scalar_select %p68, %s69, %s70
    %p74 = pneg %p68
    %p75 = scmp.eq.s32.totalorder %s17, 1
    %p76 = por %p74, %p75
    %p77 = scmp.ne.s32.totalorder %s69, %s72
    %p78 = scmp.eq.s32.totalorder %s17, 0
    %p79 = por %p77, %p78
    %p80 = scmp.ne.s32.totalorder %s69, %s72
    %p81 = scmp.eq.s32.totalorder %s22, 1
    %p82 = por %p80, %p81
    %p83 = scmp.ne.s32.totalorder %s72, %s73
    %p84 = scmp.eq.s32.totalorder %s22, 0
    %p85 = por %p83, %p84
    %p86 = scmp.ne.s32.totalorder %s72, %s73
    %p87 = scmp.eq.s32.totalorder %s23, 1
    %p88 = por %p86, %p87
    %p90 = scmp.ne.s32.totalorder %s73, %s89
    %p91 = scmp.eq.s32.totalorder %s23, 0
    %p92 = por %p90, %p91
    %s93 = ssub.s32 %s17, %s24
    %p94 = scmp.eq.s32.totalorder %s93, 0
    %s96 = sadd.s32 %s95, 1
    %s97 = scalar_select %p94, %s95, %s96
    %p100 = pneg %p94
    %p101 = scmp.eq.s32.totalorder %s17, 1
    %p102 = por %p100, %p101
    %p103 = scmp.ne.s32.totalorder %s95, %s98
    %p104 = scmp.eq.s32.totalorder %s17, 0
    %p105 = por %p103, %p104
    %p106 = scmp.ne.s32.totalorder %s95, %s98
    %p107 = scmp.eq.s32.totalorder %s22, 1
    %p108 = por %p106, %p107
    %p109 = scmp.ne.s32.totalorder %s98, %s99
    %p110 = scmp.eq.s32.totalorder %s22, 0
    %p111 = por %p109, %p110
    %p112 = scmp.ne.s32.totalorder %s98, %s99
    %p113 = scmp.eq.s32.totalorder %s23, 1
    %p114 = por %p112, %p113
    %p116 = scmp.ne.s32.totalorder %s99, %s115
    %p117 = scmp.eq.s32.totalorder %s23, 0
    %p118 = por %p116, %p117
    %s119 = ssub.s32 %s17, %s24
    %p120 = scmp.eq.s32.totalorder %s119, 0
    %s122 = sadd.s32 %s121, 1
    %s123 = scalar_select %p120, %s121, %s122
    %p126 = pneg %p120
    %p127 = scmp.eq.s32.totalorder %s17, 1
    %p128 = por %p126, %p127
    %p129 = scmp.ne.s32.totalorder %s121, %s124
    %p130 = scmp.eq.s32.totalorder %s17, 0
    %p131 = por %p129, %p130
    %p132 = scmp.ne.s32.totalorder %s121, %s124
    %p133 = scmp.eq.s32.totalorder %s22, 1
    %p134 = por %p132, %p133
    %p135 = scmp.ne.s32.totalorder %s124, %s125
    %p136 = scmp.eq.s32.totalorder %s22, 0
    %p137 = por %p135, %p136
    %p138 = scmp.ne.s32.totalorder %s124, %s125
    %p139 = scmp.eq.s32.totalorder %s23, 1
    %p140 = por %p138, %p139
    %p142 = scmp.ne.s32.totalorder %s125, %s141
    %p143 = scmp.eq.s32.totalorder %s23, 0
    %p144 = por %p142, %p143
    %s145 = ssub.s32 %s17, %s24
    %p146 = scmp.eq.s32.totalorder %s145, 0
    %s148 = sadd.s32 %s147, 1
    %s149 = scalar_select %p146, %s147, %s148
    %p152 = pneg %p146
    %p153 = scmp.eq.s32.totalorder %s17, 1
    %p154 = por %p152, %p153
    %p155 = scmp.ne.s32.totalorder %s147, %s150
    %p156 = scmp.eq.s32.totalorder %s17, 0
    %p157 = por %p155, %p156
    %p158 = scmp.ne.s32.totalorder %s147, %s150
    %p159 = scmp.eq.s32.totalorder %s22, 1
    %p160 = por %p158, %p159
    %p161 = scmp.ne.s32.totalorder %s150, %s151
    %p162 = scmp.eq.s32.totalorder %s22, 0
    %p163 = por %p161, %p162
    %p164 = scmp.ne.s32.totalorder %s150, %s151
    %p165 = scmp.eq.s32.totalorder %s23, 1
    %p166 = por %p164, %p165
    %p168 = scmp.ne.s32.totalorder %s151, %s167
    %p169 = scmp.eq.s32.totalorder %s23, 0
    %p170 = por %p168, %p169
    %s171 = ssub.s32 %s17, %s24
    %p172 = scmp.eq.s32.totalorder %s171, 0
    %s174 = sadd.s32 %s173, 1
    %s175 = scalar_select %p172, %s173, %s174
    %p178 = pneg %p172
    %p179 = scmp.eq.s32.totalorder %s17, 1
    %p180 = por %p178, %p179
    %p181 = scmp.ne.s32.totalorder %s173, %s176
    %p182 = scmp.eq.s32.totalorder %s17, 0
    %p183 = por %p181, %p182
    %p184 = scmp.ne.s32.totalorder %s173, %s176
    %p185 = scmp.eq.s32.totalorder %s22, 1
    %p186 = por %p184, %p185
    %p187 = scmp.ne.s32.totalorder %s176, %s177
    %p188 = scmp.eq.s32.totalorder %s22, 0
    %p189 = por %p187, %p188
    %p190 = scmp.ne.s32.totalorder %s176, %s177
    %p191 = scmp.eq.s32.totalorder %s23, 1
    %p192 = por %p190, %p191
    %p194 = scmp.ne.s32.totalorder %s177, %s193
    %p195 = scmp.eq.s32.totalorder %s23, 0
    %p196 = por %p194, %p195
    %s197 = ssub.s32 %s17, %s24
    %p198 = scmp.eq.s32.totalorder %s197, 0
    %s200 = sadd.s32 %s199, 1
    %s201 = scalar_select %p198, %s199, %s200
    %p204 = pneg %p198
    %p205 = scmp.eq.s32.totalorder %s17, 1
    %p206 = por %p204, %p205
    %p207 = scmp.ne.s32.totalorder %s199, %s202
    %p208 = scmp.eq.s32.totalorder %s17, 0
    %p209 = por %p207, %p208
    %p210 = scmp.ne.s32.totalorder %s199, %s202
    %p211 = scmp.eq.s32.totalorder %s22, 1
    %p212 = por %p210, %p211
    %p213 = scmp.ne.s32.totalorder %s202, %s203
    %p214 = scmp.eq.s32.totalorder %s22, 0
    %p215 = por %p213, %p214
    %p216 = scmp.ne.s32.totalorder %s202, %s203
    %p217 = scmp.eq.s32.totalorder %s23, 1
    %p218 = por %p216, %p217
    %p220 = scmp.ne.s32.totalorder %s203, %s219
    %p221 = scmp.eq.s32.totalorder %s23, 0
    %p222 = por %p220, %p221
    %s223 = ssub.s32 %s17, %s24
    %p224 = scmp.eq.s32.totalorder %s223, 0
    %s226 = sadd.s32 %s225, 1
    %s227 = scalar_select %p224, %s225, %s226
    %p230 = pneg %p224
    %p231 = scmp.eq.s32.totalorder %s17, 1
    %p232 = por %p230, %p231
    %p233 = scmp.ne.s32.totalorder %s225, %s228
    %p234 = scmp.eq.s32.totalorder %s17, 0
    %p235 = por %p233, %p234
    %p236 = scmp.ne.s32.totalorder %s225, %s228
    %p237 = scmp.eq.s32.totalorder %s22, 1
    %p238 = por %p236, %p237
    %p239 = scmp.ne.s32.totalorder %s228, %s229
    %p240 = scmp.eq.s32.totalorder %s22, 0
    %p241 = por %p239, %p240
    %p242 = scmp.ne.s32.totalorder %s228, %s229
    %p243 = scmp.eq.s32.totalorder %s23, 1
    %p244 = por %p242, %p243
    %p246 = scmp.ne.s32.totalorder %s229, %s245
    %p247 = scmp.eq.s32.totalorder %s23, 0
    %p248 = por %p246, %p247
    %s250 = sadd.s32 %s249, 1
    %p253 = scmp.eq.s32.totalorder %s17, 1
    %p254 = scmp.ne.s32.totalorder %s249, %s251
    %p255 = scmp.eq.s32.totalorder %s17, 0
    %p256 = por %p254, %p255
    %p257 = scmp.ne.s32.totalorder %s249, %s251
    %p258 = scmp.eq.s32.totalorder %s22, 1
    %p259 = por %p257, %p258
    %p260 = scmp.ne.s32.totalorder %s251, %s252
    %p261 = scmp.eq.s32.totalorder %s22, 0
    %p262 = por %p260, %p261
    %p263 = scmp.ne.s32.totalorder %s251, %s252
    %p264 = scmp.eq.s32.totalorder %s23, 1
    %p265 = por %p263, %p264
    %p267 = scmp.ne.s32.totalorder %s252, %s266
    %p268 = scmp.eq.s32.totalorder %s23, 0
    %p269 = por %p267, %p268
    %s271 = sadd.s32 %s270, 1
    %p274 = scmp.eq.s32.totalorder %s17, 1
    %p275 = scmp.ne.s32.totalorder %s270, %s272
    %p276 = scmp.eq.s32.totalorder %s17, 0
    %p277 = por %p275, %p276
    %p278 = scmp.ne.s32.totalorder %s270, %s272
    %p279 = scmp.eq.s32.totalorder %s22, 1
    %p280 = por %p278, %p279
    %p281 = scmp.ne.s32.totalorder %s272, %s273
    %p282 = scmp.eq.s32.totalorder %s22, 0
    %p283 = por %p281, %p282
    %p284 = scmp.ne.s32.totalorder %s272, %s273
    %p285 = scmp.eq.s32.totalorder %s23, 1
    %p286 = por %p284, %p285
    %p288 = scmp.ne.s32.totalorder %s273, %s287
    %p289 = scmp.eq.s32.totalorder %s23, 0
    %p290 = por %p288, %p289
    %s292 = sadd.s32 %s291, 1
    %p295 = scmp.eq.s32.totalorder %s17, 1
    %p296 = scmp.ne.s32.totalorder %s291, %s293
    %p297 = scmp.eq.s32.totalorder %s17, 0
    %p298 = por %p296, %p297
    %p299 = scmp.ne.s32.totalorder %s291, %s293
    %p300 = scmp.eq.s32.totalorder %s22, 1
    %p301 = por %p299, %p300
    %p302 = scmp.ne.s32.totalorder %s293, %s294
    %p303 = scmp.eq.s32.totalorder %s22, 0
    %p304 = por %p302, %p303
    %p305 = scmp.ne.s32.totalorder %s293, %s294
    %p306 = scmp.eq.s32.totalorder %s23, 1
    %p307 = por %p305, %p306
    %p309 = scmp.ne.s32.totalorder %s294, %s308
    %p310 = scmp.eq.s32.totalorder %s23, 0
    %p311 = por %p309, %p310
    %p312 = scmp.le.s32.totalorder 1, %s17
    %p313 = scmp.lt.s32.totalorder %s17, 3
    %p314 = pnand %p312, %p313
    %p315 = pneg %p314
    // Predicated region
    $region9: #{transformer_forward.4} parent=5 // pred_check
      _
    $region10: #{transformer_forward.4} parent=5 // pred_check_branch
      %317 = sbr.rel (%p314) target = $region12
    $region11: #{transformer_forward.4} parent=5 // pred_region
      %s318 = ssub.s32 %s17, 1
      // Predicated region
      $region13: #{transformer_forward.4} parent=11 // pred_check
        %p319 = pneg %p38
      $region14: #{transformer_forward.4} parent=11 // pred_check_branch
        %321 = sbr.rel (%p319) target = $region16
      $region15: #{transformer_forward.4} parent=11 // pred_region
        _
      $region16: #{transformer_forward.4} parent=11 // pred_fallthru
        _
      // Predicated region
      $region17: #{transformer_forward.4} parent=11 // pred_check
        %p322 = pneg %p59
      $region18: #{transformer_forward.4} parent=11 // pred_check_branch
        %324 = sbr.rel (%p322) target = $region20
      $region19: #{transformer_forward.4} parent=11 // pred_region
        _
      $region20: #{transformer_forward.4} parent=11 // pred_fallthru
        _
      // Predicated region
      $region21: #{transformer_forward.4} parent=11 // pred_check
        %p325 = pneg %p262
      $region22: #{transformer_forward.4} parent=11 // pred_check_branch
        %327 = sbr.rel (%p325) target = $region24
      $region23: #{transformer_forward.4} parent=11 // pred_region
        _
      $region24: #{transformer_forward.4} parent=11 // pred_fallthru
        _
      // Predicated region
      $region25: #{transformer_forward.4} parent=11 // pred_check
        %p328 = pneg %p283
      $region26: #{transformer_forward.4} parent=11 // pred_check_branch
        %330 = sbr.rel (%p328) target = $region28
      $region27: #{transformer_forward.4} parent=11 // pred_region
        _
      $region28: #{transformer_forward.4} parent=11 // pred_fallthru
        _
    $region12: #{transformer_forward.4} parent=5 // pred_fallthru
      _
    %p331 = scmp.lt.s32.totalorder %s17, 2
    // Predicated region
    $region29: #{transformer_forward.4} parent=5 // pred_check
      %p332 = pneg %p331
    $region30: #{transformer_forward.4} parent=5 // pred_check_branch
      %334 = sbr.rel (%p332) target = $region32
    $region31: #{transformer_forward.4} parent=5 // pred_region
      // Predicated region
      $region33: #{transformer_forward.4} parent=31 // pred_check
        %p335 = pneg %p79
      $region34: #{transformer_forward.4} parent=31 // pred_check_branch
        %337 = sbr.rel (%p335) target = $region36
      $region35: #{transformer_forward.4} parent=31 // pred_region
        %p338 = scmp.lt.s32.totalorder %s17, 1
        %s339 = scalar_select %p338, %s17, 1
        %s340 = smul.addr %s339, 12
        %s341 = smul.addr %s340, 4
        %s342 = scalar_lea.vmem %s2, %s341
      $region36: #{transformer_forward.4} parent=31 // pred_fallthru
        _
      // Predicated region
      $region37: #{transformer_forward.4} parent=31 // pred_check
        %p343 = pneg %p105
      $region38: #{transformer_forward.4} parent=31 // pred_check_branch
        %345 = sbr.rel (%p343) target = $region40
      $region39: #{transformer_forward.4} parent=31 // pred_region
        %p346 = scmp.lt.s32.totalorder %s17, 1
        %s347 = scalar_select %p346, %s17, 1
        %s348 = smul.addr %s347, 4
        %s349 = smul.addr %s348, 4
        %s350 = scalar_lea.vmem %s3, %s349
      $region40: #{transformer_forward.4} parent=31 // pred_fallthru
        _
      // Predicated region
      $region41: #{transformer_forward.4} parent=31 // pred_check
        %p351 = pneg %p131
      $region42: #{transformer_forward.4} parent=31 // pred_check_branch
        %353 = sbr.rel (%p351) target = $region44
      $region43: #{transformer_forward.4} parent=31 // pred_region
        %p354 = scmp.lt.s32.totalorder %s17, 1
        %s355 = scalar_select %p354, %s17, 1
        %s356 = smul.addr %s355, 4
        %s357 = scalar_lea.vmem %s4, %s356
      $region44: #{transformer_forward.4} parent=31 // pred_fallthru
        _
      // Predicated region
      $region45: #{transformer_forward.4} parent=31 // pred_check
        %p358 = pneg %p157
      $region46: #{transformer_forward.4} parent=31 // pred_check_branch
        %360 = sbr.rel (%p358) target = $region48
      $region47: #{transformer_forward.4} parent=31 // pred_region
        %p361 = scmp.lt.s32.totalorder %s17, 1
        %s362 = scalar_select %p361, %s17, 1
        %s363 = smul.addr %s362, 8
        %s364 = smul.addr %s363, 4
        %s365 = scalar_lea.vmem %s5, %s364
      $region48: #{transformer_forward.4} parent=31 // pred_fallthru
        _
      // Predicated region
      $region49: #{transformer_forward.4} parent=31 // pred_check
        %p366 = pneg %p183
      $region50: #{transformer_forward.4} parent=31 // pred_check_branch
        %368 = sbr.rel (%p366) target = $region52
      $region51: #{transformer_forward.4} parent=31 // pred_region
        %p369 = scmp.lt.s32.totalorder %s17, 1
        %s370 = scalar_select %p369, %s17, 1
        %s371 = smul.addr %s370, 2
        %s372 = scalar_lea.vmem %s6, %s371
      $region52: #{transformer_forward.4} parent=31 // pred_fallthru
        _
      // Predicated region
      $region53: #{transformer_forward.4} parent=31 // pred_check
        %p373 = pneg %p209
      $region54: #{transformer_forward.4} parent=31 // pred_check_branch
        %375 = sbr.rel (%p373) target = $region56
      $region55: #{transformer_forward.4} parent=31 // pred_region
        %p376 = scmp.lt.s32.totalorder %s17, 1
        %s377 = scalar_select %p376, %s17, 1
        %s378 = smul.addr %s377, 2
        %s379 = scalar_lea.vmem %s7, %s378
      $region56: #{transformer_forward.4} parent=31 // pred_fallthru
        _
      // Predicated region
      $region57: #{transformer_forward.4} parent=31 // pred_check
        %p380 = pneg %p235
      $region58: #{transformer_forward.4} parent=31 // pred_check_branch
        %382 = sbr.rel (%p380) target = $region60
      $region59: #{transformer_forward.4} parent=31 // pred_region
        %p383 = scmp.lt.s32.totalorder %s17, 1
        %s384 = scalar_select %p383, %s17, 1
        %s385 = smul.addr %s384, 2
        %s386 = scalar_lea.vmem %s8, %s385
      $region60: #{transformer_forward.4} parent=31 // pred_fallthru
        _
    $region32: #{transformer_forward.4} parent=5 // pred_fallthru
      _
    %p387 = scmp.le.s32.totalorder 1, %s17
    %p388 = scmp.lt.s32.totalorder %s17, 3
    %p389 = pnand %p387, %p388
    %p390 = pneg %p389
    // Predicated region
    $region61: #{transformer_forward.4} parent=5 // pred_check
      _
    $region62: #{transformer_forward.4} parent=5 // pred_check_branch
      %392 = sbr.rel (%p389) target = $region64
    $region63: #{transformer_forward.4} parent=5 // pred_region
      %s393 = ssub.s32 %s17, 1
      %p394 = pneg %p38
      %p395 = pneg %p35
      %p396 = pneg %p59
      %p397 = pneg %p56
      %p398 = scmp.lt.s32.totalorder %s22, 1
      %s399 = scalar_select %p398, %s22, 1
      %s400 = smul.addr %s399, 12
      %s401 = smul.addr %s400, 4
      %s402 = scalar_lea.vmem %s2, %s401
      %p403 = pneg %p85
      %p404 = pneg %p82
      %p405 = scmp.lt.s32.totalorder %s22, 1
      %s406 = scalar_select %p405, %s22, 1
      %s407 = smul.addr %s406, 4
      %s408 = smul.addr %s407, 4
      %s409 = scalar_lea.vmem %s3, %s408
      %p410 = pneg %p111
      %p411 = pneg %p108
      %p412 = scmp.lt.s32.totalorder %s22, 1
      %s413 = scalar_select %p412, %s22, 1
      %s414 = smul.addr %s413, 4
      %s415 = scalar_lea.vmem %s4, %s414
      %p416 = pneg %p137
      %p417 = pneg %p134
      %p418 = scmp.lt.s32.totalorder %s22, 1
      %s419 = scalar_select %p418, %s22, 1
      %s420 = smul.addr %s419, 8
      %s421 = smul.addr %s420, 4
      %s422 = scalar_lea.vmem %s5, %s421
      %p423 = pneg %p163
      %p424 = pneg %p160
      %p425 = scmp.lt.s32.totalorder %s22, 1
      %s426 = scalar_select %p425, %s22, 1
      %s427 = smul.addr %s426, 2
      %s428 = scalar_lea.vmem %s6, %s427
      %p429 = pneg %p189
      %p430 = pneg %p186
      %p431 = scmp.lt.s32.totalorder %s22, 1
      %s432 = scalar_select %p431, %s22, 1
      %s433 = smul.addr %s432, 2
      %s434 = scalar_lea.vmem %s7, %s433
      %p435 = pneg %p215
      %p436 = pneg %p212
      %p437 = scmp.lt.s32.totalorder %s22, 1
      %s438 = scalar_select %p437, %s22, 1
      %s439 = smul.addr %s438, 2
      %s440 = scalar_lea.vmem %s8, %s439
      %p441 = pneg %p241
      %p442 = pneg %p238
      %p443 = pneg %p262
      %p444 = pneg %p259
      %p445 = pneg %p283
      %p446 = pneg %p280
      %p447 = pneg %p304
      %p448 = pneg %p301
      %p449 = scmp.lt.s32.totalorder %s22, 1
      %s450 = scalar_select %p449, %s22, 1
      %s451 = smul.addr %s450, 12
      %s452 = smul.addr %s451, 4
      %s453 = scalar_lea.vmem %s2, %s452
      %p454 = scmp.lt.s32.totalorder %s22, 1
      %s455 = scalar_select %p454, %s22, 1
      %s456 = smul.addr %s455, 4
      %s457 = smul.addr %s456, 4
      %s458 = scalar_lea.vmem %s3, %s457
      %p459 = scmp.lt.s32.totalorder %s22, 1
      %s460 = scalar_select %p459, %s22, 1
      %s461 = smul.addr %s460, 4
      %s462 = scalar_lea.vmem %s4, %s461
      %p463 = scmp.lt.s32.totalorder %s22, 1
      %s464 = scalar_select %p463, %s22, 1
      %s465 = smul.addr %s464, 8
      %s466 = smul.addr %s465, 4
      %s467 = scalar_lea.vmem %s5, %s466
      %p468 = scmp.lt.s32.totalorder %s22, 1
      %s469 = scalar_select %p468, %s22, 1
      %s470 = smul.addr %s469, 2
      %s471 = scalar_lea.vmem %s6, %s470
      %p472 = scmp.lt.s32.totalorder %s22, 1
      %s473 = scalar_select %p472, %s22, 1
      %s474 = smul.addr %s473, 2
      %s475 = scalar_lea.vmem %s7, %s474
      %p476 = scmp.lt.s32.totalorder %s22, 1
      %s477 = scalar_select %p476, %s22, 1
      %s478 = smul.addr %s477, 2
      %s479 = scalar_lea.vmem %s8, %s478
      %p481 = scmp.eq.s32.totalorder %s22, 0
      // Predicated region
      $region65: #{transformer_forward.4} parent=63 // pred_check
        %p482 = pneg %p481
      $region66: #{transformer_forward.4} parent=63 // pred_check_branch
        %484 = sbr.rel (%p482) target = $region68
      $region67: #{transformer_forward.4} parent=63 // pred_region
        %v485 = vld [vmem:[%s0] sm:$0xff]
        %v486 = vld [vmem:[%s0 + $0x8] sm:$0xff]
        %vm487 = vcmask 261120
        %488 = vst.msk [vmem:[#allocation2] sm:$0xff] %vm487, %v485
        %489 = vst.msk [vmem:[#allocation2 + $0x8] sm:$0xff] %vm487, %v486
      $region68: #{transformer_forward.4} parent=63 // pred_fallthru
        _
      %v490 = vld [vmem:[#allocation2] sm:$0xff]
      %v491 = vld [vmem:[#allocation2 + $0x8] sm:$0xff]
      %v492 = vld [vmem:[%s1] sm:$0xff]
      %v493 = vld [vmem:[%s1 + $0x8] sm:$0xff]
      %v494 = vld [vmem:[%s453] sm:$0xf]
      %v495 = vld [vmem:[%s453 + $0x4] sm:$0xf]
      %v496 = vld [vmem:[%s453 + $0x8] sm:$0xf]
      %v497 = vld [vmem:[%s453 + $0xc] sm:$0xf]
      %v498 = vpack.c.bf16 %v491, %v490
      %v499 = vld [vmem:[%s462] sm:$0x1]
      %v501 = vlaneseq
      %v502 = vshrl.u32 %v501, 7
      %v503 = vsub.s32 0, %v502
      %v504 = vrot.slane %v499, %v503
      %v510 = vunpack.c.l.b16 %v494
      %v511 = vunpack.c.l.b16 %v495
      %v512 = vunpack.c.l.b16 %v496
      %v513 = vunpack.c.l.b16 %v497
      %v514 = vpack.c.b16 %v511, %v510
      %v515 = vpack.c.b16 %v513, %v512
      %vm518 = vcmask 261120
      %v520 = vsel %vm518, %v498, 0
      %522 = vmatprep.subr.bf16.mxu0 0
      %523 = vmatpush1.bf16.msra.mxu0 %v514
      %524 = vmatprep.subr.bf16.mxu0 0
      %525 = vmatpush1.bf16.msra.mxu0 %v515
      %526 = vmatprep.subr.bf16.mxu0 0
      %527 = vmatpush1.bf16.msra.mxu0 0
      %528 = vmatprep.subr.bf16.mxu0 0
      %529 = vmatpush1.bf16.msra.mxu0 0
      %530 = vmatprep.subr.bf16.mxu0 0
      %531 = vmatpush1.bf16.msra.mxu0 0
      %532 = vmatprep.subr.bf16.mxu0 0
      %533 = vmatpush1.bf16.msra.mxu0 0
      %534 = vmatprep.subr.bf16.mxu0 0
      %535 = vmatpush1.bf16.msra.mxu0 0
      %536 = vmatprep.subr.bf16.mxu0 0
      %537 = vmatpush1.bf16.msra.mxu0 0
      %538 = vmatprep.subr.bf16.mxu0 0
      %539 = vmatpush1.bf16.msra.mxu0 0
      %540 = vmatprep.subr.bf16.mxu0 0
      %541 = vmatpush1.bf16.msra.mxu0 0
      %542 = vmatprep.subr.bf16.mxu0 0
      %543 = vmatpush1.bf16.msra.mxu0 0
      %544 = vmatprep.subr.bf16.mxu0 0
      %545 = vmatpush1.bf16.msra.mxu0 0
      %546 = vmatprep.subr.bf16.mxu0 0
      %547 = vmatpush1.bf16.msra.mxu0 0
      %548 = vmatprep.subr.bf16.mxu0 0
      %549 = vmatpush1.bf16.msra.mxu0 0
      %550 = vmatprep.subr.bf16.mxu0 0
      %551 = vmatpush1.bf16.msra.mxu0 0
      %552 = vmatprep.subr.bf16.mxu0 0
      %553 = vmatpush1.bf16.msra.mxu0 0
      %554 = vmatprep.mubr.bf16.mxu0 0
      %555 = vmatmul.mubr.bf16.gmra.mrb[0].mxu0 %v520
      %v556 = vpop.f32.mrb[0].mxu0
      %v557 = vadd.f32 %v504, %v556
      %v558 = vpop.f32.mrb[0].mxu0
      %v559 = vpop.f32.mrb[0].mxu0
      %v560 = vadd.f32 %v504, %v559
      %v561 = vpop.f32.mrb[0].mxu0
      %562 = vdwg.mxu0
      %v563 = vmul.f32 %v557, 0.35355338
      %v564 = vmul.f32 %v560, 0.35355338
      %s565 = scalar_lea.vmem %s453, 16
      %v566 = vld [vmem:[%s565] sm:$0xf]
      %v567 = vld [vmem:[%s565 + $0x4] sm:$0xf]
      %v568 = vld [vmem:[%s565 + $0x8] sm:$0xf]
      %v569 = vld [vmem:[%s565 + $0xc] sm:$0xf]
      %s570 = scalar_lea.vmem %s462, 1
      %v571 = vld [vmem:[%s570] sm:$0x1]
      %v573 = vlaneseq
      %v574 = vshrl.u32 %v573, 7
      %v575 = vsub.s32 0, %v574
      %v576 = vrot.slane %v571, %v575
      %v582 = vunpack.c.l.b16 %v566
      %v583 = vunpack.c.l.b16 %v567
      %v584 = vunpack.c.l.b16 %v568
      %v585 = vunpack.c.l.b16 %v569
      %v586 = vpack.c.b16 %v583, %v582
      %v587 = vpack.c.b16 %v585, %v584
      %590 = vmatprep.subr.bf16.mxu0 0
      %591 = vmatpush1.bf16.msra.mxu0 %v586
      %592 = vmatprep.subr.bf16.mxu0 0
      %593 = vmatpush1.bf16.msra.mxu0 %v587
      %594 = vmatprep.subr.bf16.mxu0 0
      %595 = vmatpush1.bf16.msra.mxu0 0
      %596 = vmatprep.subr.bf16.mxu0 0
      %597 = vmatpush1.bf16.msra.mxu0 0
      %598 = vmatprep.subr.bf16.mxu0 0
      %599 = vmatpush1.bf16.msra.mxu0 0
      %600 = vmatprep.subr.bf16.mxu0 0
      %601 = vmatpush1.bf16.msra.mxu0 0
      %602 = vmatprep.subr.bf16.mxu0 0
      %603 = vmatpush1.bf16.msra.mxu0 0
      %604 = vmatprep.subr.bf16.mxu0 0
      %605 = vmatpush1.bf16.msra.mxu0 0
      %606 = vmatprep.subr.bf16.mxu0 0
      %607 = vmatpush1.bf16.msra.mxu0 0
      %608 = vmatprep.subr.bf16.mxu0 0
      %609 = vmatpush1.bf16.msra.mxu0 0
      %610 = vmatprep.subr.bf16.mxu0 0
      %611 = vmatpush1.bf16.msra.mxu0 0
      %612 = vmatprep.subr.bf16.mxu0 0
      %613 = vmatpush1.bf16.msra.mxu0 0
      %614 = vmatprep.subr.bf16.mxu0 0
      %615 = vmatpush1.bf16.msra.mxu0 0
      %616 = vmatprep.subr.bf16.mxu0 0
      %617 = vmatpush1.bf16.msra.mxu0 0
      %618 = vmatprep.subr.bf16.mxu0 0
      %619 = vmatpush1.bf16.msra.mxu0 0
      %620 = vmatprep.subr.bf16.mxu0 0
      %621 = vmatpush1.bf16.msra.mxu0 0
      %622 = vmatprep.mubr.bf16.mxu0 0
      %623 = vmatmul.mubr.bf16.gmra.mrb[0].mxu0 %v520
      %v624 = vpop.f32.mrb[0].mxu0
      %v625 = vadd.f32 %v576, %v624
      %v626 = vpop.f32.mrb[0].mxu0
      %v627 = vpop.f32.mrb[0].mxu0
      %v628 = vadd.f32 %v576, %v627
      %v629 = vpop.f32.mrb[0].mxu0
      %630 = vdwg.mxu0
      %s631 = scalar_lea.vmem %s453, 32
      %v632 = vld [vmem:[%s631] sm:$0xf]
      %v633 = vld [vmem:[%s631 + $0x4] sm:$0xf]
      %v634 = vld [vmem:[%s631 + $0x8] sm:$0xf]
      %v635 = vld [vmem:[%s631 + $0xc] sm:$0xf]
      %s636 = scalar_lea.vmem %s462, 2
      %v637 = vld [vmem:[%s636] sm:$0x1]
      %v639 = vlaneseq
      %v640 = vshrl.u32 %v639, 7
      %v641 = vsub.s32 0, %v640
      %v642 = vrot.slane %v637, %v641
      %v648 = vunpack.c.l.b16 %v632
      %v649 = vunpack.c.l.b16 %v633
      %v650 = vunpack.c.l.b16 %v634
      %v651 = vunpack.c.l.b16 %v635
      %v652 = vpack.c.b16 %v649, %v648
      %v653 = vpack.c.b16 %v651, %v650
      %656 = vmatprep.subr.bf16.mxu0 0
      %657 = vmatpush1.bf16.msra.mxu0 %v652
      %658 = vmatprep.subr.bf16.mxu0 0
      %659 = vmatpush1.bf16.msra.mxu0 %v653
      %660 = vmatprep.subr.bf16.mxu0 0
      %661 = vmatpush1.bf16.msra.mxu0 0
      %662 = vmatprep.subr.bf16.mxu0 0
      %663 = vmatpush1.bf16.msra.mxu0 0
      %664 = vmatprep.subr.bf16.mxu0 0
      %665 = vmatpush1.bf16.msra.mxu0 0
      %666 = vmatprep.subr.bf16.mxu0 0
      %667 = vmatpush1.bf16.msra.mxu0 0
      %668 = vmatprep.subr.bf16.mxu0 0
      %669 = vmatpush1.bf16.msra.mxu0 0
      %670 = vmatprep.subr.bf16.mxu0 0
      %671 = vmatpush1.bf16.msra.mxu0 0
      %672 = vmatprep.subr.bf16.mxu0 0
      %673 = vmatpush1.bf16.msra.mxu0 0
      %674 = vmatprep.subr.bf16.mxu0 0
      %675 = vmatpush1.bf16.msra.mxu0 0
      %676 = vmatprep.subr.bf16.mxu0 0
      %677 = vmatpush1.bf16.msra.mxu0 0
      %678 = vmatprep.subr.bf16.mxu0 0
      %679 = vmatpush1.bf16.msra.mxu0 0
      %680 = vmatprep.subr.bf16.mxu0 0
      %681 = vmatpush1.bf16.msra.mxu0 0
      %682 = vmatprep.subr.bf16.mxu0 0
      %683 = vmatpush1.bf16.msra.mxu0 0
      %684 = vmatprep.subr.bf16.mxu0 0
      %685 = vmatpush1.bf16.msra.mxu0 0
      %686 = vmatprep.subr.bf16.mxu0 0
      %687 = vmatpush1.bf16.msra.mxu0 0
      %688 = vmatprep.mubr.bf16.mxu0 0
      %689 = vmatmul.mubr.bf16.gmra.mrb[0].mxu0 %v520
      %v690 = vpop.f32.mrb[0].mxu0
      %v691 = vadd.f32 %v642, %v690
      %v692 = vpop.f32.mrb[0].mxu0
      %v693 = vpop.f32.mrb[0].mxu0
      %v694 = vadd.f32 %v642, %v693
      %v695 = vpop.f32.mrb[0].mxu0
      %696 = vdwg.mxu0
      %v697 = vpack.c.bf16 %v564, %v563
      %v698 = vpack.c.bf16 %v628, %v625
      %vm699 = vcmask 64512
      %v701 = vsel %vm699, %v697, 0
      %v704 = vsel %vm699, %v698, 0
      %706 = vmatprep.subr.bf16.mxu0 0
      %707 = vmatpush1.bf16.xpose.msra.mxu0 %v704
      %708 = vmatprep.subr.bf16.mxu0 0
      %709 = vmatpush1.bf16.xpose.msra.mxu0 0
      %710 = vmatprep.subr.bf16.mxu0 0
      %711 = vmatpush1.bf16.xpose.msra.mxu0 0
      %712 = vmatprep.subr.bf16.mxu0 0
      %713 = vmatpush1.bf16.xpose.msra.mxu0 0
      %714 = vmatprep.subr.bf16.mxu0 0
      %715 = vmatpush1.bf16.xpose.msra.mxu0 0
      %716 = vmatprep.subr.bf16.mxu0 0
      %717 = vmatpush1.bf16.xpose.msra.mxu0 0
      %718 = vmatprep.subr.bf16.mxu0 0
      %719 = vmatpush1.bf16.xpose.msra.mxu0 0
      %720 = vmatprep.subr.bf16.mxu0 0
      %721 = vmatpush1.bf16.xpose.msra.mxu0 0
      %722 = vmatprep.subr.bf16.mxu0 0
      %723 = vmatpush1.bf16.xpose.msra.mxu0 0
      %724 = vmatprep.subr.bf16.mxu0 0
      %725 = vmatpush1.bf16.xpose.msra.mxu0 0
      %726 = vmatprep.subr.bf16.mxu0 0
      %727 = vmatpush1.bf16.xpose.msra.mxu0 0
      %728 = vmatprep.subr.bf16.mxu0 0
      %729 = vmatpush1.bf16.xpose.msra.mxu0 0
      %730 = vmatprep.subr.bf16.mxu0 0
      %731 = vmatpush1.bf16.xpose.msra.mxu0 0
      %732 = vmatprep.subr.bf16.mxu0 0
      %733 = vmatpush1.bf16.xpose.msra.mxu0 0
      %734 = vmatprep.subr.bf16.mxu0 0
      %735 = vmatpush1.bf16.xpose.msra.mxu0 0
      %736 = vmatprep.subr.bf16.mxu0 0
      %737 = vmatpush1.bf16.xpose.msra.mxu0 0
      %738 = vmatprep.mubr.bf16.mxu0 0
      %739 = vmatmul.mubr.bf16.gmra.mrb[0].mxu0 %v701
      %v740 = vpop.f32.mrb[0].mxu0
      %v741 = vadd.f32 %v492, %v740
      %v742 = vpop.f32.mrb[0].mxu0
      %v743 = vpop.f32.mrb[0].mxu0
      %v744 = vadd.f32 %v493, %v743
      %v745 = vpop.f32.mrb[0].mxu0
      %746 = vdwg.mxu0
      %vm747 = vcmask 130048
      %v748 = vsel %vm747, %v741, -inf
      %749 = vmax.xlane.f32.xlu0 %v748
      %v750 = vpop.xlane.xlu0 %749
      %v751 = vsel %vm747, %v744, -inf
      %752 = vmax.xlane.f32.xlu0 %v751
      %v753 = vpop.xlane.xlu0 %752
      %v754 = vsub.f32 %v741, %v750
      %v755 = vsub.f32 %v744, %v753
      %v756 = vmul.f32 %v754, 1.442695
      %v757 = vpow.pop %v756
      %v758 = vmul.f32 %v755, 1.442695
      %v759 = vpow.pop %v758
      %v760 = vsel %vm747, %v757, 0.0
      %761 = vadd.xlane.f32.xlu0 %v760
      %v762 = vpop.xlane.xlu0 %761
      %v763 = vsel %vm747, %v759, 0.0
      %764 = vadd.xlane.f32.xlu0 %v763
      %v765 = vpop.xlane.xlu0 %764
      %v766 = vrcp.pop %v762
      %v767 = vrcp.pop %v765
      %v768 = vmul.f32 %v757, %v766
      %v769 = vmul.f32 %v759, %v767
      %v770 = vpack.c.bf16 %v769, %v768
      %v771 = vpack.c.bf16 %v694, %v691
      %v773 = vsel %vm747, %v770, 0
      %775 = vmatprep.subr.bf16.mxu0 0
      %776 = vmatpush1.bf16.msra.mxu0 %v771
      %777 = vmatprep.subr.bf16.mxu0 0
      %778 = vmatpush1.bf16.msra.mxu0 0
      %779 = vmatprep.subr.bf16.mxu0 0
      %780 = vmatpush1.bf16.msra.mxu0 0
      %781 = vmatprep.subr.bf16.mxu0 0
      %782 = vmatpush1.bf16.msra.mxu0 0
      %783 = vmatprep.subr.bf16.mxu0 0
      %784 = vmatpush1.bf16.msra.mxu0 0
      %785 = vmatprep.subr.bf16.mxu0 0
      %786 = vmatpush1.bf16.msra.mxu0 0
      %787 = vmatprep.subr.bf16.mxu0 0
      %788 = vmatpush1.bf16.msra.mxu0 0
      %789 = vmatprep.subr.bf16.mxu0 0
      %790 = vmatpush1.bf16.msra.mxu0 0
      %791 = vmatprep.subr.bf16.mxu0 0
      %792 = vmatpush1.bf16.msra.mxu0 0
      %793 = vmatprep.subr.bf16.mxu0 0
      %794 = vmatpush1.bf16.msra.mxu0 0
      %795 = vmatprep.subr.bf16.mxu0 0
      %796 = vmatpush1.bf16.msra.mxu0 0
      %797 = vmatprep.subr.bf16.mxu0 0
      %798 = vmatpush1.bf16.msra.mxu0 0
      %799 = vmatprep.subr.bf16.mxu0 0
      %800 = vmatpush1.bf16.msra.mxu0 0
      %801 = vmatprep.subr.bf16.mxu0 0
      %802 = vmatpush1.bf16.msra.mxu0 0
      %803 = vmatprep.subr.bf16.mxu0 0
      %804 = vmatpush1.bf16.msra.mxu0 0
      %805 = vmatprep.subr.bf16.mxu0 0
      %806 = vmatpush1.bf16.msra.mxu0 0
      %807 = vmatprep.mubr.bf16.mxu0 0
      %808 = vmatmul.mubr.bf16.gmra.mrb[0].mxu0 %v773
      %v809 = vpop.f32.mrb[0].mxu0
      %v810 = vadd.f32 0.0, %v809
      %v811 = vpop.f32.mrb[0].mxu0
      %v812 = vpop.f32.mrb[0].mxu0
      %v813 = vadd.f32 0.0, %v812
      %v814 = vpop.f32.mrb[0].mxu0
      %815 = vdwg.mxu0
      %v816 = vld [vmem:[%s458] sm:$0xf]
      %v817 = vpack.c.bf16 %v813, %v810
      %819 = vrot.lane.b32.xlu0 %v697, 120
      %v820 = vpop.permute.xlu0 %819
      %822 = vrot.lane.b32.xlu0 %v698, 120
      %v823 = vpop.permute.xlu0 %822
      %v825 = vsel %vm699, %v820, 0
      %v828 = vsel %vm699, %v823, 0
      %830 = vmatprep.subr.bf16.mxu0 0
      %831 = vmatpush1.bf16.xpose.msra.mxu0 %v828
      %832 = vmatprep.subr.bf16.mxu0 0
      %833 = vmatpush1.bf16.xpose.msra.mxu0 0
      %834 = vmatprep.subr.bf16.mxu0 0
      %835 = vmatpush1.bf16.xpose.msra.mxu0 0
      %836 = vmatprep.subr.bf16.mxu0 0
      %837 = vmatpush1.bf16.xpose.msra.mxu0 0
      %838 = vmatprep.subr.bf16.mxu0 0
      %839 = vmatpush1.bf16.xpose.msra.mxu0 0
      %840 = vmatprep.subr.bf16.mxu0 0
      %841 = vmatpush1.bf16.xpose.msra.mxu0 0
      %842 = vmatprep.subr.bf16.mxu0 0
      %843 = vmatpush1.bf16.xpose.msra.mxu0 0
      %844 = vmatprep.subr.bf16.mxu0 0
      %845 = vmatpush1.bf16.xpose.msra.mxu0 0
      %846 = vmatprep.subr.bf16.mxu0 0
      %847 = vmatpush1.bf16.xpose.msra.mxu0 0
      %848 = vmatprep.subr.bf16.mxu0 0
      %849 = vmatpush1.bf16.xpose.msra.mxu0 0
      %850 = vmatprep.subr.bf16.mxu0 0
      %851 = vmatpush1.bf16.xpose.msra.mxu0 0
      %852 = vmatprep.subr.bf16.mxu0 0
      %853 = vmatpush1.bf16.xpose.msra.mxu0 0
      %854 = vmatprep.subr.bf16.mxu0 0
      %855 = vmatpush1.bf16.xpose.msra.mxu0 0
      %856 = vmatprep.subr.bf16.mxu0 0
      %857 = vmatpush1.bf16.xpose.msra.mxu0 0
      %858 = vmatprep.subr.bf16.mxu0 0
      %859 = vmatpush1.bf16.xpose.msra.mxu0 0
      %860 = vmatprep.subr.bf16.mxu0 0
      %861 = vmatpush1.bf16.xpose.msra.mxu0 0
      %862 = vmatprep.mubr.bf16.mxu0 0
      %863 = vmatmul.mubr.bf16.gmra.mrb[0].mxu0 %v825
      %v864 = vpop.f32.mrb[0].mxu0
      %v865 = vadd.f32 %v492, %v864
      %v866 = vpop.f32.mrb[0].mxu0
      %v867 = vpop.f32.mrb[0].mxu0
      %v868 = vadd.f32 %v493, %v867
      %v869 = vpop.f32.mrb[0].mxu0
      %870 = vdwg.mxu0
      %v871 = vsel %vm747, %v865, -inf
      %872 = vmax.xlane.f32.xlu0 %v871
      %v873 = vpop.xlane.xlu0 %872
      %v874 = vsel %vm747, %v868, -inf
      %875 = vmax.xlane.f32.xlu0 %v874
      %v876 = vpop.xlane.xlu0 %875
      %v877 = vsub.f32 %v865, %v873
      %v878 = vsub.f32 %v868, %v876
      %v879 = vmul.f32 %v877, 1.442695
      %v880 = vpow.pop %v879
      %v881 = vmul.f32 %v878, 1.442695
      %v882 = vpow.pop %v881
      %v883 = vsel %vm747, %v880, 0.0
      %884 = vadd.xlane.f32.xlu0 %v883
      %v885 = vpop.xlane.xlu0 %884
      %v886 = vsel %vm747, %v882, 0.0
      %887 = vadd.xlane.f32.xlu0 %v886
      %v888 = vpop.xlane.xlu0 %887
      %v889 = vrcp.pop %v885
      %v890 = vrcp.pop %v888
      %v891 = vmul.f32 %v880, %v889
      %v892 = vmul.f32 %v882, %v890
      %v893 = vpack.c.bf16 %v892, %v891
      %895 = vrot.lane.b32.xlu0 %v771, 120
      %v896 = vpop.permute.xlu0 %895
      %v899 = vsel %vm747, %v893, 0
      %901 = vmatprep.subr.bf16.mxu0 0
      %902 = vmatpush1.bf16.msra.mxu0 %v896
      %903 = vmatprep.subr.bf16.mxu0 0
      %904 = vmatpush1.bf16.msra.mxu0 0
      %905 = vmatprep.subr.bf16.mxu0 0
      %906 = vmatpush1.bf16.msra.mxu0 0
      %907 = vmatprep.subr.bf16.mxu0 0
      %908 = vmatpush1.bf16.msra.mxu0 0
      %909 = vmatprep.subr.bf16.mxu0 0
      %910 = vmatpush1.bf16.msra.mxu0 0
      %911 = vmatprep.subr.bf16.mxu0 0
      %912 = vmatpush1.bf16.msra.mxu0 0
      %913 = vmatprep.subr.bf16.mxu0 0
      %914 = vmatpush1.bf16.msra.mxu0 0
      %915 = vmatprep.subr.bf16.mxu0 0
      %916 = vmatpush1.bf16.msra.mxu0 0
      %917 = vmatprep.subr.bf16.mxu0 0
      %918 = vmatpush1.bf16.msra.mxu0 0
      %919 = vmatprep.subr.bf16.mxu0 0
      %920 = vmatpush1.bf16.msra.mxu0 0
      %921 = vmatprep.subr.bf16.mxu0 0
      %922 = vmatpush1.bf16.msra.mxu0 0
      %923 = vmatprep.subr.bf16.mxu0 0
      %924 = vmatpush1.bf16.msra.mxu0 0
      %925 = vmatprep.subr.bf16.mxu0 0
      %926 = vmatpush1.bf16.msra.mxu0 0
      %927 = vmatprep.subr.bf16.mxu0 0
      %928 = vmatpush1.bf16.msra.mxu0 0
      %929 = vmatprep.subr.bf16.mxu0 0
      %930 = vmatpush1.bf16.msra.mxu0 0
      %931 = vmatprep.subr.bf16.mxu0 0
      %932 = vmatpush1.bf16.msra.mxu0 0
      %933 = vmatprep.mubr.bf16.mxu0 0
      %934 = vmatmul.mubr.bf16.gmra.mrb[0].mxu0 %v899
      %v935 = vpop.f32.mrb[0].mxu0
      %v936 = vadd.f32 0.0, %v935
      %v937 = vpop.f32.mrb[0].mxu0
      %v938 = vpop.f32.mrb[0].mxu0
      %v939 = vadd.f32 0.0, %v938
      %v940 = vpop.f32.mrb[0].mxu0
      %941 = vdwg.mxu0
      %s942 = scalar_lea.vmem %s458, 4
      %v943 = vld [vmem:[%s942] sm:$0xf]
      %v944 = vpack.c.bf16 %v939, %v936
      %v946 = vsel %vm699, %v944, 0
      %vm948 = vcmask 1043456
      %v950 = vsel %vm948, %v943, 0
      %952 = vmatprep.subr.bf16.mxu0 0
      %953 = vmatpush1.bf16.msra.mxu0 %v950
      %954 = vmatprep.subr.bf16.mxu0 0
      %955 = vmatpush1.bf16.msra.mxu0 0
      %956 = vmatprep.subr.bf16.mxu0 0
      %957 = vmatpush1.bf16.msra.mxu0 0
      %958 = vmatprep.subr.bf16.mxu0 0
      %959 = vmatpush1.bf16.msra.mxu0 0
      %960 = vmatprep.subr.bf16.mxu0 0
      %961 = vmatpush1.bf16.msra.mxu0 0
      %962 = vmatprep.subr.bf16.mxu0 0
      %963 = vmatpush1.bf16.msra.mxu0 0
      %964 = vmatprep.subr.bf16.mxu0 0
      %965 = vmatpush1.bf16.msra.mxu0 0
      %966 = vmatprep.subr.bf16.mxu0 0
      %967 = vmatpush1.bf16.msra.mxu0 0
      %968 = vmatprep.subr.bf16.mxu0 0
      %969 = vmatpush1.bf16.msra.mxu0 0
      %970 = vmatprep.subr.bf16.mxu0 0
      %971 = vmatpush1.bf16.msra.mxu0 0
      %972 = vmatprep.subr.bf16.mxu0 0
      %973 = vmatpush1.bf16.msra.mxu0 0
      %974 = vmatprep.subr.bf16.mxu0 0
      %975 = vmatpush1.bf16.msra.mxu0 0
      %976 = vmatprep.subr.bf16.mxu0 0
      %977 = vmatpush1.bf16.msra.mxu0 0
      %978 = vmatprep.subr.bf16.mxu0 0
      %979 = vmatpush1.bf16.msra.mxu0 0
      %980 = vmatprep.subr.bf16.mxu0 0
      %981 = vmatpush1.bf16.msra.mxu0 0
      %982 = vmatprep.subr.bf16.mxu0 0
      %983 = vmatpush1.bf16.msra.mxu0 0
      %984 = vmatprep.mubr.bf16.mxu0 0
      %985 = vmatmul.mubr.bf16.gmra.mrb[0].mxu0 %v946
      %v986 = vpop.f32.mrb[0].mxu0
      %v987 = vadd.f32 0.0, %v986
      %v988 = vpop.f32.mrb[0].mxu0
      %v989 = vpop.f32.mrb[0].mxu0
      %v990 = vadd.f32 0.0, %v989
      %v991 = vpop.f32.mrb[0].mxu0
      %992 = vdwg.mxu0
      %v994 = vsel %vm699, %v817, 0
      %v997 = vsel %vm948, %v816, 0
      %999 = vmatprep.subr.bf16.mxu0 0
      %1000 = vmatpush1.bf16.msra.mxu0 %v997
      %1001 = vmatprep.subr.bf16.mxu0 0
      %1002 = vmatpush1.bf16.msra.mxu0 0
      %1003 = vmatprep.subr.bf16.mxu0 0
      %1004 = vmatpush1.bf16.msra.mxu0 0
      %1005 = vmatprep.subr.bf16.mxu0 0
      %1006 = vmatpush1.bf16.msra.mxu0 0
      %1007 = vmatprep.subr.bf16.mxu0 0
      %1008 = vmatpush1.bf16.msra.mxu0 0
      %1009 = vmatprep.subr.bf16.mxu0 0
      %1010 = vmatpush1.bf16.msra.mxu0 0
      %1011 = vmatprep.subr.bf16.mxu0 0
      %1012 = vmatpush1.bf16.msra.mxu0 0
      %1013 = vmatprep.subr.bf16.mxu0 0
      %1014 = vmatpush1.bf16.msra.mxu0 0
      %1015 = vmatprep.subr.bf16.mxu0 0
      %1016 = vmatpush1.bf16.msra.mxu0 0
      %1017 = vmatprep.subr.bf16.mxu0 0
      %1018 = vmatpush1.bf16.msra.mxu0 0
      %1019 = vmatprep.subr.bf16.mxu0 0
      %1020 = vmatpush1.bf16.msra.mxu0 0
      %1021 = vmatprep.subr.bf16.mxu0 0
      %1022 = vmatpush1.bf16.msra.mxu0 0
      %1023 = vmatprep.subr.bf16.mxu0 0
      %1024 = vmatpush1.bf16.msra.mxu0 0
      %1025 = vmatprep.subr.bf16.mxu0 0
      %1026 = vmatpush1.bf16.msra.mxu0 0
      %1027 = vmatprep.subr.bf16.mxu0 0
      %1028 = vmatpush1.bf16.msra.mxu0 0
      %1029 = vmatprep.subr.bf16.mxu0 0
      %1030 = vmatpush1.bf16.msra.mxu0 0
      %1031 = vmatprep.mubr.bf16.mxu0 0
      %1032 = vmatmul.mubr.bf16.gmra.mrb[0].mxu0 %v994
      %v1033 = vpop.f32.mrb[0].mxu0
      %v1034 = vadd.f32 %v987, %v1033
      %v1035 = vpop.f32.mrb[0].mxu0
      %v1036 = vpop.f32.mrb[0].mxu0
      %v1037 = vadd.f32 %v990, %v1036
      %v1038 = vpop.f32.mrb[0].mxu0
      %1039 = vdwg.mxu0
      %1040 = vrot.lane.b32.xlu0 %v697, 112
      %v1041 = vpop.permute.xlu0 %1040
      %1042 = vrot.lane.b32.xlu0 %v698, 112
      %v1043 = vpop.permute.xlu0 %1042
      %v1045 = vsel %vm699, %v1041, 0
      %v1048 = vsel %vm699, %v1043, 0
      %1050 = vmatprep.subr.bf16.mxu0 0
      %1051 = vmatpush1.bf16.xpose.msra.mxu0 %v1048
      %1052 = vmatprep.subr.bf16.mxu0 0
      %1053 = vmatpush1.bf16.xpose.msra.mxu0 0
      %1054 = vmatprep.subr.bf16.mxu0 0
      %1055 = vmatpush1.bf16.xpose.msra.mxu0 0
      %1056 = vmatprep.subr.bf16.mxu0 0
      %1057 = vmatpush1.bf16.xpose.msra.mxu0 0
      %1058 = vmatprep.subr.bf16.mxu0 0
      %1059 = vmatpush1.bf16.xpose.msra.mxu0 0
      %1060 = vmatprep.subr.bf16.mxu0 0
      %1061 = vmatpush1.bf16.xpose.msra.mxu0 0
      %1062 = vmatprep.subr.bf16.mxu0 0
      %1063 = vmatpush1.bf16.xpose.msra.mxu0 0
      %1064 = vmatprep.subr.bf16.mxu0 0
      %1065 = vmatpush1.bf16.xpose.msra.mxu0 0
      %1066 = vmatprep.subr.bf16.mxu0 0
      %1067 = vmatpush1.bf16.xpose.msra.mxu0 0
      %1068 = vmatprep.subr.bf16.mxu0 0
      %1069 = vmatpush1.bf16.xpose.msra.mxu0 0
      %1070 = vmatprep.subr.bf16.mxu0 0
      %1071 = vmatpush1.bf16.xpose.msra.mxu0 0
      %1072 = vmatprep.subr.bf16.mxu0 0
      %1073 = vmatpush1.bf16.xpose.msra.mxu0 0
      %1074 = vmatprep.subr.bf16.mxu0 0
      %1075 = vmatpush1.bf16.xpose.msra.mxu0 0
      %1076 = vmatprep.subr.bf16.mxu0 0
      %1077 = vmatpush1.bf16.xpose.msra.mxu0 0
      %1078 = vmatprep.subr.bf16.mxu0 0
      %1079 = vmatpush1.bf16.xpose.msra.mxu0 0
      %1080 = vmatprep.subr.bf16.mxu0 0
      %1081 = vmatpush1.bf16.xpose.msra.mxu0 0
      %1082 = vmatprep.mubr.bf16.mxu0 0
      %1083 = vmatmul.mubr.bf16.gmra.mrb[0].mxu0 %v1045
      %v1084 = vpop.f32.mrb[0].mxu0
      %v1085 = vadd.f32 %v492, %v1084
      %v1086 = vpop.f32.mrb[0].mxu0
      %v1087 = vpop.f32.mrb[0].mxu0
      %v1088 = vadd.f32 %v493, %v1087
      %v1089 = vpop.f32.mrb[0].mxu0
      %1090 = vdwg.mxu0
      %v1091 = vsel %vm747, %v1085, -inf
      %1092 = vmax.xlane.f32.xlu0 %v1091
      %v1093 = vpop.xlane.xlu0 %1092
      %v1094 = vsel %vm747, %v1088, -inf
      %1095 = vmax.xlane.f32.xlu0 %v1094
      %v1096 = vpop.xlane.xlu0 %1095
      %v1097 = vsub.f32 %v1085, %v1093
      %v1098 = vsub.f32 %v1088, %v1096
      %v1099 = vmul.f32 %v1097, 1.442695
      %v1100 = vpow.pop %v1099
      %v1101 = vmul.f32 %v1098, 1.442695
      %v1102 = vpow.pop %v1101
      %v1103 = vsel %vm747, %v1100, 0.0
      %1104 = vadd.xlane.f32.xlu0 %v1103
      %v1105 = vpop.xlane.xlu0 %1104
      %v1106 = vsel %vm747, %v1102, 0.0
      %1107 = vadd.xlane.f32.xlu0 %v1106
      %v1108 = vpop.xlane.xlu0 %1107
      %v1109 = vrcp.pop %v1105
      %v1110 = vrcp.pop %v1108
      %v1111 = vmul.f32 %v1100, %v1109
      %v1112 = vmul.f32 %v1102, %v1110
      %v1113 = vpack.c.bf16 %v1112, %v1111
      %1114 = vrot.lane.b32.xlu0 %v771, 112
      %v1115 = vpop.permute.xlu0 %1114
      %v1118 = vsel %vm747, %v1113, 0
      %1120 = vmatprep.subr.bf16.mxu0 0
      %1121 = vmatpush1.bf16.msra.mxu0 %v1115
      %1122 = vmatprep.subr.bf16.mxu0 0
      %1123 = vmatpush1.bf16.msra.mxu0 0
      %1124 = vmatprep.subr.bf16.mxu0 0
      %1125 = vmatpush1.bf16.msra.mxu0 0
      %1126 = vmatprep.subr.bf16.mxu0 0
      %1127 = vmatpush1.bf16.msra.mxu0 0
      %1128 = vmatprep.subr.bf16.mxu0 0
      %1129 = vmatpush1.bf16.msra.mxu0 0
      %1130 = vmatprep.subr.bf16.mxu0 0
      %1131 = vmatpush1.bf16.msra.mxu0 0
      %1132 = vmatprep.subr.bf16.mxu0 0
      %1133 = vmatpush1.bf16.msra.mxu0 0
      %1134 = vmatprep.subr.bf16.mxu0 0
      %1135 = vmatpush1.bf16.msra.mxu0 0
      %1136 = vmatprep.subr.bf16.mxu0 0
      %1137 = vmatpush1.bf16.msra.mxu0 0
      %1138 = vmatprep.subr.bf16.mxu0 0
      %1139 = vmatpush1.bf16.msra.mxu0 0
      %1140 = vmatprep.subr.bf16.mxu0 0
      %1141 = vmatpush1.bf16.msra.mxu0 0
      %1142 = vmatprep.subr.bf16.mxu0 0
      %1143 = vmatpush1.bf16.msra.mxu0 0
      %1144 = vmatprep.subr.bf16.mxu0 0
      %1145 = vmatpush1.bf16.msra.mxu0 0
      %1146 = vmatprep.subr.bf16.mxu0 0
      %1147 = vmatpush1.bf16.msra.mxu0 0
      %1148 = vmatprep.subr.bf16.mxu0 0
      %1149 = vmatpush1.bf16.msra.mxu0 0
      %1150 = vmatprep.subr.bf16.mxu0 0
      %1151 = vmatpush1.bf16.msra.mxu0 0
      %1152 = vmatprep.mubr.bf16.mxu0 0
      %1153 = vmatmul.mubr.bf16.gmra.mrb[0].mxu0 %v1118
      %v1154 = vpop.f32.mrb[0].mxu0
      %v1155 = vadd.f32 0.0, %v1154
      %v1156 = vpop.f32.mrb[0].mxu0
      %v1157 = vpop.f32.mrb[0].mxu0
      %v1158 = vadd.f32 0.0, %v1157
      %v1159 = vpop.f32.mrb[0].mxu0
      %1160 = vdwg.mxu0
      %s1161 = scalar_lea.vmem %s458, 8
      %v1162 = vld [vmem:[%s1161] sm:$0xf]
      %v1163 = vpack.c.bf16 %v1158, %v1155
      %v1165 = vsel %vm699, %v1163, 0
      %v1168 = vsel %vm948, %v1162, 0
      %1170 = vmatprep.subr.bf16.mxu0 0
      %1171 = vmatpush1.bf16.msra.mxu0 %v1168
      %1172 = vmatprep.subr.bf16.mxu0 0
      %1173 = vmatpush1.bf16.msra.mxu0 0
      %1174 = vmatprep.subr.bf16.mxu0 0
      %1175 = vmatpush1.bf16.msra.mxu0 0
      %1176 = vmatprep.subr.bf16.mxu0 0
      %1177 = vmatpush1.bf16.msra.mxu0 0
      %1178 = vmatprep.subr.bf16.mxu0 0
      %1179 = vmatpush1.bf16.msra.mxu0 0
      %1180 = vmatprep.subr.bf16.mxu0 0
      %1181 = vmatpush1.bf16.msra.mxu0 0
      %1182 = vmatprep.subr.bf16.mxu0 0
      %1183 = vmatpush1.bf16.msra.mxu0 0
      %1184 = vmatprep.subr.bf16.mxu0 0
      %1185 = vmatpush1.bf16.msra.mxu0 0
      %1186 = vmatprep.subr.bf16.mxu0 0
      %1187 = vmatpush1.bf16.msra.mxu0 0
      %1188 = vmatprep.subr.bf16.mxu0 0
      %1189 = vmatpush1.bf16.msra.mxu0 0
      %1190 = vmatprep.subr.bf16.mxu0 0
      %1191 = vmatpush1.bf16.msra.mxu0 0
      %1192 = vmatprep.subr.bf16.mxu0 0
      %1193 = vmatpush1.bf16.msra.mxu0 0
      %1194 = vmatprep.subr.bf16.mxu0 0
      %1195 = vmatpush1.bf16.msra.mxu0 0
      %1196 = vmatprep.subr.bf16.mxu0 0
      %1197 = vmatpush1.bf16.msra.mxu0 0
      %1198 = vmatprep.subr.bf16.mxu0 0
      %1199 = vmatpush1.bf16.msra.mxu0 0
      %1200 = vmatprep.subr.bf16.mxu0 0
      %1201 = vmatpush1.bf16.msra.mxu0 0
      %1202 = vmatprep.mubr.bf16.mxu0 0
      %1203 = vmatmul.mubr.bf16.gmra.mrb[0].mxu0 %v1165
      %v1204 = vpop.f32.mrb[0].mxu0
      %v1205 = vadd.f32 0.0, %v1204
      %v1206 = vpop.f32.mrb[0].mxu0
      %v1207 = vpop.f32.mrb[0].mxu0
      %v1208 = vadd.f32 0.0, %v1207
      %v1209 = vpop.f32.mrb[0].mxu0
      %1210 = vdwg.mxu0
      %v1211 = vadd.f32 %v1034, %v1205
      %v1212 = vadd.f32 %v1037, %v1208
      %1213 = vrot.lane.b32.xlu0 %v697, 104
      %v1214 = vpop.permute.xlu0 %1213
      %1215 = vrot.lane.b32.xlu0 %v698, 104
      %v1216 = vpop.permute.xlu0 %1215
      %v1218 = vsel %vm699, %v1214, 0
      %v1221 = vsel %vm699, %v1216, 0
      %1223 = vmatprep.subr.bf16.mxu0 0
      %1224 = vmatpush1.bf16.xpose.msra.mxu0 %v1221
      %1225 = vmatprep.subr.bf16.mxu0 0
      %1226 = vmatpush1.bf16.xpose.msra.mxu0 0
      %1227 = vmatprep.subr.bf16.mxu0 0
      %1228 = vmatpush1.bf16.xpose.msra.mxu0 0
      %1229 = vmatprep.subr.bf16.mxu0 0
      %1230 = vmatpush1.bf16.xpose.msra.mxu0 0
      %1231 = vmatprep.subr.bf16.mxu0 0
      %1232 = vmatpush1.bf16.xpose.msra.mxu0 0
      %1233 = vmatprep.subr.bf16.mxu0 0
      %1234 = vmatpush1.bf16.xpose.msra.mxu0 0
      %1235 = vmatprep.subr.bf16.mxu0 0
      %1236 = vmatpush1.bf16.xpose.msra.mxu0 0
      %1237 = vmatprep.subr.bf16.mxu0 0
      %1238 = vmatpush1.bf16.xpose.msra.mxu0 0
      %1239 = vmatprep.subr.bf16.mxu0 0
      %1240 = vmatpush1.bf16.xpose.msra.mxu0 0
      %1241 = vmatprep.subr.bf16.mxu0 0
      %1242 = vmatpush1.bf16.xpose.msra.mxu0 0
      %1243 = vmatprep.subr.bf16.mxu0 0
      %1244 = vmatpush1.bf16.xpose.msra.mxu0 0
      %1245 = vmatprep.subr.bf16.mxu0 0
      %1246 = vmatpush1.bf16.xpose.msra.mxu0 0
      %1247 = vmatprep.subr.bf16.mxu0 0
      %1248 = vmatpush1.bf16.xpose.msra.mxu0 0
      %1249 = vmatprep.subr.bf16.mxu0 0
      %1250 = vmatpush1.bf16.xpose.msra.mxu0 0
      %1251 = vmatprep.subr.bf16.mxu0 0
      %1252 = vmatpush1.bf16.xpose.msra.mxu0 0
      %1253 = vmatprep.subr.bf16.mxu0 0
      %1254 = vmatpush1.bf16.xpose.msra.mxu0 0
      %1255 = vmatprep.mubr.bf16.mxu0 0
      %1256 = vmatmul.mubr.bf16.gmra.mrb[0].mxu0 %v1218
      %v1257 = vpop.f32.mrb[0].mxu0
      %v1258 = vadd.f32 %v492, %v1257
      %v1259 = vpop.f32.mrb[0].mxu0
      %v1260 = vpop.f32.mrb[0].mxu0
      %v1261 = vadd.f32 %v493, %v1260
      %v1262 = vpop.f32.mrb[0].mxu0
      %1263 = vdwg.mxu0
      %v1264 = vsel %vm747, %v1258, -inf
      %1265 = vmax.xlane.f32.xlu0 %v1264
      %v1266 = vpop.xlane.xlu0 %1265
      %v1267 = vsel %vm747, %v1261, -inf
      %1268 = vmax.xlane.f32.xlu0 %v1267
      %v1269 = vpop.xlane.xlu0 %1268
      %v1270 = vsub.f32 %v1258, %v1266
      %v1271 = vsub.f32 %v1261, %v1269
      %v1272 = vmul.f32 %v1270, 1.442695
      %v1273 = vpow.pop %v1272
      %v1274 = vmul.f32 %v1271, 1.442695
      %v1275 = vpow.pop %v1274
      %v1276 = vsel %vm747, %v1273, 0.0
      %1277 = vadd.xlane.f32.xlu0 %v1276
      %v1278 = vpop.xlane.xlu0 %1277
      %v1279 = vsel %vm747, %v1275, 0.0
      %1280 = vadd.xlane.f32.xlu0 %v1279
      %v1281 = vpop.xlane.xlu0 %1280
      %v1282 = vrcp.pop %v1278
      %v1283 = vrcp.pop %v1281
      %v1284 = vmul.f32 %v1273, %v1282
      %v1285 = vmul.f32 %v1275, %v1283
      %v1286 = vpack.c.bf16 %v1285, %v1284
      %1287 = vrot.lane.b32.xlu0 %v771, 104
      %v1288 = vpop.permute.xlu0 %1287
      %v1291 = vsel %vm747, %v1286, 0
      %1293 = vmatprep.subr.bf16.mxu0 0
      %1294 = vmatpush1.bf16.msra.mxu0 %v1288
      %1295 = vmatprep.subr.bf16.mxu0 0
      %1296 = vmatpush1.bf16.msra.mxu0 0
      %1297 = vmatprep.subr.bf16.mxu0 0
      %1298 = vmatpush1.bf16.msra.mxu0 0
      %1299 = vmatprep.subr.bf16.mxu0 0
      %1300 = vmatpush1.bf16.msra.mxu0 0
      %1301 = vmatprep.subr.bf16.mxu0 0
      %1302 = vmatpush1.bf16.msra.mxu0 0
      %1303 = vmatprep.subr.bf16.mxu0 0
      %1304 = vmatpush1.bf16.msra.mxu0 0
      %1305 = vmatprep.subr.bf16.mxu0 0
      %1306 = vmatpush1.bf16.msra.mxu0 0
      %1307 = vmatprep.subr.bf16.mxu0 0
      %1308 = vmatpush1.bf16.msra.mxu0 0
      %1309 = vmatprep.subr.bf16.mxu0 0
      %1310 = vmatpush1.bf16.msra.mxu0 0
      %1311 = vmatprep.subr.bf16.mxu0 0
      %1312 = vmatpush1.bf16.msra.mxu0 0
      %1313 = vmatprep.subr.bf16.mxu0 0
      %1314 = vmatpush1.bf16.msra.mxu0 0
      %1315 = vmatprep.subr.bf16.mxu0 0
      %1316 = vmatpush1.bf16.msra.mxu0 0
      %1317 = vmatprep.subr.bf16.mxu0 0
      %1318 = vmatpush1.bf16.msra.mxu0 0
      %1319 = vmatprep.subr.bf16.mxu0 0
      %1320 = vmatpush1.bf16.msra.mxu0 0
      %1321 = vmatprep.subr.bf16.mxu0 0
      %1322 = vmatpush1.bf16.msra.mxu0 0
      %1323 = vmatprep.subr.bf16.mxu0 0
      %1324 = vmatpush1.bf16.msra.mxu0 0
      %1325 = vmatprep.mubr.bf16.mxu0 0
      %1326 = vmatmul.mubr.bf16.gmra.mrb[0].mxu0 %v1291
      %v1327 = vpop.f32.mrb[0].mxu0
      %v1328 = vadd.f32 0.0, %v1327
      %v1329 = vpop.f32.mrb[0].mxu0
      %v1330 = vpop.f32.mrb[0].mxu0
      %v1331 = vadd.f32 0.0, %v1330
      %v1332 = vpop.f32.mrb[0].mxu0
      %1333 = vdwg.mxu0
      %s1334 = scalar_lea.vmem %s458, 12
      %v1335 = vld [vmem:[%s1334] sm:$0xf]
      %v1336 = vpack.c.bf16 %v1331, %v1328
      %v1338 = vsel %vm699, %v1336, 0
      %v1341 = vsel %vm948, %v1335, 0
      %1343 = vmatprep.subr.bf16.mxu0 0
      %1344 = vmatpush1.bf16.msra.mxu0 %v1341
      %1345 = vmatprep.subr.bf16.mxu0 0
      %1346 = vmatpush1.bf16.msra.mxu0 0
      %1347 = vmatprep.subr.bf16.mxu0 0
      %1348 = vmatpush1.bf16.msra.mxu0 0
      %1349 = vmatprep.subr.bf16.mxu0 0
      %1350 = vmatpush1.bf16.msra.mxu0 0
      %1351 = vmatprep.subr.bf16.mxu0 0
      %1352 = vmatpush1.bf16.msra.mxu0 0
      %1353 = vmatprep.subr.bf16.mxu0 0
      %1354 = vmatpush1.bf16.msra.mxu0 0
      %1355 = vmatprep.subr.bf16.mxu0 0
      %1356 = vmatpush1.bf16.msra.mxu0 0
      %1357 = vmatprep.subr.bf16.mxu0 0
      %1358 = vmatpush1.bf16.msra.mxu0 0
      %1359 = vmatprep.subr.bf16.mxu0 0
      %1360 = vmatpush1.bf16.msra.mxu0 0
      %1361 = vmatprep.subr.bf16.mxu0 0
      %1362 = vmatpush1.bf16.msra.mxu0 0
      %1363 = vmatprep.subr.bf16.mxu0 0
      %1364 = vmatpush1.bf16.msra.mxu0 0
      %1365 = vmatprep.subr.bf16.mxu0 0
      %1366 = vmatpush1.bf16.msra.mxu0 0
      %1367 = vmatprep.subr.bf16.mxu0 0
      %1368 = vmatpush1.bf16.msra.mxu0 0
      %1369 = vmatprep.subr.bf16.mxu0 0
      %1370 = vmatpush1.bf16.msra.mxu0 0
      %1371 = vmatprep.subr.bf16.mxu0 0
      %1372 = vmatpush1.bf16.msra.mxu0 0
      %1373 = vmatprep.subr.bf16.mxu0 0
      %1374 = vmatpush1.bf16.msra.mxu0 0
      %1375 = vmatprep.mubr.bf16.mxu0 0
      %1376 = vmatmul.mubr.bf16.gmra.mrb[0].mxu0 %v1338
      %v1377 = vpop.f32.mrb[0].mxu0
      %v1378 = vadd.f32 0.0, %v1377
      %v1379 = vpop.f32.mrb[0].mxu0
      %v1380 = vpop.f32.mrb[0].mxu0
      %v1381 = vadd.f32 0.0, %v1380
      %v1382 = vpop.f32.mrb[0].mxu0
      %1383 = vdwg.mxu0
      %v1384 = vadd.f32 %v1211, %v1378
      %v1385 = vadd.f32 %v1212, %v1381
      %s1386 = scalar_lea.vmem %s462, 3
      %v1387 = vld [vmem:[%s1386] sm:$0x1]
      %v1389 = vlaneseq
      %v1390 = vshrl.u32 %v1389, 7
      %v1391 = vsub.s32 0, %v1390
      %v1392 = vrot.slane %v1387, %v1391
      %v1394 = vadd.f32 %v1384, %v1392
      %v1395 = vadd.f32 %v1385, %v1392
      %v1396 = vadd.f32 %v490, %v1394
      %v1397 = vadd.f32 %v491, %v1395
      %v1398 = vld [vmem:[%s475] sm:$0x1]
      %v1399 = vld [vmem:[%s479] sm:$0x1]
      %v1400 = vsel %vm518, %v1396, 0.0
      %1401 = vadd.xlane.f32.xlu0 %v1400
      %v1402 = vpop.xlane.xlu0 %1401
      %v1403 = vsel %vm518, %v1397, 0.0
      %1404 = vadd.xlane.f32.xlu0 %v1403
      %v1405 = vpop.xlane.xlu0 %1404
      %v1406 = vrcp.pop 32.0
      %v1407 = vmul.f32 %v1402, %v1406
      %v1408 = vmul.f32 %v1405, %v1406
      %v1409 = vsub.f32 %v1396, %v1407
      %v1410 = vsub.f32 %v1397, %v1408
      %v1411 = vmul.f32 %v1409, %v1409
      %v1412 = vmul.f32 %v1410, %v1410
      %v1413 = vsel %vm518, %v1411, 0.0
      %1414 = vadd.xlane.f32.xlu0 %v1413
      %v1415 = vpop.xlane.xlu0 %1414
      %v1416 = vsel %vm518, %v1412, 0.0
      %1417 = vadd.xlane.f32.xlu0 %v1416
      %v1418 = vpop.xlane.xlu0 %1417
      %v1419 = vmul.f32 %v1415, %v1406
      %v1420 = vmul.f32 %v1418, %v1406
      %v1421 = vadd.f32 %v1419, 1e-05
      %v1422 = vadd.f32 %v1420, 1e-05
      %v1423 = vrsqrt.pop %v1421
      %v1424 = vrsqrt.pop %v1422
      %v1425 = vmul.f32 %v1409, %v1423
      %v1426 = vmul.f32 %v1410, %v1424
      %v1428 = vlaneseq
      %v1429 = vshrl.u32 %v1428, 7
      %v1430 = vsub.s32 0, %v1429
      %v1431 = vrot.slane %v1398, %v1430
      %v1433 = vmul.f32 %v1425, %v1431
      %v1434 = vmul.f32 %v1426, %v1431
      %v1436 = vlaneseq
      %v1437 = vshrl.u32 %v1436, 7
      %v1438 = vsub.s32 0, %v1437
      %v1439 = vrot.slane %v1399, %v1438
      %v1441 = vadd.f32 %v1433, %v1439
      %v1442 = vadd.f32 %v1434, %v1439
      %v1443 = vld [vmem:[%s467] sm:$0xf]
      %v1444 = vld [vmem:[%s467 + $0x4] sm:$0xf]
      %v1445 = vld [vmem:[%s467 + $0x8] sm:$0xf]
      %v1446 = vld [vmem:[%s467 + $0xc] sm:$0xf]
      %v1447 = vpack.c.bf16 %v1442, %v1441
      %v1448 = vld [vmem:[%s471] sm:$0x1]
      %v1450 = vlaneseq
      %v1451 = vshrl.u32 %v1450, 7
      %v1452 = vsub.s32 0, %v1451
      %v1453 = vrot.slane %v1448, %v1452
      %v1459 = vunpack.c.l.b16 %v1443
      %v1460 = vunpack.c.l.b16 %v1444
      %v1461 = vunpack.c.l.b16 %v1445
      %v1462 = vunpack.c.l.b16 %v1446
      %v1463 = vpack.c.b16 %v1460, %v1459
      %v1464 = vpack.c.b16 %v1462, %v1461
      %v1468 = vsel %vm518, %v1447, 0
      %1470 = vmatprep.subr.bf16.mxu0 0
      %1471 = vmatpush1.bf16.msra.mxu0 %v1463
      %1472 = vmatprep.subr.bf16.mxu0 0
      %1473 = vmatpush1.bf16.msra.mxu0 %v1464
      %1474 = vmatprep.subr.bf16.mxu0 0
      %1475 = vmatpush1.bf16.msra.mxu0 0
      %1476 = vmatprep.subr.bf16.mxu0 0
      %1477 = vmatpush1.bf16.msra.mxu0 0
      %1478 = vmatprep.subr.bf16.mxu0 0
      %1479 = vmatpush1.bf16.msra.mxu0 0
      %1480 = vmatprep.subr.bf16.mxu0 0
      %1481 = vmatpush1.bf16.msra.mxu0 0
      %1482 = vmatprep.subr.bf16.mxu0 0
      %1483 = vmatpush1.bf16.msra.mxu0 0
      %1484 = vmatprep.subr.bf16.mxu0 0
      %1485 = vmatpush1.bf16.msra.mxu0 0
      %1486 = vmatprep.subr.bf16.mxu0 0
      %1487 = vmatpush1.bf16.msra.mxu0 0
      %1488 = vmatprep.subr.bf16.mxu0 0
      %1489 = vmatpush1.bf16.msra.mxu0 0
      %1490 = vmatprep.subr.bf16.mxu0 0
      %1491 = vmatpush1.bf16.msra.mxu0 0
      %1492 = vmatprep.subr.bf16.mxu0 0
      %1493 = vmatpush1.bf16.msra.mxu0 0
      %1494 = vmatprep.subr.bf16.mxu0 0
      %1495 = vmatpush1.bf16.msra.mxu0 0
      %1496 = vmatprep.subr.bf16.mxu0 0
      %1497 = vmatpush1.bf16.msra.mxu0 0
      %1498 = vmatprep.subr.bf16.mxu0 0
      %1499 = vmatpush1.bf16.msra.mxu0 0
      %1500 = vmatprep.subr.bf16.mxu0 0
      %1501 = vmatpush1.bf16.msra.mxu0 0
      %1502 = vmatprep.mubr.bf16.mxu0 0
      %1503 = vmatmul.mubr.bf16.gmra.mrb[0].mxu0 %v1468
      %v1504 = vpop.f32.mrb[0].mxu0
      %v1505 = vadd.f32 %v1453, %v1504
      %v1506 = vpop.f32.mrb[0].mxu0
      %v1507 = vpop.f32.mrb[0].mxu0
      %v1508 = vadd.f32 %v1453, %v1507
      %v1509 = vpop.f32.mrb[0].mxu0
      %1510 = vdwg.mxu0
      %v1511 = vmax.f32 %v1505, 0.0
      %v1512 = vmax.f32 %v1508, 0.0
      %s1513 = scalar_lea.vmem %s467, 16
      %v1514 = vld [vmem:[%s1513] sm:$0xf]
      %v1515 = vld [vmem:[%s1513 + $0x4] sm:$0xf]
      %v1516 = vld [vmem:[%s1513 + $0x8] sm:$0xf]
      %v1517 = vld [vmem:[%s1513 + $0xc] sm:$0xf]
      %v1518 = vpack.c.bf16 %v1512, %v1511
      %s1519 = scalar_lea.vmem %s471, 1
      %v1520 = vld [vmem:[%s1519] sm:$0x1]
      %v1522 = vlaneseq
      %v1523 = vshrl.u32 %v1522, 7
      %v1524 = vsub.s32 0, %v1523
      %v1525 = vrot.slane %v1520, %v1524
      %v1531 = vunpack.c.l.b16 %v1514
      %v1532 = vunpack.c.l.b16 %v1515
      %v1533 = vunpack.c.l.b16 %v1516
      %v1534 = vunpack.c.l.b16 %v1517
      %v1535 = vpack.c.b16 %v1532, %v1531
      %v1536 = vpack.c.b16 %v1534, %v1533
      %v1540 = vsel %vm518, %v1518, 0
      %1542 = vmatprep.subr.bf16.mxu0 0
      %1543 = vmatpush1.bf16.msra.mxu0 %v1535
      %1544 = vmatprep.subr.bf16.mxu0 0
      %1545 = vmatpush1.bf16.msra.mxu0 %v1536
      %1546 = vmatprep.subr.bf16.mxu0 0
      %1547 = vmatpush1.bf16.msra.mxu0 0
      %1548 = vmatprep.subr.bf16.mxu0 0
      %1549 = vmatpush1.bf16.msra.mxu0 0
      %1550 = vmatprep.subr.bf16.mxu0 0
      %1551 = vmatpush1.bf16.msra.mxu0 0
      %1552 = vmatprep.subr.bf16.mxu0 0
      %1553 = vmatpush1.bf16.msra.mxu0 0
      %1554 = vmatprep.subr.bf16.mxu0 0
      %1555 = vmatpush1.bf16.msra.mxu0 0
      %1556 = vmatprep.subr.bf16.mxu0 0
      %1557 = vmatpush1.bf16.msra.mxu0 0
      %1558 = vmatprep.subr.bf16.mxu0 0
      %1559 = vmatpush1.bf16.msra.mxu0 0
      %1560 = vmatprep.subr.bf16.mxu0 0
      %1561 = vmatpush1.bf16.msra.mxu0 0
      %1562 = vmatprep.subr.bf16.mxu0 0
      %1563 = vmatpush1.bf16.msra.mxu0 0
      %1564 = vmatprep.subr.bf16.mxu0 0
      %1565 = vmatpush1.bf16.msra.mxu0 0
      %1566 = vmatprep.subr.bf16.mxu0 0
      %1567 = vmatpush1.bf16.msra.mxu0 0
      %1568 = vmatprep.subr.bf16.mxu0 0
      %1569 = vmatpush1.bf16.msra.mxu0 0
      %1570 = vmatprep.subr.bf16.mxu0 0
      %1571 = vmatpush1.bf16.msra.mxu0 0
      %1572 = vmatprep.subr.bf16.mxu0 0
      %1573 = vmatpush1.bf16.msra.mxu0 0
      %1574 = vmatprep.mubr.bf16.mxu0 0
      %1575 = vmatmul.mubr.bf16.gmra.mrb[0].mxu0 %v1540
      %v1576 = vpop.f32.mrb[0].mxu0
      %v1577 = vadd.f32 %v1525, %v1576
      %v1578 = vpop.f32.mrb[0].mxu0
      %v1579 = vpop.f32.mrb[0].mxu0
      %v1580 = vadd.f32 %v1525, %v1579
      %v1581 = vpop.f32.mrb[0].mxu0
      %1582 = vdwg.mxu0
      %v1583 = vadd.f32 %v1441, %v1577
      %v1584 = vadd.f32 %v1442, %v1580
      %s1585 = scalar_lea.vmem %s475, 1
      %v1586 = vld [vmem:[%s1585] sm:$0x1]
      %s1587 = scalar_lea.vmem %s479, 1
      %v1588 = vld [vmem:[%s1587] sm:$0x1]
      %v1589 = vsel %vm518, %v1583, 0.0
      %1590 = vadd.xlane.f32.xlu0 %v1589
      %v1591 = vpop.xlane.xlu0 %1590
      %v1592 = vsel %vm518, %v1584, 0.0
      %1593 = vadd.xlane.f32.xlu0 %v1592
      %v1594 = vpop.xlane.xlu0 %1593
      %v1595 = vmul.f32 %v1591, %v1406
      %v1596 = vmul.f32 %v1594, %v1406
      %v1597 = vsub.f32 %v1583, %v1595
      %v1598 = vsub.f32 %v1584, %v1596
      %v1599 = vmul.f32 %v1597, %v1597
      %v1600 = vmul.f32 %v1598, %v1598
      %v1601 = vsel %vm518, %v1599, 0.0
      %1602 = vadd.xlane.f32.xlu0 %v1601
      %v1603 = vpop.xlane.xlu0 %1602
      %v1604 = vsel %vm518, %v1600, 0.0
      %1605 = vadd.xlane.f32.xlu0 %v1604
      %v1606 = vpop.xlane.xlu0 %1605
      %v1607 = vmul.f32 %v1603, %v1406
      %v1608 = vmul.f32 %v1606, %v1406
      %v1609 = vadd.f32 %v1607, 1e-05
      %v1610 = vadd.f32 %v1608, 1e-05
      %v1611 = vrsqrt.pop %v1609
      %v1612 = vrsqrt.pop %v1610
      %v1613 = vmul.f32 %v1597, %v1611
      %v1614 = vmul.f32 %v1598, %v1612
      %v1616 = vlaneseq
      %v1617 = vshrl.u32 %v1616, 7
      %v1618 = vsub.s32 0, %v1617
      %v1619 = vrot.slane %v1586, %v1618
      %v1621 = vmul.f32 %v1613, %v1619
      %v1622 = vmul.f32 %v1614, %v1619
      %v1624 = vlaneseq
      %v1625 = vshrl.u32 %v1624, 7
      %v1626 = vsub.s32 0, %v1625
      %v1627 = vrot.slane %v1588, %v1626
      %v1629 = vadd.f32 %v1621, %v1627
      %v1630 = vadd.f32 %v1622, %v1627
      %1631 = vst.msk [vmem:[#allocation2] sm:$0xff] %vm518, %v1629
      %1632 = vst.msk [vmem:[#allocation2 + $0x8] sm:$0xff] %vm518, %v1630
      %p1633 = scmp.eq.s32.totalorder %s22, 1
      // Predicated region
      $region69: #{transformer_forward.4} parent=63 // pred_check
        %p1634 = pneg %p1633
      $region70: #{transformer_forward.4} parent=63 // pred_check_branch
        %1636 = sbr.rel (%p1634) target = $region72
      $region71: #{transformer_forward.4} parent=63 // pred_region
        %v1637 = vld [vmem:[%s9] sm:$0x1]
        %v1638 = vld [vmem:[%s10] sm:$0x1]
        %v1639 = vsel %vm518, %v1629, 0.0
        %1640 = vadd.xlane.f32.xlu0 %v1639
        %v1641 = vpop.xlane.xlu0 %1640
        %v1642 = vsel %vm518, %v1630, 0.0
        %1643 = vadd.xlane.f32.xlu0 %v1642
        %v1644 = vpop.xlane.xlu0 %1643
        %v1645 = vmul.f32 %v1641, %v1406
        %v1646 = vmul.f32 %v1644, %v1406
        %v1647 = vsub.f32 %v1629, %v1645
        %v1648 = vsub.f32 %v1630, %v1646
        %v1649 = vmul.f32 %v1647, %v1647
        %v1650 = vmul.f32 %v1648, %v1648
        %v1651 = vsel %vm518, %v1649, 0.0
        %1652 = vadd.xlane.f32.xlu0 %v1651
        %v1653 = vpop.xlane.xlu0 %1652
        %v1654 = vsel %vm518, %v1650, 0.0
        %1655 = vadd.xlane.f32.xlu0 %v1654
        %v1656 = vpop.xlane.xlu0 %1655
        %v1657 = vmul.f32 %v1653, %v1406
        %v1658 = vmul.f32 %v1656, %v1406
        %v1659 = vadd.f32 %v1657, 1e-05
        %v1660 = vadd.f32 %v1658, 1e-05
        %v1661 = vrsqrt.pop %v1659
        %v1662 = vrsqrt.pop %v1660
        %v1663 = vmul.f32 %v1647, %v1661
        %v1664 = vmul.f32 %v1648, %v1662
        %v1666 = vlaneseq
        %v1667 = vshrl.u32 %v1666, 7
        %v1668 = vsub.s32 0, %v1667
        %v1669 = vrot.slane %v1637, %v1668
        %v1671 = vmul.f32 %v1663, %v1669
        %v1672 = vmul.f32 %v1664, %v1669
        %v1674 = vlaneseq
        %v1675 = vshrl.u32 %v1674, 7
        %v1676 = vsub.s32 0, %v1675
        %v1677 = vrot.slane %v1638, %v1676
        %v1679 = vadd.f32 %v1671, %v1677
        %v1680 = vadd.f32 %v1672, %v1677
        %1681 = vst.msk [vmem:[%s11] sm:$0xff] %vm518, %v1679
        %1682 = vst.msk [vmem:[%s11 + $0x8] sm:$0xff] %vm518, %v1680
      $region72: #{transformer_forward.4} parent=63 // pred_fallthru
        _
      // Predicated region
      $region73: #{transformer_forward.4} parent=63 // pred_check
        %p1683 = pneg %p301
      $region74: #{transformer_forward.4} parent=63 // pred_check_branch
        %1685 = sbr.rel (%p1683) target = $region76
      $region75: #{transformer_forward.4} parent=63 // pred_region
        _
      $region76: #{transformer_forward.4} parent=63 // pred_fallthru
        _
      // Predicated region
      $region77: #{transformer_forward.4} parent=63 // pred_check
        %p1686 = pneg %p301
      $region78: #{transformer_forward.4} parent=63 // pred_check_branch
        %1688 = sbr.rel (%p1686) target = $region80
      $region79: #{transformer_forward.4} parent=63 // pred_region
        _
      $region80: #{transformer_forward.4} parent=63 // pred_fallthru
        _
    $region64: #{transformer_forward.4} parent=5 // pred_fallthru
      _
    %p1689 = scmp.le.s32.totalorder 2, %s17
    // Predicated region
    $region81: #{transformer_forward.4} parent=5 // pred_check
      %p1690 = pneg %p1689
    $region82: #{transformer_forward.4} parent=5 // pred_check_branch
      %1692 = sbr.rel (%p1690) target = $region84
    $region83: #{transformer_forward.4} parent=5 // pred_region
      %s1693 = ssub.s32 %s17, 2
    $region84: #{transformer_forward.4} parent=5 // pred_fallthru
      _
  $region6: #{transformer_forward.4} parent=0 // loop_footer
    %s21 = sadd.s32 1, %s17
  $region7: #{transformer_forward.4} parent=0 // loop_footer_branch
    %16 = sbr.rel target = $region3
  $region8: #{transformer_forward.4} parent=0 // loop_exit
    _

// kernel: transformer_forward.5
$region0: #{transformer_forward.5}
  #allocation0 [shape = 'u32[]', space=smem, size = 0x4, offset = 0x4, fixed_abs, tag = 'smem constant byte address 0x4 - core index']
  #allocation1 [shape = 'u32[144,128]{1,0:T(1,128)}', space=vmem, size = 0x12000, scoped, tag = 'internal scratch']
  #allocation2 [shape = 'f32[16,32]{1,0:T(8,128)}', space=vmem, size = 0x2000, scoped, tag = 'scratch operand']
  %s0 = inlined_call_operand.vmem [shape: f32[16,32], index: 0, kind: input, shape index: {}]
  %s1 = inlined_call_operand.vmem [shape: f32[16,32], index: 1, kind: input, shape index: {}]
  %s2 = inlined_call_operand.vmem [shape: f32[16,16], index: 2, kind: input, shape index: {}]
  %s3 = inlined_call_operand.vmem [shape: f32[16,16], index: 3, kind: input, shape index: {}]
  %s4 = inlined_call_operand.vmem [shape: bf16[2,3,32,32], index: 4, kind: input, shape index: {}]
  %s5 = inlined_call_operand.vmem [shape: bf16[2,4,8,32], index: 5, kind: input, shape index: {}]
  %s6 = inlined_call_operand.vmem [shape: f32[2,4,1,32], index: 6, kind: input, shape index: {}]
  %s7 = inlined_call_operand.vmem [shape: bf16[2,3,32,32], index: 7, kind: input, shape index: {}]
  %s8 = inlined_call_operand.vmem [shape: bf16[2,4,8,32], index: 8, kind: input, shape index: {}]
  %s9 = inlined_call_operand.vmem [shape: f32[2,4,1,32], index: 9, kind: input, shape index: {}]
  %s10 = inlined_call_operand.vmem [shape: bf16[2,2,32,32], index: 10, kind: input, shape index: {}]
  %s11 = inlined_call_operand.vmem [shape: f32[2,2,1,32], index: 11, kind: input, shape index: {}]
  %s12 = inlined_call_operand.vmem [shape: f32[2,3,1,32], index: 12, kind: input, shape index: {}]
  %s13 = inlined_call_operand.vmem [shape: f32[2,3,1,32], index: 13, kind: input, shape index: {}]
  %s14 = inlined_call_operand.vmem [shape: f32[1,32], index: 14, kind: input, shape index: {}]
  %s15 = inlined_call_operand.vmem [shape: f32[1,32], index: 15, kind: input, shape index: {}]
  %s16 = inlined_call_operand.vmem [shape: bf16[32,32], index: 16, kind: input, shape index: {}]
  %s17 = inlined_call_operand.vmem [shape: f32[1,32], index: 17, kind: input, shape index: {}]
  %s18 = inlined_call_operand.vmem [shape: f32[16,32], index: 18, kind: output, shape index: {}]
  %s19 = sld [smem:[#allocation0]]
  $region113: #{transformer_forward.5} parent=0
    _
  %s21 = ssub.s32 1, %s19
  %s22 = scalar_select 0, %s21, %s19
  loop: start=0, step=1, limit=4
  $region2: #{transformer_forward.5} parent=0 // loop_pre_header
    _
  $region3: #{transformer_forward.5} parent=0 // loop_header
    %s24 = sphi 0, %s28
    %p25 = scmp.ge.s32.totalorder %s24, 4
    %s32 = sphi 0, %s32
    %s34 = sphi 0, %s32
    %s35 = sphi 0, %s34
    %s49 = sphi 0, %s35
    %s53 = sphi 0, %s53
    %s55 = sphi 0, %s53
    %s56 = sphi 0, %s55
    %s70 = sphi 0, %s56
    %s74 = sphi 0, %s74
    %s76 = sphi 0, %s74
    %s77 = sphi 0, %s76
    %s91 = sphi 0, %s77
    %s95 = sphi 0, %s95
    %s97 = sphi 0, %s95
    %s98 = sphi 0, %s97
    %s112 = sphi 0, %s98
    %s118 = sphi 0, %s120
    %s121 = sphi 0, %s118
    %s122 = sphi 0, %s121
    %s138 = sphi 0, %s122
    %s144 = sphi 0, %s146
    %s147 = sphi 0, %s144
    %s148 = sphi 0, %s147
    %s164 = sphi 0, %s148
    %s170 = sphi 0, %s172
    %s173 = sphi 0, %s170
    %s174 = sphi 0, %s173
    %s190 = sphi 0, %s174
    %s196 = sphi 0, %s198
    %s199 = sphi 0, %s196
    %s200 = sphi 0, %s199
    %s216 = sphi 0, %s200
    %s222 = sphi 0, %s224
    %s225 = sphi 0, %s222
    %s226 = sphi 0, %s225
    %s242 = sphi 0, %s226
    %s248 = sphi 0, %s250
    %s251 = sphi 0, %s248
    %s252 = sphi 0, %s251
    %s268 = sphi 0, %s252
    %s274 = sphi 0, %s276
    %s277 = sphi 0, %s274
    %s278 = sphi 0, %s277
    %s294 = sphi 0, %s278
    %s300 = sphi 0, %s302
    %s303 = sphi 0, %s300
    %s304 = sphi 0, %s303
    %s320 = sphi 0, %s304
    %s326 = sphi 0, %s328
    %s329 = sphi 0, %s326
    %s330 = sphi 0, %s329
    %s346 = sphi 0, %s330
    %s352 = sphi 0, %s354
    %s355 = sphi 0, %s352
    %s356 = sphi 0, %s355
    %s372 = sphi 0, %s356
    %s376 = sphi 0, %s376
    %s378 = sphi 0, %s376
    %s379 = sphi 0, %s378
    %s393 = sphi 0, %s379
    %s397 = sphi 0, %s397
    %s399 = sphi 0, %s397
    %s400 = sphi 0, %s399
    %s414 = sphi 0, %s400
    %s418 = sphi 0, %s418
    %s420 = sphi 0, %s418
    %s421 = sphi 0, %s420
    %s435 = sphi 0, %s421
    %s439 = sphi 0, %s439
    %s441 = sphi 0, %s439
    %s442 = sphi 0, %s441
    %s456 = sphi 0, %s442
    %s460 = sphi 0, %s460
    %s462 = sphi 0, %s460
    %s463 = sphi 0, %s462
    %s477 = sphi 0, %s463
  $region4: #{transformer_forward.5} parent=0 // loop_header_branch
    %27 = sbr.rel (%p25) target = $region8
  $region5: #{transformer_forward.5} parent=0 // loop_body
    %s29 = ssub.s32 %s24, 1
    %s30 = ssub.s32 %s24, 2
    %s31 = sadd.s32 %s24, 1
    %s33 = sadd.s32 %s32, 1
    %p36 = scmp.eq.s32.totalorder %s24, 1
    %p37 = scmp.ne.s32.totalorder %s32, %s34
    %p38 = scmp.eq.s32.totalorder %s24, 0
    %p39 = por %p37, %p38
    %p40 = scmp.ne.s32.totalorder %s32, %s34
    %p41 = scmp.eq.s32.totalorder %s29, 1
    %p42 = por %p40, %p41
    %p43 = scmp.ne.s32.totalorder %s34, %s35
    %p44 = scmp.eq.s32.totalorder %s29, 0
    %p45 = por %p43, %p44
    %p46 = scmp.ne.s32.totalorder %s34, %s35
    %p47 = scmp.eq.s32.totalorder %s30, 1
    %p48 = por %p46, %p47
    %p50 = scmp.ne.s32.totalorder %s35, %s49
    %p51 = scmp.eq.s32.totalorder %s30, 0
    %p52 = por %p50, %p51
    %s54 = sadd.s32 %s53, 1
    %p57 = scmp.eq.s32.totalorder %s24, 1
    %p58 = scmp.ne.s32.totalorder %s53, %s55
    %p59 = scmp.eq.s32.totalorder %s24, 0
    %p60 = por %p58, %p59
    %p61 = scmp.ne.s32.totalorder %s53, %s55
    %p62 = scmp.eq.s32.totalorder %s29, 1
    %p63 = por %p61, %p62
    %p64 = scmp.ne.s32.totalorder %s55, %s56
    %p65 = scmp.eq.s32.totalorder %s29, 0
    %p66 = por %p64, %p65
    %p67 = scmp.ne.s32.totalorder %s55, %s56
    %p68 = scmp.eq.s32.totalorder %s30, 1
    %p69 = por %p67, %p68
    %p71 = scmp.ne.s32.totalorder %s56, %s70
    %p72 = scmp.eq.s32.totalorder %s30, 0
    %p73 = por %p71, %p72
    %s75 = sadd.s32 %s74, 1
    %p78 = scmp.eq.s32.totalorder %s24, 1
    %p79 = scmp.ne.s32.totalorder %s74, %s76
    %p80 = scmp.eq.s32.totalorder %s24, 0
    %p81 = por %p79, %p80
    %p82 = scmp.ne.s32.totalorder %s74, %s76
    %p83 = scmp.eq.s32.totalorder %s29, 1
    %p84 = por %p82, %p83
    %p85 = scmp.ne.s32.totalorder %s76, %s77
    %p86 = scmp.eq.s32.totalorder %s29, 0
    %p87 = por %p85, %p86
    %p88 = scmp.ne.s32.totalorder %s76, %s77
    %p89 = scmp.eq.s32.totalorder %s30, 1
    %p90 = por %p88, %p89
    %p92 = scmp.ne.s32.totalorder %s77, %s91
    %p93 = scmp.eq.s32.totalorder %s30, 0
    %p94 = por %p92, %p93
    %s96 = sadd.s32 %s95, 1
    %p99 = scmp.eq.s32.totalorder %s24, 1
    %p100 = scmp.ne.s32.totalorder %s95, %s97
    %p101 = scmp.eq.s32.totalorder %s24, 0
    %p102 = por %p100, %p101
    %p103 = scmp.ne.s32.totalorder %s95, %s97
    %p104 = scmp.eq.s32.totalorder %s29, 1
    %p105 = por %p103, %p104
    %p106 = scmp.ne.s32.totalorder %s97, %s98
    %p107 = scmp.eq.s32.totalorder %s29, 0
    %p108 = por %p106, %p107
    %p109 = scmp.ne.s32.totalorder %s97, %s98
    %p110 = scmp.eq.s32.totalorder %s30, 1
    %p111 = por %p109, %p110
    %p113 = scmp.ne.s32.totalorder %s98, %s112
    %p114 = scmp.eq.s32.totalorder %s30, 0
    %p115 = por %p113, %p114
    %s116 = ssub.s32 %s24, %s31
    %p117 = scmp.eq.s32.totalorder %s116, 0
    %s119 = sadd.s32 %s118, 1
    %s120 = scalar_select %p117, %s118, %s119
    %p123 = pneg %p117
    %p124 = scmp.eq.s32.totalorder %s24, 1
    %p125 = por %p123, %p124
    %p126 = scmp.ne.s32.totalorder %s118, %s121
    %p127 = scmp.eq.s32.totalorder %s24, 0
    %p128 = por %p126, %p127
    %p129 = scmp.ne.s32.totalorder %s118, %s121
    %p130 = scmp.eq.s32.totalorder %s29, 1
    %p131 = por %p129, %p130
    %p132 = scmp.ne.s32.totalorder %s121, %s122
    %p133 = scmp.eq.s32.totalorder %s29, 0
    %p134 = por %p132, %p133
    %p135 = scmp.ne.s32.totalorder %s121, %s122
    %p136 = scmp.eq.s32.totalorder %s30, 1
    %p137 = por %p135, %p136
    %p139 = scmp.ne.s32.totalorder %s122, %s138
    %p140 = scmp.eq.s32.totalorder %s30, 0
    %p141 = por %p139, %p140
    %s142 = ssub.s32 %s24, %s31
    %p143 = scmp.eq.s32.totalorder %s142, 0
    %s145 = sadd.s32 %s144, 1
    %s146 = scalar_select %p143, %s144, %s145
    %p149 = pneg %p143
    %p150 = scmp.eq.s32.totalorder %s24, 1
    %p151 = por %p149, %p150
    %p152 = scmp.ne.s32.totalorder %s144, %s147
    %p153 = scmp.eq.s32.totalorder %s24, 0
    %p154 = por %p152, %p153
    %p155 = scmp.ne.s32.totalorder %s144, %s147
    %p156 = scmp.eq.s32.totalorder %s29, 1
    %p157 = por %p155, %p156
    %p158 = scmp.ne.s32.totalorder %s147, %s148
    %p159 = scmp.eq.s32.totalorder %s29, 0
    %p160 = por %p158, %p159
    %p161 = scmp.ne.s32.totalorder %s147, %s148
    %p162 = scmp.eq.s32.totalorder %s30, 1
    %p163 = por %p161, %p162
    %p165 = scmp.ne.s32.totalorder %s148, %s164
    %p166 = scmp.eq.s32.totalorder %s30, 0
    %p167 = por %p165, %p166
    %s168 = ssub.s32 %s24, %s31
    %p169 = scmp.eq.s32.totalorder %s168, 0
    %s171 = sadd.s32 %s170, 1
    %s172 = scalar_select %p169, %s170, %s171
    %p175 = pneg %p169
    %p176 = scmp.eq.s32.totalorder %s24, 1
    %p177 = por %p175, %p176
    %p178 = scmp.ne.s32.totalorder %s170, %s173
    %p179 = scmp.eq.s32.totalorder %s24, 0
    %p180 = por %p178, %p179
    %p181 = scmp.ne.s32.totalorder %s170, %s173
    %p182 = scmp.eq.s32.totalorder %s29, 1
    %p183 = por %p181, %p182
    %p184 = scmp.ne.s32.totalorder %s173, %s174
    %p185 = scmp.eq.s32.totalorder %s29, 0
    %p186 = por %p184, %p185
    %p187 = scmp.ne.s32.totalorder %s173, %s174
    %p188 = scmp.eq.s32.totalorder %s30, 1
    %p189 = por %p187, %p188
    %p191 = scmp.ne.s32.totalorder %s174, %s190
    %p192 = scmp.eq.s32.totalorder %s30, 0
    %p193 = por %p191, %p192
    %s194 = ssub.s32 %s24, %s31
    %p195 = scmp.eq.s32.totalorder %s194, 0
    %s197 = sadd.s32 %s196, 1
    %s198 = scalar_select %p195, %s196, %s197
    %p201 = pneg %p195
    %p202 = scmp.eq.s32.totalorder %s24, 1
    %p203 = por %p201, %p202
    %p204 = scmp.ne.s32.totalorder %s196, %s199
    %p205 = scmp.eq.s32.totalorder %s24, 0
    %p206 = por %p204, %p205
    %p207 = scmp.ne.s32.totalorder %s196, %s199
    %p208 = scmp.eq.s32.totalorder %s29, 1
    %p209 = por %p207, %p208
    %p210 = scmp.ne.s32.totalorder %s199, %s200
    %p211 = scmp.eq.s32.totalorder %s29, 0
    %p212 = por %p210, %p211
    %p213 = scmp.ne.s32.totalorder %s199, %s200
    %p214 = scmp.eq.s32.totalorder %s30, 1
    %p215 = por %p213, %p214
    %p217 = scmp.ne.s32.totalorder %s200, %s216
    %p218 = scmp.eq.s32.totalorder %s30, 0
    %p219 = por %p217, %p218
    %s220 = ssub.s32 %s24, %s31
    %p221 = scmp.eq.s32.totalorder %s220, 0
    %s223 = sadd.s32 %s222, 1
    %s224 = scalar_select %p221, %s222, %s223
    %p227 = pneg %p221
    %p228 = scmp.eq.s32.totalorder %s24, 1
    %p229 = por %p227, %p228
    %p230 = scmp.ne.s32.totalorder %s222, %s225
    %p231 = scmp.eq.s32.totalorder %s24, 0
    %p232 = por %p230, %p231
    %p233 = scmp.ne.s32.totalorder %s222, %s225
    %p234 = scmp.eq.s32.totalorder %s29, 1
    %p235 = por %p233, %p234
    %p236 = scmp.ne.s32.totalorder %s225, %s226
    %p237 = scmp.eq.s32.totalorder %s29, 0
    %p238 = por %p236, %p237
    %p239 = scmp.ne.s32.totalorder %s225, %s226
    %p240 = scmp.eq.s32.totalorder %s30, 1
    %p241 = por %p239, %p240
    %p243 = scmp.ne.s32.totalorder %s226, %s242
    %p244 = scmp.eq.s32.totalorder %s30, 0
    %p245 = por %p243, %p244
    %s246 = ssub.s32 %s24, %s31
    %p247 = scmp.eq.s32.totalorder %s246, 0
    %s249 = sadd.s32 %s248, 1
    %s250 = scalar_select %p247, %s248, %s249
    %p253 = pneg %p247
    %p254 = scmp.eq.s32.totalorder %s24, 1
    %p255 = por %p253, %p254
    %p256 = scmp.ne.s32.totalorder %s248, %s251
    %p257 = scmp.eq.s32.totalorder %s24, 0
    %p258 = por %p256, %p257
    %p259 = scmp.ne.s32.totalorder %s248, %s251
    %p260 = scmp.eq.s32.totalorder %s29, 1
    %p261 = por %p259, %p260
    %p262 = scmp.ne.s32.totalorder %s251, %s252
    %p263 = scmp.eq.s32.totalorder %s29, 0
    %p264 = por %p262, %p263
    %p265 = scmp.ne.s32.totalorder %s251, %s252
    %p266 = scmp.eq.s32.totalorder %s30, 1
    %p267 = por %p265, %p266
    %p269 = scmp.ne.s32.totalorder %s252, %s268
    %p270 = scmp.eq.s32.totalorder %s30, 0
    %p271 = por %p269, %p270
    %s272 = ssub.s32 %s24, %s31
    %p273 = scmp.eq.s32.totalorder %s272, 0
    %s275 = sadd.s32 %s274, 1
    %s276 = scalar_select %p273, %s274, %s275
    %p279 = pneg %p273
    %p280 = scmp.eq.s32.totalorder %s24, 1
    %p281 = por %p279, %p280
    %p282 = scmp.ne.s32.totalorder %s274, %s277
    %p283 = scmp.eq.s32.totalorder %s24, 0
    %p284 = por %p282, %p283
    %p285 = scmp.ne.s32.totalorder %s274, %s277
    %p286 = scmp.eq.s32.totalorder %s29, 1
    %p287 = por %p285, %p286
    %p288 = scmp.ne.s32.totalorder %s277, %s278
    %p289 = scmp.eq.s32.totalorder %s29, 0
    %p290 = por %p288, %p289
    %p291 = scmp.ne.s32.totalorder %s277, %s278
    %p292 = scmp.eq.s32.totalorder %s30, 1
    %p293 = por %p291, %p292
    %p295 = scmp.ne.s32.totalorder %s278, %s294
    %p296 = scmp.eq.s32.totalorder %s30, 0
    %p297 = por %p295, %p296
    %s298 = ssub.s32 %s24, %s31
    %p299 = scmp.eq.s32.totalorder %s298, 0
    %s301 = sadd.s32 %s300, 1
    %s302 = scalar_select %p299, %s300, %s301
    %p305 = pneg %p299
    %p306 = scmp.eq.s32.totalorder %s24, 1
    %p307 = por %p305, %p306
    %p308 = scmp.ne.s32.totalorder %s300, %s303
    %p309 = scmp.eq.s32.totalorder %s24, 0
    %p310 = por %p308, %p309
    %p311 = scmp.ne.s32.totalorder %s300, %s303
    %p312 = scmp.eq.s32.totalorder %s29, 1
    %p313 = por %p311, %p312
    %p314 = scmp.ne.s32.totalorder %s303, %s304
    %p315 = scmp.eq.s32.totalorder %s29, 0
    %p316 = por %p314, %p315
    %p317 = scmp.ne.s32.totalorder %s303, %s304
    %p318 = scmp.eq.s32.totalorder %s30, 1
    %p319 = por %p317, %p318
    %p321 = scmp.ne.s32.totalorder %s304, %s320
    %p322 = scmp.eq.s32.totalorder %s30, 0
    %p323 = por %p321, %p322
    %s324 = ssub.s32 %s24, %s31
    %p325 = scmp.eq.s32.totalorder %s324, 0
    %s327 = sadd.s32 %s326, 1
    %s328 = scalar_select %p325, %s326, %s327
    %p331 = pneg %p325
    %p332 = scmp.eq.s32.totalorder %s24, 1
    %p333 = por %p331, %p332
    %p334 = scmp.ne.s32.totalorder %s326, %s329
    %p335 = scmp.eq.s32.totalorder %s24, 0
    %p336 = por %p334, %p335
    %p337 = scmp.ne.s32.totalorder %s326, %s329
    %p338 = scmp.eq.s32.totalorder %s29, 1
    %p339 = por %p337, %p338
    %p340 = scmp.ne.s32.totalorder %s329, %s330
    %p341 = scmp.eq.s32.totalorder %s29, 0
    %p342 = por %p340, %p341
    %p343 = scmp.ne.s32.totalorder %s329, %s330
    %p344 = scmp.eq.s32.totalorder %s30, 1
    %p345 = por %p343, %p344
    %p347 = scmp.ne.s32.totalorder %s330, %s346
    %p348 = scmp.eq.s32.totalorder %s30, 0
    %p349 = por %p347, %p348
    %s350 = ssub.s32 %s24, %s31
    %p351 = scmp.eq.s32.totalorder %s350, 0
    %s353 = sadd.s32 %s352, 1
    %s354 = scalar_select %p351, %s352, %s353
    %p357 = pneg %p351
    %p358 = scmp.eq.s32.totalorder %s24, 1
    %p359 = por %p357, %p358
    %p360 = scmp.ne.s32.totalorder %s352, %s355
    %p361 = scmp.eq.s32.totalorder %s24, 0
    %p362 = por %p360, %p361
    %p363 = scmp.ne.s32.totalorder %s352, %s355
    %p364 = scmp.eq.s32.totalorder %s29, 1
    %p365 = por %p363, %p364
    %p366 = scmp.ne.s32.totalorder %s355, %s356
    %p367 = scmp.eq.s32.totalorder %s29, 0
    %p368 = por %p366, %p367
    %p369 = scmp.ne.s32.totalorder %s355, %s356
    %p370 = scmp.eq.s32.totalorder %s30, 1
    %p371 = por %p369, %p370
    %p373 = scmp.ne.s32.totalorder %s356, %s372
    %p374 = scmp.eq.s32.totalorder %s30, 0
    %p375 = por %p373, %p374
    %s377 = sadd.s32 %s376, 1
    %p380 = scmp.eq.s32.totalorder %s24, 1
    %p381 = scmp.ne.s32.totalorder %s376, %s378
    %p382 = scmp.eq.s32.totalorder %s24, 0
    %p383 = por %p381, %p382
    %p384 = scmp.ne.s32.totalorder %s376, %s378
    %p385 = scmp.eq.s32.totalorder %s29, 1
    %p386 = por %p384, %p385
    %p387 = scmp.ne.s32.totalorder %s378, %s379
    %p388 = scmp.eq.s32.totalorder %s29, 0
    %p389 = por %p387, %p388
    %p390 = scmp.ne.s32.totalorder %s378, %s379
    %p391 = scmp.eq.s32.totalorder %s30, 1
    %p392 = por %p390, %p391
    %p394 = scmp.ne.s32.totalorder %s379, %s393
    %p395 = scmp.eq.s32.totalorder %s30, 0
    %p396 = por %p394, %p395
    %s398 = sadd.s32 %s397, 1
    %p401 = scmp.eq.s32.totalorder %s24, 1
    %p402 = scmp.ne.s32.totalorder %s397, %s399
    %p403 = scmp.eq.s32.totalorder %s24, 0
    %p404 = por %p402, %p403
    %p405 = scmp.ne.s32.totalorder %s397, %s399
    %p406 = scmp.eq.s32.totalorder %s29, 1
    %p407 = por %p405, %p406
    %p408 = scmp.ne.s32.totalorder %s399, %s400
    %p409 = scmp.eq.s32.totalorder %s29, 0
    %p410 = por %p408, %p409
    %p411 = scmp.ne.s32.totalorder %s399, %s400
    %p412 = scmp.eq.s32.totalorder %s30, 1
    %p413 = por %p411, %p412
    %p415 = scmp.ne.s32.totalorder %s400, %s414
    %p416 = scmp.eq.s32.totalorder %s30, 0
    %p417 = por %p415, %p416
    %s419 = sadd.s32 %s418, 1
    %p422 = scmp.eq.s32.totalorder %s24, 1
    %p423 = scmp.ne.s32.totalorder %s418, %s420
    %p424 = scmp.eq.s32.totalorder %s24, 0
    %p425 = por %p423, %p424
    %p426 = scmp.ne.s32.totalorder %s418, %s420
    %p427 = scmp.eq.s32.totalorder %s29, 1
    %p428 = por %p426, %p427
    %p429 = scmp.ne.s32.totalorder %s420, %s421
    %p430 = scmp.eq.s32.totalorder %s29, 0
    %p431 = por %p429, %p430
    %p432 = scmp.ne.s32.totalorder %s420, %s421
    %p433 = scmp.eq.s32.totalorder %s30, 1
    %p434 = por %p432, %p433
    %p436 = scmp.ne.s32.totalorder %s421, %s435
    %p437 = scmp.eq.s32.totalorder %s30, 0
    %p438 = por %p436, %p437
    %s440 = sadd.s32 %s439, 1
    %p443 = scmp.eq.s32.totalorder %s24, 1
    %p444 = scmp.ne.s32.totalorder %s439, %s441
    %p445 = scmp.eq.s32.totalorder %s24, 0
    %p446 = por %p444, %p445
    %p447 = scmp.ne.s32.totalorder %s439, %s441
    %p448 = scmp.eq.s32.totalorder %s29, 1
    %p449 = por %p447, %p448
    %p450 = scmp.ne.s32.totalorder %s441, %s442
    %p451 = scmp.eq.s32.totalorder %s29, 0
    %p452 = por %p450, %p451
    %p453 = scmp.ne.s32.totalorder %s441, %s442
    %p454 = scmp.eq.s32.totalorder %s30, 1
    %p455 = por %p453, %p454
    %p457 = scmp.ne.s32.totalorder %s442, %s456
    %p458 = scmp.eq.s32.totalorder %s30, 0
    %p459 = por %p457, %p458
    %s461 = sadd.s32 %s460, 1
    %p464 = scmp.eq.s32.totalorder %s24, 1
    %p465 = scmp.ne.s32.totalorder %s460, %s462
    %p466 = scmp.eq.s32.totalorder %s24, 0
    %p467 = por %p465, %p466
    %p468 = scmp.ne.s32.totalorder %s460, %s462
    %p469 = scmp.eq.s32.totalorder %s29, 1
    %p470 = por %p468, %p469
    %p471 = scmp.ne.s32.totalorder %s462, %s463
    %p472 = scmp.eq.s32.totalorder %s29, 0
    %p473 = por %p471, %p472
    %p474 = scmp.ne.s32.totalorder %s462, %s463
    %p475 = scmp.eq.s32.totalorder %s30, 1
    %p476 = por %p474, %p475
    %p478 = scmp.ne.s32.totalorder %s463, %s477
    %p479 = scmp.eq.s32.totalorder %s30, 0
    %p480 = por %p478, %p479
    %p481 = scmp.le.s32.totalorder 1, %s24
    %p482 = scmp.lt.s32.totalorder %s24, 3
    %p483 = pnand %p481, %p482
    %p484 = pneg %p483
    // Predicated region
    $region9: #{transformer_forward.5} parent=5 // pred_check
      _
    $region10: #{transformer_forward.5} parent=5 // pred_check_branch
      %486 = sbr.rel (%p483) target = $region12
    $region11: #{transformer_forward.5} parent=5 // pred_region
      %s487 = ssub.s32 %s24, 1
      // Predicated region
      $region13: #{transformer_forward.5} parent=11 // pred_check
        %p488 = pneg %p45
      $region14: #{transformer_forward.5} parent=11 // pred_check_branch
        %490 = sbr.rel (%p488) target = $region16
      $region15: #{transformer_forward.5} parent=11 // pred_region
        _
      $region16: #{transformer_forward.5} parent=11 // pred_fallthru
        _
      // Predicated region
      $region17: #{transformer_forward.5} parent=11 // pred_check
        %p491 = pneg %p66
      $region18: #{transformer_forward.5} parent=11 // pred_check_branch
        %493 = sbr.rel (%p491) target = $region20
      $region19: #{transformer_forward.5} parent=11 // pred_region
        _
      $region20: #{transformer_forward.5} parent=11 // pred_fallthru
        _
      // Predicated region
      $region21: #{transformer_forward.5} parent=11 // pred_check
        %p494 = pneg %p87
      $region22: #{transformer_forward.5} parent=11 // pred_check_branch
        %496 = sbr.rel (%p494) target = $region24
      $region23: #{transformer_forward.5} parent=11 // pred_region
        _
      $region24: #{transformer_forward.5} parent=11 // pred_fallthru
        _
      // Predicated region
      $region25: #{transformer_forward.5} parent=11 // pred_check
        %p497 = pneg %p108
      $region26: #{transformer_forward.5} parent=11 // pred_check_branch
        %499 = sbr.rel (%p497) target = $region28
      $region27: #{transformer_forward.5} parent=11 // pred_region
        _
      $region28: #{transformer_forward.5} parent=11 // pred_fallthru
        _
      // Predicated region
      $region29: #{transformer_forward.5} parent=11 // pred_check
        %p500 = pneg %p389
      $region30: #{transformer_forward.5} parent=11 // pred_check_branch
        %502 = sbr.rel (%p500) target = $region32
      $region31: #{transformer_forward.5} parent=11 // pred_region
        _
      $region32: #{transformer_forward.5} parent=11 // pred_fallthru
        _
      // Predicated region
      $region33: #{transformer_forward.5} parent=11 // pred_check
        %p503 = pneg %p410
      $region34: #{transformer_forward.5} parent=11 // pred_check_branch
        %505 = sbr.rel (%p503) target = $region36
      $region35: #{transformer_forward.5} parent=11 // pred_region
        _
      $region36: #{transformer_forward.5} parent=11 // pred_fallthru
        _
      // Predicated region
      $region37: #{transformer_forward.5} parent=11 // pred_check
        %p506 = pneg %p431
      $region38: #{transformer_forward.5} parent=11 // pred_check_branch
        %508 = sbr.rel (%p506) target = $region40
      $region39: #{transformer_forward.5} parent=11 // pred_region
        _
      $region40: #{transformer_forward.5} parent=11 // pred_fallthru
        _
      // Predicated region
      $region41: #{transformer_forward.5} parent=11 // pred_check
        %p509 = pneg %p452
      $region42: #{transformer_forward.5} parent=11 // pred_check_branch
        %511 = sbr.rel (%p509) target = $region44
      $region43: #{transformer_forward.5} parent=11 // pred_region
        _
      $region44: #{transformer_forward.5} parent=11 // pred_fallthru
        _
    $region12: #{transformer_forward.5} parent=5 // pred_fallthru
      _
    %p512 = scmp.lt.s32.totalorder %s24, 2
    // Predicated region
    $region45: #{transformer_forward.5} parent=5 // pred_check
      %p513 = pneg %p512
    $region46: #{transformer_forward.5} parent=5 // pred_check_branch
      %515 = sbr.rel (%p513) target = $region48
    $region47: #{transformer_forward.5} parent=5 // pred_region
      // Predicated region
      $region49: #{transformer_forward.5} parent=47 // pred_check
        %p516 = pneg %p128
      $region50: #{transformer_forward.5} parent=47 // pred_check_branch
        %518 = sbr.rel (%p516) target = $region52
      $region51: #{transformer_forward.5} parent=47 // pred_region
        %p519 = scmp.lt.s32.totalorder %s24, 1
        %s520 = scalar_select %p519, %s24, 1
        %s521 = smul.addr %s520, 12
        %s522 = smul.addr %s521, 4
        %s523 = scalar_lea.vmem %s4, %s522
      $region52: #{transformer_forward.5} parent=47 // pred_fallthru
        _
      // Predicated region
      $region53: #{transformer_forward.5} parent=47 // pred_check
        %p524 = pneg %p154
      $region54: #{transformer_forward.5} parent=47 // pred_check_branch
        %526 = sbr.rel (%p524) target = $region56
      $region55: #{transformer_forward.5} parent=47 // pred_region
        %p527 = scmp.lt.s32.totalorder %s24, 1
        %s528 = scalar_select %p527, %s24, 1
        %s529 = smul.addr %s528, 4
        %s530 = smul.addr %s529, 4
        %s531 = scalar_lea.vmem %s5, %s530
      $region56: #{transformer_forward.5} parent=47 // pred_fallthru
        _
      // Predicated region
      $region57: #{transformer_forward.5} parent=47 // pred_check
        %p532 = pneg %p180
      $region58: #{transformer_forward.5} parent=47 // pred_check_branch
        %534 = sbr.rel (%p532) target = $region60
      $region59: #{transformer_forward.5} parent=47 // pred_region
        %p535 = scmp.lt.s32.totalorder %s24, 1
        %s536 = scalar_select %p535, %s24, 1
        %s537 = smul.addr %s536, 4
        %s538 = scalar_lea.vmem %s6, %s537
      $region60: #{transformer_forward.5} parent=47 // pred_fallthru
        _
      // Predicated region
      $region61: #{transformer_forward.5} parent=47 // pred_check
        %p539 = pneg %p206
      $region62: #{transformer_forward.5} parent=47 // pred_check_branch
        %541 = sbr.rel (%p539) target = $region64
      $region63: #{transformer_forward.5} parent=47 // pred_region
        %p542 = scmp.lt.s32.totalorder %s24, 1
        %s543 = scalar_select %p542, %s24, 1
        %s544 = smul.addr %s543, 12
        %s545 = smul.addr %s544, 4
        %s546 = scalar_lea.vmem %s7, %s545
      $region64: #{transformer_forward.5} parent=47 // pred_fallthru
        _
      // Predicated region
      $region65: #{transformer_forward.5} parent=47 // pred_check
        %p547 = pneg %p232
      $region66: #{transformer_forward.5} parent=47 // pred_check_branch
        %549 = sbr.rel (%p547) target = $region68
      $region67: #{transformer_forward.5} parent=47 // pred_region
        %p550 = scmp.lt.s32.totalorder %s24, 1
        %s551 = scalar_select %p550, %s24, 1
        %s552 = smul.addr %s551, 4
        %s553 = smul.addr %s552, 4
        %s554 = scalar_lea.vmem %s8, %s553
      $region68: #{transformer_forward.5} parent=47 // pred_fallthru
        _
      // Predicated region
      $region69: #{transformer_forward.5} parent=47 // pred_check
        %p555 = pneg %p258
      $region70: #{transformer_forward.5} parent=47 // pred_check_branch
        %557 = sbr.rel (%p555) target = $region72
      $region71: #{transformer_forward.5} parent=47 // pred_region
        %p558 = scmp.lt.s32.totalorder %s24, 1
        %s559 = scalar_select %p558, %s24, 1
        %s560 = smul.addr %s559, 4
        %s561 = scalar_lea.vmem %s9, %s560
      $region72: #{transformer_forward.5} parent=47 // pred_fallthru
        _
      // Predicated region
      $region73: #{transformer_forward.5} parent=47 // pred_check
        %p562 = pneg %p284
      $region74: #{transformer_forward.5} parent=47 // pred_check_branch
        %564 = sbr.rel (%p562) target = $region76
      $region75: #{transformer_forward.5} parent=47 // pred_region
        %p565 = scmp.lt.s32.totalorder %s24, 1
        %s566 = scalar_select %p565, %s24, 1
        %s567 = smul.addr %s566, 8
        %s568 = smul.addr %s567, 4
        %s569 = scalar_lea.vmem %s10, %s568
      $region76: #{transformer_forward.5} parent=47 // pred_fallthru
        _
      // Predicated region
      $region77: #{transformer_forward.5} parent=47 // pred_check
        %p570 = pneg %p310
      $region78: #{transformer_forward.5} parent=47 // pred_check_branch
        %572 = sbr.rel (%p570) target = $region80
      $region79: #{transformer_forward.5} parent=47 // pred_region
        %p573 = scmp.lt.s32.totalorder %s24, 1
        %s574 = scalar_select %p573, %s24, 1
        %s575 = smul.addr %s574, 2
        %s576 = scalar_lea.vmem %s11, %s575
      $region80: #{transformer_forward.5} parent=47 // pred_fallthru
        _
      // Predicated region
      $region81: #{transformer_forward.5} parent=47 // pred_check
        %p577 = pneg %p336
      $region82: #{transformer_forward.5} parent=47 // pred_check_branch
        %579 = sbr.rel (%p577) target = $region84
      $region83: #{transformer_forward.5} parent=47 // pred_region
        %p580 = scmp.lt.s32.totalorder %s24, 1
        %s581 = scalar_select %p580, %s24, 1
        %s582 = smul.addr %s581, 3
        %s583 = scalar_lea.vmem %s12, %s582
      $region84: #{transformer_forward.5} parent=47 // pred_fallthru
        _
      // Predicated region
      $region85: #{transformer_forward.5} parent=47 // pred_check
        %p584 = pneg %p362
      $region86: #{transformer_forward.5} parent=47 // pred_check_branch
        %586 = sbr.rel (%p584) target = $region88
      $region87: #{transformer_forward.5} parent=47 // pred_region
        %p587 = scmp.lt.s32.totalorder %s24, 1
        %s588 = scalar_select %p587, %s24, 1
        %s589 = smul.addr %s588, 3
        %s590 = scalar_lea.vmem %s13, %s589
      $region88: #{transformer_forward.5} parent=47 // pred_fallthru
        _
    $region48: #{transformer_forward.5} parent=5 // pred_fallthru
      _
    %p591 = scmp.le.s32.totalorder 1, %s24
    %p592 = scmp.lt.s32.totalorder %s24, 3
    %p593 = pnand %p591, %p592
    %p594 = pneg %p593
    // Predicated region
    $region89: #{transformer_forward.5} parent=5 // pred_check
      _
    $region90: #{transformer_forward.5} parent=5 // pred_check_branch
      %596 = sbr.rel (%p593) target = $region92
    $region91: #{transformer_forward.5} parent=5 // pred_region
      %s597 = ssub.s32 %s24, 1
      %p598 = pneg %p45
      %p599 = pneg %p42
      %p600 = pneg %p66
      %p601 = pneg %p63
      %p602 = pneg %p87
      %p603 = pneg %p84
      %p604 = pneg %p108
      %p605 = pneg %p105
      %p606 = scmp.lt.s32.totalorder %s29, 1
      %s607 = scalar_select %p606, %s29, 1
      %s608 = smul.addr %s607, 12
      %s609 = smul.addr %s608, 4
      %s610 = scalar_lea.vmem %s4, %s609
      %p611 = pneg %p134
      %p612 = pneg %p131
      %p613 = scmp.lt.s32.totalorder %s29, 1
      %s614 = scalar_select %p613, %s29, 1
      %s615 = smul.addr %s614, 4
      %s616 = smul.addr %s615, 4
      %s617 = scalar_lea.vmem %s5, %s616
      %p618 = pneg %p160
      %p619 = pneg %p157
      %p620 = scmp.lt.s32.totalorder %s29, 1
      %s621 = scalar_select %p620, %s29, 1
      %s622 = smul.addr %s621, 4
      %s623 = scalar_lea.vmem %s6, %s622
      %p624 = pneg %p186
      %p625 = pneg %p183
      %p626 = scmp.lt.s32.totalorder %s29, 1
      %s627 = scalar_select %p626, %s29, 1
      %s628 = smul.addr %s627, 12
      %s629 = smul.addr %s628, 4
      %s630 = scalar_lea.vmem %s7, %s629
      %p631 = pneg %p212
      %p632 = pneg %p209
      %p633 = scmp.lt.s32.totalorder %s29, 1
      %s634 = scalar_select %p633, %s29, 1
      %s635 = smul.addr %s634, 4
      %s636 = smul.addr %s635, 4
      %s637 = scalar_lea.vmem %s8, %s636
      %p638 = pneg %p238
      %p639 = pneg %p235
      %p640 = scmp.lt.s32.totalorder %s29, 1
      %s641 = scalar_select %p640, %s29, 1
      %s642 = smul.addr %s641, 4
      %s643 = scalar_lea.vmem %s9, %s642
      %p644 = pneg %p264
      %p645 = pneg %p261
      %p646 = scmp.lt.s32.totalorder %s29, 1
      %s647 = scalar_select %p646, %s29, 1
      %s648 = smul.addr %s647, 8
      %s649 = smul.addr %s648, 4
      %s650 = scalar_lea.vmem %s10, %s649
      %p651 = pneg %p290
      %p652 = pneg %p287
      %p653 = scmp.lt.s32.totalorder %s29, 1
      %s654 = scalar_select %p653, %s29, 1
      %s655 = smul.addr %s654, 2
      %s656 = scalar_lea.vmem %s11, %s655
      %p657 = pneg %p316
      %p658 = pneg %p313
      %p659 = scmp.lt.s32.totalorder %s29, 1
      %s660 = scalar_select %p659, %s29, 1
      %s661 = smul.addr %s660, 3
      %s662 = scalar_lea.vmem %s12, %s661
      %p663 = pneg %p342
      %p664 = pneg %p339
      %p665 = scmp.lt.s32.totalorder %s29, 1
      %s666 = scalar_select %p665, %s29, 1
      %s667 = smul.addr %s666, 3
      %s668 = scalar_lea.vmem %s13, %s667
      %p669 = pneg %p368
      %p670 = pneg %p365
      %p671 = pneg %p389
      %p672 = pneg %p386
      %p673 = pneg %p410
      %p674 = pneg %p407
      %p675 = pneg %p431
      %p676 = pneg %p428
      %p677 = pneg %p452
      %p678 = pneg %p449
      %p679 = pneg %p473
      %p680 = pneg %p470
      %p681 = scmp.lt.s32.totalorder %s29, 1
      %s682 = scalar_select %p681, %s29, 1
      %s683 = smul.addr %s682, 12
      %s684 = smul.addr %s683, 4
      %s685 = scalar_lea.vmem %s4, %s684
      %p686 = scmp.lt.s32.totalorder %s29, 1
      %s687 = scalar_select %p686, %s29, 1
      %s688 = smul.addr %s687, 4
      %s689 = smul.addr %s688, 4
      %s690 = scalar_lea.vmem %s5, %s689
      %p691 = scmp.lt.s32.totalorder %s29, 1
      %s692 = scalar_select %p691, %s29, 1
      %s693 = smul.addr %s692, 4
      %s694 = scalar_lea.vmem %s6, %s693
      %p695 = scmp.lt.s32.totalorder %s29, 1
      %s696 = scalar_select %p695, %s29, 1
      %s697 = smul.addr %s696, 12
      %s698 = smul.addr %s697, 4
      %s699 = scalar_lea.vmem %s7, %s698
      %p700 = scmp.lt.s32.totalorder %s29, 1
      %s701 = scalar_select %p700, %s29, 1
      %s702 = smul.addr %s701, 4
      %s703 = smul.addr %s702, 4
      %s704 = scalar_lea.vmem %s8, %s703
      %p705 = scmp.lt.s32.totalorder %s29, 1
      %s706 = scalar_select %p705, %s29, 1
      %s707 = smul.addr %s706, 4
      %s708 = scalar_lea.vmem %s9, %s707
      %p709 = scmp.lt.s32.totalorder %s29, 1
      %s710 = scalar_select %p709, %s29, 1
      %s711 = smul.addr %s710, 8
      %s712 = smul.addr %s711, 4
      %s713 = scalar_lea.vmem %s10, %s712
      %p714 = scmp.lt.s32.totalorder %s29, 1
      %s715 = scalar_select %p714, %s29, 1
      %s716 = smul.addr %s715, 2
      %s717 = scalar_lea.vmem %s11, %s716
      %p718 = scmp.lt.s32.totalorder %s29, 1
      %s719 = scalar_select %p718, %s29, 1
      %s720 = smul.addr %s719, 3
      %s721 = scalar_lea.vmem %s12, %s720
      %p722 = scmp.lt.s32.totalorder %s29, 1
      %s723 = scalar_select %p722, %s29, 1
      %s724 = smul.addr %s723, 3
      %s725 = scalar_lea.vmem %s13, %s724
      %p727 = scmp.eq.s32.totalorder %s29, 0
      // Predicated region
      $region93: #{transformer_forward.5} parent=91 // pred_check
        %p728 = pneg %p727
      $region94: #{transformer_forward.5} parent=91 // pred_check_branch
        %730 = sbr.rel (%p728) target = $region96
      $region95: #{transformer_forward.5} parent=91 // pred_region
        %v731 = vld [vmem:[%s0] sm:$0xff]
        %v732 = vld [vmem:[%s0 + $0x8] sm:$0xff]
        %vm733 = vcmask 261120
        %734 = vst.msk [vmem:[#allocation2] sm:$0xff] %vm733, %v731
        %735 = vst.msk [vmem:[#allocation2 + $0x8] sm:$0xff] %vm733, %v732
      $region96: #{transformer_forward.5} parent=91 // pred_fallthru
        _
      %v736 = vld [vmem:[#allocation2] sm:$0xff]
      %v737 = vld [vmem:[#allocation2 + $0x8] sm:$0xff]
      %v738 = vld [vmem:[%s1] sm:$0xff]
      %v739 = vld [vmem:[%s1 + $0x8] sm:$0xff]
      %v740 = vld [vmem:[%s2] sm:$0xff]
      %v741 = vld [vmem:[%s2 + $0x8] sm:$0xff]
      %v742 = vld [vmem:[%s685] sm:$0xf]
      %v743 = vld [vmem:[%s685 + $0x4] sm:$0xf]
      %v744 = vld [vmem:[%s685 + $0x8] sm:$0xf]
      %v745 = vld [vmem:[%s685 + $0xc] sm:$0xf]
      %v746 = vpack.c.bf16 %v737, %v736
      %v747 = vld [vmem:[%s694] sm:$0x1]
      %v749 = vlaneseq
      %v750 = vshrl.u32 %v749, 7
      %v751 = vsub.s32 0, %v750
      %v752 = vrot.slane %v747, %v751
      %v758 = vunpack.c.l.b16 %v742
      %v759 = vunpack.c.l.b16 %v743
      %v760 = vunpack.c.l.b16 %v744
      %v761 = vunpack.c.l.b16 %v745
      %v762 = vpack.c.b16 %v759, %v758
      %v763 = vpack.c.b16 %v761, %v760
      %vm766 = vcmask 261120
      %v768 = vsel %vm766, %v746, 0
      %770 = vmatprep.subr.bf16.mxu0 0
      %771 = vmatpush1.bf16.msra.mxu0 %v762
      %772 = vmatprep.subr.bf16.mxu0 0
      %773 = vmatpush1.bf16.msra.mxu0 %v763
      %774 = vmatprep.subr.bf16.mxu0 0
      %775 = vmatpush1.bf16.msra.mxu0 0
      %776 = vmatprep.subr.bf16.mxu0 0
      %777 = vmatpush1.bf16.msra.mxu0 0
      %778 = vmatprep.subr.bf16.mxu0 0
      %779 = vmatpush1.bf16.msra.mxu0 0
      %780 = vmatprep.subr.bf16.mxu0 0
      %781 = vmatpush1.bf16.msra.mxu0 0
      %782 = vmatprep.subr.bf16.mxu0 0
      %783 = vmatpush1.bf16.msra.mxu0 0
      %784 = vmatprep.subr.bf16.mxu0 0
      %785 = vmatpush1.bf16.msra.mxu0 0
      %786 = vmatprep.subr.bf16.mxu0 0
      %787 = vmatpush1.bf16.msra.mxu0 0
      %788 = vmatprep.subr.bf16.mxu0 0
      %789 = vmatpush1.bf16.msra.mxu0 0
      %790 = vmatprep.subr.bf16.mxu0 0
      %791 = vmatpush1.bf16.msra.mxu0 0
      %792 = vmatprep.subr.bf16.mxu0 0
      %793 = vmatpush1.bf16.msra.mxu0 0
      %794 = vmatprep.subr.bf16.mxu0 0
      %795 = vmatpush1.bf16.msra.mxu0 0
      %796 = vmatprep.subr.bf16.mxu0 0
      %797 = vmatpush1.bf16.msra.mxu0 0
      %798 = vmatprep.subr.bf16.mxu0 0
      %799 = vmatpush1.bf16.msra.mxu0 0
      %800 = vmatprep.subr.bf16.mxu0 0
      %801 = vmatpush1.bf16.msra.mxu0 0
      %802 = vmatprep.mubr.bf16.mxu0 0
      %803 = vmatmul.mubr.bf16.gmra.mrb[0].mxu0 %v768
      %v804 = vpop.f32.mrb[0].mxu0
      %v805 = vadd.f32 %v752, %v804
      %v806 = vpop.f32.mrb[0].mxu0
      %v807 = vpop.f32.mrb[0].mxu0
      %v808 = vadd.f32 %v752, %v807
      %v809 = vpop.f32.mrb[0].mxu0
      %810 = vdwg.mxu0
      %v811 = vmul.f32 %v805, 0.35355338
      %v812 = vmul.f32 %v808, 0.35355338
      %s813 = scalar_lea.vmem %s685, 16
      %v814 = vld [vmem:[%s813] sm:$0xf]
      %v815 = vld [vmem:[%s813 + $0x4] sm:$0xf]
      %v816 = vld [vmem:[%s813 + $0x8] sm:$0xf]
      %v817 = vld [vmem:[%s813 + $0xc] sm:$0xf]
      %s818 = scalar_lea.vmem %s694, 1
      %v819 = vld [vmem:[%s818] sm:$0x1]
      %v821 = vlaneseq
      %v822 = vshrl.u32 %v821, 7
      %v823 = vsub.s32 0, %v822
      %v824 = vrot.slane %v819, %v823
      %v830 = vunpack.c.l.b16 %v814
      %v831 = vunpack.c.l.b16 %v815
      %v832 = vunpack.c.l.b16 %v816
      %v833 = vunpack.c.l.b16 %v817
      %v834 = vpack.c.b16 %v831, %v830
      %v835 = vpack.c.b16 %v833, %v832
      %838 = vmatprep.subr.bf16.mxu0 0
      %839 = vmatpush1.bf16.msra.mxu0 %v834
      %840 = vmatprep.subr.bf16.mxu0 0
      %841 = vmatpush1.bf16.msra.mxu0 %v835
      %842 = vmatprep.subr.bf16.mxu0 0
      %843 = vmatpush1.bf16.msra.mxu0 0
      %844 = vmatprep.subr.bf16.mxu0 0
      %845 = vmatpush1.bf16.msra.mxu0 0
      %846 = vmatprep.subr.bf16.mxu0 0
      %847 = vmatpush1.bf16.msra.mxu0 0
      %848 = vmatprep.subr.bf16.mxu0 0
      %849 = vmatpush1.bf16.msra.mxu0 0
      %850 = vmatprep.subr.bf16.mxu0 0
      %851 = vmatpush1.bf16.msra.mxu0 0
      %852 = vmatprep.subr.bf16.mxu0 0
      %853 = vmatpush1.bf16.msra.mxu0 0
      %854 = vmatprep.subr.bf16.mxu0 0
      %855 = vmatpush1.bf16.msra.mxu0 0
      %856 = vmatprep.subr.bf16.mxu0 0
      %857 = vmatpush1.bf16.msra.mxu0 0
      %858 = vmatprep.subr.bf16.mxu0 0
      %859 = vmatpush1.bf16.msra.mxu0 0
      %860 = vmatprep.subr.bf16.mxu0 0
      %861 = vmatpush1.bf16.msra.mxu0 0
      %862 = vmatprep.subr.bf16.mxu0 0
      %863 = vmatpush1.bf16.msra.mxu0 0
      %864 = vmatprep.subr.bf16.mxu0 0
      %865 = vmatpush1.bf16.msra.mxu0 0
      %866 = vmatprep.subr.bf16.mxu0 0
      %867 = vmatpush1.bf16.msra.mxu0 0
      %868 = vmatprep.subr.bf16.mxu0 0
      %869 = vmatpush1.bf16.msra.mxu0 0
      %870 = vmatprep.mubr.bf16.mxu0 0
      %871 = vmatmul.mubr.bf16.gmra.mrb[0].mxu0 %v768
      %v872 = vpop.f32.mrb[0].mxu0
      %v873 = vadd.f32 %v824, %v872
      %v874 = vpop.f32.mrb[0].mxu0
      %v875 = vpop.f32.mrb[0].mxu0
      %v876 = vadd.f32 %v824, %v875
      %v877 = vpop.f32.mrb[0].mxu0
      %878 = vdwg.mxu0
      %s879 = scalar_lea.vmem %s685, 32
      %v880 = vld [vmem:[%s879] sm:$0xf]
      %v881 = vld [vmem:[%s879 + $0x4] sm:$0xf]
      %v882 = vld [vmem:[%s879 + $0x8] sm:$0xf]
      %v883 = vld [vmem:[%s879 + $0xc] sm:$0xf]
      %s884 = scalar_lea.vmem %s694, 2
      %v885 = vld [vmem:[%s884] sm:$0x1]
      %v887 = vlaneseq
      %v888 = vshrl.u32 %v887, 7
      %v889 = vsub.s32 0, %v888
      %v890 = vrot.slane %v885, %v889
      %v896 = vunpack.c.l.b16 %v880
      %v897 = vunpack.c.l.b16 %v881
      %v898 = vunpack.c.l.b16 %v882
      %v899 = vunpack.c.l.b16 %v883
      %v900 = vpack.c.b16 %v897, %v896
      %v901 = vpack.c.b16 %v899, %v898
      %904 = vmatprep.subr.bf16.mxu0 0
      %905 = vmatpush1.bf16.msra.mxu0 %v900
      %906 = vmatprep.subr.bf16.mxu0 0
      %907 = vmatpush1.bf16.msra.mxu0 %v901
      %908 = vmatprep.subr.bf16.mxu0 0
      %909 = vmatpush1.bf16.msra.mxu0 0
      %910 = vmatprep.subr.bf16.mxu0 0
      %911 = vmatpush1.bf16.msra.mxu0 0
      %912 = vmatprep.subr.bf16.mxu0 0
      %913 = vmatpush1.bf16.msra.mxu0 0
      %914 = vmatprep.subr.bf16.mxu0 0
      %915 = vmatpush1.bf16.msra.mxu0 0
      %916 = vmatprep.subr.bf16.mxu0 0
      %917 = vmatpush1.bf16.msra.mxu0 0
      %918 = vmatprep.subr.bf16.mxu0 0
      %919 = vmatpush1.bf16.msra.mxu0 0
      %920 = vmatprep.subr.bf16.mxu0 0
      %921 = vmatpush1.bf16.msra.mxu0 0
      %922 = vmatprep.subr.bf16.mxu0 0
      %923 = vmatpush1.bf16.msra.mxu0 0
      %924 = vmatprep.subr.bf16.mxu0 0
      %925 = vmatpush1.bf16.msra.mxu0 0
      %926 = vmatprep.subr.bf16.mxu0 0
      %927 = vmatpush1.bf16.msra.mxu0 0
      %928 = vmatprep.subr.bf16.mxu0 0
      %929 = vmatpush1.bf16.msra.mxu0 0
      %930 = vmatprep.subr.bf16.mxu0 0
      %931 = vmatpush1.bf16.msra.mxu0 0
      %932 = vmatprep.subr.bf16.mxu0 0
      %933 = vmatpush1.bf16.msra.mxu0 0
      %934 = vmatprep.subr.bf16.mxu0 0
      %935 = vmatpush1.bf16.msra.mxu0 0
      %936 = vmatprep.mubr.bf16.mxu0 0
      %937 = vmatmul.mubr.bf16.gmra.mrb[0].mxu0 %v768
      %v938 = vpop.f32.mrb[0].mxu0
      %v939 = vadd.f32 %v890, %v938
      %v940 = vpop.f32.mrb[0].mxu0
      %v941 = vpop.f32.mrb[0].mxu0
      %v942 = vadd.f32 %v890, %v941
      %v943 = vpop.f32.mrb[0].mxu0
      %944 = vdwg.mxu0
      %v945 = vpack.c.bf16 %v812, %v811
      %v946 = vpack.c.bf16 %v876, %v873
      %vm947 = vcmask 64512
      %v949 = vsel %vm947, %v945, 0
      %v952 = vsel %vm947, %v946, 0
      %954 = vmatprep.subr.bf16.mxu0 0
      %955 = vmatpush1.bf16.xpose.msra.mxu0 %v952
      %956 = vmatprep.subr.bf16.mxu0 0
      %957 = vmatpush1.bf16.xpose.msra.mxu0 0
      %958 = vmatprep.subr.bf16.mxu0 0
      %959 = vmatpush1.bf16.xpose.msra.mxu0 0
      %960 = vmatprep.subr.bf16.mxu0 0
      %961 = vmatpush1.bf16.xpose.msra.mxu0 0
      %962 = vmatprep.subr.bf16.mxu0 0
      %963 = vmatpush1.bf16.xpose.msra.mxu0 0
      %964 = vmatprep.subr.bf16.mxu0 0
      %965 = vmatpush1.bf16.xpose.msra.mxu0 0
      %966 = vmatprep.subr.bf16.mxu0 0
      %967 = vmatpush1.bf16.xpose.msra.mxu0 0
      %968 = vmatprep.subr.bf16.mxu0 0
      %969 = vmatpush1.bf16.xpose.msra.mxu0 0
      %970 = vmatprep.subr.bf16.mxu0 0
      %971 = vmatpush1.bf16.xpose.msra.mxu0 0
      %972 = vmatprep.subr.bf16.mxu0 0
      %973 = vmatpush1.bf16.xpose.msra.mxu0 0
      %974 = vmatprep.subr.bf16.mxu0 0
      %975 = vmatpush1.bf16.xpose.msra.mxu0 0
      %976 = vmatprep.subr.bf16.mxu0 0
      %977 = vmatpush1.bf16.xpose.msra.mxu0 0
      %978 = vmatprep.subr.bf16.mxu0 0
      %979 = vmatpush1.bf16.xpose.msra.mxu0 0
      %980 = vmatprep.subr.bf16.mxu0 0
      %981 = vmatpush1.bf16.xpose.msra.mxu0 0
      %982 = vmatprep.subr.bf16.mxu0 0
      %983 = vmatpush1.bf16.xpose.msra.mxu0 0
      %984 = vmatprep.subr.bf16.mxu0 0
      %985 = vmatpush1.bf16.xpose.msra.mxu0 0
      %986 = vmatprep.mubr.bf16.mxu0 0
      %987 = vmatmul.mubr.bf16.gmra.mrb[0].mxu0 %v949
      %v988 = vpop.f32.mrb[0].mxu0
      %v989 = vadd.f32 %v740, %v988
      %v990 = vpop.f32.mrb[0].mxu0
      %v991 = vpop.f32.mrb[0].mxu0
      %v992 = vadd.f32 %v741, %v991
      %v993 = vpop.f32.mrb[0].mxu0
      %994 = vdwg.mxu0
      %vm995 = vcmask 130048
      %v996 = vsel %vm995, %v989, -inf
      %997 = vmax.xlane.f32.xlu0 %v996
      %v998 = vpop.xlane.xlu0 %997
      %v999 = vsel %vm995, %v992, -inf
      %1000 = vmax.xlane.f32.xlu0 %v999
      %v1001 = vpop.xlane.xlu0 %1000
      %v1002 = vsub.f32 %v989, %v998
      %v1003 = vsub.f32 %v992, %v1001
      %v1004 = vmul.f32 %v1002, 1.442695
      %v1005 = vpow.pop %v1004
      %v1006 = vmul.f32 %v1003, 1.442695
      %v1007 = vpow.pop %v1006
      %v1008 = vsel %vm995, %v1005, 0.0
      %1009 = vadd.xlane.f32.xlu0 %v1008
      %v1010 = vpop.xlane.xlu0 %1009
      %v1011 = vsel %vm995, %v1007, 0.0
      %1012 = vadd.xlane.f32.xlu0 %v1011
      %v1013 = vpop.xlane.xlu0 %1012
      %v1014 = vrcp.pop %v1010
      %v1015 = vrcp.pop %v1013
      %v1016 = vmul.f32 %v1005, %v1014
      %v1017 = vmul.f32 %v1007, %v1015
      %v1018 = vpack.c.bf16 %v1017, %v1016
      %v1019 = vpack.c.bf16 %v942, %v939
      %v1021 = vsel %vm995, %v1018, 0
      %1023 = vmatprep.subr.bf16.mxu0 0
      %1024 = vmatpush1.bf16.msra.mxu0 %v1019
      %1025 = vmatprep.subr.bf16.mxu0 0
      %1026 = vmatpush1.bf16.msra.mxu0 0
      %1027 = vmatprep.subr.bf16.mxu0 0
      %1028 = vmatpush1.bf16.msra.mxu0 0
      %1029 = vmatprep.subr.bf16.mxu0 0
      %1030 = vmatpush1.bf16.msra.mxu0 0
      %1031 = vmatprep.subr.bf16.mxu0 0
      %1032 = vmatpush1.bf16.msra.mxu0 0
      %1033 = vmatprep.subr.bf16.mxu0 0
      %1034 = vmatpush1.bf16.msra.mxu0 0
      %1035 = vmatprep.subr.bf16.mxu0 0
      %1036 = vmatpush1.bf16.msra.mxu0 0
      %1037 = vmatprep.subr.bf16.mxu0 0
      %1038 = vmatpush1.bf16.msra.mxu0 0
      %1039 = vmatprep.subr.bf16.mxu0 0
      %1040 = vmatpush1.bf16.msra.mxu0 0
      %1041 = vmatprep.subr.bf16.mxu0 0
      %1042 = vmatpush1.bf16.msra.mxu0 0
      %1043 = vmatprep.subr.bf16.mxu0 0
      %1044 = vmatpush1.bf16.msra.mxu0 0
      %1045 = vmatprep.subr.bf16.mxu0 0
      %1046 = vmatpush1.bf16.msra.mxu0 0
      %1047 = vmatprep.subr.bf16.mxu0 0
      %1048 = vmatpush1.bf16.msra.mxu0 0
      %1049 = vmatprep.subr.bf16.mxu0 0
      %1050 = vmatpush1.bf16.msra.mxu0 0
      %1051 = vmatprep.subr.bf16.mxu0 0
      %1052 = vmatpush1.bf16.msra.mxu0 0
      %1053 = vmatprep.subr.bf16.mxu0 0
      %1054 = vmatpush1.bf16.msra.mxu0 0
      %1055 = vmatprep.mubr.bf16.mxu0 0
      %1056 = vmatmul.mubr.bf16.gmra.mrb[0].mxu0 %v1021
      %v1057 = vpop.f32.mrb[0].mxu0
      %v1058 = vadd.f32 0.0, %v1057
      %v1059 = vpop.f32.mrb[0].mxu0
      %v1060 = vpop.f32.mrb[0].mxu0
      %v1061 = vadd.f32 0.0, %v1060
      %v1062 = vpop.f32.mrb[0].mxu0
      %1063 = vdwg.mxu0
      %v1064 = vld [vmem:[%s690] sm:$0xf]
      %v1065 = vpack.c.bf16 %v1061, %v1058
      %1067 = vrot.lane.b32.xlu0 %v945, 120
      %v1068 = vpop.permute.xlu0 %1067
      %1070 = vrot.lane.b32.xlu0 %v946, 120
      %v1071 = vpop.permute.xlu0 %1070
      %v1073 = vsel %vm947, %v1068, 0
      %v1076 = vsel %vm947, %v1071, 0
      %1078 = vmatprep.subr.bf16.mxu0 0
      %1079 = vmatpush1.bf16.xpose.msra.mxu0 %v1076
      %1080 = vmatprep.subr.bf16.mxu0 0
      %1081 = vmatpush1.bf16.xpose.msra.mxu0 0
      %1082 = vmatprep.subr.bf16.mxu0 0
      %1083 = vmatpush1.bf16.xpose.msra.mxu0 0
      %1084 = vmatprep.subr.bf16.mxu0 0
      %1085 = vmatpush1.bf16.xpose.msra.mxu0 0
      %1086 = vmatprep.subr.bf16.mxu0 0
      %1087 = vmatpush1.bf16.xpose.msra.mxu0 0
      %1088 = vmatprep.subr.bf16.mxu0 0
      %1089 = vmatpush1.bf16.xpose.msra.mxu0 0
      %1090 = vmatprep.subr.bf16.mxu0 0
      %1091 = vmatpush1.bf16.xpose.msra.mxu0 0
      %1092 = vmatprep.subr.bf16.mxu0 0
      %1093 = vmatpush1.bf16.xpose.msra.mxu0 0
      %1094 = vmatprep.subr.bf16.mxu0 0
      %1095 = vmatpush1.bf16.xpose.msra.mxu0 0
      %1096 = vmatprep.subr.bf16.mxu0 0
      %1097 = vmatpush1.bf16.xpose.msra.mxu0 0
      %1098 = vmatprep.subr.bf16.mxu0 0
      %1099 = vmatpush1.bf16.xpose.msra.mxu0 0
      %1100 = vmatprep.subr.bf16.mxu0 0
      %1101 = vmatpush1.bf16.xpose.msra.mxu0 0
      %1102 = vmatprep.subr.bf16.mxu0 0
      %1103 = vmatpush1.bf16.xpose.msra.mxu0 0
      %1104 = vmatprep.subr.bf16.mxu0 0
      %1105 = vmatpush1.bf16.xpose.msra.mxu0 0
      %1106 = vmatprep.subr.bf16.mxu0 0
      %1107 = vmatpush1.bf16.xpose.msra.mxu0 0
      %1108 = vmatprep.subr.bf16.mxu0 0
      %1109 = vmatpush1.bf16.xpose.msra.mxu0 0
      %1110 = vmatprep.mubr.bf16.mxu0 0
      %1111 = vmatmul.mubr.bf16.gmra.mrb[0].mxu0 %v1073
      %v1112 = vpop.f32.mrb[0].mxu0
      %v1113 = vadd.f32 %v740, %v1112
      %v1114 = vpop.f32.mrb[0].mxu0
      %v1115 = vpop.f32.mrb[0].mxu0
      %v1116 = vadd.f32 %v741, %v1115
      %v1117 = vpop.f32.mrb[0].mxu0
      %1118 = vdwg.mxu0
      %v1119 = vsel %vm995, %v1113, -inf
      %1120 = vmax.xlane.f32.xlu0 %v1119
      %v1121 = vpop.xlane.xlu0 %1120
      %v1122 = vsel %vm995, %v1116, -inf
      %1123 = vmax.xlane.f32.xlu0 %v1122
      %v1124 = vpop.xlane.xlu0 %1123
      %v1125 = vsub.f32 %v1113, %v1121
      %v1126 = vsub.f32 %v1116, %v1124
      %v1127 = vmul.f32 %v1125, 1.442695
      %v1128 = vpow.pop %v1127
      %v1129 = vmul.f32 %v1126, 1.442695
      %v1130 = vpow.pop %v1129
      %v1131 = vsel %vm995, %v1128, 0.0
      %1132 = vadd.xlane.f32.xlu0 %v1131
      %v1133 = vpop.xlane.xlu0 %1132
      %v1134 = vsel %vm995, %v1130, 0.0
      %1135 = vadd.xlane.f32.xlu0 %v1134
      %v1136 = vpop.xlane.xlu0 %1135
      %v1137 = vrcp.pop %v1133
      %v1138 = vrcp.pop %v1136
      %v1139 = vmul.f32 %v1128, %v1137
      %v1140 = vmul.f32 %v1130, %v1138
      %v1141 = vpack.c.bf16 %v1140, %v1139
      %1143 = vrot.lane.b32.xlu0 %v1019, 120
      %v1144 = vpop.permute.xlu0 %1143
      %v1147 = vsel %vm995, %v1141, 0
      %1149 = vmatprep.subr.bf16.mxu0 0
      %1150 = vmatpush1.bf16.msra.mxu0 %v1144
      %1151 = vmatprep.subr.bf16.mxu0 0
      %1152 = vmatpush1.bf16.msra.mxu0 0
      %1153 = vmatprep.subr.bf16.mxu0 0
      %1154 = vmatpush1.bf16.msra.mxu0 0
      %1155 = vmatprep.subr.bf16.mxu0 0
      %1156 = vmatpush1.bf16.msra.mxu0 0
      %1157 = vmatprep.subr.bf16.mxu0 0
      %1158 = vmatpush1.bf16.msra.mxu0 0
      %1159 = vmatprep.subr.bf16.mxu0 0
      %1160 = vmatpush1.bf16.msra.mxu0 0
      %1161 = vmatprep.subr.bf16.mxu0 0
      %1162 = vmatpush1.bf16.msra.mxu0 0
      %1163 = vmatprep.subr.bf16.mxu0 0
      %1164 = vmatpush1.bf16.msra.mxu0 0
      %1165 = vmatprep.subr.bf16.mxu0 0
      %1166 = vmatpush1.bf16.msra.mxu0 0
      %1167 = vmatprep.subr.bf16.mxu0 0
      %1168 = vmatpush1.bf16.msra.mxu0 0
      %1169 = vmatprep.subr.bf16.mxu0 0
      %1170 = vmatpush1.bf16.msra.mxu0 0
      %1171 = vmatprep.subr.bf16.mxu0 0
      %1172 = vmatpush1.bf16.msra.mxu0 0
      %1173 = vmatprep.subr.bf16.mxu0 0
      %1174 = vmatpush1.bf16.msra.mxu0 0
      %1175 = vmatprep.subr.bf16.mxu0 0
      %1176 = vmatpush1.bf16.msra.mxu0 0
      %1177 = vmatprep.subr.bf16.mxu0 0
      %1178 = vmatpush1.bf16.msra.mxu0 0
      %1179 = vmatprep.subr.bf16.mxu0 0
      %1180 = vmatpush1.bf16.msra.mxu0 0
      %1181 = vmatprep.mubr.bf16.mxu0 0
      %1182 = vmatmul.mubr.bf16.gmra.mrb[0].mxu0 %v1147
      %v1183 = vpop.f32.mrb[0].mxu0
      %v1184 = vadd.f32 0.0, %v1183
      %v1185 = vpop.f32.mrb[0].mxu0
      %v1186 = vpop.f32.mrb[0].mxu0
      %v1187 = vadd.f32 0.0, %v1186
      %v1188 = vpop.f32.mrb[0].mxu0
      %1189 = vdwg.mxu0
      %s1190 = scalar_lea.vmem %s690, 4
      %v1191 = vld [vmem:[%s1190] sm:$0xf]
      %v1192 = vpack.c.bf16 %v1187, %v1184
      %v1194 = vsel %vm947, %v1192, 0
      %vm1196 = vcmask 1043456
      %v1198 = vsel %vm1196, %v1191, 0
      %1200 = vmatprep.subr.bf16.mxu0 0
      %1201 = vmatpush1.bf16.msra.mxu0 %v1198
      %1202 = vmatprep.subr.bf16.mxu0 0
      %1203 = vmatpush1.bf16.msra.mxu0 0
      %1204 = vmatprep.subr.bf16.mxu0 0
      %1205 = vmatpush1.bf16.msra.mxu0 0
      %1206 = vmatprep.subr.bf16.mxu0 0
      %1207 = vmatpush1.bf16.msra.mxu0 0
      %1208 = vmatprep.subr.bf16.mxu0 0
      %1209 = vmatpush1.bf16.msra.mxu0 0
      %1210 = vmatprep.subr.bf16.mxu0 0
      %1211 = vmatpush1.bf16.msra.mxu0 0
      %1212 = vmatprep.subr.bf16.mxu0 0
      %1213 = vmatpush1.bf16.msra.mxu0 0
      %1214 = vmatprep.subr.bf16.mxu0 0
      %1215 = vmatpush1.bf16.msra.mxu0 0
      %1216 = vmatprep.subr.bf16.mxu0 0
      %1217 = vmatpush1.bf16.msra.mxu0 0
      %1218 = vmatprep.subr.bf16.mxu0 0
      %1219 = vmatpush1.bf16.msra.mxu0 0
      %1220 = vmatprep.subr.bf16.mxu0 0
      %1221 = vmatpush1.bf16.msra.mxu0 0
      %1222 = vmatprep.subr.bf16.mxu0 0
      %1223 = vmatpush1.bf16.msra.mxu0 0
      %1224 = vmatprep.subr.bf16.mxu0 0
      %1225 = vmatpush1.bf16.msra.mxu0 0
      %1226 = vmatprep.subr.bf16.mxu0 0
      %1227 = vmatpush1.bf16.msra.mxu0 0
      %1228 = vmatprep.subr.bf16.mxu0 0
      %1229 = vmatpush1.bf16.msra.mxu0 0
      %1230 = vmatprep.subr.bf16.mxu0 0
      %1231 = vmatpush1.bf16.msra.mxu0 0
      %1232 = vmatprep.mubr.bf16.mxu0 0
      %1233 = vmatmul.mubr.bf16.gmra.mrb[0].mxu0 %v1194
      %v1234 = vpop.f32.mrb[0].mxu0
      %v1235 = vadd.f32 0.0, %v1234
      %v1236 = vpop.f32.mrb[0].mxu0
      %v1237 = vpop.f32.mrb[0].mxu0
      %v1238 = vadd.f32 0.0, %v1237
      %v1239 = vpop.f32.mrb[0].mxu0
      %1240 = vdwg.mxu0
      %v1242 = vsel %vm947, %v1065, 0
      %v1245 = vsel %vm1196, %v1064, 0
      %1247 = vmatprep.subr.bf16.mxu0 0
      %1248 = vmatpush1.bf16.msra.mxu0 %v1245
      %1249 = vmatprep.subr.bf16.mxu0 0
      %1250 = vmatpush1.bf16.msra.mxu0 0
      %1251 = vmatprep.subr.bf16.mxu0 0
      %1252 = vmatpush1.bf16.msra.mxu0 0
      %1253 = vmatprep.subr.bf16.mxu0 0
      %1254 = vmatpush1.bf16.msra.mxu0 0
      %1255 = vmatprep.subr.bf16.mxu0 0
      %1256 = vmatpush1.bf16.msra.mxu0 0
      %1257 = vmatprep.subr.bf16.mxu0 0
      %1258 = vmatpush1.bf16.msra.mxu0 0
      %1259 = vmatprep.subr.bf16.mxu0 0
      %1260 = vmatpush1.bf16.msra.mxu0 0
      %1261 = vmatprep.subr.bf16.mxu0 0
      %1262 = vmatpush1.bf16.msra.mxu0 0
      %1263 = vmatprep.subr.bf16.mxu0 0
      %1264 = vmatpush1.bf16.msra.mxu0 0
      %1265 = vmatprep.subr.bf16.mxu0 0
      %1266 = vmatpush1.bf16.msra.mxu0 0
      %1267 = vmatprep.subr.bf16.mxu0 0
      %1268 = vmatpush1.bf16.msra.mxu0 0
      %1269 = vmatprep.subr.bf16.mxu0 0
      %1270 = vmatpush1.bf16.msra.mxu0 0
      %1271 = vmatprep.subr.bf16.mxu0 0
      %1272 = vmatpush1.bf16.msra.mxu0 0
      %1273 = vmatprep.subr.bf16.mxu0 0
      %1274 = vmatpush1.bf16.msra.mxu0 0
      %1275 = vmatprep.subr.bf16.mxu0 0
      %1276 = vmatpush1.bf16.msra.mxu0 0
      %1277 = vmatprep.subr.bf16.mxu0 0
      %1278 = vmatpush1.bf16.msra.mxu0 0
      %1279 = vmatprep.mubr.bf16.mxu0 0
      %1280 = vmatmul.mubr.bf16.gmra.mrb[0].mxu0 %v1242
      %v1281 = vpop.f32.mrb[0].mxu0
      %v1282 = vadd.f32 %v1235, %v1281
      %v1283 = vpop.f32.mrb[0].mxu0
      %v1284 = vpop.f32.mrb[0].mxu0
      %v1285 = vadd.f32 %v1238, %v1284
      %v1286 = vpop.f32.mrb[0].mxu0
      %1287 = vdwg.mxu0
      %1288 = vrot.lane.b32.xlu0 %v945, 112
      %v1289 = vpop.permute.xlu0 %1288
      %1290 = vrot.lane.b32.xlu0 %v946, 112
      %v1291 = vpop.permute.xlu0 %1290
      %v1293 = vsel %vm947, %v1289, 0
      %v1296 = vsel %vm947, %v1291, 0
      %1298 = vmatprep.subr.bf16.mxu0 0
      %1299 = vmatpush1.bf16.xpose.msra.mxu0 %v1296
      %1300 = vmatprep.subr.bf16.mxu0 0
      %1301 = vmatpush1.bf16.xpose.msra.mxu0 0
      %1302 = vmatprep.subr.bf16.mxu0 0
      %1303 = vmatpush1.bf16.xpose.msra.mxu0 0
      %1304 = vmatprep.subr.bf16.mxu0 0
      %1305 = vmatpush1.bf16.xpose.msra.mxu0 0
      %1306 = vmatprep.subr.bf16.mxu0 0
      %1307 = vmatpush1.bf16.xpose.msra.mxu0 0
      %1308 = vmatprep.subr.bf16.mxu0 0
      %1309 = vmatpush1.bf16.xpose.msra.mxu0 0
      %1310 = vmatprep.subr.bf16.mxu0 0
      %1311 = vmatpush1.bf16.xpose.msra.mxu0 0
      %1312 = vmatprep.subr.bf16.mxu0 0
      %1313 = vmatpush1.bf16.xpose.msra.mxu0 0
      %1314 = vmatprep.subr.bf16.mxu0 0
      %1315 = vmatpush1.bf16.xpose.msra.mxu0 0
      %1316 = vmatprep.subr.bf16.mxu0 0
      %1317 = vmatpush1.bf16.xpose.msra.mxu0 0
      %1318 = vmatprep.subr.bf16.mxu0 0
      %1319 = vmatpush1.bf16.xpose.msra.mxu0 0
      %1320 = vmatprep.subr.bf16.mxu0 0
      %1321 = vmatpush1.bf16.xpose.msra.mxu0 0
      %1322 = vmatprep.subr.bf16.mxu0 0
      %1323 = vmatpush1.bf16.xpose.msra.mxu0 0
      %1324 = vmatprep.subr.bf16.mxu0 0
      %1325 = vmatpush1.bf16.xpose.msra.mxu0 0
      %1326 = vmatprep.subr.bf16.mxu0 0
      %1327 = vmatpush1.bf16.xpose.msra.mxu0 0
      %1328 = vmatprep.subr.bf16.mxu0 0
      %1329 = vmatpush1.bf16.xpose.msra.mxu0 0
      %1330 = vmatprep.mubr.bf16.mxu0 0
      %1331 = vmatmul.mubr.bf16.gmra.mrb[0].mxu0 %v1293
      %v1332 = vpop.f32.mrb[0].mxu0
      %v1333 = vadd.f32 %v740, %v1332
      %v1334 = vpop.f32.mrb[0].mxu0
      %v1335 = vpop.f32.mrb[0].mxu0
      %v1336 = vadd.f32 %v741, %v1335
      %v1337 = vpop.f32.mrb[0].mxu0
      %1338 = vdwg.mxu0
      %v1339 = vsel %vm995, %v1333, -inf
      %1340 = vmax.xlane.f32.xlu0 %v1339
      %v1341 = vpop.xlane.xlu0 %1340
      %v1342 = vsel %vm995, %v1336, -inf
      %1343 = vmax.xlane.f32.xlu0 %v1342
      %v1344 = vpop.xlane.xlu0 %1343
      %v1345 = vsub.f32 %v1333, %v1341
      %v1346 = vsub.f32 %v1336, %v1344
      %v1347 = vmul.f32 %v1345, 1.442695
      %v1348 = vpow.pop %v1347
      %v1349 = vmul.f32 %v1346, 1.442695
      %v1350 = vpow.pop %v1349
      %v1351 = vsel %vm995, %v1348, 0.0
      %1352 = vadd.xlane.f32.xlu0 %v1351
      %v1353 = vpop.xlane.xlu0 %1352
      %v1354 = vsel %vm995, %v1350, 0.0
      %1355 = vadd.xlane.f32.xlu0 %v1354
      %v1356 = vpop.xlane.xlu0 %1355
      %v1357 = vrcp.pop %v1353
      %v1358 = vrcp.pop %v1356
      %v1359 = vmul.f32 %v1348, %v1357
      %v1360 = vmul.f32 %v1350, %v1358
      %v1361 = vpack.c.bf16 %v1360, %v1359
      %1362 = vrot.lane.b32.xlu0 %v1019, 112
      %v1363 = vpop.permute.xlu0 %1362
      %v1366 = vsel %vm995, %v1361, 0
      %1368 = vmatprep.subr.bf16.mxu0 0
      %1369 = vmatpush1.bf16.msra.mxu0 %v1363
      %1370 = vmatprep.subr.bf16.mxu0 0
      %1371 = vmatpush1.bf16.msra.mxu0 0
      %1372 = vmatprep.subr.bf16.mxu0 0
      %1373 = vmatpush1.bf16.msra.mxu0 0
      %1374 = vmatprep.subr.bf16.mxu0 0
      %1375 = vmatpush1.bf16.msra.mxu0 0
      %1376 = vmatprep.subr.bf16.mxu0 0
      %1377 = vmatpush1.bf16.msra.mxu0 0
      %1378 = vmatprep.subr.bf16.mxu0 0
      %1379 = vmatpush1.bf16.msra.mxu0 0
      %1380 = vmatprep.subr.bf16.mxu0 0
      %1381 = vmatpush1.bf16.msra.mxu0 0
      %1382 = vmatprep.subr.bf16.mxu0 0
      %1383 = vmatpush1.bf16.msra.mxu0 0
      %1384 = vmatprep.subr.bf16.mxu0 0
      %1385 = vmatpush1.bf16.msra.mxu0 0
      %1386 = vmatprep.subr.bf16.mxu0 0
      %1387 = vmatpush1.bf16.msra.mxu0 0
      %1388 = vmatprep.subr.bf16.mxu0 0
      %1389 = vmatpush1.bf16.msra.mxu0 0
      %1390 = vmatprep.subr.bf16.mxu0 0
      %1391 = vmatpush1.bf16.msra.mxu0 0
      %1392 = vmatprep.subr.bf16.mxu0 0
      %1393 = vmatpush1.bf16.msra.mxu0 0
      %1394 = vmatprep.subr.bf16.mxu0 0
      %1395 = vmatpush1.bf16.msra.mxu0 0
      %1396 = vmatprep.subr.bf16.mxu0 0
      %1397 = vmatpush1.bf16.msra.mxu0 0
      %1398 = vmatprep.subr.bf16.mxu0 0
      %1399 = vmatpush1.bf16.msra.mxu0 0
      %1400 = vmatprep.mubr.bf16.mxu0 0
      %1401 = vmatmul.mubr.bf16.gmra.mrb[0].mxu0 %v1366
      %v1402 = vpop.f32.mrb[0].mxu0
      %v1403 = vadd.f32 0.0, %v1402
      %v1404 = vpop.f32.mrb[0].mxu0
      %v1405 = vpop.f32.mrb[0].mxu0
      %v1406 = vadd.f32 0.0, %v1405
      %v1407 = vpop.f32.mrb[0].mxu0
      %1408 = vdwg.mxu0
      %s1409 = scalar_lea.vmem %s690, 8
      %v1410 = vld [vmem:[%s1409] sm:$0xf]
      %v1411 = vpack.c.bf16 %v1406, %v1403
      %v1413 = vsel %vm947, %v1411, 0
      %v1416 = vsel %vm1196, %v1410, 0
      %1418 = vmatprep.subr.bf16.mxu0 0
      %1419 = vmatpush1.bf16.msra.mxu0 %v1416
      %1420 = vmatprep.subr.bf16.mxu0 0
      %1421 = vmatpush1.bf16.msra.mxu0 0
      %1422 = vmatprep.subr.bf16.mxu0 0
      %1423 = vmatpush1.bf16.msra.mxu0 0
      %1424 = vmatprep.subr.bf16.mxu0 0
      %1425 = vmatpush1.bf16.msra.mxu0 0
      %1426 = vmatprep.subr.bf16.mxu0 0
      %1427 = vmatpush1.bf16.msra.mxu0 0
      %1428 = vmatprep.subr.bf16.mxu0 0
      %1429 = vmatpush1.bf16.msra.mxu0 0
      %1430 = vmatprep.subr.bf16.mxu0 0
      %1431 = vmatpush1.bf16.msra.mxu0 0
      %1432 = vmatprep.subr.bf16.mxu0 0
      %1433 = vmatpush1.bf16.msra.mxu0 0
      %1434 = vmatprep.subr.bf16.mxu0 0
      %1435 = vmatpush1.bf16.msra.mxu0 0
      %1436 = vmatprep.subr.bf16.mxu0 0
      %1437 = vmatpush1.bf16.msra.mxu0 0
      %1438 = vmatprep.subr.bf16.mxu0 0
      %1439 = vmatpush1.bf16.msra.mxu0 0
      %1440 = vmatprep.subr.bf16.mxu0 0
      %1441 = vmatpush1.bf16.msra.mxu0 0
      %1442 = vmatprep.subr.bf16.mxu0 0
      %1443 = vmatpush1.bf16.msra.mxu0 0
      %1444 = vmatprep.subr.bf16.mxu0 0
      %1445 = vmatpush1.bf16.msra.mxu0 0
      %1446 = vmatprep.subr.bf16.mxu0 0
      %1447 = vmatpush1.bf16.msra.mxu0 0
      %1448 = vmatprep.subr.bf16.mxu0 0
      %1449 = vmatpush1.bf16.msra.mxu0 0
      %1450 = vmatprep.mubr.bf16.mxu0 0
      %1451 = vmatmul.mubr.bf16.gmra.mrb[0].mxu0 %v1413
      %v1452 = vpop.f32.mrb[0].mxu0
      %v1453 = vadd.f32 0.0, %v1452
      %v1454 = vpop.f32.mrb[0].mxu0
      %v1455 = vpop.f32.mrb[0].mxu0
      %v1456 = vadd.f32 0.0, %v1455
      %v1457 = vpop.f32.mrb[0].mxu0
      %1458 = vdwg.mxu0
      %v1459 = vadd.f32 %v1282, %v1453
      %v1460 = vadd.f32 %v1285, %v1456
      %1461 = vrot.lane.b32.xlu0 %v945, 104
      %v1462 = vpop.permute.xlu0 %1461
      %1463 = vrot.lane.b32.xlu0 %v946, 104
      %v1464 = vpop.permute.xlu0 %1463
      %v1466 = vsel %vm947, %v1462, 0
      %v1469 = vsel %vm947, %v1464, 0
      %1471 = vmatprep.subr.bf16.mxu0 0
      %1472 = vmatpush1.bf16.xpose.msra.mxu0 %v1469
      %1473 = vmatprep.subr.bf16.mxu0 0
      %1474 = vmatpush1.bf16.xpose.msra.mxu0 0
      %1475 = vmatprep.subr.bf16.mxu0 0
      %1476 = vmatpush1.bf16.xpose.msra.mxu0 0
      %1477 = vmatprep.subr.bf16.mxu0 0
      %1478 = vmatpush1.bf16.xpose.msra.mxu0 0
      %1479 = vmatprep.subr.bf16.mxu0 0
      %1480 = vmatpush1.bf16.xpose.msra.mxu0 0
      %1481 = vmatprep.subr.bf16.mxu0 0
      %1482 = vmatpush1.bf16.xpose.msra.mxu0 0
      %1483 = vmatprep.subr.bf16.mxu0 0
      %1484 = vmatpush1.bf16.xpose.msra.mxu0 0
      %1485 = vmatprep.subr.bf16.mxu0 0
      %1486 = vmatpush1.bf16.xpose.msra.mxu0 0
      %1487 = vmatprep.subr.bf16.mxu0 0
      %1488 = vmatpush1.bf16.xpose.msra.mxu0 0
      %1489 = vmatprep.subr.bf16.mxu0 0
      %1490 = vmatpush1.bf16.xpose.msra.mxu0 0
      %1491 = vmatprep.subr.bf16.mxu0 0
      %1492 = vmatpush1.bf16.xpose.msra.mxu0 0
      %1493 = vmatprep.subr.bf16.mxu0 0
      %1494 = vmatpush1.bf16.xpose.msra.mxu0 0
      %1495 = vmatprep.subr.bf16.mxu0 0
      %1496 = vmatpush1.bf16.xpose.msra.mxu0 0
      %1497 = vmatprep.subr.bf16.mxu0 0
      %1498 = vmatpush1.bf16.xpose.msra.mxu0 0
      %1499 = vmatprep.subr.bf16.mxu0 0
      %1500 = vmatpush1.bf16.xpose.msra.mxu0 0
      %1501 = vmatprep.subr.bf16.mxu0 0
      %1502 = vmatpush1.bf16.xpose.msra.mxu0 0
      %1503 = vmatprep.mubr.bf16.mxu0 0
      %1504 = vmatmul.mubr.bf16.gmra.mrb[0].mxu0 %v1466
      %v1505 = vpop.f32.mrb[0].mxu0
      %v1506 = vadd.f32 %v740, %v1505
      %v1507 = vpop.f32.mrb[0].mxu0
      %v1508 = vpop.f32.mrb[0].mxu0
      %v1509 = vadd.f32 %v741, %v1508
      %v1510 = vpop.f32.mrb[0].mxu0
      %1511 = vdwg.mxu0
      %v1512 = vsel %vm995, %v1506, -inf
      %1513 = vmax.xlane.f32.xlu0 %v1512
      %v1514 = vpop.xlane.xlu0 %1513
      %v1515 = vsel %vm995, %v1509, -inf
      %1516 = vmax.xlane.f32.xlu0 %v1515
      %v1517 = vpop.xlane.xlu0 %1516
      %v1518 = vsub.f32 %v1506, %v1514
      %v1519 = vsub.f32 %v1509, %v1517
      %v1520 = vmul.f32 %v1518, 1.442695
      %v1521 = vpow.pop %v1520
      %v1522 = vmul.f32 %v1519, 1.442695
      %v1523 = vpow.pop %v1522
      %v1524 = vsel %vm995, %v1521, 0.0
      %1525 = vadd.xlane.f32.xlu0 %v1524
      %v1526 = vpop.xlane.xlu0 %1525
      %v1527 = vsel %vm995, %v1523, 0.0
      %1528 = vadd.xlane.f32.xlu0 %v1527
      %v1529 = vpop.xlane.xlu0 %1528
      %v1530 = vrcp.pop %v1526
      %v1531 = vrcp.pop %v1529
      %v1532 = vmul.f32 %v1521, %v1530
      %v1533 = vmul.f32 %v1523, %v1531
      %v1534 = vpack.c.bf16 %v1533, %v1532
      %1535 = vrot.lane.b32.xlu0 %v1019, 104
      %v1536 = vpop.permute.xlu0 %1535
      %v1539 = vsel %vm995, %v1534, 0
      %1541 = vmatprep.subr.bf16.mxu0 0
      %1542 = vmatpush1.bf16.msra.mxu0 %v1536
      %1543 = vmatprep.subr.bf16.mxu0 0
      %1544 = vmatpush1.bf16.msra.mxu0 0
      %1545 = vmatprep.subr.bf16.mxu0 0
      %1546 = vmatpush1.bf16.msra.mxu0 0
      %1547 = vmatprep.subr.bf16.mxu0 0
      %1548 = vmatpush1.bf16.msra.mxu0 0
      %1549 = vmatprep.subr.bf16.mxu0 0
      %1550 = vmatpush1.bf16.msra.mxu0 0
      %1551 = vmatprep.subr.bf16.mxu0 0
      %1552 = vmatpush1.bf16.msra.mxu0 0
      %1553 = vmatprep.subr.bf16.mxu0 0
      %1554 = vmatpush1.bf16.msra.mxu0 0
      %1555 = vmatprep.subr.bf16.mxu0 0
      %1556 = vmatpush1.bf16.msra.mxu0 0
      %1557 = vmatprep.subr.bf16.mxu0 0
      %1558 = vmatpush1.bf16.msra.mxu0 0
      %1559 = vmatprep.subr.bf16.mxu0 0
      %1560 = vmatpush1.bf16.msra.mxu0 0
      %1561 = vmatprep.subr.bf16.mxu0 0
      %1562 = vmatpush1.bf16.msra.mxu0 0
      %1563 = vmatprep.subr.bf16.mxu0 0
      %1564 = vmatpush1.bf16.msra.mxu0 0
      %1565 = vmatprep.subr.bf16.mxu0 0
      %1566 = vmatpush1.bf16.msra.mxu0 0
      %1567 = vmatprep.subr.bf16.mxu0 0
      %1568 = vmatpush1.bf16.msra.mxu0 0
      %1569 = vmatprep.subr.bf16.mxu0 0
      %1570 = vmatpush1.bf16.msra.mxu0 0
      %1571 = vmatprep.subr.bf16.mxu0 0
      %1572 = vmatpush1.bf16.msra.mxu0 0
      %1573 = vmatprep.mubr.bf16.mxu0 0
      %1574 = vmatmul.mubr.bf16.gmra.mrb[0].mxu0 %v1539
      %v1575 = vpop.f32.mrb[0].mxu0
      %v1576 = vadd.f32 0.0, %v1575
      %v1577 = vpop.f32.mrb[0].mxu0
      %v1578 = vpop.f32.mrb[0].mxu0
      %v1579 = vadd.f32 0.0, %v1578
      %v1580 = vpop.f32.mrb[0].mxu0
      %1581 = vdwg.mxu0
      %s1582 = scalar_lea.vmem %s690, 12
      %v1583 = vld [vmem:[%s1582] sm:$0xf]
      %v1584 = vpack.c.bf16 %v1579, %v1576
      %v1586 = vsel %vm947, %v1584, 0
      %v1589 = vsel %vm1196, %v1583, 0
      %1591 = vmatprep.subr.bf16.mxu0 0
      %1592 = vmatpush1.bf16.msra.mxu0 %v1589
      %1593 = vmatprep.subr.bf16.mxu0 0
      %1594 = vmatpush1.bf16.msra.mxu0 0
      %1595 = vmatprep.subr.bf16.mxu0 0
      %1596 = vmatpush1.bf16.msra.mxu0 0
      %1597 = vmatprep.subr.bf16.mxu0 0
      %1598 = vmatpush1.bf16.msra.mxu0 0
      %1599 = vmatprep.subr.bf16.mxu0 0
      %1600 = vmatpush1.bf16.msra.mxu0 0
      %1601 = vmatprep.subr.bf16.mxu0 0
      %1602 = vmatpush1.bf16.msra.mxu0 0
      %1603 = vmatprep.subr.bf16.mxu0 0
      %1604 = vmatpush1.bf16.msra.mxu0 0
      %1605 = vmatprep.subr.bf16.mxu0 0
      %1606 = vmatpush1.bf16.msra.mxu0 0
      %1607 = vmatprep.subr.bf16.mxu0 0
      %1608 = vmatpush1.bf16.msra.mxu0 0
      %1609 = vmatprep.subr.bf16.mxu0 0
      %1610 = vmatpush1.bf16.msra.mxu0 0
      %1611 = vmatprep.subr.bf16.mxu0 0
      %1612 = vmatpush1.bf16.msra.mxu0 0
      %1613 = vmatprep.subr.bf16.mxu0 0
      %1614 = vmatpush1.bf16.msra.mxu0 0
      %1615 = vmatprep.subr.bf16.mxu0 0
      %1616 = vmatpush1.bf16.msra.mxu0 0
      %1617 = vmatprep.subr.bf16.mxu0 0
      %1618 = vmatpush1.bf16.msra.mxu0 0
      %1619 = vmatprep.subr.bf16.mxu0 0
      %1620 = vmatpush1.bf16.msra.mxu0 0
      %1621 = vmatprep.subr.bf16.mxu0 0
      %1622 = vmatpush1.bf16.msra.mxu0 0
      %1623 = vmatprep.mubr.bf16.mxu0 0
      %1624 = vmatmul.mubr.bf16.gmra.mrb[0].mxu0 %v1586
      %v1625 = vpop.f32.mrb[0].mxu0
      %v1626 = vadd.f32 0.0, %v1625
      %v1627 = vpop.f32.mrb[0].mxu0
      %v1628 = vpop.f32.mrb[0].mxu0
      %v1629 = vadd.f32 0.0, %v1628
      %v1630 = vpop.f32.mrb[0].mxu0
      %1631 = vdwg.mxu0
      %v1632 = vadd.f32 %v1459, %v1626
      %v1633 = vadd.f32 %v1460, %v1629
      %s1634 = scalar_lea.vmem %s694, 3
      %v1635 = vld [vmem:[%s1634] sm:$0x1]
      %v1637 = vlaneseq
      %v1638 = vshrl.u32 %v1637, 7
      %v1639 = vsub.s32 0, %v1638
      %v1640 = vrot.slane %v1635, %v1639
      %v1642 = vadd.f32 %v1632, %v1640
      %v1643 = vadd.f32 %v1633, %v1640
      %v1644 = vadd.f32 %v736, %v1642
      %v1645 = vadd.f32 %v737, %v1643
      %v1646 = vld [vmem:[%s721] sm:$0x1]
      %v1647 = vld [vmem:[%s725] sm:$0x1]
      %v1648 = vsel %vm766, %v1644, 0.0
      %1649 = vadd.xlane.f32.xlu0 %v1648
      %v1650 = vpop.xlane.xlu0 %1649
      %v1651 = vsel %vm766, %v1645, 0.0
      %1652 = vadd.xlane.f32.xlu0 %v1651
      %v1653 = vpop.xlane.xlu0 %1652
      %v1654 = vrcp.pop 32.0
      %v1655 = vmul.f32 %v1650, %v1654
      %v1656 = vmul.f32 %v1653, %v1654
      %v1657 = vsub.f32 %v1644, %v1655
      %v1658 = vsub.f32 %v1645, %v1656
      %v1659 = vmul.f32 %v1657, %v1657
      %v1660 = vmul.f32 %v1658, %v1658
      %v1661 = vsel %vm766, %v1659, 0.0
      %1662 = vadd.xlane.f32.xlu0 %v1661
      %v1663 = vpop.xlane.xlu0 %1662
      %v1664 = vsel %vm766, %v1660, 0.0
      %1665 = vadd.xlane.f32.xlu0 %v1664
      %v1666 = vpop.xlane.xlu0 %1665
      %v1667 = vmul.f32 %v1663, %v1654
      %v1668 = vmul.f32 %v1666, %v1654
      %v1669 = vadd.f32 %v1667, 1e-05
      %v1670 = vadd.f32 %v1668, 1e-05
      %v1671 = vrsqrt.pop %v1669
      %v1672 = vrsqrt.pop %v1670
      %v1673 = vmul.f32 %v1657, %v1671
      %v1674 = vmul.f32 %v1658, %v1672
      %v1676 = vlaneseq
      %v1677 = vshrl.u32 %v1676, 7
      %v1678 = vsub.s32 0, %v1677
      %v1679 = vrot.slane %v1646, %v1678
      %v1681 = vmul.f32 %v1673, %v1679
      %v1682 = vmul.f32 %v1674, %v1679
      %v1684 = vlaneseq
      %v1685 = vshrl.u32 %v1684, 7
      %v1686 = vsub.s32 0, %v1685
      %v1687 = vrot.slane %v1647, %v1686
      %v1689 = vadd.f32 %v1681, %v1687
      %v1690 = vadd.f32 %v1682, %v1687
      %v1691 = vld [vmem:[%s3] sm:$0xff]
      %v1692 = vld [vmem:[%s3 + $0x8] sm:$0xff]
      %v1693 = vld [vmem:[%s699] sm:$0xf]
      %v1694 = vld [vmem:[%s699 + $0x4] sm:$0xf]
      %v1695 = vld [vmem:[%s699 + $0x8] sm:$0xf]
      %v1696 = vld [vmem:[%s699 + $0xc] sm:$0xf]
      %v1697 = vpack.c.bf16 %v1690, %v1689
      %v1698 = vld [vmem:[%s708] sm:$0x1]
      %v1700 = vlaneseq
      %v1701 = vshrl.u32 %v1700, 7
      %v1702 = vsub.s32 0, %v1701
      %v1703 = vrot.slane %v1698, %v1702
      %v1709 = vunpack.c.l.b16 %v1693
      %v1710 = vunpack.c.l.b16 %v1694
      %v1711 = vunpack.c.l.b16 %v1695
      %v1712 = vunpack.c.l.b16 %v1696
      %v1713 = vpack.c.b16 %v1710, %v1709
      %v1714 = vpack.c.b16 %v1712, %v1711
      %v1718 = vsel %vm766, %v1697, 0
      %1720 = vmatprep.subr.bf16.mxu0 0
      %1721 = vmatpush1.bf16.msra.mxu0 %v1713
      %1722 = vmatprep.subr.bf16.mxu0 0
      %1723 = vmatpush1.bf16.msra.mxu0 %v1714
      %1724 = vmatprep.subr.bf16.mxu0 0
      %1725 = vmatpush1.bf16.msra.mxu0 0
      %1726 = vmatprep.subr.bf16.mxu0 0
      %1727 = vmatpush1.bf16.msra.mxu0 0
      %1728 = vmatprep.subr.bf16.mxu0 0
      %1729 = vmatpush1.bf16.msra.mxu0 0
      %1730 = vmatprep.subr.bf16.mxu0 0
      %1731 = vmatpush1.bf16.msra.mxu0 0
      %1732 = vmatprep.subr.bf16.mxu0 0
      %1733 = vmatpush1.bf16.msra.mxu0 0
      %1734 = vmatprep.subr.bf16.mxu0 0
      %1735 = vmatpush1.bf16.msra.mxu0 0
      %1736 = vmatprep.subr.bf16.mxu0 0
      %1737 = vmatpush1.bf16.msra.mxu0 0
      %1738 = vmatprep.subr.bf16.mxu0 0
      %1739 = vmatpush1.bf16.msra.mxu0 0
      %1740 = vmatprep.subr.bf16.mxu0 0
      %1741 = vmatpush1.bf16.msra.mxu0 0
      %1742 = vmatprep.subr.bf16.mxu0 0
      %1743 = vmatpush1.bf16.msra.mxu0 0
      %1744 = vmatprep.subr.bf16.mxu0 0
      %1745 = vmatpush1.bf16.msra.mxu0 0
      %1746 = vmatprep.subr.bf16.mxu0 0
      %1747 = vmatpush1.bf16.msra.mxu0 0
      %1748 = vmatprep.subr.bf16.mxu0 0
      %1749 = vmatpush1.bf16.msra.mxu0 0
      %1750 = vmatprep.subr.bf16.mxu0 0
      %1751 = vmatpush1.bf16.msra.mxu0 0
      %1752 = vmatprep.mubr.bf16.mxu0 0
      %1753 = vmatmul.mubr.bf16.gmra.mrb[0].mxu0 %v1718
      %v1754 = vpop.f32.mrb[0].mxu0
      %v1755 = vadd.f32 %v1703, %v1754
      %v1756 = vpop.f32.mrb[0].mxu0
      %v1757 = vpop.f32.mrb[0].mxu0
      %v1758 = vadd.f32 %v1703, %v1757
      %v1759 = vpop.f32.mrb[0].mxu0
      %1760 = vdwg.mxu0
      %v1761 = vmul.f32 %v1755, 0.35355338
      %v1762 = vmul.f32 %v1758, 0.35355338
      %s1763 = scalar_lea.vmem %s699, 16
      %v1764 = vld [vmem:[%s1763] sm:$0xf]
      %v1765 = vld [vmem:[%s1763 + $0x4] sm:$0xf]
      %v1766 = vld [vmem:[%s1763 + $0x8] sm:$0xf]
      %v1767 = vld [vmem:[%s1763 + $0xc] sm:$0xf]
      %v1768 = vpack.c.bf16 %v739, %v738
      %s1769 = scalar_lea.vmem %s708, 1
      %v1770 = vld [vmem:[%s1769] sm:$0x1]
      %v1772 = vlaneseq
      %v1773 = vshrl.u32 %v1772, 7
      %v1774 = vsub.s32 0, %v1773
      %v1775 = vrot.slane %v1770, %v1774
      %v1781 = vunpack.c.l.b16 %v1764
      %v1782 = vunpack.c.l.b16 %v1765
      %v1783 = vunpack.c.l.b16 %v1766
      %v1784 = vunpack.c.l.b16 %v1767
      %v1785 = vpack.c.b16 %v1782, %v1781
      %v1786 = vpack.c.b16 %v1784, %v1783
      %v1790 = vsel %vm766, %v1768, 0
      %1792 = vmatprep.subr.bf16.mxu0 0
      %1793 = vmatpush1.bf16.msra.mxu0 %v1785
      %1794 = vmatprep.subr.bf16.mxu0 0
      %1795 = vmatpush1.bf16.msra.mxu0 %v1786
      %1796 = vmatprep.subr.bf16.mxu0 0
      %1797 = vmatpush1.bf16.msra.mxu0 0
      %1798 = vmatprep.subr.bf16.mxu0 0
      %1799 = vmatpush1.bf16.msra.mxu0 0
      %1800 = vmatprep.subr.bf16.mxu0 0
      %1801 = vmatpush1.bf16.msra.mxu0 0
      %1802 = vmatprep.subr.bf16.mxu0 0
      %1803 = vmatpush1.bf16.msra.mxu0 0
      %1804 = vmatprep.subr.bf16.mxu0 0
      %1805 = vmatpush1.bf16.msra.mxu0 0
      %1806 = vmatprep.subr.bf16.mxu0 0
      %1807 = vmatpush1.bf16.msra.mxu0 0
      %1808 = vmatprep.subr.bf16.mxu0 0
      %1809 = vmatpush1.bf16.msra.mxu0 0
      %1810 = vmatprep.subr.bf16.mxu0 0
      %1811 = vmatpush1.bf16.msra.mxu0 0
      %1812 = vmatprep.subr.bf16.mxu0 0
      %1813 = vmatpush1.bf16.msra.mxu0 0
      %1814 = vmatprep.subr.bf16.mxu0 0
      %1815 = vmatpush1.bf16.msra.mxu0 0
      %1816 = vmatprep.subr.bf16.mxu0 0
      %1817 = vmatpush1.bf16.msra.mxu0 0
      %1818 = vmatprep.subr.bf16.mxu0 0
      %1819 = vmatpush1.bf16.msra.mxu0 0
      %1820 = vmatprep.subr.bf16.mxu0 0
      %1821 = vmatpush1.bf16.msra.mxu0 0
      %1822 = vmatprep.subr.bf16.mxu0 0
      %1823 = vmatpush1.bf16.msra.mxu0 0
      %1824 = vmatprep.mubr.bf16.mxu0 0
      %1825 = vmatmul.mubr.bf16.gmra.mrb[0].mxu0 %v1790
      %v1826 = vpop.f32.mrb[0].mxu0
      %v1827 = vadd.f32 %v1775, %v1826
      %v1828 = vpop.f32.mrb[0].mxu0
      %v1829 = vpop.f32.mrb[0].mxu0
      %v1830 = vadd.f32 %v1775, %v1829
      %v1831 = vpop.f32.mrb[0].mxu0
      %1832 = vdwg.mxu0
      %s1833 = scalar_lea.vmem %s699, 32
      %v1834 = vld [vmem:[%s1833] sm:$0xf]
      %v1835 = vld [vmem:[%s1833 + $0x4] sm:$0xf]
      %v1836 = vld [vmem:[%s1833 + $0x8] sm:$0xf]
      %v1837 = vld [vmem:[%s1833 + $0xc] sm:$0xf]
      %s1838 = scalar_lea.vmem %s708, 2
      %v1839 = vld [vmem:[%s1838] sm:$0x1]
      %v1841 = vlaneseq
      %v1842 = vshrl.u32 %v1841, 7
      %v1843 = vsub.s32 0, %v1842
      %v1844 = vrot.slane %v1839, %v1843
      %v1850 = vunpack.c.l.b16 %v1834
      %v1851 = vunpack.c.l.b16 %v1835
      %v1852 = vunpack.c.l.b16 %v1836
      %v1853 = vunpack.c.l.b16 %v1837
      %v1854 = vpack.c.b16 %v1851, %v1850
      %v1855 = vpack.c.b16 %v1853, %v1852
      %1858 = vmatprep.subr.bf16.mxu0 0
      %1859 = vmatpush1.bf16.msra.mxu0 %v1854
      %1860 = vmatprep.subr.bf16.mxu0 0
      %1861 = vmatpush1.bf16.msra.mxu0 %v1855
      %1862 = vmatprep.subr.bf16.mxu0 0
      %1863 = vmatpush1.bf16.msra.mxu0 0
      %1864 = vmatprep.subr.bf16.mxu0 0
      %1865 = vmatpush1.bf16.msra.mxu0 0
      %1866 = vmatprep.subr.bf16.mxu0 0
      %1867 = vmatpush1.bf16.msra.mxu0 0
      %1868 = vmatprep.subr.bf16.mxu0 0
      %1869 = vmatpush1.bf16.msra.mxu0 0
      %1870 = vmatprep.subr.bf16.mxu0 0
      %1871 = vmatpush1.bf16.msra.mxu0 0
      %1872 = vmatprep.subr.bf16.mxu0 0
      %1873 = vmatpush1.bf16.msra.mxu0 0
      %1874 = vmatprep.subr.bf16.mxu0 0
      %1875 = vmatpush1.bf16.msra.mxu0 0
      %1876 = vmatprep.subr.bf16.mxu0 0
      %1877 = vmatpush1.bf16.msra.mxu0 0
      %1878 = vmatprep.subr.bf16.mxu0 0
      %1879 = vmatpush1.bf16.msra.mxu0 0
      %1880 = vmatprep.subr.bf16.mxu0 0
      %1881 = vmatpush1.bf16.msra.mxu0 0
      %1882 = vmatprep.subr.bf16.mxu0 0
      %1883 = vmatpush1.bf16.msra.mxu0 0
      %1884 = vmatprep.subr.bf16.mxu0 0
      %1885 = vmatpush1.bf16.msra.mxu0 0
      %1886 = vmatprep.subr.bf16.mxu0 0
      %1887 = vmatpush1.bf16.msra.mxu0 0
      %1888 = vmatprep.subr.bf16.mxu0 0
      %1889 = vmatpush1.bf16.msra.mxu0 0
      %1890 = vmatprep.mubr.bf16.mxu0 0
      %1891 = vmatmul.mubr.bf16.gmra.mrb[0].mxu0 %v1790
      %v1892 = vpop.f32.mrb[0].mxu0
      %v1893 = vadd.f32 %v1844, %v1892
      %v1894 = vpop.f32.mrb[0].mxu0
      %v1895 = vpop.f32.mrb[0].mxu0
      %v1896 = vadd.f32 %v1844, %v1895
      %v1897 = vpop.f32.mrb[0].mxu0
      %1898 = vdwg.mxu0
      %v1899 = vpack.c.bf16 %v1762, %v1761
      %v1900 = vpack.c.bf16 %v1830, %v1827
      %v1902 = vsel %vm947, %v1899, 0
      %v1905 = vsel %vm947, %v1900, 0
      %1907 = vmatprep.subr.bf16.mxu0 0
      %1908 = vmatpush1.bf16.xpose.msra.mxu0 %v1905
      %1909 = vmatprep.subr.bf16.mxu0 0
      %1910 = vmatpush1.bf16.xpose.msra.mxu0 0
      %1911 = vmatprep.subr.bf16.mxu0 0
      %1912 = vmatpush1.bf16.xpose.msra.mxu0 0
      %1913 = vmatprep.subr.bf16.mxu0 0
      %1914 = vmatpush1.bf16.xpose.msra.mxu0 0
      %1915 = vmatprep.subr.bf16.mxu0 0
      %1916 = vmatpush1.bf16.xpose.msra.mxu0 0
      %1917 = vmatprep.subr.bf16.mxu0 0
      %1918 = vmatpush1.bf16.xpose.msra.mxu0 0
      %1919 = vmatprep.subr.bf16.mxu0 0
      %1920 = vmatpush1.bf16.xpose.msra.mxu0 0
      %1921 = vmatprep.subr.bf16.mxu0 0
      %1922 = vmatpush1.bf16.xpose.msra.mxu0 0
      %1923 = vmatprep.subr.bf16.mxu0 0
      %1924 = vmatpush1.bf16.xpose.msra.mxu0 0
      %1925 = vmatprep.subr.bf16.mxu0 0
      %1926 = vmatpush1.bf16.xpose.msra.mxu0 0
      %1927 = vmatprep.subr.bf16.mxu0 0
      %1928 = vmatpush1.bf16.xpose.msra.mxu0 0
      %1929 = vmatprep.subr.bf16.mxu0 0
      %1930 = vmatpush1.bf16.xpose.msra.mxu0 0
      %1931 = vmatprep.subr.bf16.mxu0 0
      %1932 = vmatpush1.bf16.xpose.msra.mxu0 0
      %1933 = vmatprep.subr.bf16.mxu0 0
      %1934 = vmatpush1.bf16.xpose.msra.mxu0 0
      %1935 = vmatprep.subr.bf16.mxu0 0
      %1936 = vmatpush1.bf16.xpose.msra.mxu0 0
      %1937 = vmatprep.subr.bf16.mxu0 0
      %1938 = vmatpush1.bf16.xpose.msra.mxu0 0
      %1939 = vmatprep.mubr.bf16.mxu0 0
      %1940 = vmatmul.mubr.bf16.gmra.mrb[0].mxu0 %v1902
      %v1941 = vpop.f32.mrb[0].mxu0
      %v1942 = vadd.f32 %v1691, %v1941
      %v1943 = vpop.f32.mrb[0].mxu0
      %v1944 = vpop.f32.mrb[0].mxu0
      %v1945 = vadd.f32 %v1692, %v1944
      %v1946 = vpop.f32.mrb[0].mxu0
      %1947 = vdwg.mxu0
      %v1948 = vsel %vm995, %v1942, -inf
      %1949 = vmax.xlane.f32.xlu0 %v1948
      %v1950 = vpop.xlane.xlu0 %1949
      %v1951 = vsel %vm995, %v1945, -inf
      %1952 = vmax.xlane.f32.xlu0 %v1951
      %v1953 = vpop.xlane.xlu0 %1952
      %v1954 = vsub.f32 %v1942, %v1950
      %v1955 = vsub.f32 %v1945, %v1953
      %v1956 = vmul.f32 %v1954, 1.442695
      %v1957 = vpow.pop %v1956
      %v1958 = vmul.f32 %v1955, 1.442695
      %v1959 = vpow.pop %v1958
      %v1960 = vsel %vm995, %v1957, 0.0
      %1961 = vadd.xlane.f32.xlu0 %v1960
      %v1962 = vpop.xlane.xlu0 %1961
      %v1963 = vsel %vm995, %v1959, 0.0
      %1964 = vadd.xlane.f32.xlu0 %v1963
      %v1965 = vpop.xlane.xlu0 %1964
      %v1966 = vrcp.pop %v1962
      %v1967 = vrcp.pop %v1965
      %v1968 = vmul.f32 %v1957, %v1966
      %v1969 = vmul.f32 %v1959, %v1967
      %v1970 = vpack.c.bf16 %v1969, %v1968
      %v1971 = vpack.c.bf16 %v1896, %v1893
      %v1973 = vsel %vm995, %v1970, 0
      %1975 = vmatprep.subr.bf16.mxu0 0
      %1976 = vmatpush1.bf16.msra.mxu0 %v1971
      %1977 = vmatprep.subr.bf16.mxu0 0
      %1978 = vmatpush1.bf16.msra.mxu0 0
      %1979 = vmatprep.subr.bf16.mxu0 0
      %1980 = vmatpush1.bf16.msra.mxu0 0
      %1981 = vmatprep.subr.bf16.mxu0 0
      %1982 = vmatpush1.bf16.msra.mxu0 0
      %1983 = vmatprep.subr.bf16.mxu0 0
      %1984 = vmatpush1.bf16.msra.mxu0 0
      %1985 = vmatprep.subr.bf16.mxu0 0
      %1986 = vmatpush1.bf16.msra.mxu0 0
      %1987 = vmatprep.subr.bf16.mxu0 0
      %1988 = vmatpush1.bf16.msra.mxu0 0
      %1989 = vmatprep.subr.bf16.mxu0 0
      %1990 = vmatpush1.bf16.msra.mxu0 0
      %1991 = vmatprep.subr.bf16.mxu0 0
      %1992 = vmatpush1.bf16.msra.mxu0 0
      %1993 = vmatprep.subr.bf16.mxu0 0
      %1994 = vmatpush1.bf16.msra.mxu0 0
      %1995 = vmatprep.subr.bf16.mxu0 0
      %1996 = vmatpush1.bf16.msra.mxu0 0
      %1997 = vmatprep.subr.bf16.mxu0 0
      %1998 = vmatpush1.bf16.msra.mxu0 0
      %1999 = vmatprep.subr.bf16.mxu0 0
      %2000 = vmatpush1.bf16.msra.mxu0 0
      %2001 = vmatprep.subr.bf16.mxu0 0
      %2002 = vmatpush1.bf16.msra.mxu0 0
      %2003 = vmatprep.subr.bf16.mxu0 0
      %2004 = vmatpush1.bf16.msra.mxu0 0
      %2005 = vmatprep.subr.bf16.mxu0 0
      %2006 = vmatpush1.bf16.msra.mxu0 0
      %2007 = vmatprep.mubr.bf16.mxu0 0
      %2008 = vmatmul.mubr.bf16.gmra.mrb[0].mxu0 %v1973
      %v2009 = vpop.f32.mrb[0].mxu0
      %v2010 = vadd.f32 0.0, %v2009
      %v2011 = vpop.f32.mrb[0].mxu0
      %v2012 = vpop.f32.mrb[0].mxu0
      %v2013 = vadd.f32 0.0, %v2012
      %v2014 = vpop.f32.mrb[0].mxu0
      %2015 = vdwg.mxu0
      %v2016 = vld [vmem:[%s704] sm:$0xf]
      %v2017 = vpack.c.bf16 %v2013, %v2010
      %2019 = vrot.lane.b32.xlu0 %v1899, 120
      %v2020 = vpop.permute.xlu0 %2019
      %2022 = vrot.lane.b32.xlu0 %v1900, 120
      %v2023 = vpop.permute.xlu0 %2022
      %v2025 = vsel %vm947, %v2020, 0
      %v2028 = vsel %vm947, %v2023, 0
      %2030 = vmatprep.subr.bf16.mxu0 0
      %2031 = vmatpush1.bf16.xpose.msra.mxu0 %v2028
      %2032 = vmatprep.subr.bf16.mxu0 0
      %2033 = vmatpush1.bf16.xpose.msra.mxu0 0
      %2034 = vmatprep.subr.bf16.mxu0 0
      %2035 = vmatpush1.bf16.xpose.msra.mxu0 0
      %2036 = vmatprep.subr.bf16.mxu0 0
      %2037 = vmatpush1.bf16.xpose.msra.mxu0 0
      %2038 = vmatprep.subr.bf16.mxu0 0
      %2039 = vmatpush1.bf16.xpose.msra.mxu0 0
      %2040 = vmatprep.subr.bf16.mxu0 0
      %2041 = vmatpush1.bf16.xpose.msra.mxu0 0
      %2042 = vmatprep.subr.bf16.mxu0 0
      %2043 = vmatpush1.bf16.xpose.msra.mxu0 0
      %2044 = vmatprep.subr.bf16.mxu0 0
      %2045 = vmatpush1.bf16.xpose.msra.mxu0 0
      %2046 = vmatprep.subr.bf16.mxu0 0
      %2047 = vmatpush1.bf16.xpose.msra.mxu0 0
      %2048 = vmatprep.subr.bf16.mxu0 0
      %2049 = vmatpush1.bf16.xpose.msra.mxu0 0
      %2050 = vmatprep.subr.bf16.mxu0 0
      %2051 = vmatpush1.bf16.xpose.msra.mxu0 0
      %2052 = vmatprep.subr.bf16.mxu0 0
      %2053 = vmatpush1.bf16.xpose.msra.mxu0 0
      %2054 = vmatprep.subr.bf16.mxu0 0
      %2055 = vmatpush1.bf16.xpose.msra.mxu0 0
      %2056 = vmatprep.subr.bf16.mxu0 0
      %2057 = vmatpush1.bf16.xpose.msra.mxu0 0
      %2058 = vmatprep.subr.bf16.mxu0 0
      %2059 = vmatpush1.bf16.xpose.msra.mxu0 0
      %2060 = vmatprep.subr.bf16.mxu0 0
      %2061 = vmatpush1.bf16.xpose.msra.mxu0 0
      %2062 = vmatprep.mubr.bf16.mxu0 0
      %2063 = vmatmul.mubr.bf16.gmra.mrb[0].mxu0 %v2025
      %v2064 = vpop.f32.mrb[0].mxu0
      %v2065 = vadd.f32 %v1691, %v2064
      %v2066 = vpop.f32.mrb[0].mxu0
      %v2067 = vpop.f32.mrb[0].mxu0
      %v2068 = vadd.f32 %v1692, %v2067
      %v2069 = vpop.f32.mrb[0].mxu0
      %2070 = vdwg.mxu0
      %v2071 = vsel %vm995, %v2065, -inf
      %2072 = vmax.xlane.f32.xlu0 %v2071
      %v2073 = vpop.xlane.xlu0 %2072
      %v2074 = vsel %vm995, %v2068, -inf
      %2075 = vmax.xlane.f32.xlu0 %v2074
      %v2076 = vpop.xlane.xlu0 %2075
      %v2077 = vsub.f32 %v2065, %v2073
      %v2078 = vsub.f32 %v2068, %v2076
      %v2079 = vmul.f32 %v2077, 1.442695
      %v2080 = vpow.pop %v2079
      %v2081 = vmul.f32 %v2078, 1.442695
      %v2082 = vpow.pop %v2081
      %v2083 = vsel %vm995, %v2080, 0.0
      %2084 = vadd.xlane.f32.xlu0 %v2083
      %v2085 = vpop.xlane.xlu0 %2084
      %v2086 = vsel %vm995, %v2082, 0.0
      %2087 = vadd.xlane.f32.xlu0 %v2086
      %v2088 = vpop.xlane.xlu0 %2087
      %v2089 = vrcp.pop %v2085
      %v2090 = vrcp.pop %v2088
      %v2091 = vmul.f32 %v2080, %v2089
      %v2092 = vmul.f32 %v2082, %v2090
      %v2093 = vpack.c.bf16 %v2092, %v2091
      %2095 = vrot.lane.b32.xlu0 %v1971, 120
      %v2096 = vpop.permute.xlu0 %2095
      %v2099 = vsel %vm995, %v2093, 0
      %2101 = vmatprep.subr.bf16.mxu0 0
      %2102 = vmatpush1.bf16.msra.mxu0 %v2096
      %2103 = vmatprep.subr.bf16.mxu0 0
      %2104 = vmatpush1.bf16.msra.mxu0 0
      %2105 = vmatprep.subr.bf16.mxu0 0
      %2106 = vmatpush1.bf16.msra.mxu0 0
      %2107 = vmatprep.subr.bf16.mxu0 0
      %2108 = vmatpush1.bf16.msra.mxu0 0
      %2109 = vmatprep.subr.bf16.mxu0 0
      %2110 = vmatpush1.bf16.msra.mxu0 0
      %2111 = vmatprep.subr.bf16.mxu0 0
      %2112 = vmatpush1.bf16.msra.mxu0 0
      %2113 = vmatprep.subr.bf16.mxu0 0
      %2114 = vmatpush1.bf16.msra.mxu0 0
      %2115 = vmatprep.subr.bf16.mxu0 0
      %2116 = vmatpush1.bf16.msra.mxu0 0
      %2117 = vmatprep.subr.bf16.mxu0 0
      %2118 = vmatpush1.bf16.msra.mxu0 0
      %2119 = vmatprep.subr.bf16.mxu0 0
      %2120 = vmatpush1.bf16.msra.mxu0 0
      %2121 = vmatprep.subr.bf16.mxu0 0
      %2122 = vmatpush1.bf16.msra.mxu0 0
      %2123 = vmatprep.subr.bf16.mxu0 0
      %2124 = vmatpush1.bf16.msra.mxu0 0
      %2125 = vmatprep.subr.bf16.mxu0 0
      %2126 = vmatpush1.bf16.msra.mxu0 0
      %2127 = vmatprep.subr.bf16.mxu0 0
      %2128 = vmatpush1.bf16.msra.mxu0 0
      %2129 = vmatprep.subr.bf16.mxu0 0
      %2130 = vmatpush1.bf16.msra.mxu0 0
      %2131 = vmatprep.subr.bf16.mxu0 0
      %2132 = vmatpush1.bf16.msra.mxu0 0
      %2133 = vmatprep.mubr.bf16.mxu0 0
      %2134 = vmatmul.mubr.bf16.gmra.mrb[0].mxu0 %v2099
      %v2135 = vpop.f32.mrb[0].mxu0
      %v2136 = vadd.f32 0.0, %v2135
      %v2137 = vpop.f32.mrb[0].mxu0
      %v2138 = vpop.f32.mrb[0].mxu0
      %v2139 = vadd.f32 0.0, %v2138
      %v2140 = vpop.f32.mrb[0].mxu0
      %2141 = vdwg.mxu0
      %s2142 = scalar_lea.vmem %s704, 4
      %v2143 = vld [vmem:[%s2142] sm:$0xf]
      %v2144 = vpack.c.bf16 %v2139, %v2136
      %v2146 = vsel %vm947, %v2144, 0
      %v2149 = vsel %vm1196, %v2143, 0
      %2151 = vmatprep.subr.bf16.mxu0 0
      %2152 = vmatpush1.bf16.msra.mxu0 %v2149
      %2153 = vmatprep.subr.bf16.mxu0 0
      %2154 = vmatpush1.bf16.msra.mxu0 0
      %2155 = vmatprep.subr.bf16.mxu0 0
      %2156 = vmatpush1.bf16.msra.mxu0 0
      %2157 = vmatprep.subr.bf16.mxu0 0
      %2158 = vmatpush1.bf16.msra.mxu0 0
      %2159 = vmatprep.subr.bf16.mxu0 0
      %2160 = vmatpush1.bf16.msra.mxu0 0
      %2161 = vmatprep.subr.bf16.mxu0 0
      %2162 = vmatpush1.bf16.msra.mxu0 0
      %2163 = vmatprep.subr.bf16.mxu0 0
      %2164 = vmatpush1.bf16.msra.mxu0 0
      %2165 = vmatprep.subr.bf16.mxu0 0
      %2166 = vmatpush1.bf16.msra.mxu0 0
      %2167 = vmatprep.subr.bf16.mxu0 0
      %2168 = vmatpush1.bf16.msra.mxu0 0
      %2169 = vmatprep.subr.bf16.mxu0 0
      %2170 = vmatpush1.bf16.msra.mxu0 0
      %2171 = vmatprep.subr.bf16.mxu0 0
      %2172 = vmatpush1.bf16.msra.mxu0 0
      %2173 = vmatprep.subr.bf16.mxu0 0
      %2174 = vmatpush1.bf16.msra.mxu0 0
      %2175 = vmatprep.subr.bf16.mxu0 0
      %2176 = vmatpush1.bf16.msra.mxu0 0
      %2177 = vmatprep.subr.bf16.mxu0 0
      %2178 = vmatpush1.bf16.msra.mxu0 0
      %2179 = vmatprep.subr.bf16.mxu0 0
      %2180 = vmatpush1.bf16.msra.mxu0 0
      %2181 = vmatprep.subr.bf16.mxu0 0
      %2182 = vmatpush1.bf16.msra.mxu0 0
      %2183 = vmatprep.mubr.bf16.mxu0 0
      %2184 = vmatmul.mubr.bf16.gmra.mrb[0].mxu0 %v2146
      %v2185 = vpop.f32.mrb[0].mxu0
      %v2186 = vadd.f32 0.0, %v2185
      %v2187 = vpop.f32.mrb[0].mxu0
      %v2188 = vpop.f32.mrb[0].mxu0
      %v2189 = vadd.f32 0.0, %v2188
      %v2190 = vpop.f32.mrb[0].mxu0
      %2191 = vdwg.mxu0
      %v2193 = vsel %vm947, %v2017, 0
      %v2196 = vsel %vm1196, %v2016, 0
      %2198 = vmatprep.subr.bf16.mxu0 0
      %2199 = vmatpush1.bf16.msra.mxu0 %v2196
      %2200 = vmatprep.subr.bf16.mxu0 0
      %2201 = vmatpush1.bf16.msra.mxu0 0
      %2202 = vmatprep.subr.bf16.mxu0 0
      %2203 = vmatpush1.bf16.msra.mxu0 0
      %2204 = vmatprep.subr.bf16.mxu0 0
      %2205 = vmatpush1.bf16.msra.mxu0 0
      %2206 = vmatprep.subr.bf16.mxu0 0
      %2207 = vmatpush1.bf16.msra.mxu0 0
      %2208 = vmatprep.subr.bf16.mxu0 0
      %2209 = vmatpush1.bf16.msra.mxu0 0
      %2210 = vmatprep.subr.bf16.mxu0 0
      %2211 = vmatpush1.bf16.msra.mxu0 0
      %2212 = vmatprep.subr.bf16.mxu0 0
      %2213 = vmatpush1.bf16.msra.mxu0 0
      %2214 = vmatprep.subr.bf16.mxu0 0
      %2215 = vmatpush1.bf16.msra.mxu0 0
      %2216 = vmatprep.subr.bf16.mxu0 0
      %2217 = vmatpush1.bf16.msra.mxu0 0
      %2218 = vmatprep.subr.bf16.mxu0 0
      %2219 = vmatpush1.bf16.msra.mxu0 0
      %2220 = vmatprep.subr.bf16.mxu0 0
      %2221 = vmatpush1.bf16.msra.mxu0 0
      %2222 = vmatprep.subr.bf16.mxu0 0
      %2223 = vmatpush1.bf16.msra.mxu0 0
      %2224 = vmatprep.subr.bf16.mxu0 0
      %2225 = vmatpush1.bf16.msra.mxu0 0
      %2226 = vmatprep.subr.bf16.mxu0 0
      %2227 = vmatpush1.bf16.msra.mxu0 0
      %2228 = vmatprep.subr.bf16.mxu0 0
      %2229 = vmatpush1.bf16.msra.mxu0 0
      %2230 = vmatprep.mubr.bf16.mxu0 0
      %2231 = vmatmul.mubr.bf16.gmra.mrb[0].mxu0 %v2193
      %v2232 = vpop.f32.mrb[0].mxu0
      %v2233 = vadd.f32 %v2186, %v2232
      %v2234 = vpop.f32.mrb[0].mxu0
      %v2235 = vpop.f32.mrb[0].mxu0
      %v2236 = vadd.f32 %v2189, %v2235
      %v2237 = vpop.f32.mrb[0].mxu0
      %2238 = vdwg.mxu0
      %2239 = vrot.lane.b32.xlu0 %v1899, 112
      %v2240 = vpop.permute.xlu0 %2239
      %2241 = vrot.lane.b32.xlu0 %v1900, 112
      %v2242 = vpop.permute.xlu0 %2241
      %v2244 = vsel %vm947, %v2240, 0
      %v2247 = vsel %vm947, %v2242, 0
      %2249 = vmatprep.subr.bf16.mxu0 0
      %2250 = vmatpush1.bf16.xpose.msra.mxu0 %v2247
      %2251 = vmatprep.subr.bf16.mxu0 0
      %2252 = vmatpush1.bf16.xpose.msra.mxu0 0
      %2253 = vmatprep.subr.bf16.mxu0 0
      %2254 = vmatpush1.bf16.xpose.msra.mxu0 0
      %2255 = vmatprep.subr.bf16.mxu0 0
      %2256 = vmatpush1.bf16.xpose.msra.mxu0 0
      %2257 = vmatprep.subr.bf16.mxu0 0
      %2258 = vmatpush1.bf16.xpose.msra.mxu0 0
      %2259 = vmatprep.subr.bf16.mxu0 0
      %2260 = vmatpush1.bf16.xpose.msra.mxu0 0
      %2261 = vmatprep.subr.bf16.mxu0 0
      %2262 = vmatpush1.bf16.xpose.msra.mxu0 0
      %2263 = vmatprep.subr.bf16.mxu0 0
      %2264 = vmatpush1.bf16.xpose.msra.mxu0 0
      %2265 = vmatprep.subr.bf16.mxu0 0
      %2266 = vmatpush1.bf16.xpose.msra.mxu0 0
      %2267 = vmatprep.subr.bf16.mxu0 0
      %2268 = vmatpush1.bf16.xpose.msra.mxu0 0
      %2269 = vmatprep.subr.bf16.mxu0 0
      %2270 = vmatpush1.bf16.xpose.msra.mxu0 0
      %2271 = vmatprep.subr.bf16.mxu0 0
      %2272 = vmatpush1.bf16.xpose.msra.mxu0 0
      %2273 = vmatprep.subr.bf16.mxu0 0
      %2274 = vmatpush1.bf16.xpose.msra.mxu0 0
      %2275 = vmatprep.subr.bf16.mxu0 0
      %2276 = vmatpush1.bf16.xpose.msra.mxu0 0
      %2277 = vmatprep.subr.bf16.mxu0 0
      %2278 = vmatpush1.bf16.xpose.msra.mxu0 0
      %2279 = vmatprep.subr.bf16.mxu0 0
      %2280 = vmatpush1.bf16.xpose.msra.mxu0 0
      %2281 = vmatprep.mubr.bf16.mxu0 0
      %2282 = vmatmul.mubr.bf16.gmra.mrb[0].mxu0 %v2244
      %v2283 = vpop.f32.mrb[0].mxu0
      %v2284 = vadd.f32 %v1691, %v2283
      %v2285 = vpop.f32.mrb[0].mxu0
      %v2286 = vpop.f32.mrb[0].mxu0
      %v2287 = vadd.f32 %v1692, %v2286
      %v2288 = vpop.f32.mrb[0].mxu0
      %2289 = vdwg.mxu0
      %v2290 = vsel %vm995, %v2284, -inf
      %2291 = vmax.xlane.f32.xlu0 %v2290
      %v2292 = vpop.xlane.xlu0 %2291
      %v2293 = vsel %vm995, %v2287, -inf
      %2294 = vmax.xlane.f32.xlu0 %v2293
      %v2295 = vpop.xlane.xlu0 %2294
      %v2296 = vsub.f32 %v2284, %v2292
      %v2297 = vsub.f32 %v2287, %v2295
      %v2298 = vmul.f32 %v2296, 1.442695
      %v2299 = vpow.pop %v2298
      %v2300 = vmul.f32 %v2297, 1.442695
      %v2301 = vpow.pop %v2300
      %v2302 = vsel %vm995, %v2299, 0.0
      %2303 = vadd.xlane.f32.xlu0 %v2302
      %v2304 = vpop.xlane.xlu0 %2303
      %v2305 = vsel %vm995, %v2301, 0.0
      %2306 = vadd.xlane.f32.xlu0 %v2305
      %v2307 = vpop.xlane.xlu0 %2306
      %v2308 = vrcp.pop %v2304
      %v2309 = vrcp.pop %v2307
      %v2310 = vmul.f32 %v2299, %v2308
      %v2311 = vmul.f32 %v2301, %v2309
      %v2312 = vpack.c.bf16 %v2311, %v2310
      %2313 = vrot.lane.b32.xlu0 %v1971, 112
      %v2314 = vpop.permute.xlu0 %2313
      %v2317 = vsel %vm995, %v2312, 0
      %2319 = vmatprep.subr.bf16.mxu0 0
      %2320 = vmatpush1.bf16.msra.mxu0 %v2314
      %2321 = vmatprep.subr.bf16.mxu0 0
      %2322 = vmatpush1.bf16.msra.mxu0 0
      %2323 = vmatprep.subr.bf16.mxu0 0
      %2324 = vmatpush1.bf16.msra.mxu0 0
      %2325 = vmatprep.subr.bf16.mxu0 0
      %2326 = vmatpush1.bf16.msra.mxu0 0
      %2327 = vmatprep.subr.bf16.mxu0 0
      %2328 = vmatpush1.bf16.msra.mxu0 0
      %2329 = vmatprep.subr.bf16.mxu0 0
      %2330 = vmatpush1.bf16.msra.mxu0 0
      %2331 = vmatprep.subr.bf16.mxu0 0
      %2332 = vmatpush1.bf16.msra.mxu0 0
      %2333 = vmatprep.subr.bf16.mxu0 0
      %2334 = vmatpush1.bf16.msra.mxu0 0
      %2335 = vmatprep.subr.bf16.mxu0 0
      %2336 = vmatpush1.bf16.msra.mxu0 0
      %2337 = vmatprep.subr.bf16.mxu0 0
      %2338 = vmatpush1.bf16.msra.mxu0 0
      %2339 = vmatprep.subr.bf16.mxu0 0
      %2340 = vmatpush1.bf16.msra.mxu0 0
      %2341 = vmatprep.subr.bf16.mxu0 0
      %2342 = vmatpush1.bf16.msra.mxu0 0
      %2343 = vmatprep.subr.bf16.mxu0 0
      %2344 = vmatpush1.bf16.msra.mxu0 0
      %2345 = vmatprep.subr.bf16.mxu0 0
      %2346 = vmatpush1.bf16.msra.mxu0 0
      %2347 = vmatprep.subr.bf16.mxu0 0
      %2348 = vmatpush1.bf16.msra.mxu0 0
      %2349 = vmatprep.subr.bf16.mxu0 0
      %2350 = vmatpush1.bf16.msra.mxu0 0
      %2351 = vmatprep.mubr.bf16.mxu0 0
      %2352 = vmatmul.mubr.bf16.gmra.mrb[0].mxu0 %v2317
      %v2353 = vpop.f32.mrb[0].mxu0
      %v2354 = vadd.f32 0.0, %v2353
      %v2355 = vpop.f32.mrb[0].mxu0
      %v2356 = vpop.f32.mrb[0].mxu0
      %v2357 = vadd.f32 0.0, %v2356
      %v2358 = vpop.f32.mrb[0].mxu0
      %2359 = vdwg.mxu0
      %s2360 = scalar_lea.vmem %s704, 8
      %v2361 = vld [vmem:[%s2360] sm:$0xf]
      %v2362 = vpack.c.bf16 %v2357, %v2354
      %v2364 = vsel %vm947, %v2362, 0
      %v2367 = vsel %vm1196, %v2361, 0
      %2369 = vmatprep.subr.bf16.mxu0 0
      %2370 = vmatpush1.bf16.msra.mxu0 %v2367
      %2371 = vmatprep.subr.bf16.mxu0 0
      %2372 = vmatpush1.bf16.msra.mxu0 0
      %2373 = vmatprep.subr.bf16.mxu0 0
      %2374 = vmatpush1.bf16.msra.mxu0 0
      %2375 = vmatprep.subr.bf16.mxu0 0
      %2376 = vmatpush1.bf16.msra.mxu0 0
      %2377 = vmatprep.subr.bf16.mxu0 0
      %2378 = vmatpush1.bf16.msra.mxu0 0
      %2379 = vmatprep.subr.bf16.mxu0 0
      %2380 = vmatpush1.bf16.msra.mxu0 0
      %2381 = vmatprep.subr.bf16.mxu0 0
      %2382 = vmatpush1.bf16.msra.mxu0 0
      %2383 = vmatprep.subr.bf16.mxu0 0
      %2384 = vmatpush1.bf16.msra.mxu0 0
      %2385 = vmatprep.subr.bf16.mxu0 0
      %2386 = vmatpush1.bf16.msra.mxu0 0
      %2387 = vmatprep.subr.bf16.mxu0 0
      %2388 = vmatpush1.bf16.msra.mxu0 0
      %2389 = vmatprep.subr.bf16.mxu0 0
      %2390 = vmatpush1.bf16.msra.mxu0 0
      %2391 = vmatprep.subr.bf16.mxu0 0
      %2392 = vmatpush1.bf16.msra.mxu0 0
      %2393 = vmatprep.subr.bf16.mxu0 0
      %2394 = vmatpush1.bf16.msra.mxu0 0
      %2395 = vmatprep.subr.bf16.mxu0 0
      %2396 = vmatpush1.bf16.msra.mxu0 0
      %2397 = vmatprep.subr.bf16.mxu0 0
      %2398 = vmatpush1.bf16.msra.mxu0 0
      %2399 = vmatprep.subr.bf16.mxu0 0
      %2400 = vmatpush1.bf16.msra.mxu0 0
      %2401 = vmatprep.mubr.bf16.mxu0 0
      %2402 = vmatmul.mubr.bf16.gmra.mrb[0].mxu0 %v2364
      %v2403 = vpop.f32.mrb[0].mxu0
      %v2404 = vadd.f32 0.0, %v2403
      %v2405 = vpop.f32.mrb[0].mxu0
      %v2406 = vpop.f32.mrb[0].mxu0
      %v2407 = vadd.f32 0.0, %v2406
      %v2408 = vpop.f32.mrb[0].mxu0
      %2409 = vdwg.mxu0
      %v2410 = vadd.f32 %v2233, %v2404
      %v2411 = vadd.f32 %v2236, %v2407
      %2412 = vrot.lane.b32.xlu0 %v1899, 104
      %v2413 = vpop.permute.xlu0 %2412
      %2414 = vrot.lane.b32.xlu0 %v1900, 104
      %v2415 = vpop.permute.xlu0 %2414
      %v2417 = vsel %vm947, %v2413, 0
      %v2420 = vsel %vm947, %v2415, 0
      %2422 = vmatprep.subr.bf16.mxu0 0
      %2423 = vmatpush1.bf16.xpose.msra.mxu0 %v2420
      %2424 = vmatprep.subr.bf16.mxu0 0
      %2425 = vmatpush1.bf16.xpose.msra.mxu0 0
      %2426 = vmatprep.subr.bf16.mxu0 0
      %2427 = vmatpush1.bf16.xpose.msra.mxu0 0
      %2428 = vmatprep.subr.bf16.mxu0 0
      %2429 = vmatpush1.bf16.xpose.msra.mxu0 0
      %2430 = vmatprep.subr.bf16.mxu0 0
      %2431 = vmatpush1.bf16.xpose.msra.mxu0 0
      %2432 = vmatprep.subr.bf16.mxu0 0
      %2433 = vmatpush1.bf16.xpose.msra.mxu0 0
      %2434 = vmatprep.subr.bf16.mxu0 0
      %2435 = vmatpush1.bf16.xpose.msra.mxu0 0
      %2436 = vmatprep.subr.bf16.mxu0 0
      %2437 = vmatpush1.bf16.xpose.msra.mxu0 0
      %2438 = vmatprep.subr.bf16.mxu0 0
      %2439 = vmatpush1.bf16.xpose.msra.mxu0 0
      %2440 = vmatprep.subr.bf16.mxu0 0
      %2441 = vmatpush1.bf16.xpose.msra.mxu0 0
      %2442 = vmatprep.subr.bf16.mxu0 0
      %2443 = vmatpush1.bf16.xpose.msra.mxu0 0
      %2444 = vmatprep.subr.bf16.mxu0 0
      %2445 = vmatpush1.bf16.xpose.msra.mxu0 0
      %2446 = vmatprep.subr.bf16.mxu0 0
      %2447 = vmatpush1.bf16.xpose.msra.mxu0 0
      %2448 = vmatprep.subr.bf16.mxu0 0
      %2449 = vmatpush1.bf16.xpose.msra.mxu0 0
      %2450 = vmatprep.subr.bf16.mxu0 0
      %2451 = vmatpush1.bf16.xpose.msra.mxu0 0
      %2452 = vmatprep.subr.bf16.mxu0 0
      %2453 = vmatpush1.bf16.xpose.msra.mxu0 0
      %2454 = vmatprep.mubr.bf16.mxu0 0
      %2455 = vmatmul.mubr.bf16.gmra.mrb[0].mxu0 %v2417
      %v2456 = vpop.f32.mrb[0].mxu0
      %v2457 = vadd.f32 %v1691, %v2456
      %v2458 = vpop.f32.mrb[0].mxu0
      %v2459 = vpop.f32.mrb[0].mxu0
      %v2460 = vadd.f32 %v1692, %v2459
      %v2461 = vpop.f32.mrb[0].mxu0
      %2462 = vdwg.mxu0
      %v2463 = vsel %vm995, %v2457, -inf
      %2464 = vmax.xlane.f32.xlu0 %v2463
      %v2465 = vpop.xlane.xlu0 %2464
      %v2466 = vsel %vm995, %v2460, -inf
      %2467 = vmax.xlane.f32.xlu0 %v2466
      %v2468 = vpop.xlane.xlu0 %2467
      %v2469 = vsub.f32 %v2457, %v2465
      %v2470 = vsub.f32 %v2460, %v2468
      %v2471 = vmul.f32 %v2469, 1.442695
      %v2472 = vpow.pop %v2471
      %v2473 = vmul.f32 %v2470, 1.442695
      %v2474 = vpow.pop %v2473
      %v2475 = vsel %vm995, %v2472, 0.0
      %2476 = vadd.xlane.f32.xlu0 %v2475
      %v2477 = vpop.xlane.xlu0 %2476
      %v2478 = vsel %vm995, %v2474, 0.0
      %2479 = vadd.xlane.f32.xlu0 %v2478
      %v2480 = vpop.xlane.xlu0 %2479
      %v2481 = vrcp.pop %v2477
      %v2482 = vrcp.pop %v2480
      %v2483 = vmul.f32 %v2472, %v2481
      %v2484 = vmul.f32 %v2474, %v2482
      %v2485 = vpack.c.bf16 %v2484, %v2483
      %2486 = vrot.lane.b32.xlu0 %v1971, 104
      %v2487 = vpop.permute.xlu0 %2486
      %v2490 = vsel %vm995, %v2485, 0
      %2492 = vmatprep.subr.bf16.mxu0 0
      %2493 = vmatpush1.bf16.msra.mxu0 %v2487
      %2494 = vmatprep.subr.bf16.mxu0 0
      %2495 = vmatpush1.bf16.msra.mxu0 0
      %2496 = vmatprep.subr.bf16.mxu0 0
      %2497 = vmatpush1.bf16.msra.mxu0 0
      %2498 = vmatprep.subr.bf16.mxu0 0
      %2499 = vmatpush1.bf16.msra.mxu0 0
      %2500 = vmatprep.subr.bf16.mxu0 0
      %2501 = vmatpush1.bf16.msra.mxu0 0
      %2502 = vmatprep.subr.bf16.mxu0 0
      %2503 = vmatpush1.bf16.msra.mxu0 0
      %2504 = vmatprep.subr.bf16.mxu0 0
      %2505 = vmatpush1.bf16.msra.mxu0 0
      %2506 = vmatprep.subr.bf16.mxu0 0
      %2507 = vmatpush1.bf16.msra.mxu0 0
      %2508 = vmatprep.subr.bf16.mxu0 0
      %2509 = vmatpush1.bf16.msra.mxu0 0
      %2510 = vmatprep.subr.bf16.mxu0 0
      %2511 = vmatpush1.bf16.msra.mxu0 0
      %2512 = vmatprep.subr.bf16.mxu0 0
      %2513 = vmatpush1.bf16.msra.mxu0 0
      %2514 = vmatprep.subr.bf16.mxu0 0
      %2515 = vmatpush1.bf16.msra.mxu0 0
      %2516 = vmatprep.subr.bf16.mxu0 0
      %2517 = vmatpush1.bf16.msra.mxu0 0
      %2518 = vmatprep.subr.bf16.mxu0 0
      %2519 = vmatpush1.bf16.msra.mxu0 0
      %2520 = vmatprep.subr.bf16.mxu0 0
      %2521 = vmatpush1.bf16.msra.mxu0 0
      %2522 = vmatprep.subr.bf16.mxu0 0
      %2523 = vmatpush1.bf16.msra.mxu0 0
      %2524 = vmatprep.mubr.bf16.mxu0 0
      %2525 = vmatmul.mubr.bf16.gmra.mrb[0].mxu0 %v2490
      %v2526 = vpop.f32.mrb[0].mxu0
      %v2527 = vadd.f32 0.0, %v2526
      %v2528 = vpop.f32.mrb[0].mxu0
      %v2529 = vpop.f32.mrb[0].mxu0
      %v2530 = vadd.f32 0.0, %v2529
      %v2531 = vpop.f32.mrb[0].mxu0
      %2532 = vdwg.mxu0
      %s2533 = scalar_lea.vmem %s704, 12
      %v2534 = vld [vmem:[%s2533] sm:$0xf]
      %v2535 = vpack.c.bf16 %v2530, %v2527
      %v2537 = vsel %vm947, %v2535, 0
      %v2540 = vsel %vm1196, %v2534, 0
      %2542 = vmatprep.subr.bf16.mxu0 0
      %2543 = vmatpush1.bf16.msra.mxu0 %v2540
      %2544 = vmatprep.subr.bf16.mxu0 0
      %2545 = vmatpush1.bf16.msra.mxu0 0
      %2546 = vmatprep.subr.bf16.mxu0 0
      %2547 = vmatpush1.bf16.msra.mxu0 0
      %2548 = vmatprep.subr.bf16.mxu0 0
      %2549 = vmatpush1.bf16.msra.mxu0 0
      %2550 = vmatprep.subr.bf16.mxu0 0
      %2551 = vmatpush1.bf16.msra.mxu0 0
      %2552 = vmatprep.subr.bf16.mxu0 0
      %2553 = vmatpush1.bf16.msra.mxu0 0
      %2554 = vmatprep.subr.bf16.mxu0 0
      %2555 = vmatpush1.bf16.msra.mxu0 0
      %2556 = vmatprep.subr.bf16.mxu0 0
      %2557 = vmatpush1.bf16.msra.mxu0 0
      %2558 = vmatprep.subr.bf16.mxu0 0
      %2559 = vmatpush1.bf16.msra.mxu0 0
      %2560 = vmatprep.subr.bf16.mxu0 0
      %2561 = vmatpush1.bf16.msra.mxu0 0
      %2562 = vmatprep.subr.bf16.mxu0 0
      %2563 = vmatpush1.bf16.msra.mxu0 0
      %2564 = vmatprep.subr.bf16.mxu0 0
      %2565 = vmatpush1.bf16.msra.mxu0 0
      %2566 = vmatprep.subr.bf16.mxu0 0
      %2567 = vmatpush1.bf16.msra.mxu0 0
      %2568 = vmatprep.subr.bf16.mxu0 0
      %2569 = vmatpush1.bf16.msra.mxu0 0
      %2570 = vmatprep.subr.bf16.mxu0 0
      %2571 = vmatpush1.bf16.msra.mxu0 0
      %2572 = vmatprep.subr.bf16.mxu0 0
      %2573 = vmatpush1.bf16.msra.mxu0 0
      %2574 = vmatprep.mubr.bf16.mxu0 0
      %2575 = vmatmul.mubr.bf16.gmra.mrb[0].mxu0 %v2537
      %v2576 = vpop.f32.mrb[0].mxu0
      %v2577 = vadd.f32 0.0, %v2576
      %v2578 = vpop.f32.mrb[0].mxu0
      %v2579 = vpop.f32.mrb[0].mxu0
      %v2580 = vadd.f32 0.0, %v2579
      %v2581 = vpop.f32.mrb[0].mxu0
      %2582 = vdwg.mxu0
      %v2583 = vadd.f32 %v2410, %v2577
      %v2584 = vadd.f32 %v2411, %v2580
      %s2585 = scalar_lea.vmem %s708, 3
      %v2586 = vld [vmem:[%s2585] sm:$0x1]
      %v2588 = vlaneseq
      %v2589 = vshrl.u32 %v2588, 7
      %v2590 = vsub.s32 0, %v2589
      %v2591 = vrot.slane %v2586, %v2590
      %v2593 = vadd.f32 %v2583, %v2591
      %v2594 = vadd.f32 %v2584, %v2591
      %v2595 = vadd.f32 %v1689, %v2593
      %v2596 = vadd.f32 %v1690, %v2594
      %s2597 = scalar_lea.vmem %s721, 1
      %v2598 = vld [vmem:[%s2597] sm:$0x1]
      %s2599 = scalar_lea.vmem %s725, 1
      %v2600 = vld [vmem:[%s2599] sm:$0x1]
      %v2601 = vsel %vm766, %v2595, 0.0
      %2602 = vadd.xlane.f32.xlu0 %v2601
      %v2603 = vpop.xlane.xlu0 %2602
      %v2604 = vsel %vm766, %v2596, 0.0
      %2605 = vadd.xlane.f32.xlu0 %v2604
      %v2606 = vpop.xlane.xlu0 %2605
      %v2607 = vmul.f32 %v2603, %v1654
      %v2608 = vmul.f32 %v2606, %v1654
      %v2609 = vsub.f32 %v2595, %v2607
      %v2610 = vsub.f32 %v2596, %v2608
      %v2611 = vmul.f32 %v2609, %v2609
      %v2612 = vmul.f32 %v2610, %v2610
      %v2613 = vsel %vm766, %v2611, 0.0
      %2614 = vadd.xlane.f32.xlu0 %v2613
      %v2615 = vpop.xlane.xlu0 %2614
      %v2616 = vsel %vm766, %v2612, 0.0
      %2617 = vadd.xlane.f32.xlu0 %v2616
      %v2618 = vpop.xlane.xlu0 %2617
      %v2619 = vmul.f32 %v2615, %v1654
      %v2620 = vmul.f32 %v2618, %v1654
      %v2621 = vadd.f32 %v2619, 1e-05
      %v2622 = vadd.f32 %v2620, 1e-05
      %v2623 = vrsqrt.pop %v2621
      %v2624 = vrsqrt.pop %v2622
      %v2625 = vmul.f32 %v2609, %v2623
      %v2626 = vmul.f32 %v2610, %v2624
      %v2628 = vlaneseq
      %v2629 = vshrl.u32 %v2628, 7
      %v2630 = vsub.s32 0, %v2629
      %v2631 = vrot.slane %v2598, %v2630
      %v2633 = vmul.f32 %v2625, %v2631
      %v2634 = vmul.f32 %v2626, %v2631
      %v2636 = vlaneseq
      %v2637 = vshrl.u32 %v2636, 7
      %v2638 = vsub.s32 0, %v2637
      %v2639 = vrot.slane %v2600, %v2638
      %v2641 = vadd.f32 %v2633, %v2639
      %v2642 = vadd.f32 %v2634, %v2639
      %v2643 = vld [vmem:[%s713] sm:$0xf]
      %v2644 = vld [vmem:[%s713 + $0x4] sm:$0xf]
      %v2645 = vld [vmem:[%s713 + $0x8] sm:$0xf]
      %v2646 = vld [vmem:[%s713 + $0xc] sm:$0xf]
      %v2647 = vpack.c.bf16 %v2642, %v2641
      %v2648 = vld [vmem:[%s717] sm:$0x1]
      %v2650 = vlaneseq
      %v2651 = vshrl.u32 %v2650, 7
      %v2652 = vsub.s32 0, %v2651
      %v2653 = vrot.slane %v2648, %v2652
      %v2659 = vunpack.c.l.b16 %v2643
      %v2660 = vunpack.c.l.b16 %v2644
      %v2661 = vunpack.c.l.b16 %v2645
      %v2662 = vunpack.c.l.b16 %v2646
      %v2663 = vpack.c.b16 %v2660, %v2659
      %v2664 = vpack.c.b16 %v2662, %v2661
      %v2668 = vsel %vm766, %v2647, 0
      %2670 = vmatprep.subr.bf16.mxu0 0
      %2671 = vmatpush1.bf16.msra.mxu0 %v2663
      %2672 = vmatprep.subr.bf16.mxu0 0
      %2673 = vmatpush1.bf16.msra.mxu0 %v2664
      %2674 = vmatprep.subr.bf16.mxu0 0
      %2675 = vmatpush1.bf16.msra.mxu0 0
      %2676 = vmatprep.subr.bf16.mxu0 0
      %2677 = vmatpush1.bf16.msra.mxu0 0
      %2678 = vmatprep.subr.bf16.mxu0 0
      %2679 = vmatpush1.bf16.msra.mxu0 0
      %2680 = vmatprep.subr.bf16.mxu0 0
      %2681 = vmatpush1.bf16.msra.mxu0 0
      %2682 = vmatprep.subr.bf16.mxu0 0
      %2683 = vmatpush1.bf16.msra.mxu0 0
      %2684 = vmatprep.subr.bf16.mxu0 0
      %2685 = vmatpush1.bf16.msra.mxu0 0
      %2686 = vmatprep.subr.bf16.mxu0 0
      %2687 = vmatpush1.bf16.msra.mxu0 0
      %2688 = vmatprep.subr.bf16.mxu0 0
      %2689 = vmatpush1.bf16.msra.mxu0 0
      %2690 = vmatprep.subr.bf16.mxu0 0
      %2691 = vmatpush1.bf16.msra.mxu0 0
      %2692 = vmatprep.subr.bf16.mxu0 0
      %2693 = vmatpush1.bf16.msra.mxu0 0
      %2694 = vmatprep.subr.bf16.mxu0 0
      %2695 = vmatpush1.bf16.msra.mxu0 0
      %2696 = vmatprep.subr.bf16.mxu0 0
      %2697 = vmatpush1.bf16.msra.mxu0 0
      %2698 = vmatprep.subr.bf16.mxu0 0
      %2699 = vmatpush1.bf16.msra.mxu0 0
      %2700 = vmatprep.subr.bf16.mxu0 0
      %2701 = vmatpush1.bf16.msra.mxu0 0
      %2702 = vmatprep.mubr.bf16.mxu0 0
      %2703 = vmatmul.mubr.bf16.gmra.mrb[0].mxu0 %v2668
      %v2704 = vpop.f32.mrb[0].mxu0
      %v2705 = vadd.f32 %v2653, %v2704
      %v2706 = vpop.f32.mrb[0].mxu0
      %v2707 = vpop.f32.mrb[0].mxu0
      %v2708 = vadd.f32 %v2653, %v2707
      %v2709 = vpop.f32.mrb[0].mxu0
      %2710 = vdwg.mxu0
      %v2711 = vmax.f32 %v2705, 0.0
      %v2712 = vmax.f32 %v2708, 0.0
      %s2713 = scalar_lea.vmem %s713, 16
      %v2714 = vld [vmem:[%s2713] sm:$0xf]
      %v2715 = vld [vmem:[%s2713 + $0x4] sm:$0xf]
      %v2716 = vld [vmem:[%s2713 + $0x8] sm:$0xf]
      %v2717 = vld [vmem:[%s2713 + $0xc] sm:$0xf]
      %v2718 = vpack.c.bf16 %v2712, %v2711
      %s2719 = scalar_lea.vmem %s717, 1
      %v2720 = vld [vmem:[%s2719] sm:$0x1]
      %v2722 = vlaneseq
      %v2723 = vshrl.u32 %v2722, 7
      %v2724 = vsub.s32 0, %v2723
      %v2725 = vrot.slane %v2720, %v2724
      %v2731 = vunpack.c.l.b16 %v2714
      %v2732 = vunpack.c.l.b16 %v2715
      %v2733 = vunpack.c.l.b16 %v2716
      %v2734 = vunpack.c.l.b16 %v2717
      %v2735 = vpack.c.b16 %v2732, %v2731
      %v2736 = vpack.c.b16 %v2734, %v2733
      %v2740 = vsel %vm766, %v2718, 0
      %2742 = vmatprep.subr.bf16.mxu0 0
      %2743 = vmatpush1.bf16.msra.mxu0 %v2735
      %2744 = vmatprep.subr.bf16.mxu0 0
      %2745 = vmatpush1.bf16.msra.mxu0 %v2736
      %2746 = vmatprep.subr.bf16.mxu0 0
      %2747 = vmatpush1.bf16.msra.mxu0 0
      %2748 = vmatprep.subr.bf16.mxu0 0
      %2749 = vmatpush1.bf16.msra.mxu0 0
      %2750 = vmatprep.subr.bf16.mxu0 0
      %2751 = vmatpush1.bf16.msra.mxu0 0
      %2752 = vmatprep.subr.bf16.mxu0 0
      %2753 = vmatpush1.bf16.msra.mxu0 0
      %2754 = vmatprep.subr.bf16.mxu0 0
      %2755 = vmatpush1.bf16.msra.mxu0 0
      %2756 = vmatprep.subr.bf16.mxu0 0
      %2757 = vmatpush1.bf16.msra.mxu0 0
      %2758 = vmatprep.subr.bf16.mxu0 0
      %2759 = vmatpush1.bf16.msra.mxu0 0
      %2760 = vmatprep.subr.bf16.mxu0 0
      %2761 = vmatpush1.bf16.msra.mxu0 0
      %2762 = vmatprep.subr.bf16.mxu0 0
      %2763 = vmatpush1.bf16.msra.mxu0 0
      %2764 = vmatprep.subr.bf16.mxu0 0
      %2765 = vmatpush1.bf16.msra.mxu0 0
      %2766 = vmatprep.subr.bf16.mxu0 0
      %2767 = vmatpush1.bf16.msra.mxu0 0
      %2768 = vmatprep.subr.bf16.mxu0 0
      %2769 = vmatpush1.bf16.msra.mxu0 0
      %2770 = vmatprep.subr.bf16.mxu0 0
      %2771 = vmatpush1.bf16.msra.mxu0 0
      %2772 = vmatprep.subr.bf16.mxu0 0
      %2773 = vmatpush1.bf16.msra.mxu0 0
      %2774 = vmatprep.mubr.bf16.mxu0 0
      %2775 = vmatmul.mubr.bf16.gmra.mrb[0].mxu0 %v2740
      %v2776 = vpop.f32.mrb[0].mxu0
      %v2777 = vadd.f32 %v2725, %v2776
      %v2778 = vpop.f32.mrb[0].mxu0
      %v2779 = vpop.f32.mrb[0].mxu0
      %v2780 = vadd.f32 %v2725, %v2779
      %v2781 = vpop.f32.mrb[0].mxu0
      %2782 = vdwg.mxu0
      %v2783 = vadd.f32 %v2641, %v2777
      %v2784 = vadd.f32 %v2642, %v2780
      %s2785 = scalar_lea.vmem %s721, 2
      %v2786 = vld [vmem:[%s2785] sm:$0x1]
      %s2787 = scalar_lea.vmem %s725, 2
      %v2788 = vld [vmem:[%s2787] sm:$0x1]
      %v2789 = vsel %vm766, %v2783, 0.0
      %2790 = vadd.xlane.f32.xlu0 %v2789
      %v2791 = vpop.xlane.xlu0 %2790
      %v2792 = vsel %vm766, %v2784, 0.0
      %2793 = vadd.xlane.f32.xlu0 %v2792
      %v2794 = vpop.xlane.xlu0 %2793
      %v2795 = vmul.f32 %v2791, %v1654
      %v2796 = vmul.f32 %v2794, %v1654
      %v2797 = vsub.f32 %v2783, %v2795
      %v2798 = vsub.f32 %v2784, %v2796
      %v2799 = vmul.f32 %v2797, %v2797
      %v2800 = vmul.f32 %v2798, %v2798
      %v2801 = vsel %vm766, %v2799, 0.0
      %2802 = vadd.xlane.f32.xlu0 %v2801
      %v2803 = vpop.xlane.xlu0 %2802
      %v2804 = vsel %vm766, %v2800, 0.0
      %2805 = vadd.xlane.f32.xlu0 %v2804
      %v2806 = vpop.xlane.xlu0 %2805
      %v2807 = vmul.f32 %v2803, %v1654
      %v2808 = vmul.f32 %v2806, %v1654
      %v2809 = vadd.f32 %v2807, 1e-05
      %v2810 = vadd.f32 %v2808, 1e-05
      %v2811 = vrsqrt.pop %v2809
      %v2812 = vrsqrt.pop %v2810
      %v2813 = vmul.f32 %v2797, %v2811
      %v2814 = vmul.f32 %v2798, %v2812
      %v2816 = vlaneseq
      %v2817 = vshrl.u32 %v2816, 7
      %v2818 = vsub.s32 0, %v2817
      %v2819 = vrot.slane %v2786, %v2818
      %v2821 = vmul.f32 %v2813, %v2819
      %v2822 = vmul.f32 %v2814, %v2819
      %v2824 = vlaneseq
      %v2825 = vshrl.u32 %v2824, 7
      %v2826 = vsub.s32 0, %v2825
      %v2827 = vrot.slane %v2788, %v2826
      %v2829 = vadd.f32 %v2821, %v2827
      %v2830 = vadd.f32 %v2822, %v2827
      %2831 = vst.msk [vmem:[#allocation2] sm:$0xff] %vm766, %v2829
      %2832 = vst.msk [vmem:[#allocation2 + $0x8] sm:$0xff] %vm766, %v2830
      %p2833 = scmp.eq.s32.totalorder %s29, 1
      // Predicated region
      $region97: #{transformer_forward.5} parent=91 // pred_check
        %p2834 = pneg %p2833
      $region98: #{transformer_forward.5} parent=91 // pred_check_branch
        %2836 = sbr.rel (%p2834) target = $region100
      $region99: #{transformer_forward.5} parent=91 // pred_region
        %v2837 = vld [vmem:[%s14] sm:$0x1]
        %v2838 = vld [vmem:[%s15] sm:$0x1]
        %v2839 = vsel %vm766, %v2829, 0.0
        %2840 = vadd.xlane.f32.xlu0 %v2839
        %v2841 = vpop.xlane.xlu0 %2840
        %v2842 = vsel %vm766, %v2830, 0.0
        %2843 = vadd.xlane.f32.xlu0 %v2842
        %v2844 = vpop.xlane.xlu0 %2843
        %v2845 = vmul.f32 %v2841, %v1654
        %v2846 = vmul.f32 %v2844, %v1654
        %v2847 = vsub.f32 %v2829, %v2845
        %v2848 = vsub.f32 %v2830, %v2846
        %v2849 = vmul.f32 %v2847, %v2847
        %v2850 = vmul.f32 %v2848, %v2848
        %v2851 = vsel %vm766, %v2849, 0.0
        %2852 = vadd.xlane.f32.xlu0 %v2851
        %v2853 = vpop.xlane.xlu0 %2852
        %v2854 = vsel %vm766, %v2850, 0.0
        %2855 = vadd.xlane.f32.xlu0 %v2854
        %v2856 = vpop.xlane.xlu0 %2855
        %v2857 = vmul.f32 %v2853, %v1654
        %v2858 = vmul.f32 %v2856, %v1654
        %v2859 = vadd.f32 %v2857, 1e-05
        %v2860 = vadd.f32 %v2858, 1e-05
        %v2861 = vrsqrt.pop %v2859
        %v2862 = vrsqrt.pop %v2860
        %v2863 = vmul.f32 %v2847, %v2861
        %v2864 = vmul.f32 %v2848, %v2862
        %v2866 = vlaneseq
        %v2867 = vshrl.u32 %v2866, 7
        %v2868 = vsub.s32 0, %v2867
        %v2869 = vrot.slane %v2837, %v2868
        %v2871 = vmul.f32 %v2863, %v2869
        %v2872 = vmul.f32 %v2864, %v2869
        %v2874 = vlaneseq
        %v2875 = vshrl.u32 %v2874, 7
        %v2876 = vsub.s32 0, %v2875
        %v2877 = vrot.slane %v2838, %v2876
        %v2879 = vadd.f32 %v2871, %v2877
        %v2880 = vadd.f32 %v2872, %v2877
        %v2881 = vld [vmem:[%s16] sm:$0xf]
        %v2882 = vld [vmem:[%s16 + $0x4] sm:$0xf]
        %v2883 = vld [vmem:[%s16 + $0x8] sm:$0xf]
        %v2884 = vld [vmem:[%s16 + $0xc] sm:$0xf]
        %v2885 = vpack.c.bf16 %v2880, %v2879
        %v2886 = vld [vmem:[%s17] sm:$0x1]
        %v2888 = vlaneseq
        %v2889 = vshrl.u32 %v2888, 7
        %v2890 = vsub.s32 0, %v2889
        %v2891 = vrot.slane %v2886, %v2890
        %v2897 = vunpack.c.l.b16 %v2881
        %v2898 = vunpack.c.l.b16 %v2882
        %v2899 = vunpack.c.l.b16 %v2883
        %v2900 = vunpack.c.l.b16 %v2884
        %v2901 = vpack.c.b16 %v2898, %v2897
        %v2902 = vpack.c.b16 %v2900, %v2899
        %v2906 = vsel %vm766, %v2885, 0
        %2908 = vmatprep.subr.bf16.mxu0 0
        %2909 = vmatpush1.bf16.msra.mxu0 %v2901
        %2910 = vmatprep.subr.bf16.mxu0 0
        %2911 = vmatpush1.bf16.msra.mxu0 %v2902
        %2912 = vmatprep.subr.bf16.mxu0 0
        %2913 = vmatpush1.bf16.msra.mxu0 0
        %2914 = vmatprep.subr.bf16.mxu0 0
        %2915 = vmatpush1.bf16.msra.mxu0 0
        %2916 = vmatprep.subr.bf16.mxu0 0
        %2917 = vmatpush1.bf16.msra.mxu0 0
        %2918 = vmatprep.subr.bf16.mxu0 0
        %2919 = vmatpush1.bf16.msra.mxu0 0
        %2920 = vmatprep.subr.bf16.mxu0 0
        %2921 = vmatpush1.bf16.msra.mxu0 0
        %2922 = vmatprep.subr.bf16.mxu0 0
        %2923 = vmatpush1.bf16.msra.mxu0 0
        %2924 = vmatprep.subr.bf16.mxu0 0
        %2925 = vmatpush1.bf16.msra.mxu0 0
        %2926 = vmatprep.subr.bf16.mxu0 0
        %2927 = vmatpush1.bf16.msra.mxu0 0
        %2928 = vmatprep.subr.bf16.mxu0 0
        %2929 = vmatpush1.bf16.msra.mxu0 0
        %2930 = vmatprep.subr.bf16.mxu0 0
        %2931 = vmatpush1.bf16.msra.mxu0 0
        %2932 = vmatprep.subr.bf16.mxu0 0
        %2933 = vmatpush1.bf16.msra.mxu0 0
        %2934 = vmatprep.subr.bf16.mxu0 0
        %2935 = vmatpush1.bf16.msra.mxu0 0
        %2936 = vmatprep.subr.bf16.mxu0 0
        %2937 = vmatpush1.bf16.msra.mxu0 0
        %2938 = vmatprep.subr.bf16.mxu0 0
        %2939 = vmatpush1.bf16.msra.mxu0 0
        %2940 = vmatprep.mubr.bf16.mxu0 0
        %2941 = vmatmul.mubr.bf16.gmra.mrb[0].mxu0 %v2906
        %v2942 = vpop.f32.mrb[0].mxu0
        %v2943 = vadd.f32 %v2891, %v2942
        %v2944 = vpop.f32.mrb[0].mxu0
        %v2945 = vpop.f32.mrb[0].mxu0
        %v2946 = vadd.f32 %v2891, %v2945
        %v2947 = vpop.f32.mrb[0].mxu0
        %2948 = vdwg.mxu0
        %2949 = vst.msk [vmem:[%s18] sm:$0xff] %vm766, %v2943
        %2950 = vst.msk [vmem:[%s18 + $0x8] sm:$0xff] %vm766, %v2946
      $region100: #{transformer_forward.5} parent=91 // pred_fallthru
        _
      // Predicated region
      $region101: #{transformer_forward.5} parent=91 // pred_check
        %p2951 = pneg %p470
      $region102: #{transformer_forward.5} parent=91 // pred_check_branch
        %2953 = sbr.rel (%p2951) target = $region104
      $region103: #{transformer_forward.5} parent=91 // pred_region
        _
      $region104: #{transformer_forward.5} parent=91 // pred_fallthru
        _
      // Predicated region
      $region105: #{transformer_forward.5} parent=91 // pred_check
        %p2954 = pneg %p470
      $region106: #{transformer_forward.5} parent=91 // pred_check_branch
        %2956 = sbr.rel (%p2954) target = $region108
      $region107: #{transformer_forward.5} parent=91 // pred_region
        _
      $region108: #{transformer_forward.5} parent=91 // pred_fallthru
        _
    $region92: #{transformer_forward.5} parent=5 // pred_fallthru
      _
    %p2957 = scmp.le.s32.totalorder 2, %s24
    // Predicated region
    $region109: #{transformer_forward.5} parent=5 // pred_check
      %p2958 = pneg %p2957
    $region110: #{transformer_forward.5} parent=5 // pred_check_branch
      %2960 = sbr.rel (%p2958) target = $region112
    $region111: #{transformer_forward.5} parent=5 // pred_region
      %s2961 = ssub.s32 %s24, 2
    $region112: #{transformer_forward.5} parent=5 // pred_fallthru
      _
  $region6: #{transformer_forward.5} parent=0 // loop_footer
    %s28 = sadd.s32 1, %s24
  $region7: #{transformer_forward.5} parent=0 // loop_footer_branch
    %23 = sbr.rel target = $region3
  $region8: #{transformer_forward.5} parent=0 // loop_exit
    _

</llo_original>
